<compile_context>
chip_gen: v6e
topology: v6e:2x2x1
jax: 0.10.0
libtpu: 0.0.40
codegen_flags: <defaults>
</compile_context>

<pallas_src>
import math

import numpy as np
import jax
import jax.numpy as jnp
from jax.experimental import pallas as pl
from jax.experimental.pallas import tpu as pltpu  # noqa: F401  (TPU backend)

# ------------------------- small TimeLLM-consistent config -------------------------
B, T, K = 2, 32, 4                  # batch, seq_len, number of series
PRED_LEN = 8
PATCH_LEN, STRIDE = 8, 4
PATCH_NUMS = (T - PATCH_LEN) // STRIDE + 2      # = 8
D_MODEL = 32
N_HEADS = 4
D_FF = 32                            # TimeLLM passes d_ff as d_keys of ReprogrammingLayer
D_LLM = 64
VOCAB = 256
NUM_TOKENS = 128
PROMPT_LEN = 8
LLM_HEADS = 4
HEAD_NF = D_FF * PATCH_NUMS          # 256
LSEQ = PROMPT_LEN + PATCH_NUMS       # 16
BN = B * K                           # 8 independent series rows
NPATCH_ROWS = BN * PATCH_NUMS        # 64  (patch rows, l-major: r = l*BN + series)
NSEQ_ROWS = BN * LSEQ                # 128 (rows indexed series*LSEQ + t)
EH = D_LLM // LLM_HEADS              # 16
HQ = N_HEADS * D_FF                  # 128 query feature width of reprogramming
OUT_PAD = 128                        # lane-padded FlattenHead output width
EPS = 1e-5

# ------ packed-slab row offsets (width-64 slab, width-128 slab, width-256 slab) -----
OFF_WPV, OFF_SEQBASE, OFF_ESC, OFF_AOW, OFF_FC2 = 0, 512, 640, 768, 832
S64_ROWS = 1088
OFF_G, OFF_CBIAS, OFF_HW = 0, 64, 192
S128_ROWS = 704
OFF_QKVW, OFF_FC1 = 0, 64
S256_ROWS = 128
VEC_W = 256
(VROW_RQB, VROW_LN1G, VROW_LN1B, VROW_QKVB, VROW_AOB, VROW_LN2G, VROW_LN2B,
 VROW_FC1B, VROW_FC2B, VROW_LNFG, VROW_LNFB, VROW_HEADB) = range(12)
VEC_ROWS = 12


# --------------------- host-side constant: fold pad+unfold+circular conv ------------
def _build_conv_selector():
    """sel[t, l, kk, c] = 1 if patch position (l, tap kk, in-chan c) reads x[:, t]."""
    sel = np.zeros((T, PATCH_NUMS, 3, PATCH_LEN), np.float32)
    for l in range(PATCH_NUMS):
        for kk in range(3):                      # circular conv taps (pad=1)
            for c in range(PATCH_LEN):
                s = ((l + kk - 1) % PATCH_NUMS) * STRIDE + c
                t = min(s, T - 1)                # replication pad of the last value
                sel[t, l, kk, c] += 1.0
    return sel


_CONV_SEL = _build_conv_selector()


# ----------------------------------- fused kernel -----------------------------------
def _fused_timellm_kernel(x_ref, wq_ref, kbd_ref, s64_ref, s128_ref, s256_ref,
                          vec_ref, out_ref):
    f32 = jnp.float32
    NN = (((1,), (0,)), ((), ()))
    NT = (((1,), (1,)), ((), ()))        # q @ k^T without an explicit transpose

    def mm(a, b, dn=NN):
        return jax.lax.dot_general(a, b, dn, preferred_element_type=f32)

    def layer_norm(v, g, b):
        m_ = jnp.mean(v, axis=-1, keepdims=True)
        var_ = jnp.mean((v - m_) ** 2, axis=-1, keepdims=True)
        return (v - m_) * jax.lax.rsqrt(var_ + EPS) * g + b

    def softmax_rows(s):
        m_ = jnp.max(s, axis=-1, keepdims=True)
        p = jnp.exp(s - m_)
        return p / jnp.sum(p, axis=-1, keepdims=True)

    vec = vec_ref[...]                                          # (12, 256) packed row vectors

    # ---- RevIN 'norm' (per series row, unbiased=False, eps inside sqrt) ----
    x = x_ref[...]                                              # (BN, T)
    mu = jnp.mean(x, axis=-1, keepdims=True)
    var = jnp.mean((x - mu) ** 2, axis=-1, keepdims=True)
    sd = jnp.sqrt(var + EPS)
    xn = (x - mu) * jax.lax.rsqrt(var + EPS)                    # (BN, T)

    # ---- patch embedding + reprogramming query projection, folded host-side ----
    # qw[b, l*HQ + j] = (patch-embed then Wq) feature j of patch (b, l)
    qw = mm(xn, wq_ref[...])                                    # (BN, PATCH_NUMS*HQ) = (8, 1024)
    q = jnp.concatenate([qw[:, l * HQ:(l + 1) * HQ] for l in range(PATCH_NUMS)],
                        axis=0)                                 # (64, 128), rows r = l*BN + b
    q = q + vec[VROW_RQB:VROW_RQB + 1, :HQ]                     # rq_b

    # ---- reprogramming cross-attention: precomputed block-diag K / fused V*out-proj ----
    scores = mm(q, kbd_ref[...])                                # (64, H*S) = (64, 512), scale folded
    p_all = jnp.concatenate(
        [softmax_rows(scores[:, h * NUM_TOKENS:(h + 1) * NUM_TOKENS])
         for h in range(N_HEADS)], axis=1)                      # (64, 512)
    enc_rep = mm(p_all, s64_ref[OFF_WPV:OFF_WPV + 512, :])      # (64, D_LLM) = heads @ ro_w

    # ---- LLM input rows: precomputed prompt/bias base + scattered reprogrammed patches ----
    seq = (s64_ref[OFF_SEQBASE:OFF_SEQBASE + NSEQ_ROWS, :] +
           mm(s64_ref[OFF_ESC:OFF_ESC + NSEQ_ROWS, :], enc_rep))          # (128, 64)

    # ---- synthetic causal pre-LN transformer block (stand-in for frozen GPT-2) ----
    # TODO(synk): frozen pretrained GPT-2/LLaMA backbone replaced by this block.
    hn = layer_norm(seq, vec[VROW_LN1G:VROW_LN1G + 1, :D_LLM],
                    vec[VROW_LN1B:VROW_LN1B + 1, :D_LLM])
    qkv = mm(hn, s256_ref[OFF_QKVW:OFF_QKVW + D_LLM, :]) + vec[VROW_QKVB:VROW_QKVB + 1, :]
    cbias = s128_ref[OFF_CBIAS:OFF_CBIAS + NSEQ_ROWS, :]        # (128,128) additive causal mask
    ao_w = s64_ref[OFF_AOW:OFF_AOW + D_LLM, :]                  # (64, 64)
    l_scale = 1.0 / math.sqrt(EH)
    attn = None
    for h in range(LLM_HEADS):
        qh = qkv[:, h * EH:(h + 1) * EH]
        kh = qkv[:, D_LLM + h * EH:D_LLM + (h + 1) * EH]
        vh = qkv[:, 2 * D_LLM + h * EH:2 * D_LLM + (h + 1) * EH]
        p = softmax_rows(mm(qh, kh, NT) * l_scale + cbias)      # (128, 128)
        contrib = mm(mm(p, vh), ao_w[h * EH:(h + 1) * EH, :])   # fold out-proj, no concat
        attn = contrib if attn is None else attn + contrib
    h1 = seq + attn + vec[VROW_AOB:VROW_AOB + 1, :D_LLM]

    hn2 = layer_norm(h1, vec[VROW_LN2G:VROW_LN2G + 1, :D_LLM],
                     vec[VROW_LN2B:VROW_LN2B + 1, :D_LLM])
    ff = mm(hn2, s256_ref[OFF_FC1:OFF_FC1 + D_LLM, :]) + vec[VROW_FC1B:VROW_FC1B + 1, :]
    gc = math.sqrt(2.0 / math.pi)
    ff = 0.5 * ff * (1.0 + jnp.tanh(gc * (ff + 0.044715 * ff * ff * ff)))   # GELU (tanh / gelu_new)
    h2 = h1 + mm(ff, s64_ref[OFF_FC2:OFF_FC2 + 4 * D_LLM, :]) + vec[VROW_FC2B:VROW_FC2B + 1, :D_LLM]
    dec = layer_norm(h2, vec[VROW_LNFG:VROW_LNFG + 1, :D_LLM],
                     vec[VROW_LNFB:VROW_LNFB + 1, :D_LLM])      # (128, D_LLM)

    # ---- FlattenHead: one gather matmul + per-patch weight blocks summed ----
    gathered = mm(s128_ref[OFF_G:OFF_G + NPATCH_ROWS, :], dec)  # (64, 64), rows r = l*BN + b
    y = vec[VROW_HEADB:VROW_HEADB + 1, :OUT_PAD]                # head bias, lane padded
    for l in range(PATCH_NUMS):
        hw_l = s128_ref[OFF_HW + l * D_LLM:OFF_HW + (l + 1) * D_LLM, :]     # (64, 128)
        y = y + mm(gathered[l * BN:(l + 1) * BN, :], hw_l)      # (8, 128)
    # RevIN 'denorm' (padded lanes beyond PRED_LEN hold mu-garbage; wrapper slices)
    out_ref[...] = y * sd + mu


# ----------------------------- parameter construction -------------------------------
def init_params(key):
    ks = jax.random.split(key, 24)
    n = lambda k, s, sc=0.02: (sc * jax.random.normal(k, s)).astype(jnp.float32)
    z = lambda s: jnp.zeros(s, jnp.float32)
    o = lambda s: jnp.ones(s, jnp.float32)
    p = {
        # synthetic stand-ins for pretrained LLM embeddings / tokenized prompt
        "word_emb": n(ks[0], (VOCAB, D_LLM)),
        "prompt_emb": n(ks[1], (PROMPT_LEN, D_LLM)),
        # mapping_layer: Linear(vocab_size -> num_tokens)
        "map_w": n(ks[2], (VOCAB, NUM_TOKENS)), "map_b": z((NUM_TOKENS,)),
        # TokenEmbedding conv1d (d_model, patch_len, 3) stored as (3, patch_len, d_model)
        "tok_w": n(ks[3], (3, PATCH_LEN, D_MODEL)),
        # ReprogrammingLayer (d_keys = d_ff)
        "rq_w": n(ks[4], (D_MODEL, N_HEADS * D_FF)), "rq_b": z((N_HEADS * D_FF,)),
        "rk_w": n(ks[5], (D_LLM, N_HEADS * D_FF)), "rk_b": z((N_HEADS * D_FF,)),
        "rv_w": n(ks[6], (D_LLM, N_HEADS * D_FF)), "rv_b": z((N_HEADS * D_FF,)),
        "ro_w": n(ks[7], (N_HEADS * D_FF, D_LLM)), "ro_b": z((D_LLM,)),
        # synthetic single-block causal transformer (stand-in for frozen GPT-2)
        "ln1_g": o((D_LLM,)), "ln1_b": z((D_LLM,)),
        "qkv_w": n(ks[8], (D_LLM, 3 * D_LLM)), "qkv_b": z((3 * D_LLM,)),
        "ao_w": n(ks[9], (D_LLM, D_LLM)), "ao_b": z((D_LLM,)),
        "ln2_g": o((D_LLM,)), "ln2_b": z((D_LLM,)),
        "fc1_w": n(ks[10], (D_LLM, 4 * D_LLM)), "fc1_b": z((4 * D_LLM,)),
        "fc2_w": n(ks[11], (4 * D_LLM, D_LLM)), "fc2_b": z((D_LLM,)),
        "lnf_g": o((D_LLM,)), "lnf_b": z((D_LLM,)),
        # FlattenHead: Linear(d_ff * patch_nums -> pred_len)
        "head_w": n(ks[12], (HEAD_NF, PRED_LEN)), "head_b": z((PRED_LEN,)),
    }
    return p


# ------------------------- ONE-TIME host-side precomputation ------------------------
def prepare_params(params):
    """Fold / pack all input-independent work into 6 device constants (runs once)."""
    p = {k: np.asarray(v, np.float32) for k, v in params.items()}

    # fold replication pad + unfold + circular conv, then fold the query projection
    wfold = np.einsum("tlkc,kcd->tld", _CONV_SEL, p["tok_w"])            # (T, L, D_MODEL)
    wq_fold = np.einsum("tld,dj->tlj", wfold, p["rq_w"]).reshape(T, PATCH_NUMS * HQ)

    # source embeddings + K/V of the reprogramming layer (input independent)
    src = p["map_w"].T @ p["word_emb"] + p["map_b"][:, None]             # (NUM_TOKENS, D_LLM)
    kmat = src @ p["rk_w"] + p["rk_b"]                                   # (S, H*E)
    vmat = src @ p["rv_w"] + p["rv_b"]                                   # (S, H*E)
    scale = 1.0 / math.sqrt(D_FF)
    kbd = np.zeros((HQ, N_HEADS * NUM_TOKENS), np.float32)               # block-diag K^T, scaled
    wpv = np.zeros((N_HEADS * NUM_TOKENS, D_LLM), np.float32)            # fused V @ ro_w
    for h in range(N_HEADS):
        kh = kmat[:, h * D_FF:(h + 1) * D_FF]
        vh = vmat[:, h * D_FF:(h + 1) * D_FF]
        kbd[h * D_FF:(h + 1) * D_FF, h * NUM_TOKENS:(h + 1) * NUM_TOKENS] = kh.T * scale
        wpv[h * NUM_TOKENS:(h + 1) * NUM_TOKENS, :] = vh @ p["ro_w"][h * D_FF:(h + 1) * D_FF, :]

    # LLM-input base (prompt embeddings + ro_b on patch rows) and patch-scatter one-hot
    seq_base = np.zeros((NSEQ_ROWS, D_LLM), np.float32)
    e_sc = np.zeros((NSEQ_ROWS, NPATCH_ROWS), np.float32)
    for s_ in range(BN):
        for t in range(LSEQ):
            row = s_ * LSEQ + t
            if t < PROMPT_LEN:
                seq_base[row, :] = p["prompt_emb"][t, :]
            else:
                seq_base[row, :] = p["ro_b"]
                e_sc[row, (t - PROMPT_LEN) * BN + s_] = 1.0

    # additive block-diagonal causal mask
    ii = np.arange(NSEQ_ROWS)[:, None]
    jj = np.arange(NSEQ_ROWS)[None, :]
    cbias = np.where((ii // LSEQ == jj // LSEQ) & (jj <= ii), 0.0, -1e30).astype(np.float32)

    # FlattenHead: gather one-hot + per-patch weight blocks (PyTorch flatten is d-major)
    g_sel = np.zeros((NPATCH_ROWS, NSEQ_ROWS), np.float32)
    hw_stack = np.zeros((PATCH_NUMS * D_LLM, OUT_PAD), np.float32)
    for l in range(PATCH_NUMS):
        for s_ in range(BN):
            g_sel[l * BN + s_, s_ * LSEQ + PROMPT_LEN + l] = 1.0
        hw_stack[l * D_LLM:l * D_LLM + D_FF, :PRED_LEN] = p["head_w"][l::PATCH_NUMS, :]

    # pack matrices into per-lane-width slabs (few prologue DMAs instead of ~28)
    qkv_pad = np.zeros((D_LLM, 4 * D_LLM), np.float32)
    qkv_pad[:, :3 * D_LLM] = p["qkv_w"]
    slab64 = np.concatenate([wpv, seq_base, e_sc, p["ao_w"], p["fc2_w"]], axis=0)
    slab128 = np.concatenate([g_sel, cbias, hw_stack], axis=0)
    slab256 = np.concatenate([qkv_pad, p["fc1_w"]], axis=0)
    assert slab64.shape == (S64_ROWS, D_LLM)
    assert slab128.shape == (S128_ROWS, 128)
    assert slab256.shape == (S256_ROWS, 256)

    # pack all (1,N) row vectors into one (12, 256) slab
    vecs = np.zeros((VEC_ROWS, VEC_W), np.float32)
    vecs[VROW_RQB, :HQ] = p["rq_b"]
    vecs[VROW_LN1G, :D_LLM] = p["ln1_g"]
    vecs[VROW_LN1B, :D_LLM] = p["ln1_b"]
    vecs[VROW_QKVB, :3 * D_LLM] = p["qkv_b"]
    vecs[VROW_AOB, :D_LLM] = p["ao_b"]
    vecs[VROW_LN2G, :D_LLM] = p["ln2_g"]
    vecs[VROW_LN2B, :D_LLM] = p["ln2_b"]
    vecs[VROW_FC1B, :4 * D_LLM] = p["fc1_b"]
    vecs[VROW_FC2B, :D_LLM] = p["fc2_b"]
    vecs[VROW_LNFG, :D_LLM] = p["lnf_g"]
    vecs[VROW_LNFB, :D_LLM] = p["lnf_b"]
    vecs[VROW_HEADB, :PRED_LEN] = p["head_b"]

    return tuple(jnp.asarray(a) for a in (wq_fold, kbd, slab64, slab128, slab256, vecs))


# ---------------------------------- forward pass ------------------------------------
@jax.jit
def timellm_forward(prepared, x_enc, x_mark_enc=None, x_dec=None, x_mark_dec=None):
    """x_enc: (B, T, K) float32 -> (B, PRED_LEN, K). Single fused Pallas kernel."""
    wq_fold, kbd, slab64, slab128, slab256, vecs = prepared
    B_, T_, K_ = x_enc.shape
    # rearrange 'b l k -> (b k) l' (the trailing singleton is implicit)
    x2d = jnp.transpose(x_enc, (0, 2, 1)).reshape(B_ * K_, T_).astype(jnp.float32)
    y_pad = pl.pallas_call(
        _fused_timellm_kernel,
        out_shape=jax.ShapeDtypeStruct((B_ * K_, OUT_PAD), jnp.float32),
        cost_estimate=pl.CostEstimate(flops=34_000_000, transcendentals=131_072,
                                      bytes_accessed=1_300_000),
    )(x2d, wq_fold, kbd, slab64, slab128, slab256, vecs)
    y = y_pad[:, :PRED_LEN]                                     # drop lane padding
    # rearrange '(b k) l 1 -> b l k'
    return jnp.transpose(y.reshape(B_, K_, PRED_LEN), (0, 2, 1))


# -------------------------------------- main ----------------------------------------
if __name__ == "__main__":
    key = jax.random.PRNGKey(0)
    k_par, k_x, k_xd = jax.random.split(key, 3)
    params = init_params(k_par)
    prepared = prepare_params(params)        # one-time host-side precomputation

    x_enc = jax.random.normal(k_x, (B, T, K), dtype=jnp.float32)
    x_mark_enc = jnp.zeros((B, T, 4), jnp.float32)             # unused by the forecast path
    x_dec = jax.random.normal(k_xd, (B, PRED_LEN, K), dtype=jnp.float32)  # unused
    x_mark_dec = jnp.zeros((B, PRED_LEN, 4), jnp.float32)      # unused

    out = timellm_forward(prepared, x_enc, x_mark_enc, x_dec, x_mark_dec)
    out = jax.block_until_ready(out)
    assert out.shape == (B, PRED_LEN, K), out.shape
    assert bool(jnp.all(jnp.isfinite(out)))
    print("KERNEL_OK")
</pallas_src>

<mosaic_0001>
module attributes {stable_mosaic.version = 11 : i64} {
  func.func @_fused_timellm_kernel(%arg0: memref<8x32xf32, #tpu.memory_space<vmem>>, %arg1: memref<32x1024xf32, #tpu.memory_space<vmem>>, %arg2: memref<128x512xf32, #tpu.memory_space<vmem>>, %arg3: memref<1088x64xf32, #tpu.memory_space<vmem>>, %arg4: memref<704x128xf32, #tpu.memory_space<vmem>>, %arg5: memref<128x256xf32, #tpu.memory_space<vmem>>, %arg6: memref<12x256xf32, #tpu.memory_space<vmem>>, %arg7: memref<8x128xf32, #tpu.memory_space<vmem>>) attributes {dimension_semantics = [], scalar_prefetch = 0 : i64, scratch_operands = 0 : i64, tpu.core_type = #tpu.core_type<tc>} {
    %c0 = arith.constant 0 : index
    %c0_0 = arith.constant 0 : index
    %0 = vector.load %arg6[%c0, %c0_0] : memref<12x256xf32, #tpu.memory_space<vmem>>, vector<12x256xf32>
    %c0_1 = arith.constant 0 : index
    %c0_2 = arith.constant 0 : index
    %1 = vector.load %arg0[%c0_1, %c0_2] : memref<8x32xf32, #tpu.memory_space<vmem>>, vector<8x32xf32>
    %cst = arith.constant dense<0.000000e+00> : vector<8xf32>
    %2 = vector.multi_reduction <add>, %1, %cst [1] : vector<8x32xf32> to vector<8xf32>
    %3 = vector.shape_cast %2 : vector<8xf32> to vector<8x1xf32>
    %cst_3 = arith.constant 3.200000e+01 : f32
    %4 = vector.broadcast %cst_3 : f32 to vector<8x1xf32>
    %5 = arith.divf %3, %4 : vector<8x1xf32>
    %6 = vector.broadcast %5 : vector<8x1xf32> to vector<8x32xf32>
    %7 = arith.subf %1, %6 : vector<8x32xf32>
    %8 = arith.mulf %7, %7 : vector<8x32xf32>
    %cst_4 = arith.constant dense<0.000000e+00> : vector<8xf32>
    %9 = vector.multi_reduction <add>, %8, %cst_4 [1] : vector<8x32xf32> to vector<8xf32>
    %10 = vector.shape_cast %9 : vector<8xf32> to vector<8x1xf32>
    %cst_5 = arith.constant 3.200000e+01 : f32
    %11 = vector.broadcast %cst_5 : f32 to vector<8x1xf32>
    %12 = arith.divf %10, %11 : vector<8x1xf32>
    %cst_6 = arith.constant 9.99999974E-6 : f32
    %13 = vector.broadcast %cst_6 : f32 to vector<8x1xf32>
    %14 = arith.addf %12, %13 : vector<8x1xf32>
    %15 = math.sqrt %14 : vector<8x1xf32>
    %16 = vector.broadcast %5 : vector<8x1xf32> to vector<8x32xf32>
    %17 = arith.subf %1, %16 : vector<8x32xf32>
    %cst_7 = arith.constant 9.99999974E-6 : f32
    %18 = vector.broadcast %cst_7 : f32 to vector<8x1xf32>
    %19 = arith.addf %12, %18 : vector<8x1xf32>
    %20 = math.rsqrt %19 : vector<8x1xf32>
    %21 = vector.broadcast %20 : vector<8x1xf32> to vector<8x32xf32>
    %22 = arith.mulf %17, %21 : vector<8x32xf32>
    %c0_8 = arith.constant 0 : index
    %c0_9 = arith.constant 0 : index
    %23 = vector.load %arg1[%c0_8, %c0_9] : memref<32x1024xf32, #tpu.memory_space<vmem>>, vector<32x1024xf32>
    %cst_10 = arith.constant dense<0.000000e+00> : vector<8x1024xf32>
    %24 = tpu.matmul %22, %23, %cst_10 {dimension_numbers = #tpu.dot_dimension_numbers<[1], [0], [0], [1], [0, 0, 1, 1], [], []>} : vector<8x32xf32>, vector<32x1024xf32>, vector<8x1024xf32> -> vector<8x1024xf32>
    %25 = vector.extract_strided_slice %24 {offsets = [0, 0], sizes = [8, 128], strides = [1, 1]} : vector<8x1024xf32> to vector<8x128xf32>
    %26 = vector.extract_strided_slice %24 {offsets = [0, 128], sizes = [8, 128], strides = [1, 1]} : vector<8x1024xf32> to vector<8x128xf32>
    %27 = vector.extract_strided_slice %24 {offsets = [0, 256], sizes = [8, 128], strides = [1, 1]} : vector<8x1024xf32> to vector<8x128xf32>
    %28 = vector.extract_strided_slice %24 {offsets = [0, 384], sizes = [8, 128], strides = [1, 1]} : vector<8x1024xf32> to vector<8x128xf32>
    %29 = vector.extract_strided_slice %24 {offsets = [0, 512], sizes = [8, 128], strides = [1, 1]} : vector<8x1024xf32> to vector<8x128xf32>
    %30 = vector.extract_strided_slice %24 {offsets = [0, 640], sizes = [8, 128], strides = [1, 1]} : vector<8x1024xf32> to vector<8x128xf32>
    %31 = vector.extract_strided_slice %24 {offsets = [0, 768], sizes = [8, 128], strides = [1, 1]} : vector<8x1024xf32> to vector<8x128xf32>
    %32 = vector.extract_strided_slice %24 {offsets = [0, 896], sizes = [8, 128], strides = [1, 1]} : vector<8x1024xf32> to vector<8x128xf32>
    %33 = tpu.concatenate %25, %26, %27, %28, %29, %30, %31, %32 in 0 : vector<8x128xf32>, vector<8x128xf32>, vector<8x128xf32>, vector<8x128xf32>, vector<8x128xf32>, vector<8x128xf32>, vector<8x128xf32>, vector<8x128xf32> -> vector<64x128xf32>
    %34 = vector.extract_strided_slice %0 {offsets = [0, 0], sizes = [1, 128], strides = [1, 1]} : vector<12x256xf32> to vector<1x128xf32>
    %35 = vector.broadcast %34 : vector<1x128xf32> to vector<64x128xf32>
    %36 = arith.addf %33, %35 : vector<64x128xf32>
    %c0_11 = arith.constant 0 : index
    %c0_12 = arith.constant 0 : index
    %37 = vector.load %arg2[%c0_11, %c0_12] : memref<128x512xf32, #tpu.memory_space<vmem>>, vector<128x512xf32>
    %cst_13 = arith.constant dense<0.000000e+00> : vector<64x512xf32>
    %38 = tpu.matmul %36, %37, %cst_13 {dimension_numbers = #tpu.dot_dimension_numbers<[1], [0], [0], [1], [0, 0, 1, 1], [], []>} : vector<64x128xf32>, vector<128x512xf32>, vector<64x512xf32> -> vector<64x512xf32>
    %39 = vector.extract_strided_slice %38 {offsets = [0, 0], sizes = [64, 128], strides = [1, 1]} : vector<64x512xf32> to vector<64x128xf32>
    %cst_14 = arith.constant dense<0xFF800000> : vector<64xf32>
    %40 = vector.multi_reduction <maximumf>, %39, %cst_14 [1] : vector<64x128xf32> to vector<64xf32>
    %41 = vector.shape_cast %40 : vector<64xf32> to vector<64x1xf32>
    %42 = vector.broadcast %41 : vector<64x1xf32> to vector<64x128xf32>
    %43 = arith.subf %39, %42 : vector<64x128xf32>
    %44 = math.exp %43 : vector<64x128xf32>
    %cst_15 = arith.constant dense<0.000000e+00> : vector<64xf32>
    %45 = vector.multi_reduction <add>, %44, %cst_15 [1] : vector<64x128xf32> to vector<64xf32>
    %46 = vector.shape_cast %45 : vector<64xf32> to vector<64x1xf32>
    %47 = vector.broadcast %46 : vector<64x1xf32> to vector<64x128xf32>
    %48 = arith.divf %44, %47 : vector<64x128xf32>
    %49 = vector.extract_strided_slice %38 {offsets = [0, 128], sizes = [64, 128], strides = [1, 1]} : vector<64x512xf32> to vector<64x128xf32>
    %cst_16 = arith.constant dense<0xFF800000> : vector<64xf32>
    %50 = vector.multi_reduction <maximumf>, %49, %cst_16 [1] : vector<64x128xf32> to vector<64xf32>
    %51 = vector.shape_cast %50 : vector<64xf32> to vector<64x1xf32>
    %52 = vector.broadcast %51 : vector<64x1xf32> to vector<64x128xf32>
    %53 = arith.subf %49, %52 : vector<64x128xf32>
    %54 = math.exp %53 : vector<64x128xf32>
    %cst_17 = arith.constant dense<0.000000e+00> : vector<64xf32>
    %55 = vector.multi_reduction <add>, %54, %cst_17 [1] : vector<64x128xf32> to vector<64xf32>
    %56 = vector.shape_cast %55 : vector<64xf32> to vector<64x1xf32>
    %57 = vector.broadcast %56 : vector<64x1xf32> to vector<64x128xf32>
    %58 = arith.divf %54, %57 : vector<64x128xf32>
    %59 = vector.extract_strided_slice %38 {offsets = [0, 256], sizes = [64, 128], strides = [1, 1]} : vector<64x512xf32> to vector<64x128xf32>
    %cst_18 = arith.constant dense<0xFF800000> : vector<64xf32>
    %60 = vector.multi_reduction <maximumf>, %59, %cst_18 [1] : vector<64x128xf32> to vector<64xf32>
    %61 = vector.shape_cast %60 : vector<64xf32> to vector<64x1xf32>
    %62 = vector.broadcast %61 : vector<64x1xf32> to vector<64x128xf32>
    %63 = arith.subf %59, %62 : vector<64x128xf32>
    %64 = math.exp %63 : vector<64x128xf32>
    %cst_19 = arith.constant dense<0.000000e+00> : vector<64xf32>
    %65 = vector.multi_reduction <add>, %64, %cst_19 [1] : vector<64x128xf32> to vector<64xf32>
    %66 = vector.shape_cast %65 : vector<64xf32> to vector<64x1xf32>
    %67 = vector.broadcast %66 : vector<64x1xf32> to vector<64x128xf32>
    %68 = arith.divf %64, %67 : vector<64x128xf32>
    %69 = vector.extract_strided_slice %38 {offsets = [0, 384], sizes = [64, 128], strides = [1, 1]} : vector<64x512xf32> to vector<64x128xf32>
    %cst_20 = arith.constant dense<0xFF800000> : vector<64xf32>
    %70 = vector.multi_reduction <maximumf>, %69, %cst_20 [1] : vector<64x128xf32> to vector<64xf32>
    %71 = vector.shape_cast %70 : vector<64xf32> to vector<64x1xf32>
    %72 = vector.broadcast %71 : vector<64x1xf32> to vector<64x128xf32>
    %73 = arith.subf %69, %72 : vector<64x128xf32>
    %74 = math.exp %73 : vector<64x128xf32>
    %cst_21 = arith.constant dense<0.000000e+00> : vector<64xf32>
    %75 = vector.multi_reduction <add>, %74, %cst_21 [1] : vector<64x128xf32> to vector<64xf32>
    %76 = vector.shape_cast %75 : vector<64xf32> to vector<64x1xf32>
    %77 = vector.broadcast %76 : vector<64x1xf32> to vector<64x128xf32>
    %78 = arith.divf %74, %77 : vector<64x128xf32>
    %79 = tpu.concatenate %48, %58, %68, %78 in 1 : vector<64x128xf32>, vector<64x128xf32>, vector<64x128xf32>, vector<64x128xf32> -> vector<64x512xf32>
    %c0_22 = arith.constant 0 : index
    %c0_23 = arith.constant 0 : index
    %80 = vector.load %arg3[%c0_22, %c0_23] : memref<1088x64xf32, #tpu.memory_space<vmem>>, vector<512x64xf32>
    %cst_24 = arith.constant dense<0.000000e+00> : vector<64x64xf32>
    %81 = tpu.matmul %79, %80, %cst_24 {dimension_numbers = #tpu.dot_dimension_numbers<[1], [0], [0], [1], [0, 0, 1, 1], [], []>} : vector<64x512xf32>, vector<512x64xf32>, vector<64x64xf32> -> vector<64x64xf32>
    %c512 = arith.constant 512 : index
    %c0_25 = arith.constant 0 : index
    %82 = vector.load %arg3[%c512, %c0_25] : memref<1088x64xf32, #tpu.memory_space<vmem>>, vector<128x64xf32>
    %c640 = arith.constant 640 : index
    %c0_26 = arith.constant 0 : index
    %83 = vector.load %arg3[%c640, %c0_26] : memref<1088x64xf32, #tpu.memory_space<vmem>>, vector<128x64xf32>
    %cst_27 = arith.constant dense<0.000000e+00> : vector<128x64xf32>
    %84 = tpu.matmul %83, %81, %cst_27 {dimension_numbers = #tpu.dot_dimension_numbers<[1], [0], [0], [1], [0, 0, 1, 1], [], []>} : vector<128x64xf32>, vector<64x64xf32>, vector<128x64xf32> -> vector<128x64xf32>
    %85 = arith.addf %82, %84 : vector<128x64xf32>
    %86 = vector.extract_strided_slice %0 {offsets = [1, 0], sizes = [1, 64], strides = [1, 1]} : vector<12x256xf32> to vector<1x64xf32>
    %87 = vector.extract_strided_slice %0 {offsets = [2, 0], sizes = [1, 64], strides = [1, 1]} : vector<12x256xf32> to vector<1x64xf32>
    %cst_28 = arith.constant dense<0.000000e+00> : vector<128xf32>
    %88 = vector.multi_reduction <add>, %85, %cst_28 [1] : vector<128x64xf32> to vector<128xf32>
    %89 = vector.shape_cast %88 : vector<128xf32> to vector<128x1xf32>
    %cst_29 = arith.constant 6.400000e+01 : f32
    %90 = vector.broadcast %cst_29 : f32 to vector<128x1xf32>
    %91 = arith.divf %89, %90 : vector<128x1xf32>
    %92 = vector.broadcast %91 : vector<128x1xf32> to vector<128x64xf32>
    %93 = arith.subf %85, %92 : vector<128x64xf32>
    %94 = arith.mulf %93, %93 : vector<128x64xf32>
    %cst_30 = arith.constant dense<0.000000e+00> : vector<128xf32>
    %95 = vector.multi_reduction <add>, %94, %cst_30 [1] : vector<128x64xf32> to vector<128xf32>
    %96 = vector.shape_cast %95 : vector<128xf32> to vector<128x1xf32>
    %cst_31 = arith.constant 6.400000e+01 : f32
    %97 = vector.broadcast %cst_31 : f32 to vector<128x1xf32>
    %98 = arith.divf %96, %97 : vector<128x1xf32>
    %99 = vector.broadcast %91 : vector<128x1xf32> to vector<128x64xf32>
    %100 = arith.subf %85, %99 : vector<128x64xf32>
    %cst_32 = arith.constant 9.99999974E-6 : f32
    %101 = vector.broadcast %cst_32 : f32 to vector<128x1xf32>
    %102 = arith.addf %98, %101 : vector<128x1xf32>
    %103 = math.rsqrt %102 : vector<128x1xf32>
    %104 = vector.broadcast %103 : vector<128x1xf32> to vector<128x64xf32>
    %105 = arith.mulf %100, %104 : vector<128x64xf32>
    %106 = vector.broadcast %86 : vector<1x64xf32> to vector<128x64xf32>
    %107 = arith.mulf %105, %106 : vector<128x64xf32>
    %108 = vector.broadcast %87 : vector<1x64xf32> to vector<128x64xf32>
    %109 = arith.addf %107, %108 : vector<128x64xf32>
    %c0_33 = arith.constant 0 : index
    %c0_34 = arith.constant 0 : index
    %110 = vector.load %arg5[%c0_33, %c0_34] : memref<128x256xf32, #tpu.memory_space<vmem>>, vector<64x256xf32>
    %cst_35 = arith.constant dense<0.000000e+00> : vector<128x256xf32>
    %111 = tpu.matmul %109, %110, %cst_35 {dimension_numbers = #tpu.dot_dimension_numbers<[1], [0], [0], [1], [0, 0, 1, 1], [], []>} : vector<128x64xf32>, vector<64x256xf32>, vector<128x256xf32> -> vector<128x256xf32>
    %112 = vector.extract_strided_slice %0 {offsets = [3, 0], sizes = [1, 256], strides = [1, 1]} : vector<12x256xf32> to vector<1x256xf32>
    %113 = vector.broadcast %112 : vector<1x256xf32> to vector<128x256xf32>
    %114 = arith.addf %111, %113 : vector<128x256xf32>
    %c64 = arith.constant 64 : index
    %c0_36 = arith.constant 0 : index
    %115 = vector.load %arg4[%c64, %c0_36] : memref<704x128xf32, #tpu.memory_space<vmem>>, vector<128x128xf32>
    %c768 = arith.constant 768 : index
    %c0_37 = arith.constant 0 : index
    %116 = vector.load %arg3[%c768, %c0_37] : memref<1088x64xf32, #tpu.memory_space<vmem>>, vector<64x64xf32>
    %117 = vector.extract_strided_slice %114 {offsets = [0, 0], sizes = [128, 16], strides = [1, 1]} : vector<128x256xf32> to vector<128x16xf32>
    %118 = vector.extract_strided_slice %114 {offsets = [0, 64], sizes = [128, 16], strides = [1, 1]} : vector<128x256xf32> to vector<128x16xf32>
    %119 = vector.extract_strided_slice %114 {offsets = [0, 128], sizes = [128, 16], strides = [1, 1]} : vector<128x256xf32> to vector<128x16xf32>
    %cst_38 = arith.constant dense<0.000000e+00> : vector<128x128xf32>
    %120 = tpu.matmul %117, %118, %cst_38 {dimension_numbers = #tpu.dot_dimension_numbers<[1], [1], [0], [0], [0, 0, 1, 0], [], []>} : vector<128x16xf32>, vector<128x16xf32>, vector<128x128xf32> -> vector<128x128xf32>
    %cst_39 = arith.constant 2.500000e-01 : f32
    %121 = vector.broadcast %cst_39 : f32 to vector<128x128xf32>
    %122 = arith.mulf %120, %121 : vector<128x128xf32>
    %123 = arith.addf %122, %115 : vector<128x128xf32>
    %cst_40 = arith.constant dense<0xFF800000> : vector<128xf32>
    %124 = vector.multi_reduction <maximumf>, %123, %cst_40 [1] : vector<128x128xf32> to vector<128xf32>
    %125 = vector.shape_cast %124 : vector<128xf32> to vector<128x1xf32>
    %126 = vector.broadcast %125 : vector<128x1xf32> to vector<128x128xf32>
    %127 = arith.subf %123, %126 : vector<128x128xf32>
    %128 = math.exp %127 : vector<128x128xf32>
    %cst_41 = arith.constant dense<0.000000e+00> : vector<128xf32>
    %129 = vector.multi_reduction <add>, %128, %cst_41 [1] : vector<128x128xf32> to vector<128xf32>
    %130 = vector.shape_cast %129 : vector<128xf32> to vector<128x1xf32>
    %131 = vector.broadcast %130 : vector<128x1xf32> to vector<128x128xf32>
    %132 = arith.divf %128, %131 : vector<128x128xf32>
    %cst_42 = arith.constant dense<0.000000e+00> : vector<128x16xf32>
    %133 = tpu.matmul %132, %119, %cst_42 {dimension_numbers = #tpu.dot_dimension_numbers<[1], [0], [0], [1], [0, 0, 1, 1], [], []>} : vector<128x128xf32>, vector<128x16xf32>, vector<128x16xf32> -> vector<128x16xf32>
    %134 = vector.extract_strided_slice %116 {offsets = [0, 0], sizes = [16, 64], strides = [1, 1]} : vector<64x64xf32> to vector<16x64xf32>
    %cst_43 = arith.constant dense<0.000000e+00> : vector<128x64xf32>
    %135 = tpu.matmul %133, %134, %cst_43 {dimension_numbers = #tpu.dot_dimension_numbers<[1], [0], [0], [1], [0, 0, 1, 1], [], []>} : vector<128x16xf32>, vector<16x64xf32>, vector<128x64xf32> -> vector<128x64xf32>
    %136 = vector.extract_strided_slice %114 {offsets = [0, 16], sizes = [128, 16], strides = [1, 1]} : vector<128x256xf32> to vector<128x16xf32>
    %137 = vector.extract_strided_slice %114 {offsets = [0, 80], sizes = [128, 16], strides = [1, 1]} : vector<128x256xf32> to vector<128x16xf32>
    %138 = vector.extract_strided_slice %114 {offsets = [0, 144], sizes = [128, 16], strides = [1, 1]} : vector<128x256xf32> to vector<128x16xf32>
    %cst_44 = arith.constant dense<0.000000e+00> : vector<128x128xf32>
    %139 = tpu.matmul %136, %137, %cst_44 {dimension_numbers = #tpu.dot_dimension_numbers<[1], [1], [0], [0], [0, 0, 1, 0], [], []>} : vector<128x16xf32>, vector<128x16xf32>, vector<128x128xf32> -> vector<128x128xf32>
    %cst_45 = arith.constant 2.500000e-01 : f32
    %140 = vector.broadcast %cst_45 : f32 to vector<128x128xf32>
    %141 = arith.mulf %139, %140 : vector<128x128xf32>
    %142 = arith.addf %141, %115 : vector<128x128xf32>
    %cst_46 = arith.constant dense<0xFF800000> : vector<128xf32>
    %143 = vector.multi_reduction <maximumf>, %142, %cst_46 [1] : vector<128x128xf32> to vector<128xf32>
    %144 = vector.shape_cast %143 : vector<128xf32> to vector<128x1xf32>
    %145 = vector.broadcast %144 : vector<128x1xf32> to vector<128x128xf32>
    %146 = arith.subf %142, %145 : vector<128x128xf32>
    %147 = math.exp %146 : vector<128x128xf32>
    %cst_47 = arith.constant dense<0.000000e+00> : vector<128xf32>
    %148 = vector.multi_reduction <add>, %147, %cst_47 [1] : vector<128x128xf32> to vector<128xf32>
    %149 = vector.shape_cast %148 : vector<128xf32> to vector<128x1xf32>
    %150 = vector.broadcast %149 : vector<128x1xf32> to vector<128x128xf32>
    %151 = arith.divf %147, %150 : vector<128x128xf32>
    %cst_48 = arith.constant dense<0.000000e+00> : vector<128x16xf32>
    %152 = tpu.matmul %151, %138, %cst_48 {dimension_numbers = #tpu.dot_dimension_numbers<[1], [0], [0], [1], [0, 0, 1, 1], [], []>} : vector<128x128xf32>, vector<128x16xf32>, vector<128x16xf32> -> vector<128x16xf32>
    %153 = vector.extract_strided_slice %116 {offsets = [16, 0], sizes = [16, 64], strides = [1, 1]} : vector<64x64xf32> to vector<16x64xf32>
    %cst_49 = arith.constant dense<0.000000e+00> : vector<128x64xf32>
    %154 = tpu.matmul %152, %153, %cst_49 {dimension_numbers = #tpu.dot_dimension_numbers<[1], [0], [0], [1], [0, 0, 1, 1], [], []>} : vector<128x16xf32>, vector<16x64xf32>, vector<128x64xf32> -> vector<128x64xf32>
    %155 = arith.addf %135, %154 : vector<128x64xf32>
    %156 = vector.extract_strided_slice %114 {offsets = [0, 32], sizes = [128, 16], strides = [1, 1]} : vector<128x256xf32> to vector<128x16xf32>
    %157 = vector.extract_strided_slice %114 {offsets = [0, 96], sizes = [128, 16], strides = [1, 1]} : vector<128x256xf32> to vector<128x16xf32>
    %158 = vector.extract_strided_slice %114 {offsets = [0, 160], sizes = [128, 16], strides = [1, 1]} : vector<128x256xf32> to vector<128x16xf32>
    %cst_50 = arith.constant dense<0.000000e+00> : vector<128x128xf32>
    %159 = tpu.matmul %156, %157, %cst_50 {dimension_numbers = #tpu.dot_dimension_numbers<[1], [1], [0], [0], [0, 0, 1, 0], [], []>} : vector<128x16xf32>, vector<128x16xf32>, vector<128x128xf32> -> vector<128x128xf32>
    %cst_51 = arith.constant 2.500000e-01 : f32
    %160 = vector.broadcast %cst_51 : f32 to vector<128x128xf32>
    %161 = arith.mulf %159, %160 : vector<128x128xf32>
    %162 = arith.addf %161, %115 : vector<128x128xf32>
    %cst_52 = arith.constant dense<0xFF800000> : vector<128xf32>
    %163 = vector.multi_reduction <maximumf>, %162, %cst_52 [1] : vector<128x128xf32> to vector<128xf32>
    %164 = vector.shape_cast %163 : vector<128xf32> to vector<128x1xf32>
    %165 = vector.broadcast %164 : vector<128x1xf32> to vector<128x128xf32>
    %166 = arith.subf %162, %165 : vector<128x128xf32>
    %167 = math.exp %166 : vector<128x128xf32>
    %cst_53 = arith.constant dense<0.000000e+00> : vector<128xf32>
    %168 = vector.multi_reduction <add>, %167, %cst_53 [1] : vector<128x128xf32> to vector<128xf32>
    %169 = vector.shape_cast %168 : vector<128xf32> to vector<128x1xf32>
    %170 = vector.broadcast %169 : vector<128x1xf32> to vector<128x128xf32>
    %171 = arith.divf %167, %170 : vector<128x128xf32>
    %cst_54 = arith.constant dense<0.000000e+00> : vector<128x16xf32>
    %172 = tpu.matmul %171, %158, %cst_54 {dimension_numbers = #tpu.dot_dimension_numbers<[1], [0], [0], [1], [0, 0, 1, 1], [], []>} : vector<128x128xf32>, vector<128x16xf32>, vector<128x16xf32> -> vector<128x16xf32>
    %173 = vector.extract_strided_slice %116 {offsets = [32, 0], sizes = [16, 64], strides = [1, 1]} : vector<64x64xf32> to vector<16x64xf32>
    %cst_55 = arith.constant dense<0.000000e+00> : vector<128x64xf32>
    %174 = tpu.matmul %172, %173, %cst_55 {dimension_numbers = #tpu.dot_dimension_numbers<[1], [0], [0], [1], [0, 0, 1, 1], [], []>} : vector<128x16xf32>, vector<16x64xf32>, vector<128x64xf32> -> vector<128x64xf32>
    %175 = arith.addf %155, %174 : vector<128x64xf32>
    %176 = vector.extract_strided_slice %114 {offsets = [0, 48], sizes = [128, 16], strides = [1, 1]} : vector<128x256xf32> to vector<128x16xf32>
    %177 = vector.extract_strided_slice %114 {offsets = [0, 112], sizes = [128, 16], strides = [1, 1]} : vector<128x256xf32> to vector<128x16xf32>
    %178 = vector.extract_strided_slice %114 {offsets = [0, 176], sizes = [128, 16], strides = [1, 1]} : vector<128x256xf32> to vector<128x16xf32>
    %cst_56 = arith.constant dense<0.000000e+00> : vector<128x128xf32>
    %179 = tpu.matmul %176, %177, %cst_56 {dimension_numbers = #tpu.dot_dimension_numbers<[1], [1], [0], [0], [0, 0, 1, 0], [], []>} : vector<128x16xf32>, vector<128x16xf32>, vector<128x128xf32> -> vector<128x128xf32>
    %cst_57 = arith.constant 2.500000e-01 : f32
    %180 = vector.broadcast %cst_57 : f32 to vector<128x128xf32>
    %181 = arith.mulf %179, %180 : vector<128x128xf32>
    %182 = arith.addf %181, %115 : vector<128x128xf32>
    %cst_58 = arith.constant dense<0xFF800000> : vector<128xf32>
    %183 = vector.multi_reduction <maximumf>, %182, %cst_58 [1] : vector<128x128xf32> to vector<128xf32>
    %184 = vector.shape_cast %183 : vector<128xf32> to vector<128x1xf32>
    %185 = vector.broadcast %184 : vector<128x1xf32> to vector<128x128xf32>
    %186 = arith.subf %182, %185 : vector<128x128xf32>
    %187 = math.exp %186 : vector<128x128xf32>
    %cst_59 = arith.constant dense<0.000000e+00> : vector<128xf32>
    %188 = vector.multi_reduction <add>, %187, %cst_59 [1] : vector<128x128xf32> to vector<128xf32>
    %189 = vector.shape_cast %188 : vector<128xf32> to vector<128x1xf32>
    %190 = vector.broadcast %189 : vector<128x1xf32> to vector<128x128xf32>
    %191 = arith.divf %187, %190 : vector<128x128xf32>
    %cst_60 = arith.constant dense<0.000000e+00> : vector<128x16xf32>
    %192 = tpu.matmul %191, %178, %cst_60 {dimension_numbers = #tpu.dot_dimension_numbers<[1], [0], [0], [1], [0, 0, 1, 1], [], []>} : vector<128x128xf32>, vector<128x16xf32>, vector<128x16xf32> -> vector<128x16xf32>
    %193 = vector.extract_strided_slice %116 {offsets = [48, 0], sizes = [16, 64], strides = [1, 1]} : vector<64x64xf32> to vector<16x64xf32>
    %cst_61 = arith.constant dense<0.000000e+00> : vector<128x64xf32>
    %194 = tpu.matmul %192, %193, %cst_61 {dimension_numbers = #tpu.dot_dimension_numbers<[1], [0], [0], [1], [0, 0, 1, 1], [], []>} : vector<128x16xf32>, vector<16x64xf32>, vector<128x64xf32> -> vector<128x64xf32>
    %195 = arith.addf %175, %194 : vector<128x64xf32>
    %196 = arith.addf %85, %195 : vector<128x64xf32>
    %197 = vector.extract_strided_slice %0 {offsets = [4, 0], sizes = [1, 64], strides = [1, 1]} : vector<12x256xf32> to vector<1x64xf32>
    %198 = vector.broadcast %197 : vector<1x64xf32> to vector<128x64xf32>
    %199 = arith.addf %196, %198 : vector<128x64xf32>
    %200 = vector.extract_strided_slice %0 {offsets = [5, 0], sizes = [1, 64], strides = [1, 1]} : vector<12x256xf32> to vector<1x64xf32>
    %201 = vector.extract_strided_slice %0 {offsets = [6, 0], sizes = [1, 64], strides = [1, 1]} : vector<12x256xf32> to vector<1x64xf32>
    %cst_62 = arith.constant dense<0.000000e+00> : vector<128xf32>
    %202 = vector.multi_reduction <add>, %199, %cst_62 [1] : vector<128x64xf32> to vector<128xf32>
    %203 = vector.shape_cast %202 : vector<128xf32> to vector<128x1xf32>
    %cst_63 = arith.constant 6.400000e+01 : f32
    %204 = vector.broadcast %cst_63 : f32 to vector<128x1xf32>
    %205 = arith.divf %203, %204 : vector<128x1xf32>
    %206 = vector.broadcast %205 : vector<128x1xf32> to vector<128x64xf32>
    %207 = arith.subf %199, %206 : vector<128x64xf32>
    %208 = arith.mulf %207, %207 : vector<128x64xf32>
    %cst_64 = arith.constant dense<0.000000e+00> : vector<128xf32>
    %209 = vector.multi_reduction <add>, %208, %cst_64 [1] : vector<128x64xf32> to vector<128xf32>
    %210 = vector.shape_cast %209 : vector<128xf32> to vector<128x1xf32>
    %cst_65 = arith.constant 6.400000e+01 : f32
    %211 = vector.broadcast %cst_65 : f32 to vector<128x1xf32>
    %212 = arith.divf %210, %211 : vector<128x1xf32>
    %213 = vector.broadcast %205 : vector<128x1xf32> to vector<128x64xf32>
    %214 = arith.subf %199, %213 : vector<128x64xf32>
    %cst_66 = arith.constant 9.99999974E-6 : f32
    %215 = vector.broadcast %cst_66 : f32 to vector<128x1xf32>
    %216 = arith.addf %212, %215 : vector<128x1xf32>
    %217 = math.rsqrt %216 : vector<128x1xf32>
    %218 = vector.broadcast %217 : vector<128x1xf32> to vector<128x64xf32>
    %219 = arith.mulf %214, %218 : vector<128x64xf32>
    %220 = vector.broadcast %200 : vector<1x64xf32> to vector<128x64xf32>
    %221 = arith.mulf %219, %220 : vector<128x64xf32>
    %222 = vector.broadcast %201 : vector<1x64xf32> to vector<128x64xf32>
    %223 = arith.addf %221, %222 : vector<128x64xf32>
    %c64_67 = arith.constant 64 : index
    %c0_68 = arith.constant 0 : index
    %224 = vector.load %arg5[%c64_67, %c0_68] : memref<128x256xf32, #tpu.memory_space<vmem>>, vector<64x256xf32>
    %cst_69 = arith.constant dense<0.000000e+00> : vector<128x256xf32>
    %225 = tpu.matmul %223, %224, %cst_69 {dimension_numbers = #tpu.dot_dimension_numbers<[1], [0], [0], [1], [0, 0, 1, 1], [], []>} : vector<128x64xf32>, vector<64x256xf32>, vector<128x256xf32> -> vector<128x256xf32>
    %226 = vector.extract_strided_slice %0 {offsets = [7, 0], sizes = [1, 256], strides = [1, 1]} : vector<12x256xf32> to vector<1x256xf32>
    %227 = vector.broadcast %226 : vector<1x256xf32> to vector<128x256xf32>
    %228 = arith.addf %225, %227 : vector<128x256xf32>
    %cst_70 = arith.constant 5.000000e-01 : f32
    %229 = vector.broadcast %cst_70 : f32 to vector<128x256xf32>
    %230 = arith.mulf %229, %228 : vector<128x256xf32>
    %cst_71 = arith.constant 4.471500e-02 : f32
    %231 = vector.broadcast %cst_71 : f32 to vector<128x256xf32>
    %232 = arith.mulf %231, %228 : vector<128x256xf32>
    %233 = arith.mulf %232, %228 : vector<128x256xf32>
    %234 = arith.mulf %233, %228 : vector<128x256xf32>
    %235 = arith.addf %228, %234 : vector<128x256xf32>
    %cst_72 = arith.constant 0.797884583 : f32
    %236 = vector.broadcast %cst_72 : f32 to vector<128x256xf32>
    %237 = arith.mulf %236, %235 : vector<128x256xf32>
    %238 = math.tanh %237 : vector<128x256xf32>
    %cst_73 = arith.constant 1.000000e+00 : f32
    %239 = vector.broadcast %cst_73 : f32 to vector<128x256xf32>
    %240 = arith.addf %239, %238 : vector<128x256xf32>
    %241 = arith.mulf %230, %240 : vector<128x256xf32>
    %c832 = arith.constant 832 : index
    %c0_74 = arith.constant 0 : index
    %242 = vector.load %arg3[%c832, %c0_74] : memref<1088x64xf32, #tpu.memory_space<vmem>>, vector<256x64xf32>
    %cst_75 = arith.constant dense<0.000000e+00> : vector<128x64xf32>
    %243 = tpu.matmul %241, %242, %cst_75 {dimension_numbers = #tpu.dot_dimension_numbers<[1], [0], [0], [1], [0, 0, 1, 1], [], []>} : vector<128x256xf32>, vector<256x64xf32>, vector<128x64xf32> -> vector<128x64xf32>
    %244 = arith.addf %199, %243 : vector<128x64xf32>
    %245 = vector.extract_strided_slice %0 {offsets = [8, 0], sizes = [1, 64], strides = [1, 1]} : vector<12x256xf32> to vector<1x64xf32>
    %246 = vector.broadcast %245 : vector<1x64xf32> to vector<128x64xf32>
    %247 = arith.addf %244, %246 : vector<128x64xf32>
    %248 = vector.extract_strided_slice %0 {offsets = [9, 0], sizes = [1, 64], strides = [1, 1]} : vector<12x256xf32> to vector<1x64xf32>
    %249 = vector.extract_strided_slice %0 {offsets = [10, 0], sizes = [1, 64], strides = [1, 1]} : vector<12x256xf32> to vector<1x64xf32>
    %cst_76 = arith.constant dense<0.000000e+00> : vector<128xf32>
    %250 = vector.multi_reduction <add>, %247, %cst_76 [1] : vector<128x64xf32> to vector<128xf32>
    %251 = vector.shape_cast %250 : vector<128xf32> to vector<128x1xf32>
    %cst_77 = arith.constant 6.400000e+01 : f32
    %252 = vector.broadcast %cst_77 : f32 to vector<128x1xf32>
    %253 = arith.divf %251, %252 : vector<128x1xf32>
    %254 = vector.broadcast %253 : vector<128x1xf32> to vector<128x64xf32>
    %255 = arith.subf %247, %254 : vector<128x64xf32>
    %256 = arith.mulf %255, %255 : vector<128x64xf32>
    %cst_78 = arith.constant dense<0.000000e+00> : vector<128xf32>
    %257 = vector.multi_reduction <add>, %256, %cst_78 [1] : vector<128x64xf32> to vector<128xf32>
    %258 = vector.shape_cast %257 : vector<128xf32> to vector<128x1xf32>
    %cst_79 = arith.constant 6.400000e+01 : f32
    %259 = vector.broadcast %cst_79 : f32 to vector<128x1xf32>
    %260 = arith.divf %258, %259 : vector<128x1xf32>
    %261 = vector.broadcast %253 : vector<128x1xf32> to vector<128x64xf32>
    %262 = arith.subf %247, %261 : vector<128x64xf32>
    %cst_80 = arith.constant 9.99999974E-6 : f32
    %263 = vector.broadcast %cst_80 : f32 to vector<128x1xf32>
    %264 = arith.addf %260, %263 : vector<128x1xf32>
    %265 = math.rsqrt %264 : vector<128x1xf32>
    %266 = vector.broadcast %265 : vector<128x1xf32> to vector<128x64xf32>
    %267 = arith.mulf %262, %266 : vector<128x64xf32>
    %268 = vector.broadcast %248 : vector<1x64xf32> to vector<128x64xf32>
    %269 = arith.mulf %267, %268 : vector<128x64xf32>
    %270 = vector.broadcast %249 : vector<1x64xf32> to vector<128x64xf32>
    %271 = arith.addf %269, %270 : vector<128x64xf32>
    %c0_81 = arith.constant 0 : index
    %c0_82 = arith.constant 0 : index
    %272 = vector.load %arg4[%c0_81, %c0_82] : memref<704x128xf32, #tpu.memory_space<vmem>>, vector<64x128xf32>
    %cst_83 = arith.constant dense<0.000000e+00> : vector<64x64xf32>
    %273 = tpu.matmul %272, %271, %cst_83 {dimension_numbers = #tpu.dot_dimension_numbers<[1], [0], [0], [1], [0, 0, 1, 1], [], []>} : vector<64x128xf32>, vector<128x64xf32>, vector<64x64xf32> -> vector<64x64xf32>
    %274 = vector.extract_strided_slice %0 {offsets = [11, 0], sizes = [1, 128], strides = [1, 1]} : vector<12x256xf32> to vector<1x128xf32>
    %c192 = arith.constant 192 : index
    %c0_84 = arith.constant 0 : index
    %275 = vector.load %arg4[%c192, %c0_84] : memref<704x128xf32, #tpu.memory_space<vmem>>, vector<64x128xf32>
    %276 = vector.extract_strided_slice %273 {offsets = [0, 0], sizes = [8, 64], strides = [1, 1]} : vector<64x64xf32> to vector<8x64xf32>
    %cst_85 = arith.constant dense<0.000000e+00> : vector<8x128xf32>
    %277 = tpu.matmul %276, %275, %cst_85 {dimension_numbers = #tpu.dot_dimension_numbers<[1], [0], [0], [1], [0, 0, 1, 1], [], []>} : vector<8x64xf32>, vector<64x128xf32>, vector<8x128xf32> -> vector<8x128xf32>
    %278 = vector.broadcast %274 : vector<1x128xf32> to vector<8x128xf32>
    %279 = arith.addf %278, %277 : vector<8x128xf32>
    %c256 = arith.constant 256 : index
    %c0_86 = arith.constant 0 : index
    %280 = vector.load %arg4[%c256, %c0_86] : memref<704x128xf32, #tpu.memory_space<vmem>>, vector<64x128xf32>
    %281 = vector.extract_strided_slice %273 {offsets = [8, 0], sizes = [8, 64], strides = [1, 1]} : vector<64x64xf32> to vector<8x64xf32>
    %cst_87 = arith.constant dense<0.000000e+00> : vector<8x128xf32>
    %282 = tpu.matmul %281, %280, %cst_87 {dimension_numbers = #tpu.dot_dimension_numbers<[1], [0], [0], [1], [0, 0, 1, 1], [], []>} : vector<8x64xf32>, vector<64x128xf32>, vector<8x128xf32> -> vector<8x128xf32>
    %283 = arith.addf %279, %282 : vector<8x128xf32>
    %c320 = arith.constant 320 : index
    %c0_88 = arith.constant 0 : index
    %284 = vector.load %arg4[%c320, %c0_88] : memref<704x128xf32, #tpu.memory_space<vmem>>, vector<64x128xf32>
    %285 = vector.extract_strided_slice %273 {offsets = [16, 0], sizes = [8, 64], strides = [1, 1]} : vector<64x64xf32> to vector<8x64xf32>
    %cst_89 = arith.constant dense<0.000000e+00> : vector<8x128xf32>
    %286 = tpu.matmul %285, %284, %cst_89 {dimension_numbers = #tpu.dot_dimension_numbers<[1], [0], [0], [1], [0, 0, 1, 1], [], []>} : vector<8x64xf32>, vector<64x128xf32>, vector<8x128xf32> -> vector<8x128xf32>
    %287 = arith.addf %283, %286 : vector<8x128xf32>
    %c384 = arith.constant 384 : index
    %c0_90 = arith.constant 0 : index
    %288 = vector.load %arg4[%c384, %c0_90] : memref<704x128xf32, #tpu.memory_space<vmem>>, vector<64x128xf32>
    %289 = vector.extract_strided_slice %273 {offsets = [24, 0], sizes = [8, 64], strides = [1, 1]} : vector<64x64xf32> to vector<8x64xf32>
    %cst_91 = arith.constant dense<0.000000e+00> : vector<8x128xf32>
    %290 = tpu.matmul %289, %288, %cst_91 {dimension_numbers = #tpu.dot_dimension_numbers<[1], [0], [0], [1], [0, 0, 1, 1], [], []>} : vector<8x64xf32>, vector<64x128xf32>, vector<8x128xf32> -> vector<8x128xf32>
    %291 = arith.addf %287, %290 : vector<8x128xf32>
    %c448 = arith.constant 448 : index
    %c0_92 = arith.constant 0 : index
    %292 = vector.load %arg4[%c448, %c0_92] : memref<704x128xf32, #tpu.memory_space<vmem>>, vector<64x128xf32>
    %293 = vector.extract_strided_slice %273 {offsets = [32, 0], sizes = [8, 64], strides = [1, 1]} : vector<64x64xf32> to vector<8x64xf32>
    %cst_93 = arith.constant dense<0.000000e+00> : vector<8x128xf32>
    %294 = tpu.matmul %293, %292, %cst_93 {dimension_numbers = #tpu.dot_dimension_numbers<[1], [0], [0], [1], [0, 0, 1, 1], [], []>} : vector<8x64xf32>, vector<64x128xf32>, vector<8x128xf32> -> vector<8x128xf32>
    %295 = arith.addf %291, %294 : vector<8x128xf32>
    %c512_94 = arith.constant 512 : index
    %c0_95 = arith.constant 0 : index
    %296 = vector.load %arg4[%c512_94, %c0_95] : memref<704x128xf32, #tpu.memory_space<vmem>>, vector<64x128xf32>
    %297 = vector.extract_strided_slice %273 {offsets = [40, 0], sizes = [8, 64], strides = [1, 1]} : vector<64x64xf32> to vector<8x64xf32>
    %cst_96 = arith.constant dense<0.000000e+00> : vector<8x128xf32>
    %298 = tpu.matmul %297, %296, %cst_96 {dimension_numbers = #tpu.dot_dimension_numbers<[1], [0], [0], [1], [0, 0, 1, 1], [], []>} : vector<8x64xf32>, vector<64x128xf32>, vector<8x128xf32> -> vector<8x128xf32>
    %299 = arith.addf %295, %298 : vector<8x128xf32>
    %c576 = arith.constant 576 : index
    %c0_97 = arith.constant 0 : index
    %300 = vector.load %arg4[%c576, %c0_97] : memref<704x128xf32, #tpu.memory_space<vmem>>, vector<64x128xf32>
    %301 = vector.extract_strided_slice %273 {offsets = [48, 0], sizes = [8, 64], strides = [1, 1]} : vector<64x64xf32> to vector<8x64xf32>
    %cst_98 = arith.constant dense<0.000000e+00> : vector<8x128xf32>
    %302 = tpu.matmul %301, %300, %cst_98 {dimension_numbers = #tpu.dot_dimension_numbers<[1], [0], [0], [1], [0, 0, 1, 1], [], []>} : vector<8x64xf32>, vector<64x128xf32>, vector<8x128xf32> -> vector<8x128xf32>
    %303 = arith.addf %299, %302 : vector<8x128xf32>
    %c640_99 = arith.constant 640 : index
    %c0_100 = arith.constant 0 : index
    %304 = vector.load %arg4[%c640_99, %c0_100] : memref<704x128xf32, #tpu.memory_space<vmem>>, vector<64x128xf32>
    %305 = vector.extract_strided_slice %273 {offsets = [56, 0], sizes = [8, 64], strides = [1, 1]} : vector<64x64xf32> to vector<8x64xf32>
    %cst_101 = arith.constant dense<0.000000e+00> : vector<8x128xf32>
    %306 = tpu.matmul %305, %304, %cst_101 {dimension_numbers = #tpu.dot_dimension_numbers<[1], [0], [0], [1], [0, 0, 1, 1], [], []>} : vector<8x64xf32>, vector<64x128xf32>, vector<8x128xf32> -> vector<8x128xf32>
    %307 = arith.addf %303, %306 : vector<8x128xf32>
    %308 = vector.broadcast %15 : vector<8x1xf32> to vector<8x128xf32>
    %309 = arith.mulf %307, %308 : vector<8x128xf32>
    %310 = vector.broadcast %5 : vector<8x1xf32> to vector<8x128xf32>
    %311 = arith.addf %309, %310 : vector<8x128xf32>
    %c0_102 = arith.constant 0 : index
    %c0_103 = arith.constant 0 : index
    %312 = vector.load %arg7[%c0_102, %c0_103] : memref<8x128xf32, #tpu.memory_space<vmem>>, vector<8x128xf32>
    tpu.vector_store %arg7[%c0_102, %c0_103], %311 {strides = array<i32>} : memref<8x128xf32, #tpu.memory_space<vmem>>, vector<8x128xf32>,
    return
  }
}

</mosaic_0001>

<llo_original>
// kernel: timellm_forward.1
$region0: #{timellm_forward.1}
  #allocation0 [shape = 'u32[]', space=smem, size = 0x4, offset = 0x4, fixed_abs, tag = 'smem constant byte address 0x4 - core index']
  #allocation1 [shape = 'u32[144,128]{1,0:T(1,128)}', space=vmem, size = 0x12000, scoped, tag = 'internal scratch']
  %s0 = inlined_call_operand.vmem [shape: f32[8,32], index: 0, kind: input, shape index: {}]
  %s1 = inlined_call_operand.vmem [shape: f32[32,1024], index: 1, kind: input, shape index: {}]
  %s2 = inlined_call_operand.vmem [shape: f32[128,512], index: 2, kind: input, shape index: {}]
  %s3 = inlined_call_operand.vmem [shape: f32[1088,64], index: 3, kind: input, shape index: {}]
  %s4 = inlined_call_operand.vmem [shape: f32[704,128], index: 4, kind: input, shape index: {}]
  %s5 = inlined_call_operand.hbm [shape: f32[128,256], index: 5, kind: input, shape index: {}]
  %s6 = inlined_call_operand.vmem [shape: f32[12,256], index: 6, kind: input, shape index: {}]
  %s7 = inlined_call_operand.hbm [shape: f32[8,128], index: 7, kind: output, shape index: {}]
  %s8 = sld [smem:[#allocation0]]
  $region42: #{timellm_forward.1} parent=0
    _
  %s10 = ssub.s32 1, %s8
  %s11 = scalar_select 0, %s10, %s8
  $region1: #{timellm_forward.1} parent=0
    #allocation2 [shape = 'u8[131072]{0}', space=vmem, size = 0x20000, scoped, tag = 'input window, operand 5, single buffered']
    #allocation3 [shape = 's32[1]{0}', space=sflag, size = 0x4, scoped, tag = 'scoped memory for timellm_forward.1']
    #allocation4 [shape = 's32[1]{0}', space=sflag, size = 0x4, scoped, tag = 'scoped memory for timellm_forward.1']
    #allocation5 [shape = 'u8[4096]{0}', space=vmem, size = 0x1000, scoped, tag = 'output window, operand 0, single buffered']
    %12 = vsyncpa [#allocation3], 0
    %13 = vsyncpa [#allocation4], 0
    // Predicated region
    $region2: #{timellm_forward.1} parent=1 // pred_check
      _
    $region3: #{timellm_forward.1} parent=1 // pred_check_branch
      %15 = sbr.rel (0) target = $region5
    $region4: #{timellm_forward.1} parent=1 // pred_region
      _
    $region5: #{timellm_forward.1} parent=1 // pred_fallthru
      _
    // Predicated region
    $region6: #{timellm_forward.1} parent=1 // pred_check
      _
    $region7: #{timellm_forward.1} parent=1 // pred_check_branch
      %17 = sbr.rel (0) target = $region9
    $region8: #{timellm_forward.1} parent=1 // pred_region
      _
    $region9: #{timellm_forward.1} parent=1 // pred_fallthru
      _
    // Predicated region
    $region10: #{timellm_forward.1} parent=1 // pred_check
      _
    $region11: #{timellm_forward.1} parent=1 // pred_check_branch
      %19 = sbr.rel (0) target = $region13
    $region12: #{timellm_forward.1} parent=1 // pred_region
      _
    $region13: #{timellm_forward.1} parent=1 // pred_fallthru
      _
    // Predicated region
    $region14: #{timellm_forward.1} parent=1 // pred_check
      _
    $region15: #{timellm_forward.1} parent=1 // pred_check_branch
      %21 = sbr.rel (0) target = $region17
    $region16: #{timellm_forward.1} parent=1 // pred_region
      _
    $region17: #{timellm_forward.1} parent=1 // pred_fallthru
      _
    // Predicated region
    $region18: #{timellm_forward.1} parent=1 // pred_check
      _
    $region19: #{timellm_forward.1} parent=1 // pred_check_branch
      %23 = sbr.rel (0) target = $region21
    $region20: #{timellm_forward.1} parent=1 // pred_region
      _
    $region21: #{timellm_forward.1} parent=1 // pred_fallthru
      _
    // Predicated region
    $region22: #{timellm_forward.1} parent=1 // pred_check
      _
    $region23: #{timellm_forward.1} parent=1 // pred_check_branch
      %25 = sbr.rel (0) target = $region25
    $region24: #{timellm_forward.1} parent=1 // pred_region
      %s27 = ssub.s32 4096, 4096
      %28 = vsyncadd [#allocation3], %s27
      %s29 = sshll.u32 [#allocation2], 4
      %s30 = int_to_ptr.vmem [resolvable:$true] %s29
      %35 = dma.hbm_to_vmem [thread:$0]  %s5, 4096, %s30, [#allocation3], 256, 256, 16
    $region25: #{timellm_forward.1} parent=1 // pred_fallthru
      _
    // Predicated region
    $region26: #{timellm_forward.1} parent=1 // pred_check
      _
    $region27: #{timellm_forward.1} parent=1 // pred_check_branch
      %37 = sbr.rel (0) target = $region29
    $region28: #{timellm_forward.1} parent=1 // pred_region
      _
    $region29: #{timellm_forward.1} parent=1 // pred_fallthru
      _
    // Predicated region
    $region30: #{timellm_forward.1} parent=1 // pred_check
      _
    $region31: #{timellm_forward.1} parent=1 // pred_check_branch
      %39 = sbr.rel (0) target = $region33
    $region32: #{timellm_forward.1} parent=1 // pred_region
      %40 = dma.done [#allocation3], 4096
    $region33: #{timellm_forward.1} parent=1 // pred_fallthru
      _
    %v41 = vld [vmem:[%s6] sm:$0xff]
    %v42 = vld [vmem:[%s6 + $0x8] sm:$0xff]
    %v43 = vld [vmem:[%s6 + $0x10] sm:$0xf]
    %v44 = vld [vmem:[%s0] sm:$0xff]
    %vm45 = vcmask 261120
    %v46 = vsel %vm45, %v44, 0.0
    %47 = vadd.xlane.f32.xlu0 %v46
    %v48 = vpop.xlane.xlu0 %47
    %v49 = vrcp.pop 32.0
    %v50 = vmul.f32 %v48, %v49
    %v51 = vsub.f32 %v44, %v50
    %v52 = vmul.f32 %v51, %v51
    %v53 = vsel %vm45, %v52, 0.0
    %54 = vadd.xlane.f32.xlu0 %v53
    %v55 = vpop.xlane.xlu0 %54
    %v56 = vmul.f32 %v55, %v49
    %v57 = vadd.f32 %v56, 1e-05
    %v58 = vrsqrt.pop %v57
    %v59 = vmul.f32 %v57, %v58
    %vm60 = vcmp.eq.f32.partialorder %v57, inf
    %v61 = vsel %vm60, %v57, %v59
    %vm62 = vcmp.eq.f32.partialorder %v57, 0.0
    %v63 = vand.u32 %v57, 2147483648
    %v64 = vsel %vm62, %v63, %v61
    %v65 = vrsqrt.pop %v57
    %v66 = vmul.f32 %v51, %v65
    %v67 = vld [vmem:[%s1] sm:$0xff]
    %v68 = vld [vmem:[%s1 + $0x8] sm:$0xff]
    %v69 = vld [vmem:[%s1 + $0x10] sm:$0xff]
    %v70 = vld [vmem:[%s1 + $0x18] sm:$0xff]
    %v71 = vld [vmem:[%s1 + $0x20] sm:$0xff]
    %v72 = vld [vmem:[%s1 + $0x28] sm:$0xff]
    %v73 = vld [vmem:[%s1 + $0x30] sm:$0xff]
    %v74 = vld [vmem:[%s1 + $0x38] sm:$0xff]
    %v75 = vld [vmem:[%s1 + $0x40] sm:$0xff]
    %v76 = vld [vmem:[%s1 + $0x48] sm:$0xff]
    %v77 = vld [vmem:[%s1 + $0x50] sm:$0xff]
    %v78 = vld [vmem:[%s1 + $0x58] sm:$0xff]
    %v79 = vld [vmem:[%s1 + $0x60] sm:$0xff]
    %v80 = vld [vmem:[%s1 + $0x68] sm:$0xff]
    %v81 = vld [vmem:[%s1 + $0x70] sm:$0xff]
    %v82 = vld [vmem:[%s1 + $0x78] sm:$0xff]
    %v83 = vld [vmem:[%s1 + $0x80] sm:$0xff]
    %v84 = vld [vmem:[%s1 + $0x88] sm:$0xff]
    %v85 = vld [vmem:[%s1 + $0x90] sm:$0xff]
    %v86 = vld [vmem:[%s1 + $0x98] sm:$0xff]
    %v87 = vld [vmem:[%s1 + $0xa0] sm:$0xff]
    %v88 = vld [vmem:[%s1 + $0xa8] sm:$0xff]
    %v89 = vld [vmem:[%s1 + $0xb0] sm:$0xff]
    %v90 = vld [vmem:[%s1 + $0xb8] sm:$0xff]
    %v91 = vld [vmem:[%s1 + $0xc0] sm:$0xff]
    %v92 = vld [vmem:[%s1 + $0xc8] sm:$0xff]
    %v93 = vld [vmem:[%s1 + $0xd0] sm:$0xff]
    %v94 = vld [vmem:[%s1 + $0xd8] sm:$0xff]
    %v95 = vld [vmem:[%s1 + $0xe0] sm:$0xff]
    %v96 = vld [vmem:[%s1 + $0xe8] sm:$0xff]
    %v97 = vld [vmem:[%s1 + $0xf0] sm:$0xff]
    %v98 = vld [vmem:[%s1 + $0xf8] sm:$0xff]
    %v100 = vsel %vm45, %v66, 0
    %102 = vmatprep.subr.mxu0 0.0
    %103 = vmatpush1.msra.mxu0 0.0
    %104 = vmatprep.subr.mxu0 0.0
    %105 = vmatpush1.msra.mxu0 0.0
    %106 = vmatprep.subr.mxu0 0.0
    %107 = vmatpush1.msra.mxu0 0.0
    %108 = vmatprep.subr.mxu0 0.0
    %109 = vmatpush1.msra.mxu0 0.0
    %110 = vmatprep.subr.mxu0 0.0
    %111 = vmatpush1.msra.mxu0 0.0
    %112 = vmatprep.subr.mxu0 0.0
    %113 = vmatpush1.msra.mxu0 0.0
    %114 = vmatprep.subr.mxu0 0.0
    %115 = vmatpush1.msra.mxu0 0.0
    %116 = vmatprep.subr.mxu0 0.0
    %117 = vmatpush1.msra.mxu0 0.0
    %118 = vmatprep.subr.mxu0 0.0
    %119 = vmatpush1.msra.mxu0 0.0
    %120 = vmatprep.subr.mxu0 0.0
    %121 = vmatpush1.msra.mxu0 0.0
    %122 = vmatprep.subr.mxu0 0.0
    %123 = vmatpush1.msra.mxu0 0.0
    %124 = vmatprep.subr.mxu0 0.0
    %125 = vmatpush1.msra.mxu0 0.0
    %126 = vmatprep.subr.mxu0 %v92
    %127 = vmatpush1.msra.mxu0 %v91
    %128 = vmatprep.subr.mxu0 %v84
    %129 = vmatpush1.msra.mxu0 %v83
    %130 = vmatprep.subr.mxu0 %v76
    %131 = vmatpush1.msra.mxu0 %v75
    %132 = vmatprep.subr.mxu0 %v68
    %133 = vmatpush1.msra.mxu0 %v67
    %134 = vmatprep.subr.mxu0 0.0
    %135 = vmatpush2.msra.mxu0 0.0
    %136 = vmatprep.subr.mxu0 0.0
    %137 = vmatpush2.msra.mxu0 0.0
    %138 = vmatprep.subr.mxu0 0.0
    %139 = vmatpush2.msra.mxu0 0.0
    %140 = vmatprep.subr.mxu0 0.0
    %141 = vmatpush2.msra.mxu0 0.0
    %142 = vmatprep.subr.mxu0 0.0
    %143 = vmatpush2.msra.mxu0 0.0
    %144 = vmatprep.subr.mxu0 0.0
    %145 = vmatpush2.msra.mxu0 0.0
    %146 = vmatprep.subr.mxu0 0.0
    %147 = vmatpush2.msra.mxu0 0.0
    %148 = vmatprep.subr.mxu0 0.0
    %149 = vmatpush2.msra.mxu0 0.0
    %150 = vmatprep.subr.mxu0 0.0
    %151 = vmatpush2.msra.mxu0 0.0
    %152 = vmatprep.subr.mxu0 0.0
    %153 = vmatpush2.msra.mxu0 0.0
    %154 = vmatprep.subr.mxu0 0.0
    %155 = vmatpush2.msra.mxu0 0.0
    %156 = vmatprep.subr.mxu0 0.0
    %157 = vmatpush2.msra.mxu0 0.0
    %158 = vmatprep.subr.mxu0 0.0
    %159 = vmatpush2.msra.mxu0 0.0
    %160 = vmatprep.subr.mxu0 0.0
    %161 = vmatpush2.msra.mxu0 0.0
    %162 = vmatprep.subr.mxu0 0.0
    %163 = vmatpush2.msra.mxu0 0.0
    %164 = vmatprep.subr.mxu0 0.0
    %165 = vmatpush2.msra.mxu0 0.0
    %166 = vmatprep.mubr.f32.mxu0 0.0
    %167 = vmatmul.mubr.f32.gmra.mxu0 %v100
    %v168 = vpop.f32.mrf.mxu0
    %v169 = vadd.f32 0.0, %v168
    %v170 = vpop.f32.mrf.mxu0
    %v171 = vadd.f32 0.0, %v170
    %172 = vdwg.mxu0
    %173 = vmatprep.subr.mxu0 0.0
    %174 = vmatpush1.msra.mxu0 0.0
    %175 = vmatprep.subr.mxu0 0.0
    %176 = vmatpush1.msra.mxu0 0.0
    %177 = vmatprep.subr.mxu0 0.0
    %178 = vmatpush1.msra.mxu0 0.0
    %179 = vmatprep.subr.mxu0 0.0
    %180 = vmatpush1.msra.mxu0 0.0
    %181 = vmatprep.subr.mxu0 0.0
    %182 = vmatpush1.msra.mxu0 0.0
    %183 = vmatprep.subr.mxu0 0.0
    %184 = vmatpush1.msra.mxu0 0.0
    %185 = vmatprep.subr.mxu0 0.0
    %186 = vmatpush1.msra.mxu0 0.0
    %187 = vmatprep.subr.mxu0 0.0
    %188 = vmatpush1.msra.mxu0 0.0
    %189 = vmatprep.subr.mxu0 0.0
    %190 = vmatpush1.msra.mxu0 0.0
    %191 = vmatprep.subr.mxu0 0.0
    %192 = vmatpush1.msra.mxu0 0.0
    %193 = vmatprep.subr.mxu0 0.0
    %194 = vmatpush1.msra.mxu0 0.0
    %195 = vmatprep.subr.mxu0 0.0
    %196 = vmatpush1.msra.mxu0 0.0
    %197 = vmatprep.subr.mxu0 %v94
    %198 = vmatpush1.msra.mxu0 %v93
    %199 = vmatprep.subr.mxu0 %v86
    %200 = vmatpush1.msra.mxu0 %v85
    %201 = vmatprep.subr.mxu0 %v78
    %202 = vmatpush1.msra.mxu0 %v77
    %203 = vmatprep.subr.mxu0 %v70
    %204 = vmatpush1.msra.mxu0 %v69
    %205 = vmatprep.subr.mxu0 0.0
    %206 = vmatpush2.msra.mxu0 0.0
    %207 = vmatprep.subr.mxu0 0.0
    %208 = vmatpush2.msra.mxu0 0.0
    %209 = vmatprep.subr.mxu0 0.0
    %210 = vmatpush2.msra.mxu0 0.0
    %211 = vmatprep.subr.mxu0 0.0
    %212 = vmatpush2.msra.mxu0 0.0
    %213 = vmatprep.subr.mxu0 0.0
    %214 = vmatpush2.msra.mxu0 0.0
    %215 = vmatprep.subr.mxu0 0.0
    %216 = vmatpush2.msra.mxu0 0.0
    %217 = vmatprep.subr.mxu0 0.0
    %218 = vmatpush2.msra.mxu0 0.0
    %219 = vmatprep.subr.mxu0 0.0
    %220 = vmatpush2.msra.mxu0 0.0
    %221 = vmatprep.subr.mxu0 0.0
    %222 = vmatpush2.msra.mxu0 0.0
    %223 = vmatprep.subr.mxu0 0.0
    %224 = vmatpush2.msra.mxu0 0.0
    %225 = vmatprep.subr.mxu0 0.0
    %226 = vmatpush2.msra.mxu0 0.0
    %227 = vmatprep.subr.mxu0 0.0
    %228 = vmatpush2.msra.mxu0 0.0
    %229 = vmatprep.subr.mxu0 0.0
    %230 = vmatpush2.msra.mxu0 0.0
    %231 = vmatprep.subr.mxu0 0.0
    %232 = vmatpush2.msra.mxu0 0.0
    %233 = vmatprep.subr.mxu0 0.0
    %234 = vmatpush2.msra.mxu0 0.0
    %235 = vmatprep.subr.mxu0 0.0
    %236 = vmatpush2.msra.mxu0 0.0
    %237 = vmatprep.mubr.f32.mxu0 0.0
    %238 = vmatmul.mubr.f32.gmra.mxu0 %v100
    %v239 = vpop.f32.mrf.mxu0
    %v240 = vadd.f32 0.0, %v239
    %v241 = vpop.f32.mrf.mxu0
    %v242 = vadd.f32 0.0, %v241
    %243 = vdwg.mxu0
    %244 = vmatprep.subr.mxu0 0.0
    %245 = vmatpush1.msra.mxu0 0.0
    %246 = vmatprep.subr.mxu0 0.0
    %247 = vmatpush1.msra.mxu0 0.0
    %248 = vmatprep.subr.mxu0 0.0
    %249 = vmatpush1.msra.mxu0 0.0
    %250 = vmatprep.subr.mxu0 0.0
    %251 = vmatpush1.msra.mxu0 0.0
    %252 = vmatprep.subr.mxu0 0.0
    %253 = vmatpush1.msra.mxu0 0.0
    %254 = vmatprep.subr.mxu0 0.0
    %255 = vmatpush1.msra.mxu0 0.0
    %256 = vmatprep.subr.mxu0 0.0
    %257 = vmatpush1.msra.mxu0 0.0
    %258 = vmatprep.subr.mxu0 0.0
    %259 = vmatpush1.msra.mxu0 0.0
    %260 = vmatprep.subr.mxu0 0.0
    %261 = vmatpush1.msra.mxu0 0.0
    %262 = vmatprep.subr.mxu0 0.0
    %263 = vmatpush1.msra.mxu0 0.0
    %264 = vmatprep.subr.mxu0 0.0
    %265 = vmatpush1.msra.mxu0 0.0
    %266 = vmatprep.subr.mxu0 0.0
    %267 = vmatpush1.msra.mxu0 0.0
    %268 = vmatprep.subr.mxu0 %v96
    %269 = vmatpush1.msra.mxu0 %v95
    %270 = vmatprep.subr.mxu0 %v88
    %271 = vmatpush1.msra.mxu0 %v87
    %272 = vmatprep.subr.mxu0 %v80
    %273 = vmatpush1.msra.mxu0 %v79
    %274 = vmatprep.subr.mxu0 %v72
    %275 = vmatpush1.msra.mxu0 %v71
    %276 = vmatprep.subr.mxu0 0.0
    %277 = vmatpush2.msra.mxu0 0.0
    %278 = vmatprep.subr.mxu0 0.0
    %279 = vmatpush2.msra.mxu0 0.0
    %280 = vmatprep.subr.mxu0 0.0
    %281 = vmatpush2.msra.mxu0 0.0
    %282 = vmatprep.subr.mxu0 0.0
    %283 = vmatpush2.msra.mxu0 0.0
    %284 = vmatprep.subr.mxu0 0.0
    %285 = vmatpush2.msra.mxu0 0.0
    %286 = vmatprep.subr.mxu0 0.0
    %287 = vmatpush2.msra.mxu0 0.0
    %288 = vmatprep.subr.mxu0 0.0
    %289 = vmatpush2.msra.mxu0 0.0
    %290 = vmatprep.subr.mxu0 0.0
    %291 = vmatpush2.msra.mxu0 0.0
    %292 = vmatprep.subr.mxu0 0.0
    %293 = vmatpush2.msra.mxu0 0.0
    %294 = vmatprep.subr.mxu0 0.0
    %295 = vmatpush2.msra.mxu0 0.0
    %296 = vmatprep.subr.mxu0 0.0
    %297 = vmatpush2.msra.mxu0 0.0
    %298 = vmatprep.subr.mxu0 0.0
    %299 = vmatpush2.msra.mxu0 0.0
    %300 = vmatprep.subr.mxu0 0.0
    %301 = vmatpush2.msra.mxu0 0.0
    %302 = vmatprep.subr.mxu0 0.0
    %303 = vmatpush2.msra.mxu0 0.0
    %304 = vmatprep.subr.mxu0 0.0
    %305 = vmatpush2.msra.mxu0 0.0
    %306 = vmatprep.subr.mxu0 0.0
    %307 = vmatpush2.msra.mxu0 0.0
    %308 = vmatprep.mubr.f32.mxu0 0.0
    %309 = vmatmul.mubr.f32.gmra.mxu0 %v100
    %v310 = vpop.f32.mrf.mxu0
    %v311 = vadd.f32 0.0, %v310
    %v312 = vpop.f32.mrf.mxu0
    %v313 = vadd.f32 0.0, %v312
    %314 = vdwg.mxu0
    %315 = vmatprep.subr.mxu0 0.0
    %316 = vmatpush1.msra.mxu0 0.0
    %317 = vmatprep.subr.mxu0 0.0
    %318 = vmatpush1.msra.mxu0 0.0
    %319 = vmatprep.subr.mxu0 0.0
    %320 = vmatpush1.msra.mxu0 0.0
    %321 = vmatprep.subr.mxu0 0.0
    %322 = vmatpush1.msra.mxu0 0.0
    %323 = vmatprep.subr.mxu0 0.0
    %324 = vmatpush1.msra.mxu0 0.0
    %325 = vmatprep.subr.mxu0 0.0
    %326 = vmatpush1.msra.mxu0 0.0
    %327 = vmatprep.subr.mxu0 0.0
    %328 = vmatpush1.msra.mxu0 0.0
    %329 = vmatprep.subr.mxu0 0.0
    %330 = vmatpush1.msra.mxu0 0.0
    %331 = vmatprep.subr.mxu0 0.0
    %332 = vmatpush1.msra.mxu0 0.0
    %333 = vmatprep.subr.mxu0 0.0
    %334 = vmatpush1.msra.mxu0 0.0
    %335 = vmatprep.subr.mxu0 0.0
    %336 = vmatpush1.msra.mxu0 0.0
    %337 = vmatprep.subr.mxu0 0.0
    %338 = vmatpush1.msra.mxu0 0.0
    %339 = vmatprep.subr.mxu0 %v98
    %340 = vmatpush1.msra.mxu0 %v97
    %341 = vmatprep.subr.mxu0 %v90
    %342 = vmatpush1.msra.mxu0 %v89
    %343 = vmatprep.subr.mxu0 %v82
    %344 = vmatpush1.msra.mxu0 %v81
    %345 = vmatprep.subr.mxu0 %v74
    %346 = vmatpush1.msra.mxu0 %v73
    %347 = vmatprep.subr.mxu0 0.0
    %348 = vmatpush2.msra.mxu0 0.0
    %349 = vmatprep.subr.mxu0 0.0
    %350 = vmatpush2.msra.mxu0 0.0
    %351 = vmatprep.subr.mxu0 0.0
    %352 = vmatpush2.msra.mxu0 0.0
    %353 = vmatprep.subr.mxu0 0.0
    %354 = vmatpush2.msra.mxu0 0.0
    %355 = vmatprep.subr.mxu0 0.0
    %356 = vmatpush2.msra.mxu0 0.0
    %357 = vmatprep.subr.mxu0 0.0
    %358 = vmatpush2.msra.mxu0 0.0
    %359 = vmatprep.subr.mxu0 0.0
    %360 = vmatpush2.msra.mxu0 0.0
    %361 = vmatprep.subr.mxu0 0.0
    %362 = vmatpush2.msra.mxu0 0.0
    %363 = vmatprep.subr.mxu0 0.0
    %364 = vmatpush2.msra.mxu0 0.0
    %365 = vmatprep.subr.mxu0 0.0
    %366 = vmatpush2.msra.mxu0 0.0
    %367 = vmatprep.subr.mxu0 0.0
    %368 = vmatpush2.msra.mxu0 0.0
    %369 = vmatprep.subr.mxu0 0.0
    %370 = vmatpush2.msra.mxu0 0.0
    %371 = vmatprep.subr.mxu0 0.0
    %372 = vmatpush2.msra.mxu0 0.0
    %373 = vmatprep.subr.mxu0 0.0
    %374 = vmatpush2.msra.mxu0 0.0
    %375 = vmatprep.subr.mxu0 0.0
    %376 = vmatpush2.msra.mxu0 0.0
    %377 = vmatprep.subr.mxu0 0.0
    %378 = vmatpush2.msra.mxu0 0.0
    %379 = vmatprep.mubr.f32.mxu0 0.0
    %380 = vmatmul.mubr.f32.gmra.mxu0 %v100
    %v381 = vpop.f32.mrf.mxu0
    %v382 = vadd.f32 0.0, %v381
    %v383 = vpop.f32.mrf.mxu0
    %v384 = vadd.f32 0.0, %v383
    %385 = vdwg.mxu0
    %v386 = vlaneseq
    %v387 = vshrl.u32 %v386, 7
    %v388 = vsub.s32 0, %v387
    %v389 = vrot.slane %v41, %v388
    %v390 = vadd.f32 %v169, %v389
    %v391 = vadd.f32 %v171, %v389
    %v392 = vadd.f32 %v240, %v389
    %v393 = vadd.f32 %v242, %v389
    %v394 = vadd.f32 %v311, %v389
    %v395 = vadd.f32 %v313, %v389
    %v396 = vadd.f32 %v382, %v389
    %v397 = vadd.f32 %v384, %v389
    %v398 = vld [vmem:[%s2] sm:$0xff]
    %v399 = vld [vmem:[%s2 + $0x8] sm:$0xff]
    %v400 = vld [vmem:[%s2 + $0x10] sm:$0xff]
    %v401 = vld [vmem:[%s2 + $0x18] sm:$0xff]
    %v402 = vld [vmem:[%s2 + $0x20] sm:$0xff]
    %v403 = vld [vmem:[%s2 + $0x28] sm:$0xff]
    %v404 = vld [vmem:[%s2 + $0x30] sm:$0xff]
    %v405 = vld [vmem:[%s2 + $0x38] sm:$0xff]
    %v406 = vld [vmem:[%s2 + $0x40] sm:$0xff]
    %v407 = vld [vmem:[%s2 + $0x48] sm:$0xff]
    %v408 = vld [vmem:[%s2 + $0x50] sm:$0xff]
    %v409 = vld [vmem:[%s2 + $0x58] sm:$0xff]
    %v410 = vld [vmem:[%s2 + $0x60] sm:$0xff]
    %v411 = vld [vmem:[%s2 + $0x68] sm:$0xff]
    %v412 = vld [vmem:[%s2 + $0x70] sm:$0xff]
    %v413 = vld [vmem:[%s2 + $0x78] sm:$0xff]
    %v414 = vld [vmem:[%s2 + $0x80] sm:$0xff]
    %v415 = vld [vmem:[%s2 + $0x88] sm:$0xff]
    %v416 = vld [vmem:[%s2 + $0x90] sm:$0xff]
    %v417 = vld [vmem:[%s2 + $0x98] sm:$0xff]
    %v418 = vld [vmem:[%s2 + $0xa0] sm:$0xff]
    %v419 = vld [vmem:[%s2 + $0xa8] sm:$0xff]
    %v420 = vld [vmem:[%s2 + $0xb0] sm:$0xff]
    %v421 = vld [vmem:[%s2 + $0xb8] sm:$0xff]
    %v422 = vld [vmem:[%s2 + $0xc0] sm:$0xff]
    %v423 = vld [vmem:[%s2 + $0xc8] sm:$0xff]
    %v424 = vld [vmem:[%s2 + $0xd0] sm:$0xff]
    %v425 = vld [vmem:[%s2 + $0xd8] sm:$0xff]
    %v426 = vld [vmem:[%s2 + $0xe0] sm:$0xff]
    %v427 = vld [vmem:[%s2 + $0xe8] sm:$0xff]
    %v428 = vld [vmem:[%s2 + $0xf0] sm:$0xff]
    %v429 = vld [vmem:[%s2 + $0xf8] sm:$0xff]
    %v430 = vld [vmem:[%s2 + $0x100] sm:$0xff]
    %v431 = vld [vmem:[%s2 + $0x108] sm:$0xff]
    %v432 = vld [vmem:[%s2 + $0x110] sm:$0xff]
    %v433 = vld [vmem:[%s2 + $0x118] sm:$0xff]
    %v434 = vld [vmem:[%s2 + $0x120] sm:$0xff]
    %v435 = vld [vmem:[%s2 + $0x128] sm:$0xff]
    %v436 = vld [vmem:[%s2 + $0x130] sm:$0xff]
    %v437 = vld [vmem:[%s2 + $0x138] sm:$0xff]
    %v438 = vld [vmem:[%s2 + $0x140] sm:$0xff]
    %v439 = vld [vmem:[%s2 + $0x148] sm:$0xff]
    %v440 = vld [vmem:[%s2 + $0x150] sm:$0xff]
    %v441 = vld [vmem:[%s2 + $0x158] sm:$0xff]
    %v442 = vld [vmem:[%s2 + $0x160] sm:$0xff]
    %v443 = vld [vmem:[%s2 + $0x168] sm:$0xff]
    %v444 = vld [vmem:[%s2 + $0x170] sm:$0xff]
    %v445 = vld [vmem:[%s2 + $0x178] sm:$0xff]
    %v446 = vld [vmem:[%s2 + $0x180] sm:$0xff]
    %v447 = vld [vmem:[%s2 + $0x188] sm:$0xff]
    %v448 = vld [vmem:[%s2 + $0x190] sm:$0xff]
    %v449 = vld [vmem:[%s2 + $0x198] sm:$0xff]
    %v450 = vld [vmem:[%s2 + $0x1a0] sm:$0xff]
    %v451 = vld [vmem:[%s2 + $0x1a8] sm:$0xff]
    %v452 = vld [vmem:[%s2 + $0x1b0] sm:$0xff]
    %v453 = vld [vmem:[%s2 + $0x1b8] sm:$0xff]
    %v454 = vld [vmem:[%s2 + $0x1c0] sm:$0xff]
    %v455 = vld [vmem:[%s2 + $0x1c8] sm:$0xff]
    %v456 = vld [vmem:[%s2 + $0x1d0] sm:$0xff]
    %v457 = vld [vmem:[%s2 + $0x1d8] sm:$0xff]
    %v458 = vld [vmem:[%s2 + $0x1e0] sm:$0xff]
    %v459 = vld [vmem:[%s2 + $0x1e8] sm:$0xff]
    %v460 = vld [vmem:[%s2 + $0x1f0] sm:$0xff]
    %v461 = vld [vmem:[%s2 + $0x1f8] sm:$0xff]
    %462 = vmatprep.subr.mxu0 %v459
    %463 = vmatpush1.msra.mxu0 %v458
    %464 = vmatprep.subr.mxu0 %v455
    %465 = vmatpush1.msra.mxu0 %v454
    %466 = vmatprep.subr.mxu0 %v451
    %467 = vmatpush1.msra.mxu0 %v450
    %468 = vmatprep.subr.mxu0 %v447
    %469 = vmatpush1.msra.mxu0 %v446
    %470 = vmatprep.subr.mxu0 %v443
    %471 = vmatpush1.msra.mxu0 %v442
    %472 = vmatprep.subr.mxu0 %v439
    %473 = vmatpush1.msra.mxu0 %v438
    %474 = vmatprep.subr.mxu0 %v435
    %475 = vmatpush1.msra.mxu0 %v434
    %476 = vmatprep.subr.mxu0 %v431
    %477 = vmatpush1.msra.mxu0 %v430
    %478 = vmatprep.subr.mxu0 %v427
    %479 = vmatpush1.msra.mxu0 %v426
    %480 = vmatprep.subr.mxu0 %v423
    %481 = vmatpush1.msra.mxu0 %v422
    %482 = vmatprep.subr.mxu0 %v419
    %483 = vmatpush1.msra.mxu0 %v418
    %484 = vmatprep.subr.mxu0 %v415
    %485 = vmatpush1.msra.mxu0 %v414
    %486 = vmatprep.subr.mxu0 %v411
    %487 = vmatpush1.msra.mxu0 %v410
    %488 = vmatprep.subr.mxu0 %v407
    %489 = vmatpush1.msra.mxu0 %v406
    %490 = vmatprep.subr.mxu0 %v403
    %491 = vmatpush1.msra.mxu0 %v402
    %492 = vmatprep.subr.mxu0 %v399
    %493 = vmatpush1.msra.mxu0 %v398
    %494 = vmatprep.subr.mxu0 0.0
    %495 = vmatpush2.msra.mxu0 0.0
    %496 = vmatprep.subr.mxu0 0.0
    %497 = vmatpush2.msra.mxu0 0.0
    %498 = vmatprep.subr.mxu0 0.0
    %499 = vmatpush2.msra.mxu0 0.0
    %500 = vmatprep.subr.mxu0 0.0
    %501 = vmatpush2.msra.mxu0 0.0
    %502 = vmatprep.subr.mxu0 0.0
    %503 = vmatpush2.msra.mxu0 0.0
    %504 = vmatprep.subr.mxu0 0.0
    %505 = vmatpush2.msra.mxu0 0.0
    %506 = vmatprep.subr.mxu0 0.0
    %507 = vmatpush2.msra.mxu0 0.0
    %508 = vmatprep.subr.mxu0 0.0
    %509 = vmatpush2.msra.mxu0 0.0
    %510 = vmatprep.subr.mxu0 0.0
    %511 = vmatpush2.msra.mxu0 0.0
    %512 = vmatprep.subr.mxu0 0.0
    %513 = vmatpush2.msra.mxu0 0.0
    %514 = vmatprep.subr.mxu0 0.0
    %515 = vmatpush2.msra.mxu0 0.0
    %516 = vmatprep.subr.mxu0 0.0
    %517 = vmatpush2.msra.mxu0 0.0
    %518 = vmatprep.subr.mxu0 0.0
    %519 = vmatpush2.msra.mxu0 0.0
    %520 = vmatprep.subr.mxu0 0.0
    %521 = vmatpush2.msra.mxu0 0.0
    %522 = vmatprep.subr.mxu0 0.0
    %523 = vmatpush2.msra.mxu0 0.0
    %524 = vmatprep.subr.mxu0 0.0
    %525 = vmatpush2.msra.mxu0 0.0
    %526 = vmatprep.mubr.f32.mxu0 0.0
    %527 = vmatmul.mubr.f32.gmra.mxu0 %v390
    %v528 = vpop.f32.mrf.mxu0
    %v529 = vadd.f32 0.0, %v528
    %v530 = vpop.f32.mrf.mxu0
    %v531 = vadd.f32 0.0, %v530
    %532 = vmatprep.mubr.f32.mxu0 0.0
    %533 = vmatmul.mubr.f32.gmra.mxu0 %v391
    %v534 = vpop.f32.mrf.mxu0
    %v535 = vadd.f32 0.0, %v534
    %v536 = vpop.f32.mrf.mxu0
    %v537 = vadd.f32 0.0, %v536
    %538 = vmatprep.mubr.f32.mxu0 0.0
    %539 = vmatmul.mubr.f32.gmra.mxu0 %v392
    %v540 = vpop.f32.mrf.mxu0
    %v541 = vadd.f32 0.0, %v540
    %v542 = vpop.f32.mrf.mxu0
    %v543 = vadd.f32 0.0, %v542
    %544 = vmatprep.mubr.f32.mxu0 0.0
    %545 = vmatmul.mubr.f32.gmra.mxu0 %v393
    %v546 = vpop.f32.mrf.mxu0
    %v547 = vadd.f32 0.0, %v546
    %v548 = vpop.f32.mrf.mxu0
    %v549 = vadd.f32 0.0, %v548
    %550 = vmatprep.mubr.f32.mxu0 0.0
    %551 = vmatmul.mubr.f32.gmra.mxu0 %v394
    %v552 = vpop.f32.mrf.mxu0
    %v553 = vadd.f32 0.0, %v552
    %v554 = vpop.f32.mrf.mxu0
    %v555 = vadd.f32 0.0, %v554
    %556 = vmatprep.mubr.f32.mxu0 0.0
    %557 = vmatmul.mubr.f32.gmra.mxu0 %v395
    %v558 = vpop.f32.mrf.mxu0
    %v559 = vadd.f32 0.0, %v558
    %v560 = vpop.f32.mrf.mxu0
    %v561 = vadd.f32 0.0, %v560
    %562 = vmatprep.mubr.f32.mxu0 0.0
    %563 = vmatmul.mubr.f32.gmra.mxu0 %v396
    %v564 = vpop.f32.mrf.mxu0
    %v565 = vadd.f32 0.0, %v564
    %v566 = vpop.f32.mrf.mxu0
    %v567 = vadd.f32 0.0, %v566
    %568 = vmatprep.mubr.f32.mxu0 0.0
    %569 = vmatmul.mubr.f32.gmra.mxu0 %v397
    %v570 = vpop.f32.mrf.mxu0
    %v571 = vadd.f32 0.0, %v570
    %v572 = vpop.f32.mrf.mxu0
    %v573 = vadd.f32 0.0, %v572
    %574 = vdwg.mxu0
    %575 = vmatprep.subr.mxu0 %v461
    %576 = vmatpush1.msra.mxu0 %v460
    %577 = vmatprep.subr.mxu0 %v457
    %578 = vmatpush1.msra.mxu0 %v456
    %579 = vmatprep.subr.mxu0 %v453
    %580 = vmatpush1.msra.mxu0 %v452
    %581 = vmatprep.subr.mxu0 %v449
    %582 = vmatpush1.msra.mxu0 %v448
    %583 = vmatprep.subr.mxu0 %v445
    %584 = vmatpush1.msra.mxu0 %v444
    %585 = vmatprep.subr.mxu0 %v441
    %586 = vmatpush1.msra.mxu0 %v440
    %587 = vmatprep.subr.mxu0 %v437
    %588 = vmatpush1.msra.mxu0 %v436
    %589 = vmatprep.subr.mxu0 %v433
    %590 = vmatpush1.msra.mxu0 %v432
    %591 = vmatprep.subr.mxu0 %v429
    %592 = vmatpush1.msra.mxu0 %v428
    %593 = vmatprep.subr.mxu0 %v425
    %594 = vmatpush1.msra.mxu0 %v424
    %595 = vmatprep.subr.mxu0 %v421
    %596 = vmatpush1.msra.mxu0 %v420
    %597 = vmatprep.subr.mxu0 %v417
    %598 = vmatpush1.msra.mxu0 %v416
    %599 = vmatprep.subr.mxu0 %v413
    %600 = vmatpush1.msra.mxu0 %v412
    %601 = vmatprep.subr.mxu0 %v409
    %602 = vmatpush1.msra.mxu0 %v408
    %603 = vmatprep.subr.mxu0 %v405
    %604 = vmatpush1.msra.mxu0 %v404
    %605 = vmatprep.subr.mxu0 %v401
    %606 = vmatpush1.msra.mxu0 %v400
    %607 = vmatprep.subr.mxu0 0.0
    %608 = vmatpush2.msra.mxu0 0.0
    %609 = vmatprep.subr.mxu0 0.0
    %610 = vmatpush2.msra.mxu0 0.0
    %611 = vmatprep.subr.mxu0 0.0
    %612 = vmatpush2.msra.mxu0 0.0
    %613 = vmatprep.subr.mxu0 0.0
    %614 = vmatpush2.msra.mxu0 0.0
    %615 = vmatprep.subr.mxu0 0.0
    %616 = vmatpush2.msra.mxu0 0.0
    %617 = vmatprep.subr.mxu0 0.0
    %618 = vmatpush2.msra.mxu0 0.0
    %619 = vmatprep.subr.mxu0 0.0
    %620 = vmatpush2.msra.mxu0 0.0
    %621 = vmatprep.subr.mxu0 0.0
    %622 = vmatpush2.msra.mxu0 0.0
    %623 = vmatprep.subr.mxu0 0.0
    %624 = vmatpush2.msra.mxu0 0.0
    %625 = vmatprep.subr.mxu0 0.0
    %626 = vmatpush2.msra.mxu0 0.0
    %627 = vmatprep.subr.mxu0 0.0
    %628 = vmatpush2.msra.mxu0 0.0
    %629 = vmatprep.subr.mxu0 0.0
    %630 = vmatpush2.msra.mxu0 0.0
    %631 = vmatprep.subr.mxu0 0.0
    %632 = vmatpush2.msra.mxu0 0.0
    %633 = vmatprep.subr.mxu0 0.0
    %634 = vmatpush2.msra.mxu0 0.0
    %635 = vmatprep.subr.mxu0 0.0
    %636 = vmatpush2.msra.mxu0 0.0
    %637 = vmatprep.subr.mxu0 0.0
    %638 = vmatpush2.msra.mxu0 0.0
    %639 = vmatprep.mubr.f32.mxu0 0.0
    %640 = vmatmul.mubr.f32.gmra.mxu0 %v390
    %v641 = vpop.f32.mrf.mxu0
    %v642 = vadd.f32 0.0, %v641
    %v643 = vpop.f32.mrf.mxu0
    %v644 = vadd.f32 0.0, %v643
    %645 = vmatprep.mubr.f32.mxu0 0.0
    %646 = vmatmul.mubr.f32.gmra.mxu0 %v391
    %v647 = vpop.f32.mrf.mxu0
    %v648 = vadd.f32 0.0, %v647
    %v649 = vpop.f32.mrf.mxu0
    %v650 = vadd.f32 0.0, %v649
    %651 = vmatprep.mubr.f32.mxu0 0.0
    %652 = vmatmul.mubr.f32.gmra.mxu0 %v392
    %v653 = vpop.f32.mrf.mxu0
    %v654 = vadd.f32 0.0, %v653
    %v655 = vpop.f32.mrf.mxu0
    %v656 = vadd.f32 0.0, %v655
    %657 = vmatprep.mubr.f32.mxu0 0.0
    %658 = vmatmul.mubr.f32.gmra.mxu0 %v393
    %v659 = vpop.f32.mrf.mxu0
    %v660 = vadd.f32 0.0, %v659
    %v661 = vpop.f32.mrf.mxu0
    %v662 = vadd.f32 0.0, %v661
    %663 = vmatprep.mubr.f32.mxu0 0.0
    %664 = vmatmul.mubr.f32.gmra.mxu0 %v394
    %v665 = vpop.f32.mrf.mxu0
    %v666 = vadd.f32 0.0, %v665
    %v667 = vpop.f32.mrf.mxu0
    %v668 = vadd.f32 0.0, %v667
    %669 = vmatprep.mubr.f32.mxu0 0.0
    %670 = vmatmul.mubr.f32.gmra.mxu0 %v395
    %v671 = vpop.f32.mrf.mxu0
    %v672 = vadd.f32 0.0, %v671
    %v673 = vpop.f32.mrf.mxu0
    %v674 = vadd.f32 0.0, %v673
    %675 = vmatprep.mubr.f32.mxu0 0.0
    %676 = vmatmul.mubr.f32.gmra.mxu0 %v396
    %v677 = vpop.f32.mrf.mxu0
    %v678 = vadd.f32 0.0, %v677
    %v679 = vpop.f32.mrf.mxu0
    %v680 = vadd.f32 0.0, %v679
    %681 = vmatprep.mubr.f32.mxu0 0.0
    %682 = vmatmul.mubr.f32.gmra.mxu0 %v397
    %v683 = vpop.f32.mrf.mxu0
    %v684 = vadd.f32 0.0, %v683
    %v685 = vpop.f32.mrf.mxu0
    %v686 = vadd.f32 0.0, %v685
    %687 = vdwg.mxu0
    %688 = vmax.xlane.f32.xlu0 %v529
    %v689 = vpop.xlane.xlu0 %688
    %690 = vmax.xlane.f32.xlu0 %v535
    %v691 = vpop.xlane.xlu0 %690
    %692 = vmax.xlane.f32.xlu0 %v541
    %v693 = vpop.xlane.xlu0 %692
    %694 = vmax.xlane.f32.xlu0 %v547
    %v695 = vpop.xlane.xlu0 %694
    %696 = vmax.xlane.f32.xlu0 %v553
    %v697 = vpop.xlane.xlu0 %696
    %698 = vmax.xlane.f32.xlu0 %v559
    %v699 = vpop.xlane.xlu0 %698
    %700 = vmax.xlane.f32.xlu0 %v565
    %v701 = vpop.xlane.xlu0 %700
    %702 = vmax.xlane.f32.xlu0 %v571
    %v703 = vpop.xlane.xlu0 %702
    %v704 = vsub.f32 %v529, %v689
    %v705 = vsub.f32 %v535, %v691
    %v706 = vsub.f32 %v541, %v693
    %v707 = vsub.f32 %v547, %v695
    %v708 = vsub.f32 %v553, %v697
    %v709 = vsub.f32 %v559, %v699
    %v710 = vsub.f32 %v565, %v701
    %v711 = vsub.f32 %v571, %v703
    %v712 = vmul.f32 %v704, 1.442695
    %v713 = vpow.pop %v712
    %v714 = vmul.f32 %v705, 1.442695
    %v715 = vpow.pop %v714
    %v716 = vmul.f32 %v706, 1.442695
    %v717 = vpow.pop %v716
    %v718 = vmul.f32 %v707, 1.442695
    %v719 = vpow.pop %v718
    %v720 = vmul.f32 %v708, 1.442695
    %v721 = vpow.pop %v720
    %v722 = vmul.f32 %v709, 1.442695
    %v723 = vpow.pop %v722
    %v724 = vmul.f32 %v710, 1.442695
    %v725 = vpow.pop %v724
    %v726 = vmul.f32 %v711, 1.442695
    %v727 = vpow.pop %v726
    %728 = vadd.xlane.f32.xlu0 %v713
    %v729 = vpop.xlane.xlu0 %728
    %730 = vadd.xlane.f32.xlu0 %v715
    %v731 = vpop.xlane.xlu0 %730
    %732 = vadd.xlane.f32.xlu0 %v717
    %v733 = vpop.xlane.xlu0 %732
    %734 = vadd.xlane.f32.xlu0 %v719
    %v735 = vpop.xlane.xlu0 %734
    %736 = vadd.xlane.f32.xlu0 %v721
    %v737 = vpop.xlane.xlu0 %736
    %738 = vadd.xlane.f32.xlu0 %v723
    %v739 = vpop.xlane.xlu0 %738
    %740 = vadd.xlane.f32.xlu0 %v725
    %v741 = vpop.xlane.xlu0 %740
    %742 = vadd.xlane.f32.xlu0 %v727
    %v743 = vpop.xlane.xlu0 %742
    %v744 = vrcp.pop %v729
    %v745 = vmul.f32 %v713, %v744
    %v746 = vrcp.pop %v731
    %v747 = vmul.f32 %v715, %v746
    %v748 = vrcp.pop %v733
    %v749 = vmul.f32 %v717, %v748
    %v750 = vrcp.pop %v735
    %v751 = vmul.f32 %v719, %v750
    %v752 = vrcp.pop %v737
    %v753 = vmul.f32 %v721, %v752
    %v754 = vrcp.pop %v739
    %v755 = vmul.f32 %v723, %v754
    %v756 = vrcp.pop %v741
    %v757 = vmul.f32 %v725, %v756
    %v758 = vrcp.pop %v743
    %v759 = vmul.f32 %v727, %v758
    %760 = vmax.xlane.f32.xlu0 %v531
    %v761 = vpop.xlane.xlu0 %760
    %762 = vmax.xlane.f32.xlu0 %v537
    %v763 = vpop.xlane.xlu0 %762
    %764 = vmax.xlane.f32.xlu0 %v543
    %v765 = vpop.xlane.xlu0 %764
    %766 = vmax.xlane.f32.xlu0 %v549
    %v767 = vpop.xlane.xlu0 %766
    %768 = vmax.xlane.f32.xlu0 %v555
    %v769 = vpop.xlane.xlu0 %768
    %770 = vmax.xlane.f32.xlu0 %v561
    %v771 = vpop.xlane.xlu0 %770
    %772 = vmax.xlane.f32.xlu0 %v567
    %v773 = vpop.xlane.xlu0 %772
    %774 = vmax.xlane.f32.xlu0 %v573
    %v775 = vpop.xlane.xlu0 %774
    %v776 = vsub.f32 %v531, %v761
    %v777 = vsub.f32 %v537, %v763
    %v778 = vsub.f32 %v543, %v765
    %v779 = vsub.f32 %v549, %v767
    %v780 = vsub.f32 %v555, %v769
    %v781 = vsub.f32 %v561, %v771
    %v782 = vsub.f32 %v567, %v773
    %v783 = vsub.f32 %v573, %v775
    %v784 = vmul.f32 %v776, 1.442695
    %v785 = vpow.pop %v784
    %v786 = vmul.f32 %v777, 1.442695
    %v787 = vpow.pop %v786
    %v788 = vmul.f32 %v778, 1.442695
    %v789 = vpow.pop %v788
    %v790 = vmul.f32 %v779, 1.442695
    %v791 = vpow.pop %v790
    %v792 = vmul.f32 %v780, 1.442695
    %v793 = vpow.pop %v792
    %v794 = vmul.f32 %v781, 1.442695
    %v795 = vpow.pop %v794
    %v796 = vmul.f32 %v782, 1.442695
    %v797 = vpow.pop %v796
    %v798 = vmul.f32 %v783, 1.442695
    %v799 = vpow.pop %v798
    %800 = vadd.xlane.f32.xlu0 %v785
    %v801 = vpop.xlane.xlu0 %800
    %802 = vadd.xlane.f32.xlu0 %v787
    %v803 = vpop.xlane.xlu0 %802
    %804 = vadd.xlane.f32.xlu0 %v789
    %v805 = vpop.xlane.xlu0 %804
    %806 = vadd.xlane.f32.xlu0 %v791
    %v807 = vpop.xlane.xlu0 %806
    %808 = vadd.xlane.f32.xlu0 %v793
    %v809 = vpop.xlane.xlu0 %808
    %810 = vadd.xlane.f32.xlu0 %v795
    %v811 = vpop.xlane.xlu0 %810
    %812 = vadd.xlane.f32.xlu0 %v797
    %v813 = vpop.xlane.xlu0 %812
    %814 = vadd.xlane.f32.xlu0 %v799
    %v815 = vpop.xlane.xlu0 %814
    %v816 = vrcp.pop %v801
    %v817 = vmul.f32 %v785, %v816
    %v818 = vrcp.pop %v803
    %v819 = vmul.f32 %v787, %v818
    %v820 = vrcp.pop %v805
    %v821 = vmul.f32 %v789, %v820
    %v822 = vrcp.pop %v807
    %v823 = vmul.f32 %v791, %v822
    %v824 = vrcp.pop %v809
    %v825 = vmul.f32 %v793, %v824
    %v826 = vrcp.pop %v811
    %v827 = vmul.f32 %v795, %v826
    %v828 = vrcp.pop %v813
    %v829 = vmul.f32 %v797, %v828
    %v830 = vrcp.pop %v815
    %v831 = vmul.f32 %v799, %v830
    %832 = vmax.xlane.f32.xlu0 %v642
    %v833 = vpop.xlane.xlu0 %832
    %834 = vmax.xlane.f32.xlu0 %v648
    %v835 = vpop.xlane.xlu0 %834
    %836 = vmax.xlane.f32.xlu0 %v654
    %v837 = vpop.xlane.xlu0 %836
    %838 = vmax.xlane.f32.xlu0 %v660
    %v839 = vpop.xlane.xlu0 %838
    %840 = vmax.xlane.f32.xlu0 %v666
    %v841 = vpop.xlane.xlu0 %840
    %842 = vmax.xlane.f32.xlu0 %v672
    %v843 = vpop.xlane.xlu0 %842
    %844 = vmax.xlane.f32.xlu0 %v678
    %v845 = vpop.xlane.xlu0 %844
    %846 = vmax.xlane.f32.xlu0 %v684
    %v847 = vpop.xlane.xlu0 %846
    %v848 = vsub.f32 %v642, %v833
    %v849 = vsub.f32 %v648, %v835
    %v850 = vsub.f32 %v654, %v837
    %v851 = vsub.f32 %v660, %v839
    %v852 = vsub.f32 %v666, %v841
    %v853 = vsub.f32 %v672, %v843
    %v854 = vsub.f32 %v678, %v845
    %v855 = vsub.f32 %v684, %v847
    %v856 = vmul.f32 %v848, 1.442695
    %v857 = vpow.pop %v856
    %v858 = vmul.f32 %v849, 1.442695
    %v859 = vpow.pop %v858
    %v860 = vmul.f32 %v850, 1.442695
    %v861 = vpow.pop %v860
    %v862 = vmul.f32 %v851, 1.442695
    %v863 = vpow.pop %v862
    %v864 = vmul.f32 %v852, 1.442695
    %v865 = vpow.pop %v864
    %v866 = vmul.f32 %v853, 1.442695
    %v867 = vpow.pop %v866
    %v868 = vmul.f32 %v854, 1.442695
    %v869 = vpow.pop %v868
    %v870 = vmul.f32 %v855, 1.442695
    %v871 = vpow.pop %v870
    %872 = vadd.xlane.f32.xlu0 %v857
    %v873 = vpop.xlane.xlu0 %872
    %874 = vadd.xlane.f32.xlu0 %v859
    %v875 = vpop.xlane.xlu0 %874
    %876 = vadd.xlane.f32.xlu0 %v861
    %v877 = vpop.xlane.xlu0 %876
    %878 = vadd.xlane.f32.xlu0 %v863
    %v879 = vpop.xlane.xlu0 %878
    %880 = vadd.xlane.f32.xlu0 %v865
    %v881 = vpop.xlane.xlu0 %880
    %882 = vadd.xlane.f32.xlu0 %v867
    %v883 = vpop.xlane.xlu0 %882
    %884 = vadd.xlane.f32.xlu0 %v869
    %v885 = vpop.xlane.xlu0 %884
    %886 = vadd.xlane.f32.xlu0 %v871
    %v887 = vpop.xlane.xlu0 %886
    %v888 = vrcp.pop %v873
    %v889 = vmul.f32 %v857, %v888
    %v890 = vrcp.pop %v875
    %v891 = vmul.f32 %v859, %v890
    %v892 = vrcp.pop %v877
    %v893 = vmul.f32 %v861, %v892
    %v894 = vrcp.pop %v879
    %v895 = vmul.f32 %v863, %v894
    %v896 = vrcp.pop %v881
    %v897 = vmul.f32 %v865, %v896
    %v898 = vrcp.pop %v883
    %v899 = vmul.f32 %v867, %v898
    %v900 = vrcp.pop %v885
    %v901 = vmul.f32 %v869, %v900
    %v902 = vrcp.pop %v887
    %v903 = vmul.f32 %v871, %v902
    %904 = vmax.xlane.f32.xlu0 %v644
    %v905 = vpop.xlane.xlu0 %904
    %906 = vmax.xlane.f32.xlu0 %v650
    %v907 = vpop.xlane.xlu0 %906
    %908 = vmax.xlane.f32.xlu0 %v656
    %v909 = vpop.xlane.xlu0 %908
    %910 = vmax.xlane.f32.xlu0 %v662
    %v911 = vpop.xlane.xlu0 %910
    %912 = vmax.xlane.f32.xlu0 %v668
    %v913 = vpop.xlane.xlu0 %912
    %914 = vmax.xlane.f32.xlu0 %v674
    %v915 = vpop.xlane.xlu0 %914
    %916 = vmax.xlane.f32.xlu0 %v680
    %v917 = vpop.xlane.xlu0 %916
    %918 = vmax.xlane.f32.xlu0 %v686
    %v919 = vpop.xlane.xlu0 %918
    %v920 = vsub.f32 %v644, %v905
    %v921 = vsub.f32 %v650, %v907
    %v922 = vsub.f32 %v656, %v909
    %v923 = vsub.f32 %v662, %v911
    %v924 = vsub.f32 %v668, %v913
    %v925 = vsub.f32 %v674, %v915
    %v926 = vsub.f32 %v680, %v917
    %v927 = vsub.f32 %v686, %v919
    %v928 = vmul.f32 %v920, 1.442695
    %v929 = vpow.pop %v928
    %v930 = vmul.f32 %v921, 1.442695
    %v931 = vpow.pop %v930
    %v932 = vmul.f32 %v922, 1.442695
    %v933 = vpow.pop %v932
    %v934 = vmul.f32 %v923, 1.442695
    %v935 = vpow.pop %v934
    %v936 = vmul.f32 %v924, 1.442695
    %v937 = vpow.pop %v936
    %v938 = vmul.f32 %v925, 1.442695
    %v939 = vpow.pop %v938
    %v940 = vmul.f32 %v926, 1.442695
    %v941 = vpow.pop %v940
    %v942 = vmul.f32 %v927, 1.442695
    %v943 = vpow.pop %v942
    %944 = vadd.xlane.f32.xlu0 %v929
    %v945 = vpop.xlane.xlu0 %944
    %946 = vadd.xlane.f32.xlu0 %v931
    %v947 = vpop.xlane.xlu0 %946
    %948 = vadd.xlane.f32.xlu0 %v933
    %v949 = vpop.xlane.xlu0 %948
    %950 = vadd.xlane.f32.xlu0 %v935
    %v951 = vpop.xlane.xlu0 %950
    %952 = vadd.xlane.f32.xlu0 %v937
    %v953 = vpop.xlane.xlu0 %952
    %954 = vadd.xlane.f32.xlu0 %v939
    %v955 = vpop.xlane.xlu0 %954
    %956 = vadd.xlane.f32.xlu0 %v941
    %v957 = vpop.xlane.xlu0 %956
    %958 = vadd.xlane.f32.xlu0 %v943
    %v959 = vpop.xlane.xlu0 %958
    %v960 = vrcp.pop %v945
    %v961 = vmul.f32 %v929, %v960
    %v962 = vrcp.pop %v947
    %v963 = vmul.f32 %v931, %v962
    %v964 = vrcp.pop %v949
    %v965 = vmul.f32 %v933, %v964
    %v966 = vrcp.pop %v951
    %v967 = vmul.f32 %v935, %v966
    %v968 = vrcp.pop %v953
    %v969 = vmul.f32 %v937, %v968
    %v970 = vrcp.pop %v955
    %v971 = vmul.f32 %v939, %v970
    %v972 = vrcp.pop %v957
    %v973 = vmul.f32 %v941, %v972
    %v974 = vrcp.pop %v959
    %v975 = vmul.f32 %v943, %v974
    %v976 = vld [vmem:[%s3] sm:$0xff]
    %v977 = vld [vmem:[%s3 + $0x8] sm:$0xff]
    %v978 = vld [vmem:[%s3 + $0x10] sm:$0xff]
    %v979 = vld [vmem:[%s3 + $0x18] sm:$0xff]
    %v980 = vld [vmem:[%s3 + $0x20] sm:$0xff]
    %v981 = vld [vmem:[%s3 + $0x28] sm:$0xff]
    %v982 = vld [vmem:[%s3 + $0x30] sm:$0xff]
    %v983 = vld [vmem:[%s3 + $0x38] sm:$0xff]
    %v984 = vld [vmem:[%s3 + $0x40] sm:$0xff]
    %v985 = vld [vmem:[%s3 + $0x48] sm:$0xff]
    %v986 = vld [vmem:[%s3 + $0x50] sm:$0xff]
    %v987 = vld [vmem:[%s3 + $0x58] sm:$0xff]
    %v988 = vld [vmem:[%s3 + $0x60] sm:$0xff]
    %v989 = vld [vmem:[%s3 + $0x68] sm:$0xff]
    %v990 = vld [vmem:[%s3 + $0x70] sm:$0xff]
    %v991 = vld [vmem:[%s3 + $0x78] sm:$0xff]
    %v992 = vld [vmem:[%s3 + $0x80] sm:$0xff]
    %v993 = vld [vmem:[%s3 + $0x88] sm:$0xff]
    %v994 = vld [vmem:[%s3 + $0x90] sm:$0xff]
    %v995 = vld [vmem:[%s3 + $0x98] sm:$0xff]
    %v996 = vld [vmem:[%s3 + $0xa0] sm:$0xff]
    %v997 = vld [vmem:[%s3 + $0xa8] sm:$0xff]
    %v998 = vld [vmem:[%s3 + $0xb0] sm:$0xff]
    %v999 = vld [vmem:[%s3 + $0xb8] sm:$0xff]
    %v1000 = vld [vmem:[%s3 + $0xc0] sm:$0xff]
    %v1001 = vld [vmem:[%s3 + $0xc8] sm:$0xff]
    %v1002 = vld [vmem:[%s3 + $0xd0] sm:$0xff]
    %v1003 = vld [vmem:[%s3 + $0xd8] sm:$0xff]
    %v1004 = vld [vmem:[%s3 + $0xe0] sm:$0xff]
    %v1005 = vld [vmem:[%s3 + $0xe8] sm:$0xff]
    %v1006 = vld [vmem:[%s3 + $0xf0] sm:$0xff]
    %v1007 = vld [vmem:[%s3 + $0xf8] sm:$0xff]
    %v1008 = vld [vmem:[%s3 + $0x100] sm:$0xff]
    %v1009 = vld [vmem:[%s3 + $0x108] sm:$0xff]
    %v1010 = vld [vmem:[%s3 + $0x110] sm:$0xff]
    %v1011 = vld [vmem:[%s3 + $0x118] sm:$0xff]
    %v1012 = vld [vmem:[%s3 + $0x120] sm:$0xff]
    %v1013 = vld [vmem:[%s3 + $0x128] sm:$0xff]
    %v1014 = vld [vmem:[%s3 + $0x130] sm:$0xff]
    %v1015 = vld [vmem:[%s3 + $0x138] sm:$0xff]
    %v1016 = vld [vmem:[%s3 + $0x140] sm:$0xff]
    %v1017 = vld [vmem:[%s3 + $0x148] sm:$0xff]
    %v1018 = vld [vmem:[%s3 + $0x150] sm:$0xff]
    %v1019 = vld [vmem:[%s3 + $0x158] sm:$0xff]
    %v1020 = vld [vmem:[%s3 + $0x160] sm:$0xff]
    %v1021 = vld [vmem:[%s3 + $0x168] sm:$0xff]
    %v1022 = vld [vmem:[%s3 + $0x170] sm:$0xff]
    %v1023 = vld [vmem:[%s3 + $0x178] sm:$0xff]
    %v1024 = vld [vmem:[%s3 + $0x180] sm:$0xff]
    %v1025 = vld [vmem:[%s3 + $0x188] sm:$0xff]
    %v1026 = vld [vmem:[%s3 + $0x190] sm:$0xff]
    %v1027 = vld [vmem:[%s3 + $0x198] sm:$0xff]
    %v1028 = vld [vmem:[%s3 + $0x1a0] sm:$0xff]
    %v1029 = vld [vmem:[%s3 + $0x1a8] sm:$0xff]
    %v1030 = vld [vmem:[%s3 + $0x1b0] sm:$0xff]
    %v1031 = vld [vmem:[%s3 + $0x1b8] sm:$0xff]
    %v1032 = vld [vmem:[%s3 + $0x1c0] sm:$0xff]
    %v1033 = vld [vmem:[%s3 + $0x1c8] sm:$0xff]
    %v1034 = vld [vmem:[%s3 + $0x1d0] sm:$0xff]
    %v1035 = vld [vmem:[%s3 + $0x1d8] sm:$0xff]
    %v1036 = vld [vmem:[%s3 + $0x1e0] sm:$0xff]
    %v1037 = vld [vmem:[%s3 + $0x1e8] sm:$0xff]
    %v1038 = vld [vmem:[%s3 + $0x1f0] sm:$0xff]
    %v1039 = vld [vmem:[%s3 + $0x1f8] sm:$0xff]
    %1040 = vmatprep.subr.mxu0 0.0
    %1041 = vmatpush1.msra.mxu0 %v991
    %1042 = vmatprep.subr.mxu0 0.0
    %1043 = vmatpush1.msra.mxu0 %v990
    %1044 = vmatprep.subr.mxu0 0.0
    %1045 = vmatpush1.msra.mxu0 %v989
    %1046 = vmatprep.subr.mxu0 0.0
    %1047 = vmatpush1.msra.mxu0 %v988
    %1048 = vmatprep.subr.mxu0 0.0
    %1049 = vmatpush1.msra.mxu0 %v987
    %1050 = vmatprep.subr.mxu0 0.0
    %1051 = vmatpush1.msra.mxu0 %v986
    %1052 = vmatprep.subr.mxu0 0.0
    %1053 = vmatpush1.msra.mxu0 %v985
    %1054 = vmatprep.subr.mxu0 0.0
    %1055 = vmatpush1.msra.mxu0 %v984
    %1056 = vmatprep.subr.mxu0 0.0
    %1057 = vmatpush1.msra.mxu0 %v983
    %1058 = vmatprep.subr.mxu0 0.0
    %1059 = vmatpush1.msra.mxu0 %v982
    %1060 = vmatprep.subr.mxu0 0.0
    %1061 = vmatpush1.msra.mxu0 %v981
    %1062 = vmatprep.subr.mxu0 0.0
    %1063 = vmatpush1.msra.mxu0 %v980
    %1064 = vmatprep.subr.mxu0 0.0
    %1065 = vmatpush1.msra.mxu0 %v979
    %1066 = vmatprep.subr.mxu0 0.0
    %1067 = vmatpush1.msra.mxu0 %v978
    %1068 = vmatprep.subr.mxu0 0.0
    %1069 = vmatpush1.msra.mxu0 %v977
    %1070 = vmatprep.subr.mxu0 0.0
    %1071 = vmatpush1.msra.mxu0 %v976
    %1072 = vmatprep.subr.mxu0 0.0
    %1073 = vmatpush2.msra.mxu0 %v1007
    %1074 = vmatprep.subr.mxu0 0.0
    %1075 = vmatpush2.msra.mxu0 %v1006
    %1076 = vmatprep.subr.mxu0 0.0
    %1077 = vmatpush2.msra.mxu0 %v1005
    %1078 = vmatprep.subr.mxu0 0.0
    %1079 = vmatpush2.msra.mxu0 %v1004
    %1080 = vmatprep.subr.mxu0 0.0
    %1081 = vmatpush2.msra.mxu0 %v1003
    %1082 = vmatprep.subr.mxu0 0.0
    %1083 = vmatpush2.msra.mxu0 %v1002
    %1084 = vmatprep.subr.mxu0 0.0
    %1085 = vmatpush2.msra.mxu0 %v1001
    %1086 = vmatprep.subr.mxu0 0.0
    %1087 = vmatpush2.msra.mxu0 %v1000
    %1088 = vmatprep.subr.mxu0 0.0
    %1089 = vmatpush2.msra.mxu0 %v999
    %1090 = vmatprep.subr.mxu0 0.0
    %1091 = vmatpush2.msra.mxu0 %v998
    %1092 = vmatprep.subr.mxu0 0.0
    %1093 = vmatpush2.msra.mxu0 %v997
    %1094 = vmatprep.subr.mxu0 0.0
    %1095 = vmatpush2.msra.mxu0 %v996
    %1096 = vmatprep.subr.mxu0 0.0
    %1097 = vmatpush2.msra.mxu0 %v995
    %1098 = vmatprep.subr.mxu0 0.0
    %1099 = vmatpush2.msra.mxu0 %v994
    %1100 = vmatprep.subr.mxu0 0.0
    %1101 = vmatpush2.msra.mxu0 %v993
    %1102 = vmatprep.subr.mxu0 0.0
    %1103 = vmatpush2.msra.mxu0 %v992
    %1104 = vmatprep.mubr.f32.mxu0 %v817
    %1105 = vmatmul.mubr.f32.gmra.mxu0 %v745
    %v1106 = vpop.f32.mrf.mxu0
    %v1107 = vadd.f32 0.0, %v1106
    %v1108 = vpop.f32.mrf.mxu0
    %1109 = vmatprep.mubr.f32.mxu0 %v819
    %1110 = vmatmul.mubr.f32.gmra.mxu0 %v747
    %v1111 = vpop.f32.mrf.mxu0
    %v1112 = vadd.f32 0.0, %v1111
    %v1113 = vpop.f32.mrf.mxu0
    %1114 = vmatprep.mubr.f32.mxu0 %v821
    %1115 = vmatmul.mubr.f32.gmra.mxu0 %v749
    %v1116 = vpop.f32.mrf.mxu0
    %v1117 = vadd.f32 0.0, %v1116
    %v1118 = vpop.f32.mrf.mxu0
    %1119 = vmatprep.mubr.f32.mxu0 %v823
    %1120 = vmatmul.mubr.f32.gmra.mxu0 %v751
    %v1121 = vpop.f32.mrf.mxu0
    %v1122 = vadd.f32 0.0, %v1121
    %v1123 = vpop.f32.mrf.mxu0
    %1124 = vmatprep.mubr.f32.mxu0 %v825
    %1125 = vmatmul.mubr.f32.gmra.mxu0 %v753
    %v1126 = vpop.f32.mrf.mxu0
    %v1127 = vadd.f32 0.0, %v1126
    %v1128 = vpop.f32.mrf.mxu0
    %1129 = vmatprep.mubr.f32.mxu0 %v827
    %1130 = vmatmul.mubr.f32.gmra.mxu0 %v755
    %v1131 = vpop.f32.mrf.mxu0
    %v1132 = vadd.f32 0.0, %v1131
    %v1133 = vpop.f32.mrf.mxu0
    %1134 = vmatprep.mubr.f32.mxu0 %v829
    %1135 = vmatmul.mubr.f32.gmra.mxu0 %v757
    %v1136 = vpop.f32.mrf.mxu0
    %v1137 = vadd.f32 0.0, %v1136
    %v1138 = vpop.f32.mrf.mxu0
    %1139 = vmatprep.mubr.f32.mxu0 %v831
    %1140 = vmatmul.mubr.f32.gmra.mxu0 %v759
    %v1141 = vpop.f32.mrf.mxu0
    %v1142 = vadd.f32 0.0, %v1141
    %v1143 = vpop.f32.mrf.mxu0
    %1144 = vdwg.mxu0
    %1145 = vmatprep.subr.mxu0 0.0
    %1146 = vmatpush1.msra.mxu0 %v1023
    %1147 = vmatprep.subr.mxu0 0.0
    %1148 = vmatpush1.msra.mxu0 %v1022
    %1149 = vmatprep.subr.mxu0 0.0
    %1150 = vmatpush1.msra.mxu0 %v1021
    %1151 = vmatprep.subr.mxu0 0.0
    %1152 = vmatpush1.msra.mxu0 %v1020
    %1153 = vmatprep.subr.mxu0 0.0
    %1154 = vmatpush1.msra.mxu0 %v1019
    %1155 = vmatprep.subr.mxu0 0.0
    %1156 = vmatpush1.msra.mxu0 %v1018
    %1157 = vmatprep.subr.mxu0 0.0
    %1158 = vmatpush1.msra.mxu0 %v1017
    %1159 = vmatprep.subr.mxu0 0.0
    %1160 = vmatpush1.msra.mxu0 %v1016
    %1161 = vmatprep.subr.mxu0 0.0
    %1162 = vmatpush1.msra.mxu0 %v1015
    %1163 = vmatprep.subr.mxu0 0.0
    %1164 = vmatpush1.msra.mxu0 %v1014
    %1165 = vmatprep.subr.mxu0 0.0
    %1166 = vmatpush1.msra.mxu0 %v1013
    %1167 = vmatprep.subr.mxu0 0.0
    %1168 = vmatpush1.msra.mxu0 %v1012
    %1169 = vmatprep.subr.mxu0 0.0
    %1170 = vmatpush1.msra.mxu0 %v1011
    %1171 = vmatprep.subr.mxu0 0.0
    %1172 = vmatpush1.msra.mxu0 %v1010
    %1173 = vmatprep.subr.mxu0 0.0
    %1174 = vmatpush1.msra.mxu0 %v1009
    %1175 = vmatprep.subr.mxu0 0.0
    %1176 = vmatpush1.msra.mxu0 %v1008
    %1177 = vmatprep.subr.mxu0 0.0
    %1178 = vmatpush2.msra.mxu0 %v1039
    %1179 = vmatprep.subr.mxu0 0.0
    %1180 = vmatpush2.msra.mxu0 %v1038
    %1181 = vmatprep.subr.mxu0 0.0
    %1182 = vmatpush2.msra.mxu0 %v1037
    %1183 = vmatprep.subr.mxu0 0.0
    %1184 = vmatpush2.msra.mxu0 %v1036
    %1185 = vmatprep.subr.mxu0 0.0
    %1186 = vmatpush2.msra.mxu0 %v1035
    %1187 = vmatprep.subr.mxu0 0.0
    %1188 = vmatpush2.msra.mxu0 %v1034
    %1189 = vmatprep.subr.mxu0 0.0
    %1190 = vmatpush2.msra.mxu0 %v1033
    %1191 = vmatprep.subr.mxu0 0.0
    %1192 = vmatpush2.msra.mxu0 %v1032
    %1193 = vmatprep.subr.mxu0 0.0
    %1194 = vmatpush2.msra.mxu0 %v1031
    %1195 = vmatprep.subr.mxu0 0.0
    %1196 = vmatpush2.msra.mxu0 %v1030
    %1197 = vmatprep.subr.mxu0 0.0
    %1198 = vmatpush2.msra.mxu0 %v1029
    %1199 = vmatprep.subr.mxu0 0.0
    %1200 = vmatpush2.msra.mxu0 %v1028
    %1201 = vmatprep.subr.mxu0 0.0
    %1202 = vmatpush2.msra.mxu0 %v1027
    %1203 = vmatprep.subr.mxu0 0.0
    %1204 = vmatpush2.msra.mxu0 %v1026
    %1205 = vmatprep.subr.mxu0 0.0
    %1206 = vmatpush2.msra.mxu0 %v1025
    %1207 = vmatprep.subr.mxu0 0.0
    %1208 = vmatpush2.msra.mxu0 %v1024
    %1209 = vmatprep.mubr.f32.mxu0 %v961
    %1210 = vmatmul.mubr.f32.gmra.mxu0 %v889
    %v1211 = vpop.f32.mrf.mxu0
    %v1212 = vadd.f32 %v1107, %v1211
    %v1213 = vpop.f32.mrf.mxu0
    %1214 = vmatprep.mubr.f32.mxu0 %v963
    %1215 = vmatmul.mubr.f32.gmra.mxu0 %v891
    %v1216 = vpop.f32.mrf.mxu0
    %v1217 = vadd.f32 %v1112, %v1216
    %v1218 = vpop.f32.mrf.mxu0
    %1219 = vmatprep.mubr.f32.mxu0 %v965
    %1220 = vmatmul.mubr.f32.gmra.mxu0 %v893
    %v1221 = vpop.f32.mrf.mxu0
    %v1222 = vadd.f32 %v1117, %v1221
    %v1223 = vpop.f32.mrf.mxu0
    %1224 = vmatprep.mubr.f32.mxu0 %v967
    %1225 = vmatmul.mubr.f32.gmra.mxu0 %v895
    %v1226 = vpop.f32.mrf.mxu0
    %v1227 = vadd.f32 %v1122, %v1226
    %v1228 = vpop.f32.mrf.mxu0
    %1229 = vmatprep.mubr.f32.mxu0 %v969
    %1230 = vmatmul.mubr.f32.gmra.mxu0 %v897
    %v1231 = vpop.f32.mrf.mxu0
    %v1232 = vadd.f32 %v1127, %v1231
    %v1233 = vpop.f32.mrf.mxu0
    %1234 = vmatprep.mubr.f32.mxu0 %v971
    %1235 = vmatmul.mubr.f32.gmra.mxu0 %v899
    %v1236 = vpop.f32.mrf.mxu0
    %v1237 = vadd.f32 %v1132, %v1236
    %v1238 = vpop.f32.mrf.mxu0
    %1239 = vmatprep.mubr.f32.mxu0 %v973
    %1240 = vmatmul.mubr.f32.gmra.mxu0 %v901
    %v1241 = vpop.f32.mrf.mxu0
    %v1242 = vadd.f32 %v1137, %v1241
    %v1243 = vpop.f32.mrf.mxu0
    %1244 = vmatprep.mubr.f32.mxu0 %v975
    %1245 = vmatmul.mubr.f32.gmra.mxu0 %v903
    %v1246 = vpop.f32.mrf.mxu0
    %v1247 = vadd.f32 %v1142, %v1246
    %v1248 = vpop.f32.mrf.mxu0
    %1249 = vdwg.mxu0
    %v1250 = vld [vmem:[%s3 + $0x200] sm:$0xff]
    %v1251 = vld [vmem:[%s3 + $0x208] sm:$0xff]
    %v1252 = vld [vmem:[%s3 + $0x210] sm:$0xff]
    %v1253 = vld [vmem:[%s3 + $0x218] sm:$0xff]
    %v1254 = vld [vmem:[%s3 + $0x220] sm:$0xff]
    %v1255 = vld [vmem:[%s3 + $0x228] sm:$0xff]
    %v1256 = vld [vmem:[%s3 + $0x230] sm:$0xff]
    %v1257 = vld [vmem:[%s3 + $0x238] sm:$0xff]
    %v1258 = vld [vmem:[%s3 + $0x240] sm:$0xff]
    %v1259 = vld [vmem:[%s3 + $0x248] sm:$0xff]
    %v1260 = vld [vmem:[%s3 + $0x250] sm:$0xff]
    %v1261 = vld [vmem:[%s3 + $0x258] sm:$0xff]
    %v1262 = vld [vmem:[%s3 + $0x260] sm:$0xff]
    %v1263 = vld [vmem:[%s3 + $0x268] sm:$0xff]
    %v1264 = vld [vmem:[%s3 + $0x270] sm:$0xff]
    %v1265 = vld [vmem:[%s3 + $0x278] sm:$0xff]
    %v1266 = vld [vmem:[%s3 + $0x280] sm:$0xff]
    %v1267 = vld [vmem:[%s3 + $0x288] sm:$0xff]
    %v1268 = vld [vmem:[%s3 + $0x290] sm:$0xff]
    %v1269 = vld [vmem:[%s3 + $0x298] sm:$0xff]
    %v1270 = vld [vmem:[%s3 + $0x2a0] sm:$0xff]
    %v1271 = vld [vmem:[%s3 + $0x2a8] sm:$0xff]
    %v1272 = vld [vmem:[%s3 + $0x2b0] sm:$0xff]
    %v1273 = vld [vmem:[%s3 + $0x2b8] sm:$0xff]
    %v1274 = vld [vmem:[%s3 + $0x2c0] sm:$0xff]
    %v1275 = vld [vmem:[%s3 + $0x2c8] sm:$0xff]
    %v1276 = vld [vmem:[%s3 + $0x2d0] sm:$0xff]
    %v1277 = vld [vmem:[%s3 + $0x2d8] sm:$0xff]
    %v1278 = vld [vmem:[%s3 + $0x2e0] sm:$0xff]
    %v1279 = vld [vmem:[%s3 + $0x2e8] sm:$0xff]
    %v1280 = vld [vmem:[%s3 + $0x2f0] sm:$0xff]
    %v1281 = vld [vmem:[%s3 + $0x2f8] sm:$0xff]
    %vm1282 = vcmask 523264
    %v1284 = vsel %vm1282, %v1266, 0
    %v1287 = vsel %vm1282, %v1267, 0
    %v1290 = vsel %vm1282, %v1268, 0
    %v1293 = vsel %vm1282, %v1269, 0
    %v1296 = vsel %vm1282, %v1270, 0
    %v1299 = vsel %vm1282, %v1271, 0
    %v1302 = vsel %vm1282, %v1272, 0
    %v1305 = vsel %vm1282, %v1273, 0
    %v1308 = vsel %vm1282, %v1274, 0
    %v1311 = vsel %vm1282, %v1275, 0
    %v1314 = vsel %vm1282, %v1276, 0
    %v1317 = vsel %vm1282, %v1277, 0
    %v1320 = vsel %vm1282, %v1278, 0
    %v1323 = vsel %vm1282, %v1279, 0
    %v1326 = vsel %vm1282, %v1280, 0
    %v1329 = vsel %vm1282, %v1281, 0
    %1331 = vmatprep.subr.mxu0 0.0
    %1332 = vmatpush1.msra.mxu0 0.0
    %1333 = vmatprep.subr.mxu0 0.0
    %1334 = vmatpush1.msra.mxu0 0.0
    %1335 = vmatprep.subr.mxu0 0.0
    %1336 = vmatpush1.msra.mxu0 0.0
    %1337 = vmatprep.subr.mxu0 0.0
    %1338 = vmatpush1.msra.mxu0 0.0
    %1339 = vmatprep.subr.mxu0 0.0
    %1340 = vmatpush1.msra.mxu0 0.0
    %1341 = vmatprep.subr.mxu0 0.0
    %1342 = vmatpush1.msra.mxu0 0.0
    %1343 = vmatprep.subr.mxu0 0.0
    %1344 = vmatpush1.msra.mxu0 0.0
    %1345 = vmatprep.subr.mxu0 0.0
    %1346 = vmatpush1.msra.mxu0 0.0
    %1347 = vmatprep.subr.mxu0 0.0
    %1348 = vmatpush1.msra.mxu0 %v1247
    %1349 = vmatprep.subr.mxu0 0.0
    %1350 = vmatpush1.msra.mxu0 %v1242
    %1351 = vmatprep.subr.mxu0 0.0
    %1352 = vmatpush1.msra.mxu0 %v1237
    %1353 = vmatprep.subr.mxu0 0.0
    %1354 = vmatpush1.msra.mxu0 %v1232
    %1355 = vmatprep.subr.mxu0 0.0
    %1356 = vmatpush1.msra.mxu0 %v1227
    %1357 = vmatprep.subr.mxu0 0.0
    %1358 = vmatpush1.msra.mxu0 %v1222
    %1359 = vmatprep.subr.mxu0 0.0
    %1360 = vmatpush1.msra.mxu0 %v1217
    %1361 = vmatprep.subr.mxu0 0.0
    %1362 = vmatpush1.msra.mxu0 %v1212
    %1363 = vmatprep.subr.mxu0 0.0
    %1364 = vmatpush2.msra.mxu0 0.0
    %1365 = vmatprep.subr.mxu0 0.0
    %1366 = vmatpush2.msra.mxu0 0.0
    %1367 = vmatprep.subr.mxu0 0.0
    %1368 = vmatpush2.msra.mxu0 0.0
    %1369 = vmatprep.subr.mxu0 0.0
    %1370 = vmatpush2.msra.mxu0 0.0
    %1371 = vmatprep.subr.mxu0 0.0
    %1372 = vmatpush2.msra.mxu0 0.0
    %1373 = vmatprep.subr.mxu0 0.0
    %1374 = vmatpush2.msra.mxu0 0.0
    %1375 = vmatprep.subr.mxu0 0.0
    %1376 = vmatpush2.msra.mxu0 0.0
    %1377 = vmatprep.subr.mxu0 0.0
    %1378 = vmatpush2.msra.mxu0 0.0
    %1379 = vmatprep.subr.mxu0 0.0
    %1380 = vmatpush2.msra.mxu0 0.0
    %1381 = vmatprep.subr.mxu0 0.0
    %1382 = vmatpush2.msra.mxu0 0.0
    %1383 = vmatprep.subr.mxu0 0.0
    %1384 = vmatpush2.msra.mxu0 0.0
    %1385 = vmatprep.subr.mxu0 0.0
    %1386 = vmatpush2.msra.mxu0 0.0
    %1387 = vmatprep.subr.mxu0 0.0
    %1388 = vmatpush2.msra.mxu0 0.0
    %1389 = vmatprep.subr.mxu0 0.0
    %1390 = vmatpush2.msra.mxu0 0.0
    %1391 = vmatprep.subr.mxu0 0.0
    %1392 = vmatpush2.msra.mxu0 0.0
    %1393 = vmatprep.subr.mxu0 0.0
    %1394 = vmatpush2.msra.mxu0 0.0
    %1395 = vmatprep.mubr.f32.mxu0 0.0
    %1396 = vmatmul.mubr.f32.gmra.mxu0 %v1284
    %v1397 = vpop.f32.mrf.mxu0
    %v1398 = vadd.f32 0.0, %v1397
    %v1399 = vpop.f32.mrf.mxu0
    %1400 = vmatprep.mubr.f32.mxu0 0.0
    %1401 = vmatmul.mubr.f32.gmra.mxu0 %v1287
    %v1402 = vpop.f32.mrf.mxu0
    %v1403 = vadd.f32 0.0, %v1402
    %v1404 = vpop.f32.mrf.mxu0
    %1405 = vmatprep.mubr.f32.mxu0 0.0
    %1406 = vmatmul.mubr.f32.gmra.mxu0 %v1290
    %v1407 = vpop.f32.mrf.mxu0
    %v1408 = vadd.f32 0.0, %v1407
    %v1409 = vpop.f32.mrf.mxu0
    %1410 = vmatprep.mubr.f32.mxu0 0.0
    %1411 = vmatmul.mubr.f32.gmra.mxu0 %v1293
    %v1412 = vpop.f32.mrf.mxu0
    %v1413 = vadd.f32 0.0, %v1412
    %v1414 = vpop.f32.mrf.mxu0
    %1415 = vmatprep.mubr.f32.mxu0 0.0
    %1416 = vmatmul.mubr.f32.gmra.mxu0 %v1296
    %v1417 = vpop.f32.mrf.mxu0
    %v1418 = vadd.f32 0.0, %v1417
    %v1419 = vpop.f32.mrf.mxu0
    %1420 = vmatprep.mubr.f32.mxu0 0.0
    %1421 = vmatmul.mubr.f32.gmra.mxu0 %v1299
    %v1422 = vpop.f32.mrf.mxu0
    %v1423 = vadd.f32 0.0, %v1422
    %v1424 = vpop.f32.mrf.mxu0
    %1425 = vmatprep.mubr.f32.mxu0 0.0
    %1426 = vmatmul.mubr.f32.gmra.mxu0 %v1302
    %v1427 = vpop.f32.mrf.mxu0
    %v1428 = vadd.f32 0.0, %v1427
    %v1429 = vpop.f32.mrf.mxu0
    %1430 = vmatprep.mubr.f32.mxu0 0.0
    %1431 = vmatmul.mubr.f32.gmra.mxu0 %v1305
    %v1432 = vpop.f32.mrf.mxu0
    %v1433 = vadd.f32 0.0, %v1432
    %v1434 = vpop.f32.mrf.mxu0
    %1435 = vmatprep.mubr.f32.mxu0 0.0
    %1436 = vmatmul.mubr.f32.gmra.mxu0 %v1308
    %v1437 = vpop.f32.mrf.mxu0
    %v1438 = vadd.f32 0.0, %v1437
    %v1439 = vpop.f32.mrf.mxu0
    %1440 = vmatprep.mubr.f32.mxu0 0.0
    %1441 = vmatmul.mubr.f32.gmra.mxu0 %v1311
    %v1442 = vpop.f32.mrf.mxu0
    %v1443 = vadd.f32 0.0, %v1442
    %v1444 = vpop.f32.mrf.mxu0
    %1445 = vmatprep.mubr.f32.mxu0 0.0
    %1446 = vmatmul.mubr.f32.gmra.mxu0 %v1314
    %v1447 = vpop.f32.mrf.mxu0
    %v1448 = vadd.f32 0.0, %v1447
    %v1449 = vpop.f32.mrf.mxu0
    %1450 = vmatprep.mubr.f32.mxu0 0.0
    %1451 = vmatmul.mubr.f32.gmra.mxu0 %v1317
    %v1452 = vpop.f32.mrf.mxu0
    %v1453 = vadd.f32 0.0, %v1452
    %v1454 = vpop.f32.mrf.mxu0
    %1455 = vmatprep.mubr.f32.mxu0 0.0
    %1456 = vmatmul.mubr.f32.gmra.mxu0 %v1320
    %v1457 = vpop.f32.mrf.mxu0
    %v1458 = vadd.f32 0.0, %v1457
    %v1459 = vpop.f32.mrf.mxu0
    %1460 = vmatprep.mubr.f32.mxu0 0.0
    %1461 = vmatmul.mubr.f32.gmra.mxu0 %v1323
    %v1462 = vpop.f32.mrf.mxu0
    %v1463 = vadd.f32 0.0, %v1462
    %v1464 = vpop.f32.mrf.mxu0
    %1465 = vmatprep.mubr.f32.mxu0 0.0
    %1466 = vmatmul.mubr.f32.gmra.mxu0 %v1326
    %v1467 = vpop.f32.mrf.mxu0
    %v1468 = vadd.f32 0.0, %v1467
    %v1469 = vpop.f32.mrf.mxu0
    %1470 = vmatprep.mubr.f32.mxu0 0.0
    %1471 = vmatmul.mubr.f32.gmra.mxu0 %v1329
    %v1472 = vpop.f32.mrf.mxu0
    %v1473 = vadd.f32 0.0, %v1472
    %v1474 = vpop.f32.mrf.mxu0
    %1475 = vdwg.mxu0
    %v1476 = vadd.f32 %v1250, %v1398
    %v1477 = vadd.f32 %v1251, %v1403
    %v1478 = vadd.f32 %v1252, %v1408
    %v1479 = vadd.f32 %v1253, %v1413
    %v1480 = vadd.f32 %v1254, %v1418
    %v1481 = vadd.f32 %v1255, %v1423
    %v1482 = vadd.f32 %v1256, %v1428
    %v1483 = vadd.f32 %v1257, %v1433
    %v1484 = vadd.f32 %v1258, %v1438
    %v1485 = vadd.f32 %v1259, %v1443
    %v1486 = vadd.f32 %v1260, %v1448
    %v1487 = vadd.f32 %v1261, %v1453
    %v1488 = vadd.f32 %v1262, %v1458
    %v1489 = vadd.f32 %v1263, %v1463
    %v1490 = vadd.f32 %v1264, %v1468
    %v1491 = vadd.f32 %v1265, %v1473
    %v1492 = vsel %vm1282, %v1476, 0.0
    %1493 = vadd.xlane.f32.xlu0 %v1492
    %v1494 = vpop.xlane.xlu0 %1493
    %v1495 = vsel %vm1282, %v1477, 0.0
    %1496 = vadd.xlane.f32.xlu0 %v1495
    %v1497 = vpop.xlane.xlu0 %1496
    %v1498 = vsel %vm1282, %v1478, 0.0
    %1499 = vadd.xlane.f32.xlu0 %v1498
    %v1500 = vpop.xlane.xlu0 %1499
    %v1501 = vsel %vm1282, %v1479, 0.0
    %1502 = vadd.xlane.f32.xlu0 %v1501
    %v1503 = vpop.xlane.xlu0 %1502
    %v1504 = vsel %vm1282, %v1480, 0.0
    %1505 = vadd.xlane.f32.xlu0 %v1504
    %v1506 = vpop.xlane.xlu0 %1505
    %v1507 = vsel %vm1282, %v1481, 0.0
    %1508 = vadd.xlane.f32.xlu0 %v1507
    %v1509 = vpop.xlane.xlu0 %1508
    %v1510 = vsel %vm1282, %v1482, 0.0
    %1511 = vadd.xlane.f32.xlu0 %v1510
    %v1512 = vpop.xlane.xlu0 %1511
    %v1513 = vsel %vm1282, %v1483, 0.0
    %1514 = vadd.xlane.f32.xlu0 %v1513
    %v1515 = vpop.xlane.xlu0 %1514
    %v1516 = vsel %vm1282, %v1484, 0.0
    %1517 = vadd.xlane.f32.xlu0 %v1516
    %v1518 = vpop.xlane.xlu0 %1517
    %v1519 = vsel %vm1282, %v1485, 0.0
    %1520 = vadd.xlane.f32.xlu0 %v1519
    %v1521 = vpop.xlane.xlu0 %1520
    %v1522 = vsel %vm1282, %v1486, 0.0
    %1523 = vadd.xlane.f32.xlu0 %v1522
    %v1524 = vpop.xlane.xlu0 %1523
    %v1525 = vsel %vm1282, %v1487, 0.0
    %1526 = vadd.xlane.f32.xlu0 %v1525
    %v1527 = vpop.xlane.xlu0 %1526
    %v1528 = vsel %vm1282, %v1488, 0.0
    %1529 = vadd.xlane.f32.xlu0 %v1528
    %v1530 = vpop.xlane.xlu0 %1529
    %v1531 = vsel %vm1282, %v1489, 0.0
    %1532 = vadd.xlane.f32.xlu0 %v1531
    %v1533 = vpop.xlane.xlu0 %1532
    %v1534 = vsel %vm1282, %v1490, 0.0
    %1535 = vadd.xlane.f32.xlu0 %v1534
    %v1536 = vpop.xlane.xlu0 %1535
    %v1537 = vsel %vm1282, %v1491, 0.0
    %1538 = vadd.xlane.f32.xlu0 %v1537
    %v1539 = vpop.xlane.xlu0 %1538
    %v1540 = vrcp.pop 64.0
    %v1541 = vmul.f32 %v1494, %v1540
    %v1542 = vmul.f32 %v1497, %v1540
    %v1543 = vmul.f32 %v1500, %v1540
    %v1544 = vmul.f32 %v1503, %v1540
    %v1545 = vmul.f32 %v1506, %v1540
    %v1546 = vmul.f32 %v1509, %v1540
    %v1547 = vmul.f32 %v1512, %v1540
    %v1548 = vmul.f32 %v1515, %v1540
    %v1549 = vmul.f32 %v1518, %v1540
    %v1550 = vmul.f32 %v1521, %v1540
    %v1551 = vmul.f32 %v1524, %v1540
    %v1552 = vmul.f32 %v1527, %v1540
    %v1553 = vmul.f32 %v1530, %v1540
    %v1554 = vmul.f32 %v1533, %v1540
    %v1555 = vmul.f32 %v1536, %v1540
    %v1556 = vmul.f32 %v1539, %v1540
    %v1557 = vsub.f32 %v1476, %v1541
    %v1558 = vsub.f32 %v1477, %v1542
    %v1559 = vsub.f32 %v1478, %v1543
    %v1560 = vsub.f32 %v1479, %v1544
    %v1561 = vsub.f32 %v1480, %v1545
    %v1562 = vsub.f32 %v1481, %v1546
    %v1563 = vsub.f32 %v1482, %v1547
    %v1564 = vsub.f32 %v1483, %v1548
    %v1565 = vsub.f32 %v1484, %v1549
    %v1566 = vsub.f32 %v1485, %v1550
    %v1567 = vsub.f32 %v1486, %v1551
    %v1568 = vsub.f32 %v1487, %v1552
    %v1569 = vsub.f32 %v1488, %v1553
    %v1570 = vsub.f32 %v1489, %v1554
    %v1571 = vsub.f32 %v1490, %v1555
    %v1572 = vsub.f32 %v1491, %v1556
    %v1573 = vmul.f32 %v1557, %v1557
    %v1574 = vmul.f32 %v1558, %v1558
    %v1575 = vmul.f32 %v1559, %v1559
    %v1576 = vmul.f32 %v1560, %v1560
    %v1577 = vmul.f32 %v1561, %v1561
    %v1578 = vmul.f32 %v1562, %v1562
    %v1579 = vmul.f32 %v1563, %v1563
    %v1580 = vmul.f32 %v1564, %v1564
    %v1581 = vmul.f32 %v1565, %v1565
    %v1582 = vmul.f32 %v1566, %v1566
    %v1583 = vmul.f32 %v1567, %v1567
    %v1584 = vmul.f32 %v1568, %v1568
    %v1585 = vmul.f32 %v1569, %v1569
    %v1586 = vmul.f32 %v1570, %v1570
    %v1587 = vmul.f32 %v1571, %v1571
    %v1588 = vmul.f32 %v1572, %v1572
    %v1589 = vsel %vm1282, %v1573, 0.0
    %1590 = vadd.xlane.f32.xlu0 %v1589
    %v1591 = vpop.xlane.xlu0 %1590
    %v1592 = vsel %vm1282, %v1574, 0.0
    %1593 = vadd.xlane.f32.xlu0 %v1592
    %v1594 = vpop.xlane.xlu0 %1593
    %v1595 = vsel %vm1282, %v1575, 0.0
    %1596 = vadd.xlane.f32.xlu0 %v1595
    %v1597 = vpop.xlane.xlu0 %1596
    %v1598 = vsel %vm1282, %v1576, 0.0
    %1599 = vadd.xlane.f32.xlu0 %v1598
    %v1600 = vpop.xlane.xlu0 %1599
    %v1601 = vsel %vm1282, %v1577, 0.0
    %1602 = vadd.xlane.f32.xlu0 %v1601
    %v1603 = vpop.xlane.xlu0 %1602
    %v1604 = vsel %vm1282, %v1578, 0.0
    %1605 = vadd.xlane.f32.xlu0 %v1604
    %v1606 = vpop.xlane.xlu0 %1605
    %v1607 = vsel %vm1282, %v1579, 0.0
    %1608 = vadd.xlane.f32.xlu0 %v1607
    %v1609 = vpop.xlane.xlu0 %1608
    %v1610 = vsel %vm1282, %v1580, 0.0
    %1611 = vadd.xlane.f32.xlu0 %v1610
    %v1612 = vpop.xlane.xlu0 %1611
    %v1613 = vsel %vm1282, %v1581, 0.0
    %1614 = vadd.xlane.f32.xlu0 %v1613
    %v1615 = vpop.xlane.xlu0 %1614
    %v1616 = vsel %vm1282, %v1582, 0.0
    %1617 = vadd.xlane.f32.xlu0 %v1616
    %v1618 = vpop.xlane.xlu0 %1617
    %v1619 = vsel %vm1282, %v1583, 0.0
    %1620 = vadd.xlane.f32.xlu0 %v1619
    %v1621 = vpop.xlane.xlu0 %1620
    %v1622 = vsel %vm1282, %v1584, 0.0
    %1623 = vadd.xlane.f32.xlu0 %v1622
    %v1624 = vpop.xlane.xlu0 %1623
    %v1625 = vsel %vm1282, %v1585, 0.0
    %1626 = vadd.xlane.f32.xlu0 %v1625
    %v1627 = vpop.xlane.xlu0 %1626
    %v1628 = vsel %vm1282, %v1586, 0.0
    %1629 = vadd.xlane.f32.xlu0 %v1628
    %v1630 = vpop.xlane.xlu0 %1629
    %v1631 = vsel %vm1282, %v1587, 0.0
    %1632 = vadd.xlane.f32.xlu0 %v1631
    %v1633 = vpop.xlane.xlu0 %1632
    %v1634 = vsel %vm1282, %v1588, 0.0
    %1635 = vadd.xlane.f32.xlu0 %v1634
    %v1636 = vpop.xlane.xlu0 %1635
    %v1637 = vmul.f32 %v1591, %v1540
    %v1638 = vmul.f32 %v1594, %v1540
    %v1639 = vmul.f32 %v1597, %v1540
    %v1640 = vmul.f32 %v1600, %v1540
    %v1641 = vmul.f32 %v1603, %v1540
    %v1642 = vmul.f32 %v1606, %v1540
    %v1643 = vmul.f32 %v1609, %v1540
    %v1644 = vmul.f32 %v1612, %v1540
    %v1645 = vmul.f32 %v1615, %v1540
    %v1646 = vmul.f32 %v1618, %v1540
    %v1647 = vmul.f32 %v1621, %v1540
    %v1648 = vmul.f32 %v1624, %v1540
    %v1649 = vmul.f32 %v1627, %v1540
    %v1650 = vmul.f32 %v1630, %v1540
    %v1651 = vmul.f32 %v1633, %v1540
    %v1652 = vmul.f32 %v1636, %v1540
    %v1653 = vadd.f32 %v1637, 1e-05
    %v1654 = vadd.f32 %v1638, 1e-05
    %v1655 = vadd.f32 %v1639, 1e-05
    %v1656 = vadd.f32 %v1640, 1e-05
    %v1657 = vadd.f32 %v1641, 1e-05
    %v1658 = vadd.f32 %v1642, 1e-05
    %v1659 = vadd.f32 %v1643, 1e-05
    %v1660 = vadd.f32 %v1644, 1e-05
    %v1661 = vadd.f32 %v1645, 1e-05
    %v1662 = vadd.f32 %v1646, 1e-05
    %v1663 = vadd.f32 %v1647, 1e-05
    %v1664 = vadd.f32 %v1648, 1e-05
    %v1665 = vadd.f32 %v1649, 1e-05
    %v1666 = vadd.f32 %v1650, 1e-05
    %v1667 = vadd.f32 %v1651, 1e-05
    %v1668 = vadd.f32 %v1652, 1e-05
    %v1669 = vrsqrt.pop %v1653
    %v1670 = vrsqrt.pop %v1654
    %v1671 = vrsqrt.pop %v1655
    %v1672 = vrsqrt.pop %v1656
    %v1673 = vrsqrt.pop %v1657
    %v1674 = vrsqrt.pop %v1658
    %v1675 = vrsqrt.pop %v1659
    %v1676 = vrsqrt.pop %v1660
    %v1677 = vrsqrt.pop %v1661
    %v1678 = vrsqrt.pop %v1662
    %v1679 = vrsqrt.pop %v1663
    %v1680 = vrsqrt.pop %v1664
    %v1681 = vrsqrt.pop %v1665
    %v1682 = vrsqrt.pop %v1666
    %v1683 = vrsqrt.pop %v1667
    %v1684 = vrsqrt.pop %v1668
    %v1685 = vmul.f32 %v1557, %v1669
    %v1686 = vmul.f32 %v1558, %v1670
    %v1687 = vmul.f32 %v1559, %v1671
    %v1688 = vmul.f32 %v1560, %v1672
    %v1689 = vmul.f32 %v1561, %v1673
    %v1690 = vmul.f32 %v1562, %v1674
    %v1691 = vmul.f32 %v1563, %v1675
    %v1692 = vmul.f32 %v1564, %v1676
    %v1693 = vmul.f32 %v1565, %v1677
    %v1694 = vmul.f32 %v1566, %v1678
    %v1695 = vmul.f32 %v1567, %v1679
    %v1696 = vmul.f32 %v1568, %v1680
    %v1697 = vmul.f32 %v1569, %v1681
    %v1698 = vmul.f32 %v1570, %v1682
    %v1699 = vmul.f32 %v1571, %v1683
    %v1700 = vmul.f32 %v1572, %v1684
    %v1701 = vlaneseq
    %v1702 = vshrl.u32 %v1701, 7
    %v1703 = vsub.s32 1, %v1702
    %v1704 = vrot.slane %v41, %v1703
    %v1705 = vmul.f32 %v1685, %v1704
    %v1706 = vmul.f32 %v1686, %v1704
    %v1707 = vmul.f32 %v1687, %v1704
    %v1708 = vmul.f32 %v1688, %v1704
    %v1709 = vmul.f32 %v1689, %v1704
    %v1710 = vmul.f32 %v1690, %v1704
    %v1711 = vmul.f32 %v1691, %v1704
    %v1712 = vmul.f32 %v1692, %v1704
    %v1713 = vmul.f32 %v1693, %v1704
    %v1714 = vmul.f32 %v1694, %v1704
    %v1715 = vmul.f32 %v1695, %v1704
    %v1716 = vmul.f32 %v1696, %v1704
    %v1717 = vmul.f32 %v1697, %v1704
    %v1718 = vmul.f32 %v1698, %v1704
    %v1719 = vmul.f32 %v1699, %v1704
    %v1720 = vmul.f32 %v1700, %v1704
    %v1721 = vlaneseq
    %v1722 = vshrl.u32 %v1721, 7
    %v1723 = vsub.s32 2, %v1722
    %v1724 = vrot.slane %v41, %v1723
    %v1725 = vadd.f32 %v1705, %v1724
    %v1726 = vadd.f32 %v1706, %v1724
    %v1727 = vadd.f32 %v1707, %v1724
    %v1728 = vadd.f32 %v1708, %v1724
    %v1729 = vadd.f32 %v1709, %v1724
    %v1730 = vadd.f32 %v1710, %v1724
    %v1731 = vadd.f32 %v1711, %v1724
    %v1732 = vadd.f32 %v1712, %v1724
    %v1733 = vadd.f32 %v1713, %v1724
    %v1734 = vadd.f32 %v1714, %v1724
    %v1735 = vadd.f32 %v1715, %v1724
    %v1736 = vadd.f32 %v1716, %v1724
    %v1737 = vadd.f32 %v1717, %v1724
    %v1738 = vadd.f32 %v1718, %v1724
    %v1739 = vadd.f32 %v1719, %v1724
    %v1740 = vadd.f32 %v1720, %v1724
    %v1741 = vld [vmem:[#allocation2] sm:$0xff]
    %v1742 = vld [vmem:[#allocation2 + $0x8] sm:$0xff]
    %v1743 = vld [vmem:[#allocation2 + $0x10] sm:$0xff]
    %v1744 = vld [vmem:[#allocation2 + $0x18] sm:$0xff]
    %v1745 = vld [vmem:[#allocation2 + $0x20] sm:$0xff]
    %v1746 = vld [vmem:[#allocation2 + $0x28] sm:$0xff]
    %v1747 = vld [vmem:[#allocation2 + $0x30] sm:$0xff]
    %v1748 = vld [vmem:[#allocation2 + $0x38] sm:$0xff]
    %v1749 = vld [vmem:[#allocation2 + $0x40] sm:$0xff]
    %v1750 = vld [vmem:[#allocation2 + $0x48] sm:$0xff]
    %v1751 = vld [vmem:[#allocation2 + $0x50] sm:$0xff]
    %v1752 = vld [vmem:[#allocation2 + $0x58] sm:$0xff]
    %v1753 = vld [vmem:[#allocation2 + $0x60] sm:$0xff]
    %v1754 = vld [vmem:[#allocation2 + $0x68] sm:$0xff]
    %v1755 = vld [vmem:[#allocation2 + $0x70] sm:$0xff]
    %v1756 = vld [vmem:[#allocation2 + $0x78] sm:$0xff]
    %v1757 = vlaneseq
    %v1758 = vshrl.u32 %v1757, 7
    %v1759 = vsub.s32 3, %v1758
    %v1760 = vrot.slane %v41, %v1759
    %v1761 = vlaneseq
    %v1762 = vshrl.u32 %v1761, 7
    %v1763 = vsub.s32 3, %v1762
    %v1764 = vrot.slane %v42, %v1763
    %v1766 = vsel %vm1282, %v1725, 0
    %v1769 = vsel %vm1282, %v1726, 0
    %v1772 = vsel %vm1282, %v1727, 0
    %v1775 = vsel %vm1282, %v1728, 0
    %v1778 = vsel %vm1282, %v1729, 0
    %v1781 = vsel %vm1282, %v1730, 0
    %v1784 = vsel %vm1282, %v1731, 0
    %v1787 = vsel %vm1282, %v1732, 0
    %v1790 = vsel %vm1282, %v1733, 0
    %v1793 = vsel %vm1282, %v1734, 0
    %v1796 = vsel %vm1282, %v1735, 0
    %v1799 = vsel %vm1282, %v1736, 0
    %v1802 = vsel %vm1282, %v1737, 0
    %v1805 = vsel %vm1282, %v1738, 0
    %v1808 = vsel %vm1282, %v1739, 0
    %v1811 = vsel %vm1282, %v1740, 0
    %1813 = vmatprep.subr.mxu0 0.0
    %1814 = vmatpush1.msra.mxu0 0.0
    %1815 = vmatprep.subr.mxu0 0.0
    %1816 = vmatpush1.msra.mxu0 0.0
    %1817 = vmatprep.subr.mxu0 0.0
    %1818 = vmatpush1.msra.mxu0 0.0
    %1819 = vmatprep.subr.mxu0 0.0
    %1820 = vmatpush1.msra.mxu0 0.0
    %1821 = vmatprep.subr.mxu0 0.0
    %1822 = vmatpush1.msra.mxu0 0.0
    %1823 = vmatprep.subr.mxu0 0.0
    %1824 = vmatpush1.msra.mxu0 0.0
    %1825 = vmatprep.subr.mxu0 0.0
    %1826 = vmatpush1.msra.mxu0 0.0
    %1827 = vmatprep.subr.mxu0 0.0
    %1828 = vmatpush1.msra.mxu0 0.0
    %1829 = vmatprep.subr.mxu0 %v1756
    %1830 = vmatpush1.msra.mxu0 %v1755
    %1831 = vmatprep.subr.mxu0 %v1754
    %1832 = vmatpush1.msra.mxu0 %v1753
    %1833 = vmatprep.subr.mxu0 %v1752
    %1834 = vmatpush1.msra.mxu0 %v1751
    %1835 = vmatprep.subr.mxu0 %v1750
    %1836 = vmatpush1.msra.mxu0 %v1749
    %1837 = vmatprep.subr.mxu0 %v1748
    %1838 = vmatpush1.msra.mxu0 %v1747
    %1839 = vmatprep.subr.mxu0 %v1746
    %1840 = vmatpush1.msra.mxu0 %v1745
    %1841 = vmatprep.subr.mxu0 %v1744
    %1842 = vmatpush1.msra.mxu0 %v1743
    %1843 = vmatprep.subr.mxu0 %v1742
    %1844 = vmatpush1.msra.mxu0 %v1741
    %1845 = vmatprep.subr.mxu0 0.0
    %1846 = vmatpush2.msra.mxu0 0.0
    %1847 = vmatprep.subr.mxu0 0.0
    %1848 = vmatpush2.msra.mxu0 0.0
    %1849 = vmatprep.subr.mxu0 0.0
    %1850 = vmatpush2.msra.mxu0 0.0
    %1851 = vmatprep.subr.mxu0 0.0
    %1852 = vmatpush2.msra.mxu0 0.0
    %1853 = vmatprep.subr.mxu0 0.0
    %1854 = vmatpush2.msra.mxu0 0.0
    %1855 = vmatprep.subr.mxu0 0.0
    %1856 = vmatpush2.msra.mxu0 0.0
    %1857 = vmatprep.subr.mxu0 0.0
    %1858 = vmatpush2.msra.mxu0 0.0
    %1859 = vmatprep.subr.mxu0 0.0
    %1860 = vmatpush2.msra.mxu0 0.0
    %1861 = vmatprep.subr.mxu0 0.0
    %1862 = vmatpush2.msra.mxu0 0.0
    %1863 = vmatprep.subr.mxu0 0.0
    %1864 = vmatpush2.msra.mxu0 0.0
    %1865 = vmatprep.subr.mxu0 0.0
    %1866 = vmatpush2.msra.mxu0 0.0
    %1867 = vmatprep.subr.mxu0 0.0
    %1868 = vmatpush2.msra.mxu0 0.0
    %1869 = vmatprep.subr.mxu0 0.0
    %1870 = vmatpush2.msra.mxu0 0.0
    %1871 = vmatprep.subr.mxu0 0.0
    %1872 = vmatpush2.msra.mxu0 0.0
    %1873 = vmatprep.subr.mxu0 0.0
    %1874 = vmatpush2.msra.mxu0 0.0
    %1875 = vmatprep.subr.mxu0 0.0
    %1876 = vmatpush2.msra.mxu0 0.0
    %1877 = vmatprep.mubr.f32.mxu0 0.0
    %1878 = vmatmul.mubr.f32.gmra.mxu0 %v1766
    %v1879 = vpop.f32.mrf.mxu0
    %v1880 = vadd.f32 %v1760, %v1879
    %v1881 = vpop.f32.mrf.mxu0
    %v1882 = vadd.f32 %v1764, %v1881
    %1883 = vmatprep.mubr.f32.mxu0 0.0
    %1884 = vmatmul.mubr.f32.gmra.mxu0 %v1769
    %v1885 = vpop.f32.mrf.mxu0
    %v1886 = vadd.f32 %v1760, %v1885
    %v1887 = vpop.f32.mrf.mxu0
    %v1888 = vadd.f32 %v1764, %v1887
    %1889 = vmatprep.mubr.f32.mxu0 0.0
    %1890 = vmatmul.mubr.f32.gmra.mxu0 %v1772
    %v1891 = vpop.f32.mrf.mxu0
    %v1892 = vadd.f32 %v1760, %v1891
    %v1893 = vpop.f32.mrf.mxu0
    %v1894 = vadd.f32 %v1764, %v1893
    %1895 = vmatprep.mubr.f32.mxu0 0.0
    %1896 = vmatmul.mubr.f32.gmra.mxu0 %v1775
    %v1897 = vpop.f32.mrf.mxu0
    %v1898 = vadd.f32 %v1760, %v1897
    %v1899 = vpop.f32.mrf.mxu0
    %v1900 = vadd.f32 %v1764, %v1899
    %1901 = vmatprep.mubr.f32.mxu0 0.0
    %1902 = vmatmul.mubr.f32.gmra.mxu0 %v1778
    %v1903 = vpop.f32.mrf.mxu0
    %v1904 = vadd.f32 %v1760, %v1903
    %v1905 = vpop.f32.mrf.mxu0
    %v1906 = vadd.f32 %v1764, %v1905
    %1907 = vmatprep.mubr.f32.mxu0 0.0
    %1908 = vmatmul.mubr.f32.gmra.mxu0 %v1781
    %v1909 = vpop.f32.mrf.mxu0
    %v1910 = vadd.f32 %v1760, %v1909
    %v1911 = vpop.f32.mrf.mxu0
    %v1912 = vadd.f32 %v1764, %v1911
    %1913 = vmatprep.mubr.f32.mxu0 0.0
    %1914 = vmatmul.mubr.f32.gmra.mxu0 %v1784
    %v1915 = vpop.f32.mrf.mxu0
    %v1916 = vadd.f32 %v1760, %v1915
    %v1917 = vpop.f32.mrf.mxu0
    %v1918 = vadd.f32 %v1764, %v1917
    %1919 = vmatprep.mubr.f32.mxu0 0.0
    %1920 = vmatmul.mubr.f32.gmra.mxu0 %v1787
    %v1921 = vpop.f32.mrf.mxu0
    %v1922 = vadd.f32 %v1760, %v1921
    %v1923 = vpop.f32.mrf.mxu0
    %v1924 = vadd.f32 %v1764, %v1923
    %1925 = vmatprep.mubr.f32.mxu0 0.0
    %1926 = vmatmul.mubr.f32.gmra.mxu0 %v1790
    %v1927 = vpop.f32.mrf.mxu0
    %v1928 = vadd.f32 %v1760, %v1927
    %v1929 = vpop.f32.mrf.mxu0
    %v1930 = vadd.f32 %v1764, %v1929
    %1931 = vmatprep.mubr.f32.mxu0 0.0
    %1932 = vmatmul.mubr.f32.gmra.mxu0 %v1793
    %v1933 = vpop.f32.mrf.mxu0
    %v1934 = vadd.f32 %v1760, %v1933
    %v1935 = vpop.f32.mrf.mxu0
    %v1936 = vadd.f32 %v1764, %v1935
    %1937 = vmatprep.mubr.f32.mxu0 0.0
    %1938 = vmatmul.mubr.f32.gmra.mxu0 %v1796
    %v1939 = vpop.f32.mrf.mxu0
    %v1940 = vadd.f32 %v1760, %v1939
    %v1941 = vpop.f32.mrf.mxu0
    %v1942 = vadd.f32 %v1764, %v1941
    %1943 = vmatprep.mubr.f32.mxu0 0.0
    %1944 = vmatmul.mubr.f32.gmra.mxu0 %v1799
    %v1945 = vpop.f32.mrf.mxu0
    %v1946 = vadd.f32 %v1760, %v1945
    %v1947 = vpop.f32.mrf.mxu0
    %v1948 = vadd.f32 %v1764, %v1947
    %1949 = vmatprep.mubr.f32.mxu0 0.0
    %1950 = vmatmul.mubr.f32.gmra.mxu0 %v1802
    %v1951 = vpop.f32.mrf.mxu0
    %v1952 = vadd.f32 %v1760, %v1951
    %v1953 = vpop.f32.mrf.mxu0
    %v1954 = vadd.f32 %v1764, %v1953
    %1955 = vmatprep.mubr.f32.mxu0 0.0
    %1956 = vmatmul.mubr.f32.gmra.mxu0 %v1805
    %v1957 = vpop.f32.mrf.mxu0
    %v1958 = vadd.f32 %v1760, %v1957
    %v1959 = vpop.f32.mrf.mxu0
    %v1960 = vadd.f32 %v1764, %v1959
    %1961 = vmatprep.mubr.f32.mxu0 0.0
    %1962 = vmatmul.mubr.f32.gmra.mxu0 %v1808
    %v1963 = vpop.f32.mrf.mxu0
    %v1964 = vadd.f32 %v1760, %v1963
    %v1965 = vpop.f32.mrf.mxu0
    %v1966 = vadd.f32 %v1764, %v1965
    %1967 = vmatprep.mubr.f32.mxu0 0.0
    %1968 = vmatmul.mubr.f32.gmra.mxu0 %v1811
    %v1969 = vpop.f32.mrf.mxu0
    %v1970 = vadd.f32 %v1760, %v1969
    %v1971 = vpop.f32.mrf.mxu0
    %v1972 = vadd.f32 %v1764, %v1971
    %1973 = vdwg.mxu0
    %v1974 = vld [vmem:[%s4 + $0x40] sm:$0xff]
    %v1975 = vld [vmem:[%s4 + $0x48] sm:$0xff]
    %v1976 = vld [vmem:[%s4 + $0x50] sm:$0xff]
    %v1977 = vld [vmem:[%s4 + $0x58] sm:$0xff]
    %v1978 = vld [vmem:[%s4 + $0x60] sm:$0xff]
    %v1979 = vld [vmem:[%s4 + $0x68] sm:$0xff]
    %v1980 = vld [vmem:[%s4 + $0x70] sm:$0xff]
    %v1981 = vld [vmem:[%s4 + $0x78] sm:$0xff]
    %v1982 = vld [vmem:[%s4 + $0x80] sm:$0xff]
    %v1983 = vld [vmem:[%s4 + $0x88] sm:$0xff]
    %v1984 = vld [vmem:[%s4 + $0x90] sm:$0xff]
    %v1985 = vld [vmem:[%s4 + $0x98] sm:$0xff]
    %v1986 = vld [vmem:[%s4 + $0xa0] sm:$0xff]
    %v1987 = vld [vmem:[%s4 + $0xa8] sm:$0xff]
    %v1988 = vld [vmem:[%s4 + $0xb0] sm:$0xff]
    %v1989 = vld [vmem:[%s4 + $0xb8] sm:$0xff]
    %v1990 = vld [vmem:[%s3 + $0x300] sm:$0xff]
    %v1991 = vld [vmem:[%s3 + $0x308] sm:$0xff]
    %v1992 = vld [vmem:[%s3 + $0x310] sm:$0xff]
    %v1993 = vld [vmem:[%s3 + $0x318] sm:$0xff]
    %v1994 = vld [vmem:[%s3 + $0x320] sm:$0xff]
    %v1995 = vld [vmem:[%s3 + $0x328] sm:$0xff]
    %v1996 = vld [vmem:[%s3 + $0x330] sm:$0xff]
    %v1997 = vld [vmem:[%s3 + $0x338] sm:$0xff]
    %2014 = vrot.lane.b32.xlu0 %v1880, 64
    %v2015 = vpop.permute.xlu0 %2014
    %2016 = vrot.lane.b32.xlu0 %v1886, 64
    %v2017 = vpop.permute.xlu0 %2016
    %2018 = vrot.lane.b32.xlu0 %v1892, 64
    %v2019 = vpop.permute.xlu0 %2018
    %2020 = vrot.lane.b32.xlu0 %v1898, 64
    %v2021 = vpop.permute.xlu0 %2020
    %2022 = vrot.lane.b32.xlu0 %v1904, 64
    %v2023 = vpop.permute.xlu0 %2022
    %2024 = vrot.lane.b32.xlu0 %v1910, 64
    %v2025 = vpop.permute.xlu0 %2024
    %2026 = vrot.lane.b32.xlu0 %v1916, 64
    %v2027 = vpop.permute.xlu0 %2026
    %2028 = vrot.lane.b32.xlu0 %v1922, 64
    %v2029 = vpop.permute.xlu0 %2028
    %2030 = vrot.lane.b32.xlu0 %v1928, 64
    %v2031 = vpop.permute.xlu0 %2030
    %2032 = vrot.lane.b32.xlu0 %v1934, 64
    %v2033 = vpop.permute.xlu0 %2032
    %2034 = vrot.lane.b32.xlu0 %v1940, 64
    %v2035 = vpop.permute.xlu0 %2034
    %2036 = vrot.lane.b32.xlu0 %v1946, 64
    %v2037 = vpop.permute.xlu0 %2036
    %2038 = vrot.lane.b32.xlu0 %v1952, 64
    %v2039 = vpop.permute.xlu0 %2038
    %2040 = vrot.lane.b32.xlu0 %v1958, 64
    %v2041 = vpop.permute.xlu0 %2040
    %2042 = vrot.lane.b32.xlu0 %v1964, 64
    %v2043 = vpop.permute.xlu0 %2042
    %2044 = vrot.lane.b32.xlu0 %v1970, 64
    %v2045 = vpop.permute.xlu0 %2044
    %vm2046 = vcmask 130048
    %v2047 = vsel %vm2046, %v1880, 0
    %v2049 = vsel %vm2046, %v1886, 0
    %v2051 = vsel %vm2046, %v1892, 0
    %v2053 = vsel %vm2046, %v1898, 0
    %v2055 = vsel %vm2046, %v1904, 0
    %v2057 = vsel %vm2046, %v1910, 0
    %v2059 = vsel %vm2046, %v1916, 0
    %v2061 = vsel %vm2046, %v1922, 0
    %v2063 = vsel %vm2046, %v1928, 0
    %v2065 = vsel %vm2046, %v1934, 0
    %v2067 = vsel %vm2046, %v1940, 0
    %v2069 = vsel %vm2046, %v1946, 0
    %v2071 = vsel %vm2046, %v1952, 0
    %v2073 = vsel %vm2046, %v1958, 0
    %v2075 = vsel %vm2046, %v1964, 0
    %v2077 = vsel %vm2046, %v1970, 0
    %v2079 = vsel %vm2046, %v2015, 0
    %v2081 = vsel %vm2046, %v2017, 0
    %v2083 = vsel %vm2046, %v2019, 0
    %v2085 = vsel %vm2046, %v2021, 0
    %v2087 = vsel %vm2046, %v2023, 0
    %v2089 = vsel %vm2046, %v2025, 0
    %v2091 = vsel %vm2046, %v2027, 0
    %v2093 = vsel %vm2046, %v2029, 0
    %v2095 = vsel %vm2046, %v2031, 0
    %v2097 = vsel %vm2046, %v2033, 0
    %v2099 = vsel %vm2046, %v2035, 0
    %v2101 = vsel %vm2046, %v2037, 0
    %v2103 = vsel %vm2046, %v2039, 0
    %v2105 = vsel %vm2046, %v2041, 0
    %v2107 = vsel %vm2046, %v2043, 0
    %v2109 = vsel %vm2046, %v2045, 0
    %2111 = vmatprep.subr.mxu0 0.0
    %2112 = vmatpush1.xpose.msra.mxu0 %v2109
    %2113 = vmatprep.subr.mxu0 0.0
    %2114 = vmatpush1.xpose.msra.mxu0 %v2107
    %2115 = vmatprep.subr.mxu0 0.0
    %2116 = vmatpush1.xpose.msra.mxu0 %v2105
    %2117 = vmatprep.subr.mxu0 0.0
    %2118 = vmatpush1.xpose.msra.mxu0 %v2103
    %2119 = vmatprep.subr.mxu0 0.0
    %2120 = vmatpush1.xpose.msra.mxu0 %v2101
    %2121 = vmatprep.subr.mxu0 0.0
    %2122 = vmatpush1.xpose.msra.mxu0 %v2099
    %2123 = vmatprep.subr.mxu0 0.0
    %2124 = vmatpush1.xpose.msra.mxu0 %v2097
    %2125 = vmatprep.subr.mxu0 0.0
    %2126 = vmatpush1.xpose.msra.mxu0 %v2095
    %2127 = vmatprep.subr.mxu0 0.0
    %2128 = vmatpush1.xpose.msra.mxu0 %v2093
    %2129 = vmatprep.subr.mxu0 0.0
    %2130 = vmatpush1.xpose.msra.mxu0 %v2091
    %2131 = vmatprep.subr.mxu0 0.0
    %2132 = vmatpush1.xpose.msra.mxu0 %v2089
    %2133 = vmatprep.subr.mxu0 0.0
    %2134 = vmatpush1.xpose.msra.mxu0 %v2087
    %2135 = vmatprep.subr.mxu0 0.0
    %2136 = vmatpush1.xpose.msra.mxu0 %v2085
    %2137 = vmatprep.subr.mxu0 0.0
    %2138 = vmatpush1.xpose.msra.mxu0 %v2083
    %2139 = vmatprep.subr.mxu0 0.0
    %2140 = vmatpush1.xpose.msra.mxu0 %v2081
    %2141 = vmatprep.subr.mxu0 0.0
    %2142 = vmatpush1.xpose.msra.mxu0 %v2079
    %2143 = vmatprep.subr.mxu0 0.0
    %2144 = vmatpush2.xpose.msra.mxu0 0.0
    %2145 = vmatprep.subr.mxu0 0.0
    %2146 = vmatpush2.xpose.msra.mxu0 0.0
    %2147 = vmatprep.subr.mxu0 0.0
    %2148 = vmatpush2.xpose.msra.mxu0 0.0
    %2149 = vmatprep.subr.mxu0 0.0
    %2150 = vmatpush2.xpose.msra.mxu0 0.0
    %2151 = vmatprep.subr.mxu0 0.0
    %2152 = vmatpush2.xpose.msra.mxu0 0.0
    %2153 = vmatprep.subr.mxu0 0.0
    %2154 = vmatpush2.xpose.msra.mxu0 0.0
    %2155 = vmatprep.subr.mxu0 0.0
    %2156 = vmatpush2.xpose.msra.mxu0 0.0
    %2157 = vmatprep.subr.mxu0 0.0
    %2158 = vmatpush2.xpose.msra.mxu0 0.0
    %2159 = vmatprep.subr.mxu0 0.0
    %2160 = vmatpush2.xpose.msra.mxu0 0.0
    %2161 = vmatprep.subr.mxu0 0.0
    %2162 = vmatpush2.xpose.msra.mxu0 0.0
    %2163 = vmatprep.subr.mxu0 0.0
    %2164 = vmatpush2.xpose.msra.mxu0 0.0
    %2165 = vmatprep.subr.mxu0 0.0
    %2166 = vmatpush2.xpose.msra.mxu0 0.0
    %2167 = vmatprep.subr.mxu0 0.0
    %2168 = vmatpush2.xpose.msra.mxu0 0.0
    %2169 = vmatprep.subr.mxu0 0.0
    %2170 = vmatpush2.xpose.msra.mxu0 0.0
    %2171 = vmatprep.subr.mxu0 0.0
    %2172 = vmatpush2.xpose.msra.mxu0 0.0
    %2173 = vmatprep.subr.mxu0 0.0
    %2174 = vmatpush2.xpose.msra.mxu0 0.0
    %2175 = vmatprep.mubr.f32.mxu0 0.0
    %2176 = vmatmul.mubr.f32.gmra.mxu0 %v2047
    %v2177 = vpop.f32.mrf.mxu0
    %v2178 = vadd.f32 0.0, %v2177
    %v2179 = vpop.f32.mrf.mxu0
    %2180 = vmatprep.mubr.f32.mxu0 0.0
    %2181 = vmatmul.mubr.f32.gmra.mxu0 %v2049
    %v2182 = vpop.f32.mrf.mxu0
    %v2183 = vadd.f32 0.0, %v2182
    %v2184 = vpop.f32.mrf.mxu0
    %2185 = vmatprep.mubr.f32.mxu0 0.0
    %2186 = vmatmul.mubr.f32.gmra.mxu0 %v2051
    %v2187 = vpop.f32.mrf.mxu0
    %v2188 = vadd.f32 0.0, %v2187
    %v2189 = vpop.f32.mrf.mxu0
    %2190 = vmatprep.mubr.f32.mxu0 0.0
    %2191 = vmatmul.mubr.f32.gmra.mxu0 %v2053
    %v2192 = vpop.f32.mrf.mxu0
    %v2193 = vadd.f32 0.0, %v2192
    %v2194 = vpop.f32.mrf.mxu0
    %2195 = vmatprep.mubr.f32.mxu0 0.0
    %2196 = vmatmul.mubr.f32.gmra.mxu0 %v2055
    %v2197 = vpop.f32.mrf.mxu0
    %v2198 = vadd.f32 0.0, %v2197
    %v2199 = vpop.f32.mrf.mxu0
    %2200 = vmatprep.mubr.f32.mxu0 0.0
    %2201 = vmatmul.mubr.f32.gmra.mxu0 %v2057
    %v2202 = vpop.f32.mrf.mxu0
    %v2203 = vadd.f32 0.0, %v2202
    %v2204 = vpop.f32.mrf.mxu0
    %2205 = vmatprep.mubr.f32.mxu0 0.0
    %2206 = vmatmul.mubr.f32.gmra.mxu0 %v2059
    %v2207 = vpop.f32.mrf.mxu0
    %v2208 = vadd.f32 0.0, %v2207
    %v2209 = vpop.f32.mrf.mxu0
    %2210 = vmatprep.mubr.f32.mxu0 0.0
    %2211 = vmatmul.mubr.f32.gmra.mxu0 %v2061
    %v2212 = vpop.f32.mrf.mxu0
    %v2213 = vadd.f32 0.0, %v2212
    %v2214 = vpop.f32.mrf.mxu0
    %2215 = vmatprep.mubr.f32.mxu0 0.0
    %2216 = vmatmul.mubr.f32.gmra.mxu0 %v2063
    %v2217 = vpop.f32.mrf.mxu0
    %v2218 = vadd.f32 0.0, %v2217
    %v2219 = vpop.f32.mrf.mxu0
    %2220 = vmatprep.mubr.f32.mxu0 0.0
    %2221 = vmatmul.mubr.f32.gmra.mxu0 %v2065
    %v2222 = vpop.f32.mrf.mxu0
    %v2223 = vadd.f32 0.0, %v2222
    %v2224 = vpop.f32.mrf.mxu0
    %2225 = vmatprep.mubr.f32.mxu0 0.0
    %2226 = vmatmul.mubr.f32.gmra.mxu0 %v2067
    %v2227 = vpop.f32.mrf.mxu0
    %v2228 = vadd.f32 0.0, %v2227
    %v2229 = vpop.f32.mrf.mxu0
    %2230 = vmatprep.mubr.f32.mxu0 0.0
    %2231 = vmatmul.mubr.f32.gmra.mxu0 %v2069
    %v2232 = vpop.f32.mrf.mxu0
    %v2233 = vadd.f32 0.0, %v2232
    %v2234 = vpop.f32.mrf.mxu0
    %2235 = vmatprep.mubr.f32.mxu0 0.0
    %2236 = vmatmul.mubr.f32.gmra.mxu0 %v2071
    %v2237 = vpop.f32.mrf.mxu0
    %v2238 = vadd.f32 0.0, %v2237
    %v2239 = vpop.f32.mrf.mxu0
    %2240 = vmatprep.mubr.f32.mxu0 0.0
    %2241 = vmatmul.mubr.f32.gmra.mxu0 %v2073
    %v2242 = vpop.f32.mrf.mxu0
    %v2243 = vadd.f32 0.0, %v2242
    %v2244 = vpop.f32.mrf.mxu0
    %2245 = vmatprep.mubr.f32.mxu0 0.0
    %2246 = vmatmul.mubr.f32.gmra.mxu0 %v2075
    %v2247 = vpop.f32.mrf.mxu0
    %v2248 = vadd.f32 0.0, %v2247
    %v2249 = vpop.f32.mrf.mxu0
    %2250 = vmatprep.mubr.f32.mxu0 0.0
    %2251 = vmatmul.mubr.f32.gmra.mxu0 %v2077
    %v2252 = vpop.f32.mrf.mxu0
    %v2253 = vadd.f32 0.0, %v2252
    %v2254 = vpop.f32.mrf.mxu0
    %2255 = vdwg.mxu0
    %v2256 = vmul.f32 %v2178, 0.25
    %v2257 = vmul.f32 %v2183, 0.25
    %v2258 = vmul.f32 %v2188, 0.25
    %v2259 = vmul.f32 %v2193, 0.25
    %v2260 = vmul.f32 %v2198, 0.25
    %v2261 = vmul.f32 %v2203, 0.25
    %v2262 = vmul.f32 %v2208, 0.25
    %v2263 = vmul.f32 %v2213, 0.25
    %v2264 = vmul.f32 %v2218, 0.25
    %v2265 = vmul.f32 %v2223, 0.25
    %v2266 = vmul.f32 %v2228, 0.25
    %v2267 = vmul.f32 %v2233, 0.25
    %v2268 = vmul.f32 %v2238, 0.25
    %v2269 = vmul.f32 %v2243, 0.25
    %v2270 = vmul.f32 %v2248, 0.25
    %v2271 = vmul.f32 %v2253, 0.25
    %v2272 = vadd.f32 %v2256, %v1974
    %v2273 = vadd.f32 %v2257, %v1975
    %v2274 = vadd.f32 %v2258, %v1976
    %v2275 = vadd.f32 %v2259, %v1977
    %v2276 = vadd.f32 %v2260, %v1978
    %v2277 = vadd.f32 %v2261, %v1979
    %v2278 = vadd.f32 %v2262, %v1980
    %v2279 = vadd.f32 %v2263, %v1981
    %v2280 = vadd.f32 %v2264, %v1982
    %v2281 = vadd.f32 %v2265, %v1983
    %v2282 = vadd.f32 %v2266, %v1984
    %v2283 = vadd.f32 %v2267, %v1985
    %v2284 = vadd.f32 %v2268, %v1986
    %v2285 = vadd.f32 %v2269, %v1987
    %v2286 = vadd.f32 %v2270, %v1988
    %v2287 = vadd.f32 %v2271, %v1989
    %2288 = vmax.xlane.f32.xlu0 %v2272
    %v2289 = vpop.xlane.xlu0 %2288
    %2290 = vmax.xlane.f32.xlu0 %v2273
    %v2291 = vpop.xlane.xlu0 %2290
    %2292 = vmax.xlane.f32.xlu0 %v2274
    %v2293 = vpop.xlane.xlu0 %2292
    %2294 = vmax.xlane.f32.xlu0 %v2275
    %v2295 = vpop.xlane.xlu0 %2294
    %2296 = vmax.xlane.f32.xlu0 %v2276
    %v2297 = vpop.xlane.xlu0 %2296
    %2298 = vmax.xlane.f32.xlu0 %v2277
    %v2299 = vpop.xlane.xlu0 %2298
    %2300 = vmax.xlane.f32.xlu0 %v2278
    %v2301 = vpop.xlane.xlu0 %2300
    %2302 = vmax.xlane.f32.xlu0 %v2279
    %v2303 = vpop.xlane.xlu0 %2302
    %2304 = vmax.xlane.f32.xlu0 %v2280
    %v2305 = vpop.xlane.xlu0 %2304
    %2306 = vmax.xlane.f32.xlu0 %v2281
    %v2307 = vpop.xlane.xlu0 %2306
    %2308 = vmax.xlane.f32.xlu0 %v2282
    %v2309 = vpop.xlane.xlu0 %2308
    %2310 = vmax.xlane.f32.xlu0 %v2283
    %v2311 = vpop.xlane.xlu0 %2310
    %2312 = vmax.xlane.f32.xlu0 %v2284
    %v2313 = vpop.xlane.xlu0 %2312
    %2314 = vmax.xlane.f32.xlu0 %v2285
    %v2315 = vpop.xlane.xlu0 %2314
    %2316 = vmax.xlane.f32.xlu0 %v2286
    %v2317 = vpop.xlane.xlu0 %2316
    %2318 = vmax.xlane.f32.xlu0 %v2287
    %v2319 = vpop.xlane.xlu0 %2318
    %v2320 = vsub.f32 %v2272, %v2289
    %v2321 = vsub.f32 %v2273, %v2291
    %v2322 = vsub.f32 %v2274, %v2293
    %v2323 = vsub.f32 %v2275, %v2295
    %v2324 = vsub.f32 %v2276, %v2297
    %v2325 = vsub.f32 %v2277, %v2299
    %v2326 = vsub.f32 %v2278, %v2301
    %v2327 = vsub.f32 %v2279, %v2303
    %v2328 = vsub.f32 %v2280, %v2305
    %v2329 = vsub.f32 %v2281, %v2307
    %v2330 = vsub.f32 %v2282, %v2309
    %v2331 = vsub.f32 %v2283, %v2311
    %v2332 = vsub.f32 %v2284, %v2313
    %v2333 = vsub.f32 %v2285, %v2315
    %v2334 = vsub.f32 %v2286, %v2317
    %v2335 = vsub.f32 %v2287, %v2319
    %v2336 = vmul.f32 %v2320, 1.442695
    %v2337 = vpow.pop %v2336
    %v2338 = vmul.f32 %v2321, 1.442695
    %v2339 = vpow.pop %v2338
    %v2340 = vmul.f32 %v2322, 1.442695
    %v2341 = vpow.pop %v2340
    %v2342 = vmul.f32 %v2323, 1.442695
    %v2343 = vpow.pop %v2342
    %v2344 = vmul.f32 %v2324, 1.442695
    %v2345 = vpow.pop %v2344
    %v2346 = vmul.f32 %v2325, 1.442695
    %v2347 = vpow.pop %v2346
    %v2348 = vmul.f32 %v2326, 1.442695
    %v2349 = vpow.pop %v2348
    %v2350 = vmul.f32 %v2327, 1.442695
    %v2351 = vpow.pop %v2350
    %v2352 = vmul.f32 %v2328, 1.442695
    %v2353 = vpow.pop %v2352
    %v2354 = vmul.f32 %v2329, 1.442695
    %v2355 = vpow.pop %v2354
    %v2356 = vmul.f32 %v2330, 1.442695
    %v2357 = vpow.pop %v2356
    %v2358 = vmul.f32 %v2331, 1.442695
    %v2359 = vpow.pop %v2358
    %v2360 = vmul.f32 %v2332, 1.442695
    %v2361 = vpow.pop %v2360
    %v2362 = vmul.f32 %v2333, 1.442695
    %v2363 = vpow.pop %v2362
    %v2364 = vmul.f32 %v2334, 1.442695
    %v2365 = vpow.pop %v2364
    %v2366 = vmul.f32 %v2335, 1.442695
    %v2367 = vpow.pop %v2366
    %2368 = vadd.xlane.f32.xlu0 %v2337
    %v2369 = vpop.xlane.xlu0 %2368
    %2370 = vadd.xlane.f32.xlu0 %v2339
    %v2371 = vpop.xlane.xlu0 %2370
    %2372 = vadd.xlane.f32.xlu0 %v2341
    %v2373 = vpop.xlane.xlu0 %2372
    %2374 = vadd.xlane.f32.xlu0 %v2343
    %v2375 = vpop.xlane.xlu0 %2374
    %2376 = vadd.xlane.f32.xlu0 %v2345
    %v2377 = vpop.xlane.xlu0 %2376
    %2378 = vadd.xlane.f32.xlu0 %v2347
    %v2379 = vpop.xlane.xlu0 %2378
    %2380 = vadd.xlane.f32.xlu0 %v2349
    %v2381 = vpop.xlane.xlu0 %2380
    %2382 = vadd.xlane.f32.xlu0 %v2351
    %v2383 = vpop.xlane.xlu0 %2382
    %2384 = vadd.xlane.f32.xlu0 %v2353
    %v2385 = vpop.xlane.xlu0 %2384
    %2386 = vadd.xlane.f32.xlu0 %v2355
    %v2387 = vpop.xlane.xlu0 %2386
    %2388 = vadd.xlane.f32.xlu0 %v2357
    %v2389 = vpop.xlane.xlu0 %2388
    %2390 = vadd.xlane.f32.xlu0 %v2359
    %v2391 = vpop.xlane.xlu0 %2390
    %2392 = vadd.xlane.f32.xlu0 %v2361
    %v2393 = vpop.xlane.xlu0 %2392
    %2394 = vadd.xlane.f32.xlu0 %v2363
    %v2395 = vpop.xlane.xlu0 %2394
    %2396 = vadd.xlane.f32.xlu0 %v2365
    %v2397 = vpop.xlane.xlu0 %2396
    %2398 = vadd.xlane.f32.xlu0 %v2367
    %v2399 = vpop.xlane.xlu0 %2398
    %v2400 = vrcp.pop %v2369
    %v2401 = vmul.f32 %v2337, %v2400
    %v2402 = vrcp.pop %v2371
    %v2403 = vmul.f32 %v2339, %v2402
    %v2404 = vrcp.pop %v2373
    %v2405 = vmul.f32 %v2341, %v2404
    %v2406 = vrcp.pop %v2375
    %v2407 = vmul.f32 %v2343, %v2406
    %v2408 = vrcp.pop %v2377
    %v2409 = vmul.f32 %v2345, %v2408
    %v2410 = vrcp.pop %v2379
    %v2411 = vmul.f32 %v2347, %v2410
    %v2412 = vrcp.pop %v2381
    %v2413 = vmul.f32 %v2349, %v2412
    %v2414 = vrcp.pop %v2383
    %v2415 = vmul.f32 %v2351, %v2414
    %v2416 = vrcp.pop %v2385
    %v2417 = vmul.f32 %v2353, %v2416
    %v2418 = vrcp.pop %v2387
    %v2419 = vmul.f32 %v2355, %v2418
    %v2420 = vrcp.pop %v2389
    %v2421 = vmul.f32 %v2357, %v2420
    %v2422 = vrcp.pop %v2391
    %v2423 = vmul.f32 %v2359, %v2422
    %v2424 = vrcp.pop %v2393
    %v2425 = vmul.f32 %v2361, %v2424
    %v2426 = vrcp.pop %v2395
    %v2427 = vmul.f32 %v2363, %v2426
    %v2428 = vrcp.pop %v2397
    %v2429 = vmul.f32 %v2365, %v2428
    %v2430 = vrcp.pop %v2399
    %v2431 = vmul.f32 %v2367, %v2430
    %2432 = vmatprep.subr.mxu0 0.0
    %2433 = vmatpush1.msra.mxu0 %v1972
    %2434 = vmatprep.subr.mxu0 0.0
    %2435 = vmatpush1.msra.mxu0 %v1966
    %2436 = vmatprep.subr.mxu0 0.0
    %2437 = vmatpush1.msra.mxu0 %v1960
    %2438 = vmatprep.subr.mxu0 0.0
    %2439 = vmatpush1.msra.mxu0 %v1954
    %2440 = vmatprep.subr.mxu0 0.0
    %2441 = vmatpush1.msra.mxu0 %v1948
    %2442 = vmatprep.subr.mxu0 0.0
    %2443 = vmatpush1.msra.mxu0 %v1942
    %2444 = vmatprep.subr.mxu0 0.0
    %2445 = vmatpush1.msra.mxu0 %v1936
    %2446 = vmatprep.subr.mxu0 0.0
    %2447 = vmatpush1.msra.mxu0 %v1930
    %2448 = vmatprep.subr.mxu0 0.0
    %2449 = vmatpush1.msra.mxu0 %v1924
    %2450 = vmatprep.subr.mxu0 0.0
    %2451 = vmatpush1.msra.mxu0 %v1918
    %2452 = vmatprep.subr.mxu0 0.0
    %2453 = vmatpush1.msra.mxu0 %v1912
    %2454 = vmatprep.subr.mxu0 0.0
    %2455 = vmatpush1.msra.mxu0 %v1906
    %2456 = vmatprep.subr.mxu0 0.0
    %2457 = vmatpush1.msra.mxu0 %v1900
    %2458 = vmatprep.subr.mxu0 0.0
    %2459 = vmatpush1.msra.mxu0 %v1894
    %2460 = vmatprep.subr.mxu0 0.0
    %2461 = vmatpush1.msra.mxu0 %v1888
    %2462 = vmatprep.subr.mxu0 0.0
    %2463 = vmatpush1.msra.mxu0 %v1882
    %2464 = vmatprep.subr.mxu0 0.0
    %2465 = vmatpush2.msra.mxu0 0.0
    %2466 = vmatprep.subr.mxu0 0.0
    %2467 = vmatpush2.msra.mxu0 0.0
    %2468 = vmatprep.subr.mxu0 0.0
    %2469 = vmatpush2.msra.mxu0 0.0
    %2470 = vmatprep.subr.mxu0 0.0
    %2471 = vmatpush2.msra.mxu0 0.0
    %2472 = vmatprep.subr.mxu0 0.0
    %2473 = vmatpush2.msra.mxu0 0.0
    %2474 = vmatprep.subr.mxu0 0.0
    %2475 = vmatpush2.msra.mxu0 0.0
    %2476 = vmatprep.subr.mxu0 0.0
    %2477 = vmatpush2.msra.mxu0 0.0
    %2478 = vmatprep.subr.mxu0 0.0
    %2479 = vmatpush2.msra.mxu0 0.0
    %2480 = vmatprep.subr.mxu0 0.0
    %2481 = vmatpush2.msra.mxu0 0.0
    %2482 = vmatprep.subr.mxu0 0.0
    %2483 = vmatpush2.msra.mxu0 0.0
    %2484 = vmatprep.subr.mxu0 0.0
    %2485 = vmatpush2.msra.mxu0 0.0
    %2486 = vmatprep.subr.mxu0 0.0
    %2487 = vmatpush2.msra.mxu0 0.0
    %2488 = vmatprep.subr.mxu0 0.0
    %2489 = vmatpush2.msra.mxu0 0.0
    %2490 = vmatprep.subr.mxu0 0.0
    %2491 = vmatpush2.msra.mxu0 0.0
    %2492 = vmatprep.subr.mxu0 0.0
    %2493 = vmatpush2.msra.mxu0 0.0
    %2494 = vmatprep.subr.mxu0 0.0
    %2495 = vmatpush2.msra.mxu0 0.0
    %2496 = vmatprep.mubr.f32.mxu0 0.0
    %2497 = vmatmul.mubr.f32.gmra.mxu0 %v2401
    %v2498 = vpop.f32.mrf.mxu0
    %v2499 = vadd.f32 0.0, %v2498
    %v2500 = vpop.f32.mrf.mxu0
    %2501 = vmatprep.mubr.f32.mxu0 0.0
    %2502 = vmatmul.mubr.f32.gmra.mxu0 %v2403
    %v2503 = vpop.f32.mrf.mxu0
    %v2504 = vadd.f32 0.0, %v2503
    %v2505 = vpop.f32.mrf.mxu0
    %2506 = vmatprep.mubr.f32.mxu0 0.0
    %2507 = vmatmul.mubr.f32.gmra.mxu0 %v2405
    %v2508 = vpop.f32.mrf.mxu0
    %v2509 = vadd.f32 0.0, %v2508
    %v2510 = vpop.f32.mrf.mxu0
    %2511 = vmatprep.mubr.f32.mxu0 0.0
    %2512 = vmatmul.mubr.f32.gmra.mxu0 %v2407
    %v2513 = vpop.f32.mrf.mxu0
    %v2514 = vadd.f32 0.0, %v2513
    %v2515 = vpop.f32.mrf.mxu0
    %2516 = vmatprep.mubr.f32.mxu0 0.0
    %2517 = vmatmul.mubr.f32.gmra.mxu0 %v2409
    %v2518 = vpop.f32.mrf.mxu0
    %v2519 = vadd.f32 0.0, %v2518
    %v2520 = vpop.f32.mrf.mxu0
    %2521 = vmatprep.mubr.f32.mxu0 0.0
    %2522 = vmatmul.mubr.f32.gmra.mxu0 %v2411
    %v2523 = vpop.f32.mrf.mxu0
    %v2524 = vadd.f32 0.0, %v2523
    %v2525 = vpop.f32.mrf.mxu0
    %2526 = vmatprep.mubr.f32.mxu0 0.0
    %2527 = vmatmul.mubr.f32.gmra.mxu0 %v2413
    %v2528 = vpop.f32.mrf.mxu0
    %v2529 = vadd.f32 0.0, %v2528
    %v2530 = vpop.f32.mrf.mxu0
    %2531 = vmatprep.mubr.f32.mxu0 0.0
    %2532 = vmatmul.mubr.f32.gmra.mxu0 %v2415
    %v2533 = vpop.f32.mrf.mxu0
    %v2534 = vadd.f32 0.0, %v2533
    %v2535 = vpop.f32.mrf.mxu0
    %2536 = vmatprep.mubr.f32.mxu0 0.0
    %2537 = vmatmul.mubr.f32.gmra.mxu0 %v2417
    %v2538 = vpop.f32.mrf.mxu0
    %v2539 = vadd.f32 0.0, %v2538
    %v2540 = vpop.f32.mrf.mxu0
    %2541 = vmatprep.mubr.f32.mxu0 0.0
    %2542 = vmatmul.mubr.f32.gmra.mxu0 %v2419
    %v2543 = vpop.f32.mrf.mxu0
    %v2544 = vadd.f32 0.0, %v2543
    %v2545 = vpop.f32.mrf.mxu0
    %2546 = vmatprep.mubr.f32.mxu0 0.0
    %2547 = vmatmul.mubr.f32.gmra.mxu0 %v2421
    %v2548 = vpop.f32.mrf.mxu0
    %v2549 = vadd.f32 0.0, %v2548
    %v2550 = vpop.f32.mrf.mxu0
    %2551 = vmatprep.mubr.f32.mxu0 0.0
    %2552 = vmatmul.mubr.f32.gmra.mxu0 %v2423
    %v2553 = vpop.f32.mrf.mxu0
    %v2554 = vadd.f32 0.0, %v2553
    %v2555 = vpop.f32.mrf.mxu0
    %2556 = vmatprep.mubr.f32.mxu0 0.0
    %2557 = vmatmul.mubr.f32.gmra.mxu0 %v2425
    %v2558 = vpop.f32.mrf.mxu0
    %v2559 = vadd.f32 0.0, %v2558
    %v2560 = vpop.f32.mrf.mxu0
    %2561 = vmatprep.mubr.f32.mxu0 0.0
    %2562 = vmatmul.mubr.f32.gmra.mxu0 %v2427
    %v2563 = vpop.f32.mrf.mxu0
    %v2564 = vadd.f32 0.0, %v2563
    %v2565 = vpop.f32.mrf.mxu0
    %2566 = vmatprep.mubr.f32.mxu0 0.0
    %2567 = vmatmul.mubr.f32.gmra.mxu0 %v2429
    %v2568 = vpop.f32.mrf.mxu0
    %v2569 = vadd.f32 0.0, %v2568
    %v2570 = vpop.f32.mrf.mxu0
    %2571 = vmatprep.mubr.f32.mxu0 0.0
    %2572 = vmatmul.mubr.f32.gmra.mxu0 %v2431
    %v2573 = vpop.f32.mrf.mxu0
    %v2574 = vadd.f32 0.0, %v2573
    %v2575 = vpop.f32.mrf.mxu0
    %2576 = vdwg.mxu0
    %2577 = vrot.lane.b32.xlu0 %v1880, 112
    %v2578 = vpop.permute.xlu0 %2577
    %2579 = vrot.lane.b32.xlu0 %v1886, 112
    %v2580 = vpop.permute.xlu0 %2579
    %2581 = vrot.lane.b32.xlu0 %v1892, 112
    %v2582 = vpop.permute.xlu0 %2581
    %2583 = vrot.lane.b32.xlu0 %v1898, 112
    %v2584 = vpop.permute.xlu0 %2583
    %2585 = vrot.lane.b32.xlu0 %v1904, 112
    %v2586 = vpop.permute.xlu0 %2585
    %2587 = vrot.lane.b32.xlu0 %v1910, 112
    %v2588 = vpop.permute.xlu0 %2587
    %2589 = vrot.lane.b32.xlu0 %v1916, 112
    %v2590 = vpop.permute.xlu0 %2589
    %2591 = vrot.lane.b32.xlu0 %v1922, 112
    %v2592 = vpop.permute.xlu0 %2591
    %2593 = vrot.lane.b32.xlu0 %v1928, 112
    %v2594 = vpop.permute.xlu0 %2593
    %2595 = vrot.lane.b32.xlu0 %v1934, 112
    %v2596 = vpop.permute.xlu0 %2595
    %2597 = vrot.lane.b32.xlu0 %v1940, 112
    %v2598 = vpop.permute.xlu0 %2597
    %2599 = vrot.lane.b32.xlu0 %v1946, 112
    %v2600 = vpop.permute.xlu0 %2599
    %2601 = vrot.lane.b32.xlu0 %v1952, 112
    %v2602 = vpop.permute.xlu0 %2601
    %2603 = vrot.lane.b32.xlu0 %v1958, 112
    %v2604 = vpop.permute.xlu0 %2603
    %2605 = vrot.lane.b32.xlu0 %v1964, 112
    %v2606 = vpop.permute.xlu0 %2605
    %2607 = vrot.lane.b32.xlu0 %v1970, 112
    %v2608 = vpop.permute.xlu0 %2607
    %2609 = vrot.lane.b32.xlu0 %v1880, 48
    %v2610 = vpop.permute.xlu0 %2609
    %2611 = vrot.lane.b32.xlu0 %v1886, 48
    %v2612 = vpop.permute.xlu0 %2611
    %2613 = vrot.lane.b32.xlu0 %v1892, 48
    %v2614 = vpop.permute.xlu0 %2613
    %2615 = vrot.lane.b32.xlu0 %v1898, 48
    %v2616 = vpop.permute.xlu0 %2615
    %2617 = vrot.lane.b32.xlu0 %v1904, 48
    %v2618 = vpop.permute.xlu0 %2617
    %2619 = vrot.lane.b32.xlu0 %v1910, 48
    %v2620 = vpop.permute.xlu0 %2619
    %2621 = vrot.lane.b32.xlu0 %v1916, 48
    %v2622 = vpop.permute.xlu0 %2621
    %2623 = vrot.lane.b32.xlu0 %v1922, 48
    %v2624 = vpop.permute.xlu0 %2623
    %2625 = vrot.lane.b32.xlu0 %v1928, 48
    %v2626 = vpop.permute.xlu0 %2625
    %2627 = vrot.lane.b32.xlu0 %v1934, 48
    %v2628 = vpop.permute.xlu0 %2627
    %2629 = vrot.lane.b32.xlu0 %v1940, 48
    %v2630 = vpop.permute.xlu0 %2629
    %2631 = vrot.lane.b32.xlu0 %v1946, 48
    %v2632 = vpop.permute.xlu0 %2631
    %2633 = vrot.lane.b32.xlu0 %v1952, 48
    %v2634 = vpop.permute.xlu0 %2633
    %2635 = vrot.lane.b32.xlu0 %v1958, 48
    %v2636 = vpop.permute.xlu0 %2635
    %2637 = vrot.lane.b32.xlu0 %v1964, 48
    %v2638 = vpop.permute.xlu0 %2637
    %2639 = vrot.lane.b32.xlu0 %v1970, 48
    %v2640 = vpop.permute.xlu0 %2639
    %v2641 = vsel %vm2046, %v2578, 0
    %v2643 = vsel %vm2046, %v2580, 0
    %v2645 = vsel %vm2046, %v2582, 0
    %v2647 = vsel %vm2046, %v2584, 0
    %v2649 = vsel %vm2046, %v2586, 0
    %v2651 = vsel %vm2046, %v2588, 0
    %v2653 = vsel %vm2046, %v2590, 0
    %v2655 = vsel %vm2046, %v2592, 0
    %v2657 = vsel %vm2046, %v2594, 0
    %v2659 = vsel %vm2046, %v2596, 0
    %v2661 = vsel %vm2046, %v2598, 0
    %v2663 = vsel %vm2046, %v2600, 0
    %v2665 = vsel %vm2046, %v2602, 0
    %v2667 = vsel %vm2046, %v2604, 0
    %v2669 = vsel %vm2046, %v2606, 0
    %v2671 = vsel %vm2046, %v2608, 0
    %v2673 = vsel %vm2046, %v2610, 0
    %v2675 = vsel %vm2046, %v2612, 0
    %v2677 = vsel %vm2046, %v2614, 0
    %v2679 = vsel %vm2046, %v2616, 0
    %v2681 = vsel %vm2046, %v2618, 0
    %v2683 = vsel %vm2046, %v2620, 0
    %v2685 = vsel %vm2046, %v2622, 0
    %v2687 = vsel %vm2046, %v2624, 0
    %v2689 = vsel %vm2046, %v2626, 0
    %v2691 = vsel %vm2046, %v2628, 0
    %v2693 = vsel %vm2046, %v2630, 0
    %v2695 = vsel %vm2046, %v2632, 0
    %v2697 = vsel %vm2046, %v2634, 0
    %v2699 = vsel %vm2046, %v2636, 0
    %v2701 = vsel %vm2046, %v2638, 0
    %v2703 = vsel %vm2046, %v2640, 0
    %2705 = vmatprep.subr.mxu0 0.0
    %2706 = vmatpush1.xpose.msra.mxu0 %v2703
    %2707 = vmatprep.subr.mxu0 0.0
    %2708 = vmatpush1.xpose.msra.mxu0 %v2701
    %2709 = vmatprep.subr.mxu0 0.0
    %2710 = vmatpush1.xpose.msra.mxu0 %v2699
    %2711 = vmatprep.subr.mxu0 0.0
    %2712 = vmatpush1.xpose.msra.mxu0 %v2697
    %2713 = vmatprep.subr.mxu0 0.0
    %2714 = vmatpush1.xpose.msra.mxu0 %v2695
    %2715 = vmatprep.subr.mxu0 0.0
    %2716 = vmatpush1.xpose.msra.mxu0 %v2693
    %2717 = vmatprep.subr.mxu0 0.0
    %2718 = vmatpush1.xpose.msra.mxu0 %v2691
    %2719 = vmatprep.subr.mxu0 0.0
    %2720 = vmatpush1.xpose.msra.mxu0 %v2689
    %2721 = vmatprep.subr.mxu0 0.0
    %2722 = vmatpush1.xpose.msra.mxu0 %v2687
    %2723 = vmatprep.subr.mxu0 0.0
    %2724 = vmatpush1.xpose.msra.mxu0 %v2685
    %2725 = vmatprep.subr.mxu0 0.0
    %2726 = vmatpush1.xpose.msra.mxu0 %v2683
    %2727 = vmatprep.subr.mxu0 0.0
    %2728 = vmatpush1.xpose.msra.mxu0 %v2681
    %2729 = vmatprep.subr.mxu0 0.0
    %2730 = vmatpush1.xpose.msra.mxu0 %v2679
    %2731 = vmatprep.subr.mxu0 0.0
    %2732 = vmatpush1.xpose.msra.mxu0 %v2677
    %2733 = vmatprep.subr.mxu0 0.0
    %2734 = vmatpush1.xpose.msra.mxu0 %v2675
    %2735 = vmatprep.subr.mxu0 0.0
    %2736 = vmatpush1.xpose.msra.mxu0 %v2673
    %2737 = vmatprep.subr.mxu0 0.0
    %2738 = vmatpush2.xpose.msra.mxu0 0.0
    %2739 = vmatprep.subr.mxu0 0.0
    %2740 = vmatpush2.xpose.msra.mxu0 0.0
    %2741 = vmatprep.subr.mxu0 0.0
    %2742 = vmatpush2.xpose.msra.mxu0 0.0
    %2743 = vmatprep.subr.mxu0 0.0
    %2744 = vmatpush2.xpose.msra.mxu0 0.0
    %2745 = vmatprep.subr.mxu0 0.0
    %2746 = vmatpush2.xpose.msra.mxu0 0.0
    %2747 = vmatprep.subr.mxu0 0.0
    %2748 = vmatpush2.xpose.msra.mxu0 0.0
    %2749 = vmatprep.subr.mxu0 0.0
    %2750 = vmatpush2.xpose.msra.mxu0 0.0
    %2751 = vmatprep.subr.mxu0 0.0
    %2752 = vmatpush2.xpose.msra.mxu0 0.0
    %2753 = vmatprep.subr.mxu0 0.0
    %2754 = vmatpush2.xpose.msra.mxu0 0.0
    %2755 = vmatprep.subr.mxu0 0.0
    %2756 = vmatpush2.xpose.msra.mxu0 0.0
    %2757 = vmatprep.subr.mxu0 0.0
    %2758 = vmatpush2.xpose.msra.mxu0 0.0
    %2759 = vmatprep.subr.mxu0 0.0
    %2760 = vmatpush2.xpose.msra.mxu0 0.0
    %2761 = vmatprep.subr.mxu0 0.0
    %2762 = vmatpush2.xpose.msra.mxu0 0.0
    %2763 = vmatprep.subr.mxu0 0.0
    %2764 = vmatpush2.xpose.msra.mxu0 0.0
    %2765 = vmatprep.subr.mxu0 0.0
    %2766 = vmatpush2.xpose.msra.mxu0 0.0
    %2767 = vmatprep.subr.mxu0 0.0
    %2768 = vmatpush2.xpose.msra.mxu0 0.0
    %2769 = vmatprep.mubr.f32.mxu0 0.0
    %2770 = vmatmul.mubr.f32.gmra.mxu0 %v2641
    %v2771 = vpop.f32.mrf.mxu0
    %v2772 = vadd.f32 0.0, %v2771
    %v2773 = vpop.f32.mrf.mxu0
    %2774 = vmatprep.mubr.f32.mxu0 0.0
    %2775 = vmatmul.mubr.f32.gmra.mxu0 %v2643
    %v2776 = vpop.f32.mrf.mxu0
    %v2777 = vadd.f32 0.0, %v2776
    %v2778 = vpop.f32.mrf.mxu0
    %2779 = vmatprep.mubr.f32.mxu0 0.0
    %2780 = vmatmul.mubr.f32.gmra.mxu0 %v2645
    %v2781 = vpop.f32.mrf.mxu0
    %v2782 = vadd.f32 0.0, %v2781
    %v2783 = vpop.f32.mrf.mxu0
    %2784 = vmatprep.mubr.f32.mxu0 0.0
    %2785 = vmatmul.mubr.f32.gmra.mxu0 %v2647
    %v2786 = vpop.f32.mrf.mxu0
    %v2787 = vadd.f32 0.0, %v2786
    %v2788 = vpop.f32.mrf.mxu0
    %2789 = vmatprep.mubr.f32.mxu0 0.0
    %2790 = vmatmul.mubr.f32.gmra.mxu0 %v2649
    %v2791 = vpop.f32.mrf.mxu0
    %v2792 = vadd.f32 0.0, %v2791
    %v2793 = vpop.f32.mrf.mxu0
    %2794 = vmatprep.mubr.f32.mxu0 0.0
    %2795 = vmatmul.mubr.f32.gmra.mxu0 %v2651
    %v2796 = vpop.f32.mrf.mxu0
    %v2797 = vadd.f32 0.0, %v2796
    %v2798 = vpop.f32.mrf.mxu0
    %2799 = vmatprep.mubr.f32.mxu0 0.0
    %2800 = vmatmul.mubr.f32.gmra.mxu0 %v2653
    %v2801 = vpop.f32.mrf.mxu0
    %v2802 = vadd.f32 0.0, %v2801
    %v2803 = vpop.f32.mrf.mxu0
    %2804 = vmatprep.mubr.f32.mxu0 0.0
    %2805 = vmatmul.mubr.f32.gmra.mxu0 %v2655
    %v2806 = vpop.f32.mrf.mxu0
    %v2807 = vadd.f32 0.0, %v2806
    %v2808 = vpop.f32.mrf.mxu0
    %2809 = vmatprep.mubr.f32.mxu0 0.0
    %2810 = vmatmul.mubr.f32.gmra.mxu0 %v2657
    %v2811 = vpop.f32.mrf.mxu0
    %v2812 = vadd.f32 0.0, %v2811
    %v2813 = vpop.f32.mrf.mxu0
    %2814 = vmatprep.mubr.f32.mxu0 0.0
    %2815 = vmatmul.mubr.f32.gmra.mxu0 %v2659
    %v2816 = vpop.f32.mrf.mxu0
    %v2817 = vadd.f32 0.0, %v2816
    %v2818 = vpop.f32.mrf.mxu0
    %2819 = vmatprep.mubr.f32.mxu0 0.0
    %2820 = vmatmul.mubr.f32.gmra.mxu0 %v2661
    %v2821 = vpop.f32.mrf.mxu0
    %v2822 = vadd.f32 0.0, %v2821
    %v2823 = vpop.f32.mrf.mxu0
    %2824 = vmatprep.mubr.f32.mxu0 0.0
    %2825 = vmatmul.mubr.f32.gmra.mxu0 %v2663
    %v2826 = vpop.f32.mrf.mxu0
    %v2827 = vadd.f32 0.0, %v2826
    %v2828 = vpop.f32.mrf.mxu0
    %2829 = vmatprep.mubr.f32.mxu0 0.0
    %2830 = vmatmul.mubr.f32.gmra.mxu0 %v2665
    %v2831 = vpop.f32.mrf.mxu0
    %v2832 = vadd.f32 0.0, %v2831
    %v2833 = vpop.f32.mrf.mxu0
    %2834 = vmatprep.mubr.f32.mxu0 0.0
    %2835 = vmatmul.mubr.f32.gmra.mxu0 %v2667
    %v2836 = vpop.f32.mrf.mxu0
    %v2837 = vadd.f32 0.0, %v2836
    %v2838 = vpop.f32.mrf.mxu0
    %2839 = vmatprep.mubr.f32.mxu0 0.0
    %2840 = vmatmul.mubr.f32.gmra.mxu0 %v2669
    %v2841 = vpop.f32.mrf.mxu0
    %v2842 = vadd.f32 0.0, %v2841
    %v2843 = vpop.f32.mrf.mxu0
    %2844 = vmatprep.mubr.f32.mxu0 0.0
    %2845 = vmatmul.mubr.f32.gmra.mxu0 %v2671
    %v2846 = vpop.f32.mrf.mxu0
    %v2847 = vadd.f32 0.0, %v2846
    %v2848 = vpop.f32.mrf.mxu0
    %2849 = vdwg.mxu0
    %v2850 = vmul.f32 %v2772, 0.25
    %v2851 = vmul.f32 %v2777, 0.25
    %v2852 = vmul.f32 %v2782, 0.25
    %v2853 = vmul.f32 %v2787, 0.25
    %v2854 = vmul.f32 %v2792, 0.25
    %v2855 = vmul.f32 %v2797, 0.25
    %v2856 = vmul.f32 %v2802, 0.25
    %v2857 = vmul.f32 %v2807, 0.25
    %v2858 = vmul.f32 %v2812, 0.25
    %v2859 = vmul.f32 %v2817, 0.25
    %v2860 = vmul.f32 %v2822, 0.25
    %v2861 = vmul.f32 %v2827, 0.25
    %v2862 = vmul.f32 %v2832, 0.25
    %v2863 = vmul.f32 %v2837, 0.25
    %v2864 = vmul.f32 %v2842, 0.25
    %v2865 = vmul.f32 %v2847, 0.25
    %v2866 = vadd.f32 %v2850, %v1974
    %v2867 = vadd.f32 %v2851, %v1975
    %v2868 = vadd.f32 %v2852, %v1976
    %v2869 = vadd.f32 %v2853, %v1977
    %v2870 = vadd.f32 %v2854, %v1978
    %v2871 = vadd.f32 %v2855, %v1979
    %v2872 = vadd.f32 %v2856, %v1980
    %v2873 = vadd.f32 %v2857, %v1981
    %v2874 = vadd.f32 %v2858, %v1982
    %v2875 = vadd.f32 %v2859, %v1983
    %v2876 = vadd.f32 %v2860, %v1984
    %v2877 = vadd.f32 %v2861, %v1985
    %v2878 = vadd.f32 %v2862, %v1986
    %v2879 = vadd.f32 %v2863, %v1987
    %v2880 = vadd.f32 %v2864, %v1988
    %v2881 = vadd.f32 %v2865, %v1989
    %2882 = vmax.xlane.f32.xlu0 %v2866
    %v2883 = vpop.xlane.xlu0 %2882
    %2884 = vmax.xlane.f32.xlu0 %v2867
    %v2885 = vpop.xlane.xlu0 %2884
    %2886 = vmax.xlane.f32.xlu0 %v2868
    %v2887 = vpop.xlane.xlu0 %2886
    %2888 = vmax.xlane.f32.xlu0 %v2869
    %v2889 = vpop.xlane.xlu0 %2888
    %2890 = vmax.xlane.f32.xlu0 %v2870
    %v2891 = vpop.xlane.xlu0 %2890
    %2892 = vmax.xlane.f32.xlu0 %v2871
    %v2893 = vpop.xlane.xlu0 %2892
    %2894 = vmax.xlane.f32.xlu0 %v2872
    %v2895 = vpop.xlane.xlu0 %2894
    %2896 = vmax.xlane.f32.xlu0 %v2873
    %v2897 = vpop.xlane.xlu0 %2896
    %2898 = vmax.xlane.f32.xlu0 %v2874
    %v2899 = vpop.xlane.xlu0 %2898
    %2900 = vmax.xlane.f32.xlu0 %v2875
    %v2901 = vpop.xlane.xlu0 %2900
    %2902 = vmax.xlane.f32.xlu0 %v2876
    %v2903 = vpop.xlane.xlu0 %2902
    %2904 = vmax.xlane.f32.xlu0 %v2877
    %v2905 = vpop.xlane.xlu0 %2904
    %2906 = vmax.xlane.f32.xlu0 %v2878
    %v2907 = vpop.xlane.xlu0 %2906
    %2908 = vmax.xlane.f32.xlu0 %v2879
    %v2909 = vpop.xlane.xlu0 %2908
    %2910 = vmax.xlane.f32.xlu0 %v2880
    %v2911 = vpop.xlane.xlu0 %2910
    %2912 = vmax.xlane.f32.xlu0 %v2881
    %v2913 = vpop.xlane.xlu0 %2912
    %v2914 = vsub.f32 %v2866, %v2883
    %v2915 = vsub.f32 %v2867, %v2885
    %v2916 = vsub.f32 %v2868, %v2887
    %v2917 = vsub.f32 %v2869, %v2889
    %v2918 = vsub.f32 %v2870, %v2891
    %v2919 = vsub.f32 %v2871, %v2893
    %v2920 = vsub.f32 %v2872, %v2895
    %v2921 = vsub.f32 %v2873, %v2897
    %v2922 = vsub.f32 %v2874, %v2899
    %v2923 = vsub.f32 %v2875, %v2901
    %v2924 = vsub.f32 %v2876, %v2903
    %v2925 = vsub.f32 %v2877, %v2905
    %v2926 = vsub.f32 %v2878, %v2907
    %v2927 = vsub.f32 %v2879, %v2909
    %v2928 = vsub.f32 %v2880, %v2911
    %v2929 = vsub.f32 %v2881, %v2913
    %v2930 = vmul.f32 %v2914, 1.442695
    %v2931 = vpow.pop %v2930
    %v2932 = vmul.f32 %v2915, 1.442695
    %v2933 = vpow.pop %v2932
    %v2934 = vmul.f32 %v2916, 1.442695
    %v2935 = vpow.pop %v2934
    %v2936 = vmul.f32 %v2917, 1.442695
    %v2937 = vpow.pop %v2936
    %v2938 = vmul.f32 %v2918, 1.442695
    %v2939 = vpow.pop %v2938
    %v2940 = vmul.f32 %v2919, 1.442695
    %v2941 = vpow.pop %v2940
    %v2942 = vmul.f32 %v2920, 1.442695
    %v2943 = vpow.pop %v2942
    %v2944 = vmul.f32 %v2921, 1.442695
    %v2945 = vpow.pop %v2944
    %v2946 = vmul.f32 %v2922, 1.442695
    %v2947 = vpow.pop %v2946
    %v2948 = vmul.f32 %v2923, 1.442695
    %v2949 = vpow.pop %v2948
    %v2950 = vmul.f32 %v2924, 1.442695
    %v2951 = vpow.pop %v2950
    %v2952 = vmul.f32 %v2925, 1.442695
    %v2953 = vpow.pop %v2952
    %v2954 = vmul.f32 %v2926, 1.442695
    %v2955 = vpow.pop %v2954
    %v2956 = vmul.f32 %v2927, 1.442695
    %v2957 = vpow.pop %v2956
    %v2958 = vmul.f32 %v2928, 1.442695
    %v2959 = vpow.pop %v2958
    %v2960 = vmul.f32 %v2929, 1.442695
    %v2961 = vpow.pop %v2960
    %2962 = vadd.xlane.f32.xlu0 %v2931
    %v2963 = vpop.xlane.xlu0 %2962
    %2964 = vadd.xlane.f32.xlu0 %v2933
    %v2965 = vpop.xlane.xlu0 %2964
    %2966 = vadd.xlane.f32.xlu0 %v2935
    %v2967 = vpop.xlane.xlu0 %2966
    %2968 = vadd.xlane.f32.xlu0 %v2937
    %v2969 = vpop.xlane.xlu0 %2968
    %2970 = vadd.xlane.f32.xlu0 %v2939
    %v2971 = vpop.xlane.xlu0 %2970
    %2972 = vadd.xlane.f32.xlu0 %v2941
    %v2973 = vpop.xlane.xlu0 %2972
    %2974 = vadd.xlane.f32.xlu0 %v2943
    %v2975 = vpop.xlane.xlu0 %2974
    %2976 = vadd.xlane.f32.xlu0 %v2945
    %v2977 = vpop.xlane.xlu0 %2976
    %2978 = vadd.xlane.f32.xlu0 %v2947
    %v2979 = vpop.xlane.xlu0 %2978
    %2980 = vadd.xlane.f32.xlu0 %v2949
    %v2981 = vpop.xlane.xlu0 %2980
    %2982 = vadd.xlane.f32.xlu0 %v2951
    %v2983 = vpop.xlane.xlu0 %2982
    %2984 = vadd.xlane.f32.xlu0 %v2953
    %v2985 = vpop.xlane.xlu0 %2984
    %2986 = vadd.xlane.f32.xlu0 %v2955
    %v2987 = vpop.xlane.xlu0 %2986
    %2988 = vadd.xlane.f32.xlu0 %v2957
    %v2989 = vpop.xlane.xlu0 %2988
    %2990 = vadd.xlane.f32.xlu0 %v2959
    %v2991 = vpop.xlane.xlu0 %2990
    %2992 = vadd.xlane.f32.xlu0 %v2961
    %v2993 = vpop.xlane.xlu0 %2992
    %v2994 = vrcp.pop %v2963
    %v2995 = vmul.f32 %v2931, %v2994
    %v2996 = vrcp.pop %v2965
    %v2997 = vmul.f32 %v2933, %v2996
    %v2998 = vrcp.pop %v2967
    %v2999 = vmul.f32 %v2935, %v2998
    %v3000 = vrcp.pop %v2969
    %v3001 = vmul.f32 %v2937, %v3000
    %v3002 = vrcp.pop %v2971
    %v3003 = vmul.f32 %v2939, %v3002
    %v3004 = vrcp.pop %v2973
    %v3005 = vmul.f32 %v2941, %v3004
    %v3006 = vrcp.pop %v2975
    %v3007 = vmul.f32 %v2943, %v3006
    %v3008 = vrcp.pop %v2977
    %v3009 = vmul.f32 %v2945, %v3008
    %v3010 = vrcp.pop %v2979
    %v3011 = vmul.f32 %v2947, %v3010
    %v3012 = vrcp.pop %v2981
    %v3013 = vmul.f32 %v2949, %v3012
    %v3014 = vrcp.pop %v2983
    %v3015 = vmul.f32 %v2951, %v3014
    %v3016 = vrcp.pop %v2985
    %v3017 = vmul.f32 %v2953, %v3016
    %v3018 = vrcp.pop %v2987
    %v3019 = vmul.f32 %v2955, %v3018
    %v3020 = vrcp.pop %v2989
    %v3021 = vmul.f32 %v2957, %v3020
    %v3022 = vrcp.pop %v2991
    %v3023 = vmul.f32 %v2959, %v3022
    %v3024 = vrcp.pop %v2993
    %v3025 = vmul.f32 %v2961, %v3024
    %3042 = vrot.lane.b32.xlu0 %v1882, 112
    %v3043 = vpop.permute.xlu0 %3042
    %3044 = vrot.lane.b32.xlu0 %v1888, 112
    %v3045 = vpop.permute.xlu0 %3044
    %3046 = vrot.lane.b32.xlu0 %v1894, 112
    %v3047 = vpop.permute.xlu0 %3046
    %3048 = vrot.lane.b32.xlu0 %v1900, 112
    %v3049 = vpop.permute.xlu0 %3048
    %3050 = vrot.lane.b32.xlu0 %v1906, 112
    %v3051 = vpop.permute.xlu0 %3050
    %3052 = vrot.lane.b32.xlu0 %v1912, 112
    %v3053 = vpop.permute.xlu0 %3052
    %3054 = vrot.lane.b32.xlu0 %v1918, 112
    %v3055 = vpop.permute.xlu0 %3054
    %3056 = vrot.lane.b32.xlu0 %v1924, 112
    %v3057 = vpop.permute.xlu0 %3056
    %3058 = vrot.lane.b32.xlu0 %v1930, 112
    %v3059 = vpop.permute.xlu0 %3058
    %3060 = vrot.lane.b32.xlu0 %v1936, 112
    %v3061 = vpop.permute.xlu0 %3060
    %3062 = vrot.lane.b32.xlu0 %v1942, 112
    %v3063 = vpop.permute.xlu0 %3062
    %3064 = vrot.lane.b32.xlu0 %v1948, 112
    %v3065 = vpop.permute.xlu0 %3064
    %3066 = vrot.lane.b32.xlu0 %v1954, 112
    %v3067 = vpop.permute.xlu0 %3066
    %3068 = vrot.lane.b32.xlu0 %v1960, 112
    %v3069 = vpop.permute.xlu0 %3068
    %3070 = vrot.lane.b32.xlu0 %v1966, 112
    %v3071 = vpop.permute.xlu0 %3070
    %3072 = vrot.lane.b32.xlu0 %v1972, 112
    %v3073 = vpop.permute.xlu0 %3072
    %3090 = vmatprep.subr.mxu0 0.0
    %3091 = vmatpush1.msra.mxu0 %v3073
    %3092 = vmatprep.subr.mxu0 0.0
    %3093 = vmatpush1.msra.mxu0 %v3071
    %3094 = vmatprep.subr.mxu0 0.0
    %3095 = vmatpush1.msra.mxu0 %v3069
    %3096 = vmatprep.subr.mxu0 0.0
    %3097 = vmatpush1.msra.mxu0 %v3067
    %3098 = vmatprep.subr.mxu0 0.0
    %3099 = vmatpush1.msra.mxu0 %v3065
    %3100 = vmatprep.subr.mxu0 0.0
    %3101 = vmatpush1.msra.mxu0 %v3063
    %3102 = vmatprep.subr.mxu0 0.0
    %3103 = vmatpush1.msra.mxu0 %v3061
    %3104 = vmatprep.subr.mxu0 0.0
    %3105 = vmatpush1.msra.mxu0 %v3059
    %3106 = vmatprep.subr.mxu0 0.0
    %3107 = vmatpush1.msra.mxu0 %v3057
    %3108 = vmatprep.subr.mxu0 0.0
    %3109 = vmatpush1.msra.mxu0 %v3055
    %3110 = vmatprep.subr.mxu0 0.0
    %3111 = vmatpush1.msra.mxu0 %v3053
    %3112 = vmatprep.subr.mxu0 0.0
    %3113 = vmatpush1.msra.mxu0 %v3051
    %3114 = vmatprep.subr.mxu0 0.0
    %3115 = vmatpush1.msra.mxu0 %v3049
    %3116 = vmatprep.subr.mxu0 0.0
    %3117 = vmatpush1.msra.mxu0 %v3047
    %3118 = vmatprep.subr.mxu0 0.0
    %3119 = vmatpush1.msra.mxu0 %v3045
    %3120 = vmatprep.subr.mxu0 0.0
    %3121 = vmatpush1.msra.mxu0 %v3043
    %3122 = vmatprep.subr.mxu0 0.0
    %3123 = vmatpush2.msra.mxu0 0.0
    %3124 = vmatprep.subr.mxu0 0.0
    %3125 = vmatpush2.msra.mxu0 0.0
    %3126 = vmatprep.subr.mxu0 0.0
    %3127 = vmatpush2.msra.mxu0 0.0
    %3128 = vmatprep.subr.mxu0 0.0
    %3129 = vmatpush2.msra.mxu0 0.0
    %3130 = vmatprep.subr.mxu0 0.0
    %3131 = vmatpush2.msra.mxu0 0.0
    %3132 = vmatprep.subr.mxu0 0.0
    %3133 = vmatpush2.msra.mxu0 0.0
    %3134 = vmatprep.subr.mxu0 0.0
    %3135 = vmatpush2.msra.mxu0 0.0
    %3136 = vmatprep.subr.mxu0 0.0
    %3137 = vmatpush2.msra.mxu0 0.0
    %3138 = vmatprep.subr.mxu0 0.0
    %3139 = vmatpush2.msra.mxu0 0.0
    %3140 = vmatprep.subr.mxu0 0.0
    %3141 = vmatpush2.msra.mxu0 0.0
    %3142 = vmatprep.subr.mxu0 0.0
    %3143 = vmatpush2.msra.mxu0 0.0
    %3144 = vmatprep.subr.mxu0 0.0
    %3145 = vmatpush2.msra.mxu0 0.0
    %3146 = vmatprep.subr.mxu0 0.0
    %3147 = vmatpush2.msra.mxu0 0.0
    %3148 = vmatprep.subr.mxu0 0.0
    %3149 = vmatpush2.msra.mxu0 0.0
    %3150 = vmatprep.subr.mxu0 0.0
    %3151 = vmatpush2.msra.mxu0 0.0
    %3152 = vmatprep.subr.mxu0 0.0
    %3153 = vmatpush2.msra.mxu0 0.0
    %3154 = vmatprep.mubr.f32.mxu0 0.0
    %3155 = vmatmul.mubr.f32.gmra.mxu0 %v2995
    %v3156 = vpop.f32.mrf.mxu0
    %v3157 = vadd.f32 0.0, %v3156
    %v3158 = vpop.f32.mrf.mxu0
    %3159 = vmatprep.mubr.f32.mxu0 0.0
    %3160 = vmatmul.mubr.f32.gmra.mxu0 %v2997
    %v3161 = vpop.f32.mrf.mxu0
    %v3162 = vadd.f32 0.0, %v3161
    %v3163 = vpop.f32.mrf.mxu0
    %3164 = vmatprep.mubr.f32.mxu0 0.0
    %3165 = vmatmul.mubr.f32.gmra.mxu0 %v2999
    %v3166 = vpop.f32.mrf.mxu0
    %v3167 = vadd.f32 0.0, %v3166
    %v3168 = vpop.f32.mrf.mxu0
    %3169 = vmatprep.mubr.f32.mxu0 0.0
    %3170 = vmatmul.mubr.f32.gmra.mxu0 %v3001
    %v3171 = vpop.f32.mrf.mxu0
    %v3172 = vadd.f32 0.0, %v3171
    %v3173 = vpop.f32.mrf.mxu0
    %3174 = vmatprep.mubr.f32.mxu0 0.0
    %3175 = vmatmul.mubr.f32.gmra.mxu0 %v3003
    %v3176 = vpop.f32.mrf.mxu0
    %v3177 = vadd.f32 0.0, %v3176
    %v3178 = vpop.f32.mrf.mxu0
    %3179 = vmatprep.mubr.f32.mxu0 0.0
    %3180 = vmatmul.mubr.f32.gmra.mxu0 %v3005
    %v3181 = vpop.f32.mrf.mxu0
    %v3182 = vadd.f32 0.0, %v3181
    %v3183 = vpop.f32.mrf.mxu0
    %3184 = vmatprep.mubr.f32.mxu0 0.0
    %3185 = vmatmul.mubr.f32.gmra.mxu0 %v3007
    %v3186 = vpop.f32.mrf.mxu0
    %v3187 = vadd.f32 0.0, %v3186
    %v3188 = vpop.f32.mrf.mxu0
    %3189 = vmatprep.mubr.f32.mxu0 0.0
    %3190 = vmatmul.mubr.f32.gmra.mxu0 %v3009
    %v3191 = vpop.f32.mrf.mxu0
    %v3192 = vadd.f32 0.0, %v3191
    %v3193 = vpop.f32.mrf.mxu0
    %3194 = vmatprep.mubr.f32.mxu0 0.0
    %3195 = vmatmul.mubr.f32.gmra.mxu0 %v3011
    %v3196 = vpop.f32.mrf.mxu0
    %v3197 = vadd.f32 0.0, %v3196
    %v3198 = vpop.f32.mrf.mxu0
    %3199 = vmatprep.mubr.f32.mxu0 0.0
    %3200 = vmatmul.mubr.f32.gmra.mxu0 %v3013
    %v3201 = vpop.f32.mrf.mxu0
    %v3202 = vadd.f32 0.0, %v3201
    %v3203 = vpop.f32.mrf.mxu0
    %3204 = vmatprep.mubr.f32.mxu0 0.0
    %3205 = vmatmul.mubr.f32.gmra.mxu0 %v3015
    %v3206 = vpop.f32.mrf.mxu0
    %v3207 = vadd.f32 0.0, %v3206
    %v3208 = vpop.f32.mrf.mxu0
    %3209 = vmatprep.mubr.f32.mxu0 0.0
    %3210 = vmatmul.mubr.f32.gmra.mxu0 %v3017
    %v3211 = vpop.f32.mrf.mxu0
    %v3212 = vadd.f32 0.0, %v3211
    %v3213 = vpop.f32.mrf.mxu0
    %3214 = vmatprep.mubr.f32.mxu0 0.0
    %3215 = vmatmul.mubr.f32.gmra.mxu0 %v3019
    %v3216 = vpop.f32.mrf.mxu0
    %v3217 = vadd.f32 0.0, %v3216
    %v3218 = vpop.f32.mrf.mxu0
    %3219 = vmatprep.mubr.f32.mxu0 0.0
    %3220 = vmatmul.mubr.f32.gmra.mxu0 %v3021
    %v3221 = vpop.f32.mrf.mxu0
    %v3222 = vadd.f32 0.0, %v3221
    %v3223 = vpop.f32.mrf.mxu0
    %3224 = vmatprep.mubr.f32.mxu0 0.0
    %3225 = vmatmul.mubr.f32.gmra.mxu0 %v3023
    %v3226 = vpop.f32.mrf.mxu0
    %v3227 = vadd.f32 0.0, %v3226
    %v3228 = vpop.f32.mrf.mxu0
    %3229 = vmatprep.mubr.f32.mxu0 0.0
    %3230 = vmatmul.mubr.f32.gmra.mxu0 %v3025
    %v3231 = vpop.f32.mrf.mxu0
    %v3232 = vadd.f32 0.0, %v3231
    %v3233 = vpop.f32.mrf.mxu0
    %3234 = vdwg.mxu0
    %v3236 = vsel %vm2046, %v3157, 0
    %v3239 = vsel %vm2046, %v3162, 0
    %v3242 = vsel %vm2046, %v3167, 0
    %v3245 = vsel %vm2046, %v3172, 0
    %v3248 = vsel %vm2046, %v3177, 0
    %v3251 = vsel %vm2046, %v3182, 0
    %v3254 = vsel %vm2046, %v3187, 0
    %v3257 = vsel %vm2046, %v3192, 0
    %v3260 = vsel %vm2046, %v3197, 0
    %v3263 = vsel %vm2046, %v3202, 0
    %v3266 = vsel %vm2046, %v3207, 0
    %v3269 = vsel %vm2046, %v3212, 0
    %v3272 = vsel %vm2046, %v3217, 0
    %v3275 = vsel %vm2046, %v3222, 0
    %v3278 = vsel %vm2046, %v3227, 0
    %v3281 = vsel %vm2046, %v3232, 0
    %3283 = vmatprep.subr.mxu0 0.0
    %3284 = vmatpush1.msra.mxu0 0.0
    %3285 = vmatprep.subr.mxu0 0.0
    %3286 = vmatpush1.msra.mxu0 0.0
    %3287 = vmatprep.subr.mxu0 0.0
    %3288 = vmatpush1.msra.mxu0 0.0
    %3289 = vmatprep.subr.mxu0 0.0
    %3290 = vmatpush1.msra.mxu0 0.0
    %3291 = vmatprep.subr.mxu0 0.0
    %3292 = vmatpush1.msra.mxu0 0.0
    %3293 = vmatprep.subr.mxu0 0.0
    %3294 = vmatpush1.msra.mxu0 0.0
    %3295 = vmatprep.subr.mxu0 0.0
    %3296 = vmatpush1.msra.mxu0 0.0
    %3297 = vmatprep.subr.mxu0 0.0
    %3298 = vmatpush1.msra.mxu0 0.0
    %3299 = vmatprep.subr.mxu0 0.0
    %3300 = vmatpush1.msra.mxu0 0.0
    %3301 = vmatprep.subr.mxu0 0.0
    %3302 = vmatpush1.msra.mxu0 0.0
    %3303 = vmatprep.subr.mxu0 0.0
    %3304 = vmatpush1.msra.mxu0 0.0
    %3305 = vmatprep.subr.mxu0 0.0
    %3306 = vmatpush1.msra.mxu0 0.0
    %3307 = vmatprep.subr.mxu0 0.0
    %3308 = vmatpush1.msra.mxu0 0.0
    %3309 = vmatprep.subr.mxu0 0.0
    %3310 = vmatpush1.msra.mxu0 0.0
    %3311 = vmatprep.subr.mxu0 0.0
    %3312 = vmatpush1.msra.mxu0 %v1993
    %3313 = vmatprep.subr.mxu0 0.0
    %3314 = vmatpush1.msra.mxu0 %v1992
    %3315 = vmatprep.subr.mxu0 0.0
    %3316 = vmatpush2.msra.mxu0 0.0
    %3317 = vmatprep.subr.mxu0 0.0
    %3318 = vmatpush2.msra.mxu0 0.0
    %3319 = vmatprep.subr.mxu0 0.0
    %3320 = vmatpush2.msra.mxu0 0.0
    %3321 = vmatprep.subr.mxu0 0.0
    %3322 = vmatpush2.msra.mxu0 0.0
    %3323 = vmatprep.subr.mxu0 0.0
    %3324 = vmatpush2.msra.mxu0 0.0
    %3325 = vmatprep.subr.mxu0 0.0
    %3326 = vmatpush2.msra.mxu0 0.0
    %3327 = vmatprep.subr.mxu0 0.0
    %3328 = vmatpush2.msra.mxu0 0.0
    %3329 = vmatprep.subr.mxu0 0.0
    %3330 = vmatpush2.msra.mxu0 0.0
    %3331 = vmatprep.subr.mxu0 0.0
    %3332 = vmatpush2.msra.mxu0 0.0
    %3333 = vmatprep.subr.mxu0 0.0
    %3334 = vmatpush2.msra.mxu0 0.0
    %3335 = vmatprep.subr.mxu0 0.0
    %3336 = vmatpush2.msra.mxu0 0.0
    %3337 = vmatprep.subr.mxu0 0.0
    %3338 = vmatpush2.msra.mxu0 0.0
    %3339 = vmatprep.subr.mxu0 0.0
    %3340 = vmatpush2.msra.mxu0 0.0
    %3341 = vmatprep.subr.mxu0 0.0
    %3342 = vmatpush2.msra.mxu0 0.0
    %3343 = vmatprep.subr.mxu0 0.0
    %3344 = vmatpush2.msra.mxu0 0.0
    %3345 = vmatprep.subr.mxu0 0.0
    %3346 = vmatpush2.msra.mxu0 0.0
    %3347 = vmatprep.mubr.f32.mxu0 0.0
    %3348 = vmatmul.mubr.f32.gmra.mxu0 %v3236
    %v3349 = vpop.f32.mrf.mxu0
    %v3350 = vadd.f32 0.0, %v3349
    %v3351 = vpop.f32.mrf.mxu0
    %3352 = vmatprep.mubr.f32.mxu0 0.0
    %3353 = vmatmul.mubr.f32.gmra.mxu0 %v3239
    %v3354 = vpop.f32.mrf.mxu0
    %v3355 = vadd.f32 0.0, %v3354
    %v3356 = vpop.f32.mrf.mxu0
    %3357 = vmatprep.mubr.f32.mxu0 0.0
    %3358 = vmatmul.mubr.f32.gmra.mxu0 %v3242
    %v3359 = vpop.f32.mrf.mxu0
    %v3360 = vadd.f32 0.0, %v3359
    %v3361 = vpop.f32.mrf.mxu0
    %3362 = vmatprep.mubr.f32.mxu0 0.0
    %3363 = vmatmul.mubr.f32.gmra.mxu0 %v3245
    %v3364 = vpop.f32.mrf.mxu0
    %v3365 = vadd.f32 0.0, %v3364
    %v3366 = vpop.f32.mrf.mxu0
    %3367 = vmatprep.mubr.f32.mxu0 0.0
    %3368 = vmatmul.mubr.f32.gmra.mxu0 %v3248
    %v3369 = vpop.f32.mrf.mxu0
    %v3370 = vadd.f32 0.0, %v3369
    %v3371 = vpop.f32.mrf.mxu0
    %3372 = vmatprep.mubr.f32.mxu0 0.0
    %3373 = vmatmul.mubr.f32.gmra.mxu0 %v3251
    %v3374 = vpop.f32.mrf.mxu0
    %v3375 = vadd.f32 0.0, %v3374
    %v3376 = vpop.f32.mrf.mxu0
    %3377 = vmatprep.mubr.f32.mxu0 0.0
    %3378 = vmatmul.mubr.f32.gmra.mxu0 %v3254
    %v3379 = vpop.f32.mrf.mxu0
    %v3380 = vadd.f32 0.0, %v3379
    %v3381 = vpop.f32.mrf.mxu0
    %3382 = vmatprep.mubr.f32.mxu0 0.0
    %3383 = vmatmul.mubr.f32.gmra.mxu0 %v3257
    %v3384 = vpop.f32.mrf.mxu0
    %v3385 = vadd.f32 0.0, %v3384
    %v3386 = vpop.f32.mrf.mxu0
    %3387 = vmatprep.mubr.f32.mxu0 0.0
    %3388 = vmatmul.mubr.f32.gmra.mxu0 %v3260
    %v3389 = vpop.f32.mrf.mxu0
    %v3390 = vadd.f32 0.0, %v3389
    %v3391 = vpop.f32.mrf.mxu0
    %3392 = vmatprep.mubr.f32.mxu0 0.0
    %3393 = vmatmul.mubr.f32.gmra.mxu0 %v3263
    %v3394 = vpop.f32.mrf.mxu0
    %v3395 = vadd.f32 0.0, %v3394
    %v3396 = vpop.f32.mrf.mxu0
    %3397 = vmatprep.mubr.f32.mxu0 0.0
    %3398 = vmatmul.mubr.f32.gmra.mxu0 %v3266
    %v3399 = vpop.f32.mrf.mxu0
    %v3400 = vadd.f32 0.0, %v3399
    %v3401 = vpop.f32.mrf.mxu0
    %3402 = vmatprep.mubr.f32.mxu0 0.0
    %3403 = vmatmul.mubr.f32.gmra.mxu0 %v3269
    %v3404 = vpop.f32.mrf.mxu0
    %v3405 = vadd.f32 0.0, %v3404
    %v3406 = vpop.f32.mrf.mxu0
    %3407 = vmatprep.mubr.f32.mxu0 0.0
    %3408 = vmatmul.mubr.f32.gmra.mxu0 %v3272
    %v3409 = vpop.f32.mrf.mxu0
    %v3410 = vadd.f32 0.0, %v3409
    %v3411 = vpop.f32.mrf.mxu0
    %3412 = vmatprep.mubr.f32.mxu0 0.0
    %3413 = vmatmul.mubr.f32.gmra.mxu0 %v3275
    %v3414 = vpop.f32.mrf.mxu0
    %v3415 = vadd.f32 0.0, %v3414
    %v3416 = vpop.f32.mrf.mxu0
    %3417 = vmatprep.mubr.f32.mxu0 0.0
    %3418 = vmatmul.mubr.f32.gmra.mxu0 %v3278
    %v3419 = vpop.f32.mrf.mxu0
    %v3420 = vadd.f32 0.0, %v3419
    %v3421 = vpop.f32.mrf.mxu0
    %3422 = vmatprep.mubr.f32.mxu0 0.0
    %3423 = vmatmul.mubr.f32.gmra.mxu0 %v3281
    %v3424 = vpop.f32.mrf.mxu0
    %v3425 = vadd.f32 0.0, %v3424
    %v3426 = vpop.f32.mrf.mxu0
    %3427 = vdwg.mxu0
    %v3429 = vsel %vm2046, %v2499, 0
    %v3432 = vsel %vm2046, %v2504, 0
    %v3435 = vsel %vm2046, %v2509, 0
    %v3438 = vsel %vm2046, %v2514, 0
    %v3441 = vsel %vm2046, %v2519, 0
    %v3444 = vsel %vm2046, %v2524, 0
    %v3447 = vsel %vm2046, %v2529, 0
    %v3450 = vsel %vm2046, %v2534, 0
    %v3453 = vsel %vm2046, %v2539, 0
    %v3456 = vsel %vm2046, %v2544, 0
    %v3459 = vsel %vm2046, %v2549, 0
    %v3462 = vsel %vm2046, %v2554, 0
    %v3465 = vsel %vm2046, %v2559, 0
    %v3468 = vsel %vm2046, %v2564, 0
    %v3471 = vsel %vm2046, %v2569, 0
    %v3474 = vsel %vm2046, %v2574, 0
    %3476 = vmatprep.subr.mxu0 0.0
    %3477 = vmatpush1.msra.mxu0 0.0
    %3478 = vmatprep.subr.mxu0 0.0
    %3479 = vmatpush1.msra.mxu0 0.0
    %3480 = vmatprep.subr.mxu0 0.0
    %3481 = vmatpush1.msra.mxu0 0.0
    %3482 = vmatprep.subr.mxu0 0.0
    %3483 = vmatpush1.msra.mxu0 0.0
    %3484 = vmatprep.subr.mxu0 0.0
    %3485 = vmatpush1.msra.mxu0 0.0
    %3486 = vmatprep.subr.mxu0 0.0
    %3487 = vmatpush1.msra.mxu0 0.0
    %3488 = vmatprep.subr.mxu0 0.0
    %3489 = vmatpush1.msra.mxu0 0.0
    %3490 = vmatprep.subr.mxu0 0.0
    %3491 = vmatpush1.msra.mxu0 0.0
    %3492 = vmatprep.subr.mxu0 0.0
    %3493 = vmatpush1.msra.mxu0 0.0
    %3494 = vmatprep.subr.mxu0 0.0
    %3495 = vmatpush1.msra.mxu0 0.0
    %3496 = vmatprep.subr.mxu0 0.0
    %3497 = vmatpush1.msra.mxu0 0.0
    %3498 = vmatprep.subr.mxu0 0.0
    %3499 = vmatpush1.msra.mxu0 0.0
    %3500 = vmatprep.subr.mxu0 0.0
    %3501 = vmatpush1.msra.mxu0 0.0
    %3502 = vmatprep.subr.mxu0 0.0
    %3503 = vmatpush1.msra.mxu0 0.0
    %3504 = vmatprep.subr.mxu0 0.0
    %3505 = vmatpush1.msra.mxu0 %v1991
    %3506 = vmatprep.subr.mxu0 0.0
    %3507 = vmatpush1.msra.mxu0 %v1990
    %3508 = vmatprep.subr.mxu0 0.0
    %3509 = vmatpush2.msra.mxu0 0.0
    %3510 = vmatprep.subr.mxu0 0.0
    %3511 = vmatpush2.msra.mxu0 0.0
    %3512 = vmatprep.subr.mxu0 0.0
    %3513 = vmatpush2.msra.mxu0 0.0
    %3514 = vmatprep.subr.mxu0 0.0
    %3515 = vmatpush2.msra.mxu0 0.0
    %3516 = vmatprep.subr.mxu0 0.0
    %3517 = vmatpush2.msra.mxu0 0.0
    %3518 = vmatprep.subr.mxu0 0.0
    %3519 = vmatpush2.msra.mxu0 0.0
    %3520 = vmatprep.subr.mxu0 0.0
    %3521 = vmatpush2.msra.mxu0 0.0
    %3522 = vmatprep.subr.mxu0 0.0
    %3523 = vmatpush2.msra.mxu0 0.0
    %3524 = vmatprep.subr.mxu0 0.0
    %3525 = vmatpush2.msra.mxu0 0.0
    %3526 = vmatprep.subr.mxu0 0.0
    %3527 = vmatpush2.msra.mxu0 0.0
    %3528 = vmatprep.subr.mxu0 0.0
    %3529 = vmatpush2.msra.mxu0 0.0
    %3530 = vmatprep.subr.mxu0 0.0
    %3531 = vmatpush2.msra.mxu0 0.0
    %3532 = vmatprep.subr.mxu0 0.0
    %3533 = vmatpush2.msra.mxu0 0.0
    %3534 = vmatprep.subr.mxu0 0.0
    %3535 = vmatpush2.msra.mxu0 0.0
    %3536 = vmatprep.subr.mxu0 0.0
    %3537 = vmatpush2.msra.mxu0 0.0
    %3538 = vmatprep.subr.mxu0 0.0
    %3539 = vmatpush2.msra.mxu0 0.0
    %3540 = vmatprep.mubr.f32.mxu0 0.0
    %3541 = vmatmul.mubr.f32.gmra.mxu0 %v3429
    %v3542 = vpop.f32.mrf.mxu0
    %v3543 = vadd.f32 %v3350, %v3542
    %v3544 = vpop.f32.mrf.mxu0
    %3545 = vmatprep.mubr.f32.mxu0 0.0
    %3546 = vmatmul.mubr.f32.gmra.mxu0 %v3432
    %v3547 = vpop.f32.mrf.mxu0
    %v3548 = vadd.f32 %v3355, %v3547
    %v3549 = vpop.f32.mrf.mxu0
    %3550 = vmatprep.mubr.f32.mxu0 0.0
    %3551 = vmatmul.mubr.f32.gmra.mxu0 %v3435
    %v3552 = vpop.f32.mrf.mxu0
    %v3553 = vadd.f32 %v3360, %v3552
    %v3554 = vpop.f32.mrf.mxu0
    %3555 = vmatprep.mubr.f32.mxu0 0.0
    %3556 = vmatmul.mubr.f32.gmra.mxu0 %v3438
    %v3557 = vpop.f32.mrf.mxu0
    %v3558 = vadd.f32 %v3365, %v3557
    %v3559 = vpop.f32.mrf.mxu0
    %3560 = vmatprep.mubr.f32.mxu0 0.0
    %3561 = vmatmul.mubr.f32.gmra.mxu0 %v3441
    %v3562 = vpop.f32.mrf.mxu0
    %v3563 = vadd.f32 %v3370, %v3562
    %v3564 = vpop.f32.mrf.mxu0
    %3565 = vmatprep.mubr.f32.mxu0 0.0
    %3566 = vmatmul.mubr.f32.gmra.mxu0 %v3444
    %v3567 = vpop.f32.mrf.mxu0
    %v3568 = vadd.f32 %v3375, %v3567
    %v3569 = vpop.f32.mrf.mxu0
    %3570 = vmatprep.mubr.f32.mxu0 0.0
    %3571 = vmatmul.mubr.f32.gmra.mxu0 %v3447
    %v3572 = vpop.f32.mrf.mxu0
    %v3573 = vadd.f32 %v3380, %v3572
    %v3574 = vpop.f32.mrf.mxu0
    %3575 = vmatprep.mubr.f32.mxu0 0.0
    %3576 = vmatmul.mubr.f32.gmra.mxu0 %v3450
    %v3577 = vpop.f32.mrf.mxu0
    %v3578 = vadd.f32 %v3385, %v3577
    %v3579 = vpop.f32.mrf.mxu0
    %3580 = vmatprep.mubr.f32.mxu0 0.0
    %3581 = vmatmul.mubr.f32.gmra.mxu0 %v3453
    %v3582 = vpop.f32.mrf.mxu0
    %v3583 = vadd.f32 %v3390, %v3582
    %v3584 = vpop.f32.mrf.mxu0
    %3585 = vmatprep.mubr.f32.mxu0 0.0
    %3586 = vmatmul.mubr.f32.gmra.mxu0 %v3456
    %v3587 = vpop.f32.mrf.mxu0
    %v3588 = vadd.f32 %v3395, %v3587
    %v3589 = vpop.f32.mrf.mxu0
    %3590 = vmatprep.mubr.f32.mxu0 0.0
    %3591 = vmatmul.mubr.f32.gmra.mxu0 %v3459
    %v3592 = vpop.f32.mrf.mxu0
    %v3593 = vadd.f32 %v3400, %v3592
    %v3594 = vpop.f32.mrf.mxu0
    %3595 = vmatprep.mubr.f32.mxu0 0.0
    %3596 = vmatmul.mubr.f32.gmra.mxu0 %v3462
    %v3597 = vpop.f32.mrf.mxu0
    %v3598 = vadd.f32 %v3405, %v3597
    %v3599 = vpop.f32.mrf.mxu0
    %3600 = vmatprep.mubr.f32.mxu0 0.0
    %3601 = vmatmul.mubr.f32.gmra.mxu0 %v3465
    %v3602 = vpop.f32.mrf.mxu0
    %v3603 = vadd.f32 %v3410, %v3602
    %v3604 = vpop.f32.mrf.mxu0
    %3605 = vmatprep.mubr.f32.mxu0 0.0
    %3606 = vmatmul.mubr.f32.gmra.mxu0 %v3468
    %v3607 = vpop.f32.mrf.mxu0
    %v3608 = vadd.f32 %v3415, %v3607
    %v3609 = vpop.f32.mrf.mxu0
    %3610 = vmatprep.mubr.f32.mxu0 0.0
    %3611 = vmatmul.mubr.f32.gmra.mxu0 %v3471
    %v3612 = vpop.f32.mrf.mxu0
    %v3613 = vadd.f32 %v3420, %v3612
    %v3614 = vpop.f32.mrf.mxu0
    %3615 = vmatprep.mubr.f32.mxu0 0.0
    %3616 = vmatmul.mubr.f32.gmra.mxu0 %v3474
    %v3617 = vpop.f32.mrf.mxu0
    %v3618 = vadd.f32 %v3425, %v3617
    %v3619 = vpop.f32.mrf.mxu0
    %3620 = vdwg.mxu0
    %3621 = vrot.lane.b32.xlu0 %v1880, 96
    %v3622 = vpop.permute.xlu0 %3621
    %3623 = vrot.lane.b32.xlu0 %v1886, 96
    %v3624 = vpop.permute.xlu0 %3623
    %3625 = vrot.lane.b32.xlu0 %v1892, 96
    %v3626 = vpop.permute.xlu0 %3625
    %3627 = vrot.lane.b32.xlu0 %v1898, 96
    %v3628 = vpop.permute.xlu0 %3627
    %3629 = vrot.lane.b32.xlu0 %v1904, 96
    %v3630 = vpop.permute.xlu0 %3629
    %3631 = vrot.lane.b32.xlu0 %v1910, 96
    %v3632 = vpop.permute.xlu0 %3631
    %3633 = vrot.lane.b32.xlu0 %v1916, 96
    %v3634 = vpop.permute.xlu0 %3633
    %3635 = vrot.lane.b32.xlu0 %v1922, 96
    %v3636 = vpop.permute.xlu0 %3635
    %3637 = vrot.lane.b32.xlu0 %v1928, 96
    %v3638 = vpop.permute.xlu0 %3637
    %3639 = vrot.lane.b32.xlu0 %v1934, 96
    %v3640 = vpop.permute.xlu0 %3639
    %3641 = vrot.lane.b32.xlu0 %v1940, 96
    %v3642 = vpop.permute.xlu0 %3641
    %3643 = vrot.lane.b32.xlu0 %v1946, 96
    %v3644 = vpop.permute.xlu0 %3643
    %3645 = vrot.lane.b32.xlu0 %v1952, 96
    %v3646 = vpop.permute.xlu0 %3645
    %3647 = vrot.lane.b32.xlu0 %v1958, 96
    %v3648 = vpop.permute.xlu0 %3647
    %3649 = vrot.lane.b32.xlu0 %v1964, 96
    %v3650 = vpop.permute.xlu0 %3649
    %3651 = vrot.lane.b32.xlu0 %v1970, 96
    %v3652 = vpop.permute.xlu0 %3651
    %3653 = vrot.lane.b32.xlu0 %v1880, 32
    %v3654 = vpop.permute.xlu0 %3653
    %3655 = vrot.lane.b32.xlu0 %v1886, 32
    %v3656 = vpop.permute.xlu0 %3655
    %3657 = vrot.lane.b32.xlu0 %v1892, 32
    %v3658 = vpop.permute.xlu0 %3657
    %3659 = vrot.lane.b32.xlu0 %v1898, 32
    %v3660 = vpop.permute.xlu0 %3659
    %3661 = vrot.lane.b32.xlu0 %v1904, 32
    %v3662 = vpop.permute.xlu0 %3661
    %3663 = vrot.lane.b32.xlu0 %v1910, 32
    %v3664 = vpop.permute.xlu0 %3663
    %3665 = vrot.lane.b32.xlu0 %v1916, 32
    %v3666 = vpop.permute.xlu0 %3665
    %3667 = vrot.lane.b32.xlu0 %v1922, 32
    %v3668 = vpop.permute.xlu0 %3667
    %3669 = vrot.lane.b32.xlu0 %v1928, 32
    %v3670 = vpop.permute.xlu0 %3669
    %3671 = vrot.lane.b32.xlu0 %v1934, 32
    %v3672 = vpop.permute.xlu0 %3671
    %3673 = vrot.lane.b32.xlu0 %v1940, 32
    %v3674 = vpop.permute.xlu0 %3673
    %3675 = vrot.lane.b32.xlu0 %v1946, 32
    %v3676 = vpop.permute.xlu0 %3675
    %3677 = vrot.lane.b32.xlu0 %v1952, 32
    %v3678 = vpop.permute.xlu0 %3677
    %3679 = vrot.lane.b32.xlu0 %v1958, 32
    %v3680 = vpop.permute.xlu0 %3679
    %3681 = vrot.lane.b32.xlu0 %v1964, 32
    %v3682 = vpop.permute.xlu0 %3681
    %3683 = vrot.lane.b32.xlu0 %v1970, 32
    %v3684 = vpop.permute.xlu0 %3683
    %v3685 = vsel %vm2046, %v3622, 0
    %v3687 = vsel %vm2046, %v3624, 0
    %v3689 = vsel %vm2046, %v3626, 0
    %v3691 = vsel %vm2046, %v3628, 0
    %v3693 = vsel %vm2046, %v3630, 0
    %v3695 = vsel %vm2046, %v3632, 0
    %v3697 = vsel %vm2046, %v3634, 0
    %v3699 = vsel %vm2046, %v3636, 0
    %v3701 = vsel %vm2046, %v3638, 0
    %v3703 = vsel %vm2046, %v3640, 0
    %v3705 = vsel %vm2046, %v3642, 0
    %v3707 = vsel %vm2046, %v3644, 0
    %v3709 = vsel %vm2046, %v3646, 0
    %v3711 = vsel %vm2046, %v3648, 0
    %v3713 = vsel %vm2046, %v3650, 0
    %v3715 = vsel %vm2046, %v3652, 0
    %v3717 = vsel %vm2046, %v3654, 0
    %v3719 = vsel %vm2046, %v3656, 0
    %v3721 = vsel %vm2046, %v3658, 0
    %v3723 = vsel %vm2046, %v3660, 0
    %v3725 = vsel %vm2046, %v3662, 0
    %v3727 = vsel %vm2046, %v3664, 0
    %v3729 = vsel %vm2046, %v3666, 0
    %v3731 = vsel %vm2046, %v3668, 0
    %v3733 = vsel %vm2046, %v3670, 0
    %v3735 = vsel %vm2046, %v3672, 0
    %v3737 = vsel %vm2046, %v3674, 0
    %v3739 = vsel %vm2046, %v3676, 0
    %v3741 = vsel %vm2046, %v3678, 0
    %v3743 = vsel %vm2046, %v3680, 0
    %v3745 = vsel %vm2046, %v3682, 0
    %v3747 = vsel %vm2046, %v3684, 0
    %3749 = vmatprep.subr.mxu0 0.0
    %3750 = vmatpush1.xpose.msra.mxu0 %v3747
    %3751 = vmatprep.subr.mxu0 0.0
    %3752 = vmatpush1.xpose.msra.mxu0 %v3745
    %3753 = vmatprep.subr.mxu0 0.0
    %3754 = vmatpush1.xpose.msra.mxu0 %v3743
    %3755 = vmatprep.subr.mxu0 0.0
    %3756 = vmatpush1.xpose.msra.mxu0 %v3741
    %3757 = vmatprep.subr.mxu0 0.0
    %3758 = vmatpush1.xpose.msra.mxu0 %v3739
    %3759 = vmatprep.subr.mxu0 0.0
    %3760 = vmatpush1.xpose.msra.mxu0 %v3737
    %3761 = vmatprep.subr.mxu0 0.0
    %3762 = vmatpush1.xpose.msra.mxu0 %v3735
    %3763 = vmatprep.subr.mxu0 0.0
    %3764 = vmatpush1.xpose.msra.mxu0 %v3733
    %3765 = vmatprep.subr.mxu0 0.0
    %3766 = vmatpush1.xpose.msra.mxu0 %v3731
    %3767 = vmatprep.subr.mxu0 0.0
    %3768 = vmatpush1.xpose.msra.mxu0 %v3729
    %3769 = vmatprep.subr.mxu0 0.0
    %3770 = vmatpush1.xpose.msra.mxu0 %v3727
    %3771 = vmatprep.subr.mxu0 0.0
    %3772 = vmatpush1.xpose.msra.mxu0 %v3725
    %3773 = vmatprep.subr.mxu0 0.0
    %3774 = vmatpush1.xpose.msra.mxu0 %v3723
    %3775 = vmatprep.subr.mxu0 0.0
    %3776 = vmatpush1.xpose.msra.mxu0 %v3721
    %3777 = vmatprep.subr.mxu0 0.0
    %3778 = vmatpush1.xpose.msra.mxu0 %v3719
    %3779 = vmatprep.subr.mxu0 0.0
    %3780 = vmatpush1.xpose.msra.mxu0 %v3717
    %3781 = vmatprep.subr.mxu0 0.0
    %3782 = vmatpush2.xpose.msra.mxu0 0.0
    %3783 = vmatprep.subr.mxu0 0.0
    %3784 = vmatpush2.xpose.msra.mxu0 0.0
    %3785 = vmatprep.subr.mxu0 0.0
    %3786 = vmatpush2.xpose.msra.mxu0 0.0
    %3787 = vmatprep.subr.mxu0 0.0
    %3788 = vmatpush2.xpose.msra.mxu0 0.0
    %3789 = vmatprep.subr.mxu0 0.0
    %3790 = vmatpush2.xpose.msra.mxu0 0.0
    %3791 = vmatprep.subr.mxu0 0.0
    %3792 = vmatpush2.xpose.msra.mxu0 0.0
    %3793 = vmatprep.subr.mxu0 0.0
    %3794 = vmatpush2.xpose.msra.mxu0 0.0
    %3795 = vmatprep.subr.mxu0 0.0
    %3796 = vmatpush2.xpose.msra.mxu0 0.0
    %3797 = vmatprep.subr.mxu0 0.0
    %3798 = vmatpush2.xpose.msra.mxu0 0.0
    %3799 = vmatprep.subr.mxu0 0.0
    %3800 = vmatpush2.xpose.msra.mxu0 0.0
    %3801 = vmatprep.subr.mxu0 0.0
    %3802 = vmatpush2.xpose.msra.mxu0 0.0
    %3803 = vmatprep.subr.mxu0 0.0
    %3804 = vmatpush2.xpose.msra.mxu0 0.0
    %3805 = vmatprep.subr.mxu0 0.0
    %3806 = vmatpush2.xpose.msra.mxu0 0.0
    %3807 = vmatprep.subr.mxu0 0.0
    %3808 = vmatpush2.xpose.msra.mxu0 0.0
    %3809 = vmatprep.subr.mxu0 0.0
    %3810 = vmatpush2.xpose.msra.mxu0 0.0
    %3811 = vmatprep.subr.mxu0 0.0
    %3812 = vmatpush2.xpose.msra.mxu0 0.0
    %3813 = vmatprep.mubr.f32.mxu0 0.0
    %3814 = vmatmul.mubr.f32.gmra.mxu0 %v3685
    %v3815 = vpop.f32.mrf.mxu0
    %v3816 = vadd.f32 0.0, %v3815
    %v3817 = vpop.f32.mrf.mxu0
    %3818 = vmatprep.mubr.f32.mxu0 0.0
    %3819 = vmatmul.mubr.f32.gmra.mxu0 %v3687
    %v3820 = vpop.f32.mrf.mxu0
    %v3821 = vadd.f32 0.0, %v3820
    %v3822 = vpop.f32.mrf.mxu0
    %3823 = vmatprep.mubr.f32.mxu0 0.0
    %3824 = vmatmul.mubr.f32.gmra.mxu0 %v3689
    %v3825 = vpop.f32.mrf.mxu0
    %v3826 = vadd.f32 0.0, %v3825
    %v3827 = vpop.f32.mrf.mxu0
    %3828 = vmatprep.mubr.f32.mxu0 0.0
    %3829 = vmatmul.mubr.f32.gmra.mxu0 %v3691
    %v3830 = vpop.f32.mrf.mxu0
    %v3831 = vadd.f32 0.0, %v3830
    %v3832 = vpop.f32.mrf.mxu0
    %3833 = vmatprep.mubr.f32.mxu0 0.0
    %3834 = vmatmul.mubr.f32.gmra.mxu0 %v3693
    %v3835 = vpop.f32.mrf.mxu0
    %v3836 = vadd.f32 0.0, %v3835
    %v3837 = vpop.f32.mrf.mxu0
    %3838 = vmatprep.mubr.f32.mxu0 0.0
    %3839 = vmatmul.mubr.f32.gmra.mxu0 %v3695
    %v3840 = vpop.f32.mrf.mxu0
    %v3841 = vadd.f32 0.0, %v3840
    %v3842 = vpop.f32.mrf.mxu0
    %3843 = vmatprep.mubr.f32.mxu0 0.0
    %3844 = vmatmul.mubr.f32.gmra.mxu0 %v3697
    %v3845 = vpop.f32.mrf.mxu0
    %v3846 = vadd.f32 0.0, %v3845
    %v3847 = vpop.f32.mrf.mxu0
    %3848 = vmatprep.mubr.f32.mxu0 0.0
    %3849 = vmatmul.mubr.f32.gmra.mxu0 %v3699
    %v3850 = vpop.f32.mrf.mxu0
    %v3851 = vadd.f32 0.0, %v3850
    %v3852 = vpop.f32.mrf.mxu0
    %3853 = vmatprep.mubr.f32.mxu0 0.0
    %3854 = vmatmul.mubr.f32.gmra.mxu0 %v3701
    %v3855 = vpop.f32.mrf.mxu0
    %v3856 = vadd.f32 0.0, %v3855
    %v3857 = vpop.f32.mrf.mxu0
    %3858 = vmatprep.mubr.f32.mxu0 0.0
    %3859 = vmatmul.mubr.f32.gmra.mxu0 %v3703
    %v3860 = vpop.f32.mrf.mxu0
    %v3861 = vadd.f32 0.0, %v3860
    %v3862 = vpop.f32.mrf.mxu0
    %3863 = vmatprep.mubr.f32.mxu0 0.0
    %3864 = vmatmul.mubr.f32.gmra.mxu0 %v3705
    %v3865 = vpop.f32.mrf.mxu0
    %v3866 = vadd.f32 0.0, %v3865
    %v3867 = vpop.f32.mrf.mxu0
    %3868 = vmatprep.mubr.f32.mxu0 0.0
    %3869 = vmatmul.mubr.f32.gmra.mxu0 %v3707
    %v3870 = vpop.f32.mrf.mxu0
    %v3871 = vadd.f32 0.0, %v3870
    %v3872 = vpop.f32.mrf.mxu0
    %3873 = vmatprep.mubr.f32.mxu0 0.0
    %3874 = vmatmul.mubr.f32.gmra.mxu0 %v3709
    %v3875 = vpop.f32.mrf.mxu0
    %v3876 = vadd.f32 0.0, %v3875
    %v3877 = vpop.f32.mrf.mxu0
    %3878 = vmatprep.mubr.f32.mxu0 0.0
    %3879 = vmatmul.mubr.f32.gmra.mxu0 %v3711
    %v3880 = vpop.f32.mrf.mxu0
    %v3881 = vadd.f32 0.0, %v3880
    %v3882 = vpop.f32.mrf.mxu0
    %3883 = vmatprep.mubr.f32.mxu0 0.0
    %3884 = vmatmul.mubr.f32.gmra.mxu0 %v3713
    %v3885 = vpop.f32.mrf.mxu0
    %v3886 = vadd.f32 0.0, %v3885
    %v3887 = vpop.f32.mrf.mxu0
    %3888 = vmatprep.mubr.f32.mxu0 0.0
    %3889 = vmatmul.mubr.f32.gmra.mxu0 %v3715
    %v3890 = vpop.f32.mrf.mxu0
    %v3891 = vadd.f32 0.0, %v3890
    %v3892 = vpop.f32.mrf.mxu0
    %3893 = vdwg.mxu0
    %v3894 = vmul.f32 %v3816, 0.25
    %v3895 = vmul.f32 %v3821, 0.25
    %v3896 = vmul.f32 %v3826, 0.25
    %v3897 = vmul.f32 %v3831, 0.25
    %v3898 = vmul.f32 %v3836, 0.25
    %v3899 = vmul.f32 %v3841, 0.25
    %v3900 = vmul.f32 %v3846, 0.25
    %v3901 = vmul.f32 %v3851, 0.25
    %v3902 = vmul.f32 %v3856, 0.25
    %v3903 = vmul.f32 %v3861, 0.25
    %v3904 = vmul.f32 %v3866, 0.25
    %v3905 = vmul.f32 %v3871, 0.25
    %v3906 = vmul.f32 %v3876, 0.25
    %v3907 = vmul.f32 %v3881, 0.25
    %v3908 = vmul.f32 %v3886, 0.25
    %v3909 = vmul.f32 %v3891, 0.25
    %v3910 = vadd.f32 %v3894, %v1974
    %v3911 = vadd.f32 %v3895, %v1975
    %v3912 = vadd.f32 %v3896, %v1976
    %v3913 = vadd.f32 %v3897, %v1977
    %v3914 = vadd.f32 %v3898, %v1978
    %v3915 = vadd.f32 %v3899, %v1979
    %v3916 = vadd.f32 %v3900, %v1980
    %v3917 = vadd.f32 %v3901, %v1981
    %v3918 = vadd.f32 %v3902, %v1982
    %v3919 = vadd.f32 %v3903, %v1983
    %v3920 = vadd.f32 %v3904, %v1984
    %v3921 = vadd.f32 %v3905, %v1985
    %v3922 = vadd.f32 %v3906, %v1986
    %v3923 = vadd.f32 %v3907, %v1987
    %v3924 = vadd.f32 %v3908, %v1988
    %v3925 = vadd.f32 %v3909, %v1989
    %3926 = vmax.xlane.f32.xlu0 %v3910
    %v3927 = vpop.xlane.xlu0 %3926
    %3928 = vmax.xlane.f32.xlu0 %v3911
    %v3929 = vpop.xlane.xlu0 %3928
    %3930 = vmax.xlane.f32.xlu0 %v3912
    %v3931 = vpop.xlane.xlu0 %3930
    %3932 = vmax.xlane.f32.xlu0 %v3913
    %v3933 = vpop.xlane.xlu0 %3932
    %3934 = vmax.xlane.f32.xlu0 %v3914
    %v3935 = vpop.xlane.xlu0 %3934
    %3936 = vmax.xlane.f32.xlu0 %v3915
    %v3937 = vpop.xlane.xlu0 %3936
    %3938 = vmax.xlane.f32.xlu0 %v3916
    %v3939 = vpop.xlane.xlu0 %3938
    %3940 = vmax.xlane.f32.xlu0 %v3917
    %v3941 = vpop.xlane.xlu0 %3940
    %3942 = vmax.xlane.f32.xlu0 %v3918
    %v3943 = vpop.xlane.xlu0 %3942
    %3944 = vmax.xlane.f32.xlu0 %v3919
    %v3945 = vpop.xlane.xlu0 %3944
    %3946 = vmax.xlane.f32.xlu0 %v3920
    %v3947 = vpop.xlane.xlu0 %3946
    %3948 = vmax.xlane.f32.xlu0 %v3921
    %v3949 = vpop.xlane.xlu0 %3948
    %3950 = vmax.xlane.f32.xlu0 %v3922
    %v3951 = vpop.xlane.xlu0 %3950
    %3952 = vmax.xlane.f32.xlu0 %v3923
    %v3953 = vpop.xlane.xlu0 %3952
    %3954 = vmax.xlane.f32.xlu0 %v3924
    %v3955 = vpop.xlane.xlu0 %3954
    %3956 = vmax.xlane.f32.xlu0 %v3925
    %v3957 = vpop.xlane.xlu0 %3956
    %v3958 = vsub.f32 %v3910, %v3927
    %v3959 = vsub.f32 %v3911, %v3929
    %v3960 = vsub.f32 %v3912, %v3931
    %v3961 = vsub.f32 %v3913, %v3933
    %v3962 = vsub.f32 %v3914, %v3935
    %v3963 = vsub.f32 %v3915, %v3937
    %v3964 = vsub.f32 %v3916, %v3939
    %v3965 = vsub.f32 %v3917, %v3941
    %v3966 = vsub.f32 %v3918, %v3943
    %v3967 = vsub.f32 %v3919, %v3945
    %v3968 = vsub.f32 %v3920, %v3947
    %v3969 = vsub.f32 %v3921, %v3949
    %v3970 = vsub.f32 %v3922, %v3951
    %v3971 = vsub.f32 %v3923, %v3953
    %v3972 = vsub.f32 %v3924, %v3955
    %v3973 = vsub.f32 %v3925, %v3957
    %v3974 = vmul.f32 %v3958, 1.442695
    %v3975 = vpow.pop %v3974
    %v3976 = vmul.f32 %v3959, 1.442695
    %v3977 = vpow.pop %v3976
    %v3978 = vmul.f32 %v3960, 1.442695
    %v3979 = vpow.pop %v3978
    %v3980 = vmul.f32 %v3961, 1.442695
    %v3981 = vpow.pop %v3980
    %v3982 = vmul.f32 %v3962, 1.442695
    %v3983 = vpow.pop %v3982
    %v3984 = vmul.f32 %v3963, 1.442695
    %v3985 = vpow.pop %v3984
    %v3986 = vmul.f32 %v3964, 1.442695
    %v3987 = vpow.pop %v3986
    %v3988 = vmul.f32 %v3965, 1.442695
    %v3989 = vpow.pop %v3988
    %v3990 = vmul.f32 %v3966, 1.442695
    %v3991 = vpow.pop %v3990
    %v3992 = vmul.f32 %v3967, 1.442695
    %v3993 = vpow.pop %v3992
    %v3994 = vmul.f32 %v3968, 1.442695
    %v3995 = vpow.pop %v3994
    %v3996 = vmul.f32 %v3969, 1.442695
    %v3997 = vpow.pop %v3996
    %v3998 = vmul.f32 %v3970, 1.442695
    %v3999 = vpow.pop %v3998
    %v4000 = vmul.f32 %v3971, 1.442695
    %v4001 = vpow.pop %v4000
    %v4002 = vmul.f32 %v3972, 1.442695
    %v4003 = vpow.pop %v4002
    %v4004 = vmul.f32 %v3973, 1.442695
    %v4005 = vpow.pop %v4004
    %4006 = vadd.xlane.f32.xlu0 %v3975
    %v4007 = vpop.xlane.xlu0 %4006
    %4008 = vadd.xlane.f32.xlu0 %v3977
    %v4009 = vpop.xlane.xlu0 %4008
    %4010 = vadd.xlane.f32.xlu0 %v3979
    %v4011 = vpop.xlane.xlu0 %4010
    %4012 = vadd.xlane.f32.xlu0 %v3981
    %v4013 = vpop.xlane.xlu0 %4012
    %4014 = vadd.xlane.f32.xlu0 %v3983
    %v4015 = vpop.xlane.xlu0 %4014
    %4016 = vadd.xlane.f32.xlu0 %v3985
    %v4017 = vpop.xlane.xlu0 %4016
    %4018 = vadd.xlane.f32.xlu0 %v3987
    %v4019 = vpop.xlane.xlu0 %4018
    %4020 = vadd.xlane.f32.xlu0 %v3989
    %v4021 = vpop.xlane.xlu0 %4020
    %4022 = vadd.xlane.f32.xlu0 %v3991
    %v4023 = vpop.xlane.xlu0 %4022
    %4024 = vadd.xlane.f32.xlu0 %v3993
    %v4025 = vpop.xlane.xlu0 %4024
    %4026 = vadd.xlane.f32.xlu0 %v3995
    %v4027 = vpop.xlane.xlu0 %4026
    %4028 = vadd.xlane.f32.xlu0 %v3997
    %v4029 = vpop.xlane.xlu0 %4028
    %4030 = vadd.xlane.f32.xlu0 %v3999
    %v4031 = vpop.xlane.xlu0 %4030
    %4032 = vadd.xlane.f32.xlu0 %v4001
    %v4033 = vpop.xlane.xlu0 %4032
    %4034 = vadd.xlane.f32.xlu0 %v4003
    %v4035 = vpop.xlane.xlu0 %4034
    %4036 = vadd.xlane.f32.xlu0 %v4005
    %v4037 = vpop.xlane.xlu0 %4036
    %v4038 = vrcp.pop %v4007
    %v4039 = vmul.f32 %v3975, %v4038
    %v4040 = vrcp.pop %v4009
    %v4041 = vmul.f32 %v3977, %v4040
    %v4042 = vrcp.pop %v4011
    %v4043 = vmul.f32 %v3979, %v4042
    %v4044 = vrcp.pop %v4013
    %v4045 = vmul.f32 %v3981, %v4044
    %v4046 = vrcp.pop %v4015
    %v4047 = vmul.f32 %v3983, %v4046
    %v4048 = vrcp.pop %v4017
    %v4049 = vmul.f32 %v3985, %v4048
    %v4050 = vrcp.pop %v4019
    %v4051 = vmul.f32 %v3987, %v4050
    %v4052 = vrcp.pop %v4021
    %v4053 = vmul.f32 %v3989, %v4052
    %v4054 = vrcp.pop %v4023
    %v4055 = vmul.f32 %v3991, %v4054
    %v4056 = vrcp.pop %v4025
    %v4057 = vmul.f32 %v3993, %v4056
    %v4058 = vrcp.pop %v4027
    %v4059 = vmul.f32 %v3995, %v4058
    %v4060 = vrcp.pop %v4029
    %v4061 = vmul.f32 %v3997, %v4060
    %v4062 = vrcp.pop %v4031
    %v4063 = vmul.f32 %v3999, %v4062
    %v4064 = vrcp.pop %v4033
    %v4065 = vmul.f32 %v4001, %v4064
    %v4066 = vrcp.pop %v4035
    %v4067 = vmul.f32 %v4003, %v4066
    %v4068 = vrcp.pop %v4037
    %v4069 = vmul.f32 %v4005, %v4068
    %4070 = vrot.lane.b32.xlu0 %v1882, 96
    %v4071 = vpop.permute.xlu0 %4070
    %4072 = vrot.lane.b32.xlu0 %v1888, 96
    %v4073 = vpop.permute.xlu0 %4072
    %4074 = vrot.lane.b32.xlu0 %v1894, 96
    %v4075 = vpop.permute.xlu0 %4074
    %4076 = vrot.lane.b32.xlu0 %v1900, 96
    %v4077 = vpop.permute.xlu0 %4076
    %4078 = vrot.lane.b32.xlu0 %v1906, 96
    %v4079 = vpop.permute.xlu0 %4078
    %4080 = vrot.lane.b32.xlu0 %v1912, 96
    %v4081 = vpop.permute.xlu0 %4080
    %4082 = vrot.lane.b32.xlu0 %v1918, 96
    %v4083 = vpop.permute.xlu0 %4082
    %4084 = vrot.lane.b32.xlu0 %v1924, 96
    %v4085 = vpop.permute.xlu0 %4084
    %4086 = vrot.lane.b32.xlu0 %v1930, 96
    %v4087 = vpop.permute.xlu0 %4086
    %4088 = vrot.lane.b32.xlu0 %v1936, 96
    %v4089 = vpop.permute.xlu0 %4088
    %4090 = vrot.lane.b32.xlu0 %v1942, 96
    %v4091 = vpop.permute.xlu0 %4090
    %4092 = vrot.lane.b32.xlu0 %v1948, 96
    %v4093 = vpop.permute.xlu0 %4092
    %4094 = vrot.lane.b32.xlu0 %v1954, 96
    %v4095 = vpop.permute.xlu0 %4094
    %4096 = vrot.lane.b32.xlu0 %v1960, 96
    %v4097 = vpop.permute.xlu0 %4096
    %4098 = vrot.lane.b32.xlu0 %v1966, 96
    %v4099 = vpop.permute.xlu0 %4098
    %4100 = vrot.lane.b32.xlu0 %v1972, 96
    %v4101 = vpop.permute.xlu0 %4100
    %4118 = vmatprep.subr.mxu0 0.0
    %4119 = vmatpush1.msra.mxu0 %v4101
    %4120 = vmatprep.subr.mxu0 0.0
    %4121 = vmatpush1.msra.mxu0 %v4099
    %4122 = vmatprep.subr.mxu0 0.0
    %4123 = vmatpush1.msra.mxu0 %v4097
    %4124 = vmatprep.subr.mxu0 0.0
    %4125 = vmatpush1.msra.mxu0 %v4095
    %4126 = vmatprep.subr.mxu0 0.0
    %4127 = vmatpush1.msra.mxu0 %v4093
    %4128 = vmatprep.subr.mxu0 0.0
    %4129 = vmatpush1.msra.mxu0 %v4091
    %4130 = vmatprep.subr.mxu0 0.0
    %4131 = vmatpush1.msra.mxu0 %v4089
    %4132 = vmatprep.subr.mxu0 0.0
    %4133 = vmatpush1.msra.mxu0 %v4087
    %4134 = vmatprep.subr.mxu0 0.0
    %4135 = vmatpush1.msra.mxu0 %v4085
    %4136 = vmatprep.subr.mxu0 0.0
    %4137 = vmatpush1.msra.mxu0 %v4083
    %4138 = vmatprep.subr.mxu0 0.0
    %4139 = vmatpush1.msra.mxu0 %v4081
    %4140 = vmatprep.subr.mxu0 0.0
    %4141 = vmatpush1.msra.mxu0 %v4079
    %4142 = vmatprep.subr.mxu0 0.0
    %4143 = vmatpush1.msra.mxu0 %v4077
    %4144 = vmatprep.subr.mxu0 0.0
    %4145 = vmatpush1.msra.mxu0 %v4075
    %4146 = vmatprep.subr.mxu0 0.0
    %4147 = vmatpush1.msra.mxu0 %v4073
    %4148 = vmatprep.subr.mxu0 0.0
    %4149 = vmatpush1.msra.mxu0 %v4071
    %4150 = vmatprep.subr.mxu0 0.0
    %4151 = vmatpush2.msra.mxu0 0.0
    %4152 = vmatprep.subr.mxu0 0.0
    %4153 = vmatpush2.msra.mxu0 0.0
    %4154 = vmatprep.subr.mxu0 0.0
    %4155 = vmatpush2.msra.mxu0 0.0
    %4156 = vmatprep.subr.mxu0 0.0
    %4157 = vmatpush2.msra.mxu0 0.0
    %4158 = vmatprep.subr.mxu0 0.0
    %4159 = vmatpush2.msra.mxu0 0.0
    %4160 = vmatprep.subr.mxu0 0.0
    %4161 = vmatpush2.msra.mxu0 0.0
    %4162 = vmatprep.subr.mxu0 0.0
    %4163 = vmatpush2.msra.mxu0 0.0
    %4164 = vmatprep.subr.mxu0 0.0
    %4165 = vmatpush2.msra.mxu0 0.0
    %4166 = vmatprep.subr.mxu0 0.0
    %4167 = vmatpush2.msra.mxu0 0.0
    %4168 = vmatprep.subr.mxu0 0.0
    %4169 = vmatpush2.msra.mxu0 0.0
    %4170 = vmatprep.subr.mxu0 0.0
    %4171 = vmatpush2.msra.mxu0 0.0
    %4172 = vmatprep.subr.mxu0 0.0
    %4173 = vmatpush2.msra.mxu0 0.0
    %4174 = vmatprep.subr.mxu0 0.0
    %4175 = vmatpush2.msra.mxu0 0.0
    %4176 = vmatprep.subr.mxu0 0.0
    %4177 = vmatpush2.msra.mxu0 0.0
    %4178 = vmatprep.subr.mxu0 0.0
    %4179 = vmatpush2.msra.mxu0 0.0
    %4180 = vmatprep.subr.mxu0 0.0
    %4181 = vmatpush2.msra.mxu0 0.0
    %4182 = vmatprep.mubr.f32.mxu0 0.0
    %4183 = vmatmul.mubr.f32.gmra.mxu0 %v4039
    %v4184 = vpop.f32.mrf.mxu0
    %v4185 = vadd.f32 0.0, %v4184
    %v4186 = vpop.f32.mrf.mxu0
    %4187 = vmatprep.mubr.f32.mxu0 0.0
    %4188 = vmatmul.mubr.f32.gmra.mxu0 %v4041
    %v4189 = vpop.f32.mrf.mxu0
    %v4190 = vadd.f32 0.0, %v4189
    %v4191 = vpop.f32.mrf.mxu0
    %4192 = vmatprep.mubr.f32.mxu0 0.0
    %4193 = vmatmul.mubr.f32.gmra.mxu0 %v4043
    %v4194 = vpop.f32.mrf.mxu0
    %v4195 = vadd.f32 0.0, %v4194
    %v4196 = vpop.f32.mrf.mxu0
    %4197 = vmatprep.mubr.f32.mxu0 0.0
    %4198 = vmatmul.mubr.f32.gmra.mxu0 %v4045
    %v4199 = vpop.f32.mrf.mxu0
    %v4200 = vadd.f32 0.0, %v4199
    %v4201 = vpop.f32.mrf.mxu0
    %4202 = vmatprep.mubr.f32.mxu0 0.0
    %4203 = vmatmul.mubr.f32.gmra.mxu0 %v4047
    %v4204 = vpop.f32.mrf.mxu0
    %v4205 = vadd.f32 0.0, %v4204
    %v4206 = vpop.f32.mrf.mxu0
    %4207 = vmatprep.mubr.f32.mxu0 0.0
    %4208 = vmatmul.mubr.f32.gmra.mxu0 %v4049
    %v4209 = vpop.f32.mrf.mxu0
    %v4210 = vadd.f32 0.0, %v4209
    %v4211 = vpop.f32.mrf.mxu0
    %4212 = vmatprep.mubr.f32.mxu0 0.0
    %4213 = vmatmul.mubr.f32.gmra.mxu0 %v4051
    %v4214 = vpop.f32.mrf.mxu0
    %v4215 = vadd.f32 0.0, %v4214
    %v4216 = vpop.f32.mrf.mxu0
    %4217 = vmatprep.mubr.f32.mxu0 0.0
    %4218 = vmatmul.mubr.f32.gmra.mxu0 %v4053
    %v4219 = vpop.f32.mrf.mxu0
    %v4220 = vadd.f32 0.0, %v4219
    %v4221 = vpop.f32.mrf.mxu0
    %4222 = vmatprep.mubr.f32.mxu0 0.0
    %4223 = vmatmul.mubr.f32.gmra.mxu0 %v4055
    %v4224 = vpop.f32.mrf.mxu0
    %v4225 = vadd.f32 0.0, %v4224
    %v4226 = vpop.f32.mrf.mxu0
    %4227 = vmatprep.mubr.f32.mxu0 0.0
    %4228 = vmatmul.mubr.f32.gmra.mxu0 %v4057
    %v4229 = vpop.f32.mrf.mxu0
    %v4230 = vadd.f32 0.0, %v4229
    %v4231 = vpop.f32.mrf.mxu0
    %4232 = vmatprep.mubr.f32.mxu0 0.0
    %4233 = vmatmul.mubr.f32.gmra.mxu0 %v4059
    %v4234 = vpop.f32.mrf.mxu0
    %v4235 = vadd.f32 0.0, %v4234
    %v4236 = vpop.f32.mrf.mxu0
    %4237 = vmatprep.mubr.f32.mxu0 0.0
    %4238 = vmatmul.mubr.f32.gmra.mxu0 %v4061
    %v4239 = vpop.f32.mrf.mxu0
    %v4240 = vadd.f32 0.0, %v4239
    %v4241 = vpop.f32.mrf.mxu0
    %4242 = vmatprep.mubr.f32.mxu0 0.0
    %4243 = vmatmul.mubr.f32.gmra.mxu0 %v4063
    %v4244 = vpop.f32.mrf.mxu0
    %v4245 = vadd.f32 0.0, %v4244
    %v4246 = vpop.f32.mrf.mxu0
    %4247 = vmatprep.mubr.f32.mxu0 0.0
    %4248 = vmatmul.mubr.f32.gmra.mxu0 %v4065
    %v4249 = vpop.f32.mrf.mxu0
    %v4250 = vadd.f32 0.0, %v4249
    %v4251 = vpop.f32.mrf.mxu0
    %4252 = vmatprep.mubr.f32.mxu0 0.0
    %4253 = vmatmul.mubr.f32.gmra.mxu0 %v4067
    %v4254 = vpop.f32.mrf.mxu0
    %v4255 = vadd.f32 0.0, %v4254
    %v4256 = vpop.f32.mrf.mxu0
    %4257 = vmatprep.mubr.f32.mxu0 0.0
    %4258 = vmatmul.mubr.f32.gmra.mxu0 %v4069
    %v4259 = vpop.f32.mrf.mxu0
    %v4260 = vadd.f32 0.0, %v4259
    %v4261 = vpop.f32.mrf.mxu0
    %4262 = vdwg.mxu0
    %v4264 = vsel %vm2046, %v4185, 0
    %v4267 = vsel %vm2046, %v4190, 0
    %v4270 = vsel %vm2046, %v4195, 0
    %v4273 = vsel %vm2046, %v4200, 0
    %v4276 = vsel %vm2046, %v4205, 0
    %v4279 = vsel %vm2046, %v4210, 0
    %v4282 = vsel %vm2046, %v4215, 0
    %v4285 = vsel %vm2046, %v4220, 0
    %v4288 = vsel %vm2046, %v4225, 0
    %v4291 = vsel %vm2046, %v4230, 0
    %v4294 = vsel %vm2046, %v4235, 0
    %v4297 = vsel %vm2046, %v4240, 0
    %v4300 = vsel %vm2046, %v4245, 0
    %v4303 = vsel %vm2046, %v4250, 0
    %v4306 = vsel %vm2046, %v4255, 0
    %v4309 = vsel %vm2046, %v4260, 0
    %4311 = vmatprep.subr.mxu0 0.0
    %4312 = vmatpush1.msra.mxu0 0.0
    %4313 = vmatprep.subr.mxu0 0.0
    %4314 = vmatpush1.msra.mxu0 0.0
    %4315 = vmatprep.subr.mxu0 0.0
    %4316 = vmatpush1.msra.mxu0 0.0
    %4317 = vmatprep.subr.mxu0 0.0
    %4318 = vmatpush1.msra.mxu0 0.0
    %4319 = vmatprep.subr.mxu0 0.0
    %4320 = vmatpush1.msra.mxu0 0.0
    %4321 = vmatprep.subr.mxu0 0.0
    %4322 = vmatpush1.msra.mxu0 0.0
    %4323 = vmatprep.subr.mxu0 0.0
    %4324 = vmatpush1.msra.mxu0 0.0
    %4325 = vmatprep.subr.mxu0 0.0
    %4326 = vmatpush1.msra.mxu0 0.0
    %4327 = vmatprep.subr.mxu0 0.0
    %4328 = vmatpush1.msra.mxu0 0.0
    %4329 = vmatprep.subr.mxu0 0.0
    %4330 = vmatpush1.msra.mxu0 0.0
    %4331 = vmatprep.subr.mxu0 0.0
    %4332 = vmatpush1.msra.mxu0 0.0
    %4333 = vmatprep.subr.mxu0 0.0
    %4334 = vmatpush1.msra.mxu0 0.0
    %4335 = vmatprep.subr.mxu0 0.0
    %4336 = vmatpush1.msra.mxu0 0.0
    %4337 = vmatprep.subr.mxu0 0.0
    %4338 = vmatpush1.msra.mxu0 0.0
    %4339 = vmatprep.subr.mxu0 0.0
    %4340 = vmatpush1.msra.mxu0 %v1995
    %4341 = vmatprep.subr.mxu0 0.0
    %4342 = vmatpush1.msra.mxu0 %v1994
    %4343 = vmatprep.subr.mxu0 0.0
    %4344 = vmatpush2.msra.mxu0 0.0
    %4345 = vmatprep.subr.mxu0 0.0
    %4346 = vmatpush2.msra.mxu0 0.0
    %4347 = vmatprep.subr.mxu0 0.0
    %4348 = vmatpush2.msra.mxu0 0.0
    %4349 = vmatprep.subr.mxu0 0.0
    %4350 = vmatpush2.msra.mxu0 0.0
    %4351 = vmatprep.subr.mxu0 0.0
    %4352 = vmatpush2.msra.mxu0 0.0
    %4353 = vmatprep.subr.mxu0 0.0
    %4354 = vmatpush2.msra.mxu0 0.0
    %4355 = vmatprep.subr.mxu0 0.0
    %4356 = vmatpush2.msra.mxu0 0.0
    %4357 = vmatprep.subr.mxu0 0.0
    %4358 = vmatpush2.msra.mxu0 0.0
    %4359 = vmatprep.subr.mxu0 0.0
    %4360 = vmatpush2.msra.mxu0 0.0
    %4361 = vmatprep.subr.mxu0 0.0
    %4362 = vmatpush2.msra.mxu0 0.0
    %4363 = vmatprep.subr.mxu0 0.0
    %4364 = vmatpush2.msra.mxu0 0.0
    %4365 = vmatprep.subr.mxu0 0.0
    %4366 = vmatpush2.msra.mxu0 0.0
    %4367 = vmatprep.subr.mxu0 0.0
    %4368 = vmatpush2.msra.mxu0 0.0
    %4369 = vmatprep.subr.mxu0 0.0
    %4370 = vmatpush2.msra.mxu0 0.0
    %4371 = vmatprep.subr.mxu0 0.0
    %4372 = vmatpush2.msra.mxu0 0.0
    %4373 = vmatprep.subr.mxu0 0.0
    %4374 = vmatpush2.msra.mxu0 0.0
    %4375 = vmatprep.mubr.f32.mxu0 0.0
    %4376 = vmatmul.mubr.f32.gmra.mxu0 %v4264
    %v4377 = vpop.f32.mrf.mxu0
    %v4378 = vadd.f32 0.0, %v4377
    %v4379 = vpop.f32.mrf.mxu0
    %4380 = vmatprep.mubr.f32.mxu0 0.0
    %4381 = vmatmul.mubr.f32.gmra.mxu0 %v4267
    %v4382 = vpop.f32.mrf.mxu0
    %v4383 = vadd.f32 0.0, %v4382
    %v4384 = vpop.f32.mrf.mxu0
    %4385 = vmatprep.mubr.f32.mxu0 0.0
    %4386 = vmatmul.mubr.f32.gmra.mxu0 %v4270
    %v4387 = vpop.f32.mrf.mxu0
    %v4388 = vadd.f32 0.0, %v4387
    %v4389 = vpop.f32.mrf.mxu0
    %4390 = vmatprep.mubr.f32.mxu0 0.0
    %4391 = vmatmul.mubr.f32.gmra.mxu0 %v4273
    %v4392 = vpop.f32.mrf.mxu0
    %v4393 = vadd.f32 0.0, %v4392
    %v4394 = vpop.f32.mrf.mxu0
    %4395 = vmatprep.mubr.f32.mxu0 0.0
    %4396 = vmatmul.mubr.f32.gmra.mxu0 %v4276
    %v4397 = vpop.f32.mrf.mxu0
    %v4398 = vadd.f32 0.0, %v4397
    %v4399 = vpop.f32.mrf.mxu0
    %4400 = vmatprep.mubr.f32.mxu0 0.0
    %4401 = vmatmul.mubr.f32.gmra.mxu0 %v4279
    %v4402 = vpop.f32.mrf.mxu0
    %v4403 = vadd.f32 0.0, %v4402
    %v4404 = vpop.f32.mrf.mxu0
    %4405 = vmatprep.mubr.f32.mxu0 0.0
    %4406 = vmatmul.mubr.f32.gmra.mxu0 %v4282
    %v4407 = vpop.f32.mrf.mxu0
    %v4408 = vadd.f32 0.0, %v4407
    %v4409 = vpop.f32.mrf.mxu0
    %4410 = vmatprep.mubr.f32.mxu0 0.0
    %4411 = vmatmul.mubr.f32.gmra.mxu0 %v4285
    %v4412 = vpop.f32.mrf.mxu0
    %v4413 = vadd.f32 0.0, %v4412
    %v4414 = vpop.f32.mrf.mxu0
    %4415 = vmatprep.mubr.f32.mxu0 0.0
    %4416 = vmatmul.mubr.f32.gmra.mxu0 %v4288
    %v4417 = vpop.f32.mrf.mxu0
    %v4418 = vadd.f32 0.0, %v4417
    %v4419 = vpop.f32.mrf.mxu0
    %4420 = vmatprep.mubr.f32.mxu0 0.0
    %4421 = vmatmul.mubr.f32.gmra.mxu0 %v4291
    %v4422 = vpop.f32.mrf.mxu0
    %v4423 = vadd.f32 0.0, %v4422
    %v4424 = vpop.f32.mrf.mxu0
    %4425 = vmatprep.mubr.f32.mxu0 0.0
    %4426 = vmatmul.mubr.f32.gmra.mxu0 %v4294
    %v4427 = vpop.f32.mrf.mxu0
    %v4428 = vadd.f32 0.0, %v4427
    %v4429 = vpop.f32.mrf.mxu0
    %4430 = vmatprep.mubr.f32.mxu0 0.0
    %4431 = vmatmul.mubr.f32.gmra.mxu0 %v4297
    %v4432 = vpop.f32.mrf.mxu0
    %v4433 = vadd.f32 0.0, %v4432
    %v4434 = vpop.f32.mrf.mxu0
    %4435 = vmatprep.mubr.f32.mxu0 0.0
    %4436 = vmatmul.mubr.f32.gmra.mxu0 %v4300
    %v4437 = vpop.f32.mrf.mxu0
    %v4438 = vadd.f32 0.0, %v4437
    %v4439 = vpop.f32.mrf.mxu0
    %4440 = vmatprep.mubr.f32.mxu0 0.0
    %4441 = vmatmul.mubr.f32.gmra.mxu0 %v4303
    %v4442 = vpop.f32.mrf.mxu0
    %v4443 = vadd.f32 0.0, %v4442
    %v4444 = vpop.f32.mrf.mxu0
    %4445 = vmatprep.mubr.f32.mxu0 0.0
    %4446 = vmatmul.mubr.f32.gmra.mxu0 %v4306
    %v4447 = vpop.f32.mrf.mxu0
    %v4448 = vadd.f32 0.0, %v4447
    %v4449 = vpop.f32.mrf.mxu0
    %4450 = vmatprep.mubr.f32.mxu0 0.0
    %4451 = vmatmul.mubr.f32.gmra.mxu0 %v4309
    %v4452 = vpop.f32.mrf.mxu0
    %v4453 = vadd.f32 0.0, %v4452
    %v4454 = vpop.f32.mrf.mxu0
    %4455 = vdwg.mxu0
    %v4456 = vadd.f32 %v3543, %v4378
    %v4457 = vadd.f32 %v3548, %v4383
    %v4458 = vadd.f32 %v3553, %v4388
    %v4459 = vadd.f32 %v3558, %v4393
    %v4460 = vadd.f32 %v3563, %v4398
    %v4461 = vadd.f32 %v3568, %v4403
    %v4462 = vadd.f32 %v3573, %v4408
    %v4463 = vadd.f32 %v3578, %v4413
    %v4464 = vadd.f32 %v3583, %v4418
    %v4465 = vadd.f32 %v3588, %v4423
    %v4466 = vadd.f32 %v3593, %v4428
    %v4467 = vadd.f32 %v3598, %v4433
    %v4468 = vadd.f32 %v3603, %v4438
    %v4469 = vadd.f32 %v3608, %v4443
    %v4470 = vadd.f32 %v3613, %v4448
    %v4471 = vadd.f32 %v3618, %v4453
    %4472 = vrot.lane.b32.xlu0 %v1880, 80
    %v4473 = vpop.permute.xlu0 %4472
    %4474 = vrot.lane.b32.xlu0 %v1886, 80
    %v4475 = vpop.permute.xlu0 %4474
    %4476 = vrot.lane.b32.xlu0 %v1892, 80
    %v4477 = vpop.permute.xlu0 %4476
    %4478 = vrot.lane.b32.xlu0 %v1898, 80
    %v4479 = vpop.permute.xlu0 %4478
    %4480 = vrot.lane.b32.xlu0 %v1904, 80
    %v4481 = vpop.permute.xlu0 %4480
    %4482 = vrot.lane.b32.xlu0 %v1910, 80
    %v4483 = vpop.permute.xlu0 %4482
    %4484 = vrot.lane.b32.xlu0 %v1916, 80
    %v4485 = vpop.permute.xlu0 %4484
    %4486 = vrot.lane.b32.xlu0 %v1922, 80
    %v4487 = vpop.permute.xlu0 %4486
    %4488 = vrot.lane.b32.xlu0 %v1928, 80
    %v4489 = vpop.permute.xlu0 %4488
    %4490 = vrot.lane.b32.xlu0 %v1934, 80
    %v4491 = vpop.permute.xlu0 %4490
    %4492 = vrot.lane.b32.xlu0 %v1940, 80
    %v4493 = vpop.permute.xlu0 %4492
    %4494 = vrot.lane.b32.xlu0 %v1946, 80
    %v4495 = vpop.permute.xlu0 %4494
    %4496 = vrot.lane.b32.xlu0 %v1952, 80
    %v4497 = vpop.permute.xlu0 %4496
    %4498 = vrot.lane.b32.xlu0 %v1958, 80
    %v4499 = vpop.permute.xlu0 %4498
    %4500 = vrot.lane.b32.xlu0 %v1964, 80
    %v4501 = vpop.permute.xlu0 %4500
    %4502 = vrot.lane.b32.xlu0 %v1970, 80
    %v4503 = vpop.permute.xlu0 %4502
    %4504 = vrot.lane.b32.xlu0 %v1880, 16
    %v4505 = vpop.permute.xlu0 %4504
    %4506 = vrot.lane.b32.xlu0 %v1886, 16
    %v4507 = vpop.permute.xlu0 %4506
    %4508 = vrot.lane.b32.xlu0 %v1892, 16
    %v4509 = vpop.permute.xlu0 %4508
    %4510 = vrot.lane.b32.xlu0 %v1898, 16
    %v4511 = vpop.permute.xlu0 %4510
    %4512 = vrot.lane.b32.xlu0 %v1904, 16
    %v4513 = vpop.permute.xlu0 %4512
    %4514 = vrot.lane.b32.xlu0 %v1910, 16
    %v4515 = vpop.permute.xlu0 %4514
    %4516 = vrot.lane.b32.xlu0 %v1916, 16
    %v4517 = vpop.permute.xlu0 %4516
    %4518 = vrot.lane.b32.xlu0 %v1922, 16
    %v4519 = vpop.permute.xlu0 %4518
    %4520 = vrot.lane.b32.xlu0 %v1928, 16
    %v4521 = vpop.permute.xlu0 %4520
    %4522 = vrot.lane.b32.xlu0 %v1934, 16
    %v4523 = vpop.permute.xlu0 %4522
    %4524 = vrot.lane.b32.xlu0 %v1940, 16
    %v4525 = vpop.permute.xlu0 %4524
    %4526 = vrot.lane.b32.xlu0 %v1946, 16
    %v4527 = vpop.permute.xlu0 %4526
    %4528 = vrot.lane.b32.xlu0 %v1952, 16
    %v4529 = vpop.permute.xlu0 %4528
    %4530 = vrot.lane.b32.xlu0 %v1958, 16
    %v4531 = vpop.permute.xlu0 %4530
    %4532 = vrot.lane.b32.xlu0 %v1964, 16
    %v4533 = vpop.permute.xlu0 %4532
    %4534 = vrot.lane.b32.xlu0 %v1970, 16
    %v4535 = vpop.permute.xlu0 %4534
    %v4536 = vsel %vm2046, %v4473, 0
    %v4538 = vsel %vm2046, %v4475, 0
    %v4540 = vsel %vm2046, %v4477, 0
    %v4542 = vsel %vm2046, %v4479, 0
    %v4544 = vsel %vm2046, %v4481, 0
    %v4546 = vsel %vm2046, %v4483, 0
    %v4548 = vsel %vm2046, %v4485, 0
    %v4550 = vsel %vm2046, %v4487, 0
    %v4552 = vsel %vm2046, %v4489, 0
    %v4554 = vsel %vm2046, %v4491, 0
    %v4556 = vsel %vm2046, %v4493, 0
    %v4558 = vsel %vm2046, %v4495, 0
    %v4560 = vsel %vm2046, %v4497, 0
    %v4562 = vsel %vm2046, %v4499, 0
    %v4564 = vsel %vm2046, %v4501, 0
    %v4566 = vsel %vm2046, %v4503, 0
    %v4568 = vsel %vm2046, %v4505, 0
    %v4570 = vsel %vm2046, %v4507, 0
    %v4572 = vsel %vm2046, %v4509, 0
    %v4574 = vsel %vm2046, %v4511, 0
    %v4576 = vsel %vm2046, %v4513, 0
    %v4578 = vsel %vm2046, %v4515, 0
    %v4580 = vsel %vm2046, %v4517, 0
    %v4582 = vsel %vm2046, %v4519, 0
    %v4584 = vsel %vm2046, %v4521, 0
    %v4586 = vsel %vm2046, %v4523, 0
    %v4588 = vsel %vm2046, %v4525, 0
    %v4590 = vsel %vm2046, %v4527, 0
    %v4592 = vsel %vm2046, %v4529, 0
    %v4594 = vsel %vm2046, %v4531, 0
    %v4596 = vsel %vm2046, %v4533, 0
    %v4598 = vsel %vm2046, %v4535, 0
    %4600 = vmatprep.subr.mxu0 0.0
    %4601 = vmatpush1.xpose.msra.mxu0 %v4598
    %4602 = vmatprep.subr.mxu0 0.0
    %4603 = vmatpush1.xpose.msra.mxu0 %v4596
    %4604 = vmatprep.subr.mxu0 0.0
    %4605 = vmatpush1.xpose.msra.mxu0 %v4594
    %4606 = vmatprep.subr.mxu0 0.0
    %4607 = vmatpush1.xpose.msra.mxu0 %v4592
    %4608 = vmatprep.subr.mxu0 0.0
    %4609 = vmatpush1.xpose.msra.mxu0 %v4590
    %4610 = vmatprep.subr.mxu0 0.0
    %4611 = vmatpush1.xpose.msra.mxu0 %v4588
    %4612 = vmatprep.subr.mxu0 0.0
    %4613 = vmatpush1.xpose.msra.mxu0 %v4586
    %4614 = vmatprep.subr.mxu0 0.0
    %4615 = vmatpush1.xpose.msra.mxu0 %v4584
    %4616 = vmatprep.subr.mxu0 0.0
    %4617 = vmatpush1.xpose.msra.mxu0 %v4582
    %4618 = vmatprep.subr.mxu0 0.0
    %4619 = vmatpush1.xpose.msra.mxu0 %v4580
    %4620 = vmatprep.subr.mxu0 0.0
    %4621 = vmatpush1.xpose.msra.mxu0 %v4578
    %4622 = vmatprep.subr.mxu0 0.0
    %4623 = vmatpush1.xpose.msra.mxu0 %v4576
    %4624 = vmatprep.subr.mxu0 0.0
    %4625 = vmatpush1.xpose.msra.mxu0 %v4574
    %4626 = vmatprep.subr.mxu0 0.0
    %4627 = vmatpush1.xpose.msra.mxu0 %v4572
    %4628 = vmatprep.subr.mxu0 0.0
    %4629 = vmatpush1.xpose.msra.mxu0 %v4570
    %4630 = vmatprep.subr.mxu0 0.0
    %4631 = vmatpush1.xpose.msra.mxu0 %v4568
    %4632 = vmatprep.subr.mxu0 0.0
    %4633 = vmatpush2.xpose.msra.mxu0 0.0
    %4634 = vmatprep.subr.mxu0 0.0
    %4635 = vmatpush2.xpose.msra.mxu0 0.0
    %4636 = vmatprep.subr.mxu0 0.0
    %4637 = vmatpush2.xpose.msra.mxu0 0.0
    %4638 = vmatprep.subr.mxu0 0.0
    %4639 = vmatpush2.xpose.msra.mxu0 0.0
    %4640 = vmatprep.subr.mxu0 0.0
    %4641 = vmatpush2.xpose.msra.mxu0 0.0
    %4642 = vmatprep.subr.mxu0 0.0
    %4643 = vmatpush2.xpose.msra.mxu0 0.0
    %4644 = vmatprep.subr.mxu0 0.0
    %4645 = vmatpush2.xpose.msra.mxu0 0.0
    %4646 = vmatprep.subr.mxu0 0.0
    %4647 = vmatpush2.xpose.msra.mxu0 0.0
    %4648 = vmatprep.subr.mxu0 0.0
    %4649 = vmatpush2.xpose.msra.mxu0 0.0
    %4650 = vmatprep.subr.mxu0 0.0
    %4651 = vmatpush2.xpose.msra.mxu0 0.0
    %4652 = vmatprep.subr.mxu0 0.0
    %4653 = vmatpush2.xpose.msra.mxu0 0.0
    %4654 = vmatprep.subr.mxu0 0.0
    %4655 = vmatpush2.xpose.msra.mxu0 0.0
    %4656 = vmatprep.subr.mxu0 0.0
    %4657 = vmatpush2.xpose.msra.mxu0 0.0
    %4658 = vmatprep.subr.mxu0 0.0
    %4659 = vmatpush2.xpose.msra.mxu0 0.0
    %4660 = vmatprep.subr.mxu0 0.0
    %4661 = vmatpush2.xpose.msra.mxu0 0.0
    %4662 = vmatprep.subr.mxu0 0.0
    %4663 = vmatpush2.xpose.msra.mxu0 0.0
    %4664 = vmatprep.mubr.f32.mxu0 0.0
    %4665 = vmatmul.mubr.f32.gmra.mxu0 %v4536
    %v4666 = vpop.f32.mrf.mxu0
    %v4667 = vadd.f32 0.0, %v4666
    %v4668 = vpop.f32.mrf.mxu0
    %4669 = vmatprep.mubr.f32.mxu0 0.0
    %4670 = vmatmul.mubr.f32.gmra.mxu0 %v4538
    %v4671 = vpop.f32.mrf.mxu0
    %v4672 = vadd.f32 0.0, %v4671
    %v4673 = vpop.f32.mrf.mxu0
    %4674 = vmatprep.mubr.f32.mxu0 0.0
    %4675 = vmatmul.mubr.f32.gmra.mxu0 %v4540
    %v4676 = vpop.f32.mrf.mxu0
    %v4677 = vadd.f32 0.0, %v4676
    %v4678 = vpop.f32.mrf.mxu0
    %4679 = vmatprep.mubr.f32.mxu0 0.0
    %4680 = vmatmul.mubr.f32.gmra.mxu0 %v4542
    %v4681 = vpop.f32.mrf.mxu0
    %v4682 = vadd.f32 0.0, %v4681
    %v4683 = vpop.f32.mrf.mxu0
    %4684 = vmatprep.mubr.f32.mxu0 0.0
    %4685 = vmatmul.mubr.f32.gmra.mxu0 %v4544
    %v4686 = vpop.f32.mrf.mxu0
    %v4687 = vadd.f32 0.0, %v4686
    %v4688 = vpop.f32.mrf.mxu0
    %4689 = vmatprep.mubr.f32.mxu0 0.0
    %4690 = vmatmul.mubr.f32.gmra.mxu0 %v4546
    %v4691 = vpop.f32.mrf.mxu0
    %v4692 = vadd.f32 0.0, %v4691
    %v4693 = vpop.f32.mrf.mxu0
    %4694 = vmatprep.mubr.f32.mxu0 0.0
    %4695 = vmatmul.mubr.f32.gmra.mxu0 %v4548
    %v4696 = vpop.f32.mrf.mxu0
    %v4697 = vadd.f32 0.0, %v4696
    %v4698 = vpop.f32.mrf.mxu0
    %4699 = vmatprep.mubr.f32.mxu0 0.0
    %4700 = vmatmul.mubr.f32.gmra.mxu0 %v4550
    %v4701 = vpop.f32.mrf.mxu0
    %v4702 = vadd.f32 0.0, %v4701
    %v4703 = vpop.f32.mrf.mxu0
    %4704 = vmatprep.mubr.f32.mxu0 0.0
    %4705 = vmatmul.mubr.f32.gmra.mxu0 %v4552
    %v4706 = vpop.f32.mrf.mxu0
    %v4707 = vadd.f32 0.0, %v4706
    %v4708 = vpop.f32.mrf.mxu0
    %4709 = vmatprep.mubr.f32.mxu0 0.0
    %4710 = vmatmul.mubr.f32.gmra.mxu0 %v4554
    %v4711 = vpop.f32.mrf.mxu0
    %v4712 = vadd.f32 0.0, %v4711
    %v4713 = vpop.f32.mrf.mxu0
    %4714 = vmatprep.mubr.f32.mxu0 0.0
    %4715 = vmatmul.mubr.f32.gmra.mxu0 %v4556
    %v4716 = vpop.f32.mrf.mxu0
    %v4717 = vadd.f32 0.0, %v4716
    %v4718 = vpop.f32.mrf.mxu0
    %4719 = vmatprep.mubr.f32.mxu0 0.0
    %4720 = vmatmul.mubr.f32.gmra.mxu0 %v4558
    %v4721 = vpop.f32.mrf.mxu0
    %v4722 = vadd.f32 0.0, %v4721
    %v4723 = vpop.f32.mrf.mxu0
    %4724 = vmatprep.mubr.f32.mxu0 0.0
    %4725 = vmatmul.mubr.f32.gmra.mxu0 %v4560
    %v4726 = vpop.f32.mrf.mxu0
    %v4727 = vadd.f32 0.0, %v4726
    %v4728 = vpop.f32.mrf.mxu0
    %4729 = vmatprep.mubr.f32.mxu0 0.0
    %4730 = vmatmul.mubr.f32.gmra.mxu0 %v4562
    %v4731 = vpop.f32.mrf.mxu0
    %v4732 = vadd.f32 0.0, %v4731
    %v4733 = vpop.f32.mrf.mxu0
    %4734 = vmatprep.mubr.f32.mxu0 0.0
    %4735 = vmatmul.mubr.f32.gmra.mxu0 %v4564
    %v4736 = vpop.f32.mrf.mxu0
    %v4737 = vadd.f32 0.0, %v4736
    %v4738 = vpop.f32.mrf.mxu0
    %4739 = vmatprep.mubr.f32.mxu0 0.0
    %4740 = vmatmul.mubr.f32.gmra.mxu0 %v4566
    %v4741 = vpop.f32.mrf.mxu0
    %v4742 = vadd.f32 0.0, %v4741
    %v4743 = vpop.f32.mrf.mxu0
    %4744 = vdwg.mxu0
    %v4745 = vmul.f32 %v4667, 0.25
    %v4746 = vmul.f32 %v4672, 0.25
    %v4747 = vmul.f32 %v4677, 0.25
    %v4748 = vmul.f32 %v4682, 0.25
    %v4749 = vmul.f32 %v4687, 0.25
    %v4750 = vmul.f32 %v4692, 0.25
    %v4751 = vmul.f32 %v4697, 0.25
    %v4752 = vmul.f32 %v4702, 0.25
    %v4753 = vmul.f32 %v4707, 0.25
    %v4754 = vmul.f32 %v4712, 0.25
    %v4755 = vmul.f32 %v4717, 0.25
    %v4756 = vmul.f32 %v4722, 0.25
    %v4757 = vmul.f32 %v4727, 0.25
    %v4758 = vmul.f32 %v4732, 0.25
    %v4759 = vmul.f32 %v4737, 0.25
    %v4760 = vmul.f32 %v4742, 0.25
    %v4761 = vadd.f32 %v4745, %v1974
    %v4762 = vadd.f32 %v4746, %v1975
    %v4763 = vadd.f32 %v4747, %v1976
    %v4764 = vadd.f32 %v4748, %v1977
    %v4765 = vadd.f32 %v4749, %v1978
    %v4766 = vadd.f32 %v4750, %v1979
    %v4767 = vadd.f32 %v4751, %v1980
    %v4768 = vadd.f32 %v4752, %v1981
    %v4769 = vadd.f32 %v4753, %v1982
    %v4770 = vadd.f32 %v4754, %v1983
    %v4771 = vadd.f32 %v4755, %v1984
    %v4772 = vadd.f32 %v4756, %v1985
    %v4773 = vadd.f32 %v4757, %v1986
    %v4774 = vadd.f32 %v4758, %v1987
    %v4775 = vadd.f32 %v4759, %v1988
    %v4776 = vadd.f32 %v4760, %v1989
    %4777 = vmax.xlane.f32.xlu0 %v4761
    %v4778 = vpop.xlane.xlu0 %4777
    %4779 = vmax.xlane.f32.xlu0 %v4762
    %v4780 = vpop.xlane.xlu0 %4779
    %4781 = vmax.xlane.f32.xlu0 %v4763
    %v4782 = vpop.xlane.xlu0 %4781
    %4783 = vmax.xlane.f32.xlu0 %v4764
    %v4784 = vpop.xlane.xlu0 %4783
    %4785 = vmax.xlane.f32.xlu0 %v4765
    %v4786 = vpop.xlane.xlu0 %4785
    %4787 = vmax.xlane.f32.xlu0 %v4766
    %v4788 = vpop.xlane.xlu0 %4787
    %4789 = vmax.xlane.f32.xlu0 %v4767
    %v4790 = vpop.xlane.xlu0 %4789
    %4791 = vmax.xlane.f32.xlu0 %v4768
    %v4792 = vpop.xlane.xlu0 %4791
    %4793 = vmax.xlane.f32.xlu0 %v4769
    %v4794 = vpop.xlane.xlu0 %4793
    %4795 = vmax.xlane.f32.xlu0 %v4770
    %v4796 = vpop.xlane.xlu0 %4795
    %4797 = vmax.xlane.f32.xlu0 %v4771
    %v4798 = vpop.xlane.xlu0 %4797
    %4799 = vmax.xlane.f32.xlu0 %v4772
    %v4800 = vpop.xlane.xlu0 %4799
    %4801 = vmax.xlane.f32.xlu0 %v4773
    %v4802 = vpop.xlane.xlu0 %4801
    %4803 = vmax.xlane.f32.xlu0 %v4774
    %v4804 = vpop.xlane.xlu0 %4803
    %4805 = vmax.xlane.f32.xlu0 %v4775
    %v4806 = vpop.xlane.xlu0 %4805
    %4807 = vmax.xlane.f32.xlu0 %v4776
    %v4808 = vpop.xlane.xlu0 %4807
    %v4809 = vsub.f32 %v4761, %v4778
    %v4810 = vsub.f32 %v4762, %v4780
    %v4811 = vsub.f32 %v4763, %v4782
    %v4812 = vsub.f32 %v4764, %v4784
    %v4813 = vsub.f32 %v4765, %v4786
    %v4814 = vsub.f32 %v4766, %v4788
    %v4815 = vsub.f32 %v4767, %v4790
    %v4816 = vsub.f32 %v4768, %v4792
    %v4817 = vsub.f32 %v4769, %v4794
    %v4818 = vsub.f32 %v4770, %v4796
    %v4819 = vsub.f32 %v4771, %v4798
    %v4820 = vsub.f32 %v4772, %v4800
    %v4821 = vsub.f32 %v4773, %v4802
    %v4822 = vsub.f32 %v4774, %v4804
    %v4823 = vsub.f32 %v4775, %v4806
    %v4824 = vsub.f32 %v4776, %v4808
    %v4825 = vmul.f32 %v4809, 1.442695
    %v4826 = vpow.pop %v4825
    %v4827 = vmul.f32 %v4810, 1.442695
    %v4828 = vpow.pop %v4827
    %v4829 = vmul.f32 %v4811, 1.442695
    %v4830 = vpow.pop %v4829
    %v4831 = vmul.f32 %v4812, 1.442695
    %v4832 = vpow.pop %v4831
    %v4833 = vmul.f32 %v4813, 1.442695
    %v4834 = vpow.pop %v4833
    %v4835 = vmul.f32 %v4814, 1.442695
    %v4836 = vpow.pop %v4835
    %v4837 = vmul.f32 %v4815, 1.442695
    %v4838 = vpow.pop %v4837
    %v4839 = vmul.f32 %v4816, 1.442695
    %v4840 = vpow.pop %v4839
    %v4841 = vmul.f32 %v4817, 1.442695
    %v4842 = vpow.pop %v4841
    %v4843 = vmul.f32 %v4818, 1.442695
    %v4844 = vpow.pop %v4843
    %v4845 = vmul.f32 %v4819, 1.442695
    %v4846 = vpow.pop %v4845
    %v4847 = vmul.f32 %v4820, 1.442695
    %v4848 = vpow.pop %v4847
    %v4849 = vmul.f32 %v4821, 1.442695
    %v4850 = vpow.pop %v4849
    %v4851 = vmul.f32 %v4822, 1.442695
    %v4852 = vpow.pop %v4851
    %v4853 = vmul.f32 %v4823, 1.442695
    %v4854 = vpow.pop %v4853
    %v4855 = vmul.f32 %v4824, 1.442695
    %v4856 = vpow.pop %v4855
    %4857 = vadd.xlane.f32.xlu0 %v4826
    %v4858 = vpop.xlane.xlu0 %4857
    %4859 = vadd.xlane.f32.xlu0 %v4828
    %v4860 = vpop.xlane.xlu0 %4859
    %4861 = vadd.xlane.f32.xlu0 %v4830
    %v4862 = vpop.xlane.xlu0 %4861
    %4863 = vadd.xlane.f32.xlu0 %v4832
    %v4864 = vpop.xlane.xlu0 %4863
    %4865 = vadd.xlane.f32.xlu0 %v4834
    %v4866 = vpop.xlane.xlu0 %4865
    %4867 = vadd.xlane.f32.xlu0 %v4836
    %v4868 = vpop.xlane.xlu0 %4867
    %4869 = vadd.xlane.f32.xlu0 %v4838
    %v4870 = vpop.xlane.xlu0 %4869
    %4871 = vadd.xlane.f32.xlu0 %v4840
    %v4872 = vpop.xlane.xlu0 %4871
    %4873 = vadd.xlane.f32.xlu0 %v4842
    %v4874 = vpop.xlane.xlu0 %4873
    %4875 = vadd.xlane.f32.xlu0 %v4844
    %v4876 = vpop.xlane.xlu0 %4875
    %4877 = vadd.xlane.f32.xlu0 %v4846
    %v4878 = vpop.xlane.xlu0 %4877
    %4879 = vadd.xlane.f32.xlu0 %v4848
    %v4880 = vpop.xlane.xlu0 %4879
    %4881 = vadd.xlane.f32.xlu0 %v4850
    %v4882 = vpop.xlane.xlu0 %4881
    %4883 = vadd.xlane.f32.xlu0 %v4852
    %v4884 = vpop.xlane.xlu0 %4883
    %4885 = vadd.xlane.f32.xlu0 %v4854
    %v4886 = vpop.xlane.xlu0 %4885
    %4887 = vadd.xlane.f32.xlu0 %v4856
    %v4888 = vpop.xlane.xlu0 %4887
    %v4889 = vrcp.pop %v4858
    %v4890 = vmul.f32 %v4826, %v4889
    %v4891 = vrcp.pop %v4860
    %v4892 = vmul.f32 %v4828, %v4891
    %v4893 = vrcp.pop %v4862
    %v4894 = vmul.f32 %v4830, %v4893
    %v4895 = vrcp.pop %v4864
    %v4896 = vmul.f32 %v4832, %v4895
    %v4897 = vrcp.pop %v4866
    %v4898 = vmul.f32 %v4834, %v4897
    %v4899 = vrcp.pop %v4868
    %v4900 = vmul.f32 %v4836, %v4899
    %v4901 = vrcp.pop %v4870
    %v4902 = vmul.f32 %v4838, %v4901
    %v4903 = vrcp.pop %v4872
    %v4904 = vmul.f32 %v4840, %v4903
    %v4905 = vrcp.pop %v4874
    %v4906 = vmul.f32 %v4842, %v4905
    %v4907 = vrcp.pop %v4876
    %v4908 = vmul.f32 %v4844, %v4907
    %v4909 = vrcp.pop %v4878
    %v4910 = vmul.f32 %v4846, %v4909
    %v4911 = vrcp.pop %v4880
    %v4912 = vmul.f32 %v4848, %v4911
    %v4913 = vrcp.pop %v4882
    %v4914 = vmul.f32 %v4850, %v4913
    %v4915 = vrcp.pop %v4884
    %v4916 = vmul.f32 %v4852, %v4915
    %v4917 = vrcp.pop %v4886
    %v4918 = vmul.f32 %v4854, %v4917
    %v4919 = vrcp.pop %v4888
    %v4920 = vmul.f32 %v4856, %v4919
    %4921 = vrot.lane.b32.xlu0 %v1882, 80
    %v4922 = vpop.permute.xlu0 %4921
    %4923 = vrot.lane.b32.xlu0 %v1888, 80
    %v4924 = vpop.permute.xlu0 %4923
    %4925 = vrot.lane.b32.xlu0 %v1894, 80
    %v4926 = vpop.permute.xlu0 %4925
    %4927 = vrot.lane.b32.xlu0 %v1900, 80
    %v4928 = vpop.permute.xlu0 %4927
    %4929 = vrot.lane.b32.xlu0 %v1906, 80
    %v4930 = vpop.permute.xlu0 %4929
    %4931 = vrot.lane.b32.xlu0 %v1912, 80
    %v4932 = vpop.permute.xlu0 %4931
    %4933 = vrot.lane.b32.xlu0 %v1918, 80
    %v4934 = vpop.permute.xlu0 %4933
    %4935 = vrot.lane.b32.xlu0 %v1924, 80
    %v4936 = vpop.permute.xlu0 %4935
    %4937 = vrot.lane.b32.xlu0 %v1930, 80
    %v4938 = vpop.permute.xlu0 %4937
    %4939 = vrot.lane.b32.xlu0 %v1936, 80
    %v4940 = vpop.permute.xlu0 %4939
    %4941 = vrot.lane.b32.xlu0 %v1942, 80
    %v4942 = vpop.permute.xlu0 %4941
    %4943 = vrot.lane.b32.xlu0 %v1948, 80
    %v4944 = vpop.permute.xlu0 %4943
    %4945 = vrot.lane.b32.xlu0 %v1954, 80
    %v4946 = vpop.permute.xlu0 %4945
    %4947 = vrot.lane.b32.xlu0 %v1960, 80
    %v4948 = vpop.permute.xlu0 %4947
    %4949 = vrot.lane.b32.xlu0 %v1966, 80
    %v4950 = vpop.permute.xlu0 %4949
    %4951 = vrot.lane.b32.xlu0 %v1972, 80
    %v4952 = vpop.permute.xlu0 %4951
    %4969 = vmatprep.subr.mxu0 0.0
    %4970 = vmatpush1.msra.mxu0 %v4952
    %4971 = vmatprep.subr.mxu0 0.0
    %4972 = vmatpush1.msra.mxu0 %v4950
    %4973 = vmatprep.subr.mxu0 0.0
    %4974 = vmatpush1.msra.mxu0 %v4948
    %4975 = vmatprep.subr.mxu0 0.0
    %4976 = vmatpush1.msra.mxu0 %v4946
    %4977 = vmatprep.subr.mxu0 0.0
    %4978 = vmatpush1.msra.mxu0 %v4944
    %4979 = vmatprep.subr.mxu0 0.0
    %4980 = vmatpush1.msra.mxu0 %v4942
    %4981 = vmatprep.subr.mxu0 0.0
    %4982 = vmatpush1.msra.mxu0 %v4940
    %4983 = vmatprep.subr.mxu0 0.0
    %4984 = vmatpush1.msra.mxu0 %v4938
    %4985 = vmatprep.subr.mxu0 0.0
    %4986 = vmatpush1.msra.mxu0 %v4936
    %4987 = vmatprep.subr.mxu0 0.0
    %4988 = vmatpush1.msra.mxu0 %v4934
    %4989 = vmatprep.subr.mxu0 0.0
    %4990 = vmatpush1.msra.mxu0 %v4932
    %4991 = vmatprep.subr.mxu0 0.0
    %4992 = vmatpush1.msra.mxu0 %v4930
    %4993 = vmatprep.subr.mxu0 0.0
    %4994 = vmatpush1.msra.mxu0 %v4928
    %4995 = vmatprep.subr.mxu0 0.0
    %4996 = vmatpush1.msra.mxu0 %v4926
    %4997 = vmatprep.subr.mxu0 0.0
    %4998 = vmatpush1.msra.mxu0 %v4924
    %4999 = vmatprep.subr.mxu0 0.0
    %5000 = vmatpush1.msra.mxu0 %v4922
    %5001 = vmatprep.subr.mxu0 0.0
    %5002 = vmatpush2.msra.mxu0 0.0
    %5003 = vmatprep.subr.mxu0 0.0
    %5004 = vmatpush2.msra.mxu0 0.0
    %5005 = vmatprep.subr.mxu0 0.0
    %5006 = vmatpush2.msra.mxu0 0.0
    %5007 = vmatprep.subr.mxu0 0.0
    %5008 = vmatpush2.msra.mxu0 0.0
    %5009 = vmatprep.subr.mxu0 0.0
    %5010 = vmatpush2.msra.mxu0 0.0
    %5011 = vmatprep.subr.mxu0 0.0
    %5012 = vmatpush2.msra.mxu0 0.0
    %5013 = vmatprep.subr.mxu0 0.0
    %5014 = vmatpush2.msra.mxu0 0.0
    %5015 = vmatprep.subr.mxu0 0.0
    %5016 = vmatpush2.msra.mxu0 0.0
    %5017 = vmatprep.subr.mxu0 0.0
    %5018 = vmatpush2.msra.mxu0 0.0
    %5019 = vmatprep.subr.mxu0 0.0
    %5020 = vmatpush2.msra.mxu0 0.0
    %5021 = vmatprep.subr.mxu0 0.0
    %5022 = vmatpush2.msra.mxu0 0.0
    %5023 = vmatprep.subr.mxu0 0.0
    %5024 = vmatpush2.msra.mxu0 0.0
    %5025 = vmatprep.subr.mxu0 0.0
    %5026 = vmatpush2.msra.mxu0 0.0
    %5027 = vmatprep.subr.mxu0 0.0
    %5028 = vmatpush2.msra.mxu0 0.0
    %5029 = vmatprep.subr.mxu0 0.0
    %5030 = vmatpush2.msra.mxu0 0.0
    %5031 = vmatprep.subr.mxu0 0.0
    %5032 = vmatpush2.msra.mxu0 0.0
    %5033 = vmatprep.mubr.f32.mxu0 0.0
    %5034 = vmatmul.mubr.f32.gmra.mxu0 %v4890
    %v5035 = vpop.f32.mrf.mxu0
    %v5036 = vadd.f32 0.0, %v5035
    %v5037 = vpop.f32.mrf.mxu0
    %5038 = vmatprep.mubr.f32.mxu0 0.0
    %5039 = vmatmul.mubr.f32.gmra.mxu0 %v4892
    %v5040 = vpop.f32.mrf.mxu0
    %v5041 = vadd.f32 0.0, %v5040
    %v5042 = vpop.f32.mrf.mxu0
    %5043 = vmatprep.mubr.f32.mxu0 0.0
    %5044 = vmatmul.mubr.f32.gmra.mxu0 %v4894
    %v5045 = vpop.f32.mrf.mxu0
    %v5046 = vadd.f32 0.0, %v5045
    %v5047 = vpop.f32.mrf.mxu0
    %5048 = vmatprep.mubr.f32.mxu0 0.0
    %5049 = vmatmul.mubr.f32.gmra.mxu0 %v4896
    %v5050 = vpop.f32.mrf.mxu0
    %v5051 = vadd.f32 0.0, %v5050
    %v5052 = vpop.f32.mrf.mxu0
    %5053 = vmatprep.mubr.f32.mxu0 0.0
    %5054 = vmatmul.mubr.f32.gmra.mxu0 %v4898
    %v5055 = vpop.f32.mrf.mxu0
    %v5056 = vadd.f32 0.0, %v5055
    %v5057 = vpop.f32.mrf.mxu0
    %5058 = vmatprep.mubr.f32.mxu0 0.0
    %5059 = vmatmul.mubr.f32.gmra.mxu0 %v4900
    %v5060 = vpop.f32.mrf.mxu0
    %v5061 = vadd.f32 0.0, %v5060
    %v5062 = vpop.f32.mrf.mxu0
    %5063 = vmatprep.mubr.f32.mxu0 0.0
    %5064 = vmatmul.mubr.f32.gmra.mxu0 %v4902
    %v5065 = vpop.f32.mrf.mxu0
    %v5066 = vadd.f32 0.0, %v5065
    %v5067 = vpop.f32.mrf.mxu0
    %5068 = vmatprep.mubr.f32.mxu0 0.0
    %5069 = vmatmul.mubr.f32.gmra.mxu0 %v4904
    %v5070 = vpop.f32.mrf.mxu0
    %v5071 = vadd.f32 0.0, %v5070
    %v5072 = vpop.f32.mrf.mxu0
    %5073 = vmatprep.mubr.f32.mxu0 0.0
    %5074 = vmatmul.mubr.f32.gmra.mxu0 %v4906
    %v5075 = vpop.f32.mrf.mxu0
    %v5076 = vadd.f32 0.0, %v5075
    %v5077 = vpop.f32.mrf.mxu0
    %5078 = vmatprep.mubr.f32.mxu0 0.0
    %5079 = vmatmul.mubr.f32.gmra.mxu0 %v4908
    %v5080 = vpop.f32.mrf.mxu0
    %v5081 = vadd.f32 0.0, %v5080
    %v5082 = vpop.f32.mrf.mxu0
    %5083 = vmatprep.mubr.f32.mxu0 0.0
    %5084 = vmatmul.mubr.f32.gmra.mxu0 %v4910
    %v5085 = vpop.f32.mrf.mxu0
    %v5086 = vadd.f32 0.0, %v5085
    %v5087 = vpop.f32.mrf.mxu0
    %5088 = vmatprep.mubr.f32.mxu0 0.0
    %5089 = vmatmul.mubr.f32.gmra.mxu0 %v4912
    %v5090 = vpop.f32.mrf.mxu0
    %v5091 = vadd.f32 0.0, %v5090
    %v5092 = vpop.f32.mrf.mxu0
    %5093 = vmatprep.mubr.f32.mxu0 0.0
    %5094 = vmatmul.mubr.f32.gmra.mxu0 %v4914
    %v5095 = vpop.f32.mrf.mxu0
    %v5096 = vadd.f32 0.0, %v5095
    %v5097 = vpop.f32.mrf.mxu0
    %5098 = vmatprep.mubr.f32.mxu0 0.0
    %5099 = vmatmul.mubr.f32.gmra.mxu0 %v4916
    %v5100 = vpop.f32.mrf.mxu0
    %v5101 = vadd.f32 0.0, %v5100
    %v5102 = vpop.f32.mrf.mxu0
    %5103 = vmatprep.mubr.f32.mxu0 0.0
    %5104 = vmatmul.mubr.f32.gmra.mxu0 %v4918
    %v5105 = vpop.f32.mrf.mxu0
    %v5106 = vadd.f32 0.0, %v5105
    %v5107 = vpop.f32.mrf.mxu0
    %5108 = vmatprep.mubr.f32.mxu0 0.0
    %5109 = vmatmul.mubr.f32.gmra.mxu0 %v4920
    %v5110 = vpop.f32.mrf.mxu0
    %v5111 = vadd.f32 0.0, %v5110
    %v5112 = vpop.f32.mrf.mxu0
    %5113 = vdwg.mxu0
    %v5115 = vsel %vm2046, %v5036, 0
    %v5118 = vsel %vm2046, %v5041, 0
    %v5121 = vsel %vm2046, %v5046, 0
    %v5124 = vsel %vm2046, %v5051, 0
    %v5127 = vsel %vm2046, %v5056, 0
    %v5130 = vsel %vm2046, %v5061, 0
    %v5133 = vsel %vm2046, %v5066, 0
    %v5136 = vsel %vm2046, %v5071, 0
    %v5139 = vsel %vm2046, %v5076, 0
    %v5142 = vsel %vm2046, %v5081, 0
    %v5145 = vsel %vm2046, %v5086, 0
    %v5148 = vsel %vm2046, %v5091, 0
    %v5151 = vsel %vm2046, %v5096, 0
    %v5154 = vsel %vm2046, %v5101, 0
    %v5157 = vsel %vm2046, %v5106, 0
    %v5160 = vsel %vm2046, %v5111, 0
    %5162 = vmatprep.subr.mxu0 0.0
    %5163 = vmatpush1.msra.mxu0 0.0
    %5164 = vmatprep.subr.mxu0 0.0
    %5165 = vmatpush1.msra.mxu0 0.0
    %5166 = vmatprep.subr.mxu0 0.0
    %5167 = vmatpush1.msra.mxu0 0.0
    %5168 = vmatprep.subr.mxu0 0.0
    %5169 = vmatpush1.msra.mxu0 0.0
    %5170 = vmatprep.subr.mxu0 0.0
    %5171 = vmatpush1.msra.mxu0 0.0
    %5172 = vmatprep.subr.mxu0 0.0
    %5173 = vmatpush1.msra.mxu0 0.0
    %5174 = vmatprep.subr.mxu0 0.0
    %5175 = vmatpush1.msra.mxu0 0.0
    %5176 = vmatprep.subr.mxu0 0.0
    %5177 = vmatpush1.msra.mxu0 0.0
    %5178 = vmatprep.subr.mxu0 0.0
    %5179 = vmatpush1.msra.mxu0 0.0
    %5180 = vmatprep.subr.mxu0 0.0
    %5181 = vmatpush1.msra.mxu0 0.0
    %5182 = vmatprep.subr.mxu0 0.0
    %5183 = vmatpush1.msra.mxu0 0.0
    %5184 = vmatprep.subr.mxu0 0.0
    %5185 = vmatpush1.msra.mxu0 0.0
    %5186 = vmatprep.subr.mxu0 0.0
    %5187 = vmatpush1.msra.mxu0 0.0
    %5188 = vmatprep.subr.mxu0 0.0
    %5189 = vmatpush1.msra.mxu0 0.0
    %5190 = vmatprep.subr.mxu0 0.0
    %5191 = vmatpush1.msra.mxu0 %v1997
    %5192 = vmatprep.subr.mxu0 0.0
    %5193 = vmatpush1.msra.mxu0 %v1996
    %5194 = vmatprep.subr.mxu0 0.0
    %5195 = vmatpush2.msra.mxu0 0.0
    %5196 = vmatprep.subr.mxu0 0.0
    %5197 = vmatpush2.msra.mxu0 0.0
    %5198 = vmatprep.subr.mxu0 0.0
    %5199 = vmatpush2.msra.mxu0 0.0
    %5200 = vmatprep.subr.mxu0 0.0
    %5201 = vmatpush2.msra.mxu0 0.0
    %5202 = vmatprep.subr.mxu0 0.0
    %5203 = vmatpush2.msra.mxu0 0.0
    %5204 = vmatprep.subr.mxu0 0.0
    %5205 = vmatpush2.msra.mxu0 0.0
    %5206 = vmatprep.subr.mxu0 0.0
    %5207 = vmatpush2.msra.mxu0 0.0
    %5208 = vmatprep.subr.mxu0 0.0
    %5209 = vmatpush2.msra.mxu0 0.0
    %5210 = vmatprep.subr.mxu0 0.0
    %5211 = vmatpush2.msra.mxu0 0.0
    %5212 = vmatprep.subr.mxu0 0.0
    %5213 = vmatpush2.msra.mxu0 0.0
    %5214 = vmatprep.subr.mxu0 0.0
    %5215 = vmatpush2.msra.mxu0 0.0
    %5216 = vmatprep.subr.mxu0 0.0
    %5217 = vmatpush2.msra.mxu0 0.0
    %5218 = vmatprep.subr.mxu0 0.0
    %5219 = vmatpush2.msra.mxu0 0.0
    %5220 = vmatprep.subr.mxu0 0.0
    %5221 = vmatpush2.msra.mxu0 0.0
    %5222 = vmatprep.subr.mxu0 0.0
    %5223 = vmatpush2.msra.mxu0 0.0
    %5224 = vmatprep.subr.mxu0 0.0
    %5225 = vmatpush2.msra.mxu0 0.0
    %5226 = vmatprep.mubr.f32.mxu0 0.0
    %5227 = vmatmul.mubr.f32.gmra.mxu0 %v5115
    %v5228 = vpop.f32.mrf.mxu0
    %v5229 = vadd.f32 0.0, %v5228
    %v5230 = vpop.f32.mrf.mxu0
    %5231 = vmatprep.mubr.f32.mxu0 0.0
    %5232 = vmatmul.mubr.f32.gmra.mxu0 %v5118
    %v5233 = vpop.f32.mrf.mxu0
    %v5234 = vadd.f32 0.0, %v5233
    %v5235 = vpop.f32.mrf.mxu0
    %5236 = vmatprep.mubr.f32.mxu0 0.0
    %5237 = vmatmul.mubr.f32.gmra.mxu0 %v5121
    %v5238 = vpop.f32.mrf.mxu0
    %v5239 = vadd.f32 0.0, %v5238
    %v5240 = vpop.f32.mrf.mxu0
    %5241 = vmatprep.mubr.f32.mxu0 0.0
    %5242 = vmatmul.mubr.f32.gmra.mxu0 %v5124
    %v5243 = vpop.f32.mrf.mxu0
    %v5244 = vadd.f32 0.0, %v5243
    %v5245 = vpop.f32.mrf.mxu0
    %5246 = vmatprep.mubr.f32.mxu0 0.0
    %5247 = vmatmul.mubr.f32.gmra.mxu0 %v5127
    %v5248 = vpop.f32.mrf.mxu0
    %v5249 = vadd.f32 0.0, %v5248
    %v5250 = vpop.f32.mrf.mxu0
    %5251 = vmatprep.mubr.f32.mxu0 0.0
    %5252 = vmatmul.mubr.f32.gmra.mxu0 %v5130
    %v5253 = vpop.f32.mrf.mxu0
    %v5254 = vadd.f32 0.0, %v5253
    %v5255 = vpop.f32.mrf.mxu0
    %5256 = vmatprep.mubr.f32.mxu0 0.0
    %5257 = vmatmul.mubr.f32.gmra.mxu0 %v5133
    %v5258 = vpop.f32.mrf.mxu0
    %v5259 = vadd.f32 0.0, %v5258
    %v5260 = vpop.f32.mrf.mxu0
    %5261 = vmatprep.mubr.f32.mxu0 0.0
    %5262 = vmatmul.mubr.f32.gmra.mxu0 %v5136
    %v5263 = vpop.f32.mrf.mxu0
    %v5264 = vadd.f32 0.0, %v5263
    %v5265 = vpop.f32.mrf.mxu0
    %5266 = vmatprep.mubr.f32.mxu0 0.0
    %5267 = vmatmul.mubr.f32.gmra.mxu0 %v5139
    %v5268 = vpop.f32.mrf.mxu0
    %v5269 = vadd.f32 0.0, %v5268
    %v5270 = vpop.f32.mrf.mxu0
    %5271 = vmatprep.mubr.f32.mxu0 0.0
    %5272 = vmatmul.mubr.f32.gmra.mxu0 %v5142
    %v5273 = vpop.f32.mrf.mxu0
    %v5274 = vadd.f32 0.0, %v5273
    %v5275 = vpop.f32.mrf.mxu0
    %5276 = vmatprep.mubr.f32.mxu0 0.0
    %5277 = vmatmul.mubr.f32.gmra.mxu0 %v5145
    %v5278 = vpop.f32.mrf.mxu0
    %v5279 = vadd.f32 0.0, %v5278
    %v5280 = vpop.f32.mrf.mxu0
    %5281 = vmatprep.mubr.f32.mxu0 0.0
    %5282 = vmatmul.mubr.f32.gmra.mxu0 %v5148
    %v5283 = vpop.f32.mrf.mxu0
    %v5284 = vadd.f32 0.0, %v5283
    %v5285 = vpop.f32.mrf.mxu0
    %5286 = vmatprep.mubr.f32.mxu0 0.0
    %5287 = vmatmul.mubr.f32.gmra.mxu0 %v5151
    %v5288 = vpop.f32.mrf.mxu0
    %v5289 = vadd.f32 0.0, %v5288
    %v5290 = vpop.f32.mrf.mxu0
    %5291 = vmatprep.mubr.f32.mxu0 0.0
    %5292 = vmatmul.mubr.f32.gmra.mxu0 %v5154
    %v5293 = vpop.f32.mrf.mxu0
    %v5294 = vadd.f32 0.0, %v5293
    %v5295 = vpop.f32.mrf.mxu0
    %5296 = vmatprep.mubr.f32.mxu0 0.0
    %5297 = vmatmul.mubr.f32.gmra.mxu0 %v5157
    %v5298 = vpop.f32.mrf.mxu0
    %v5299 = vadd.f32 0.0, %v5298
    %v5300 = vpop.f32.mrf.mxu0
    %5301 = vmatprep.mubr.f32.mxu0 0.0
    %5302 = vmatmul.mubr.f32.gmra.mxu0 %v5160
    %v5303 = vpop.f32.mrf.mxu0
    %v5304 = vadd.f32 0.0, %v5303
    %v5305 = vpop.f32.mrf.mxu0
    %5306 = vdwg.mxu0
    %v5307 = vadd.f32 %v4456, %v5229
    %v5308 = vadd.f32 %v4457, %v5234
    %v5309 = vadd.f32 %v4458, %v5239
    %v5310 = vadd.f32 %v4459, %v5244
    %v5311 = vadd.f32 %v4460, %v5249
    %v5312 = vadd.f32 %v4461, %v5254
    %v5313 = vadd.f32 %v4462, %v5259
    %v5314 = vadd.f32 %v4463, %v5264
    %v5315 = vadd.f32 %v4464, %v5269
    %v5316 = vadd.f32 %v4465, %v5274
    %v5317 = vadd.f32 %v4466, %v5279
    %v5318 = vadd.f32 %v4467, %v5284
    %v5319 = vadd.f32 %v4468, %v5289
    %v5320 = vadd.f32 %v4469, %v5294
    %v5321 = vadd.f32 %v4470, %v5299
    %v5322 = vadd.f32 %v4471, %v5304
    %v5323 = vadd.f32 %v1476, %v5307
    %v5324 = vadd.f32 %v1477, %v5308
    %v5325 = vadd.f32 %v1478, %v5309
    %v5326 = vadd.f32 %v1479, %v5310
    %v5327 = vadd.f32 %v1480, %v5311
    %v5328 = vadd.f32 %v1481, %v5312
    %v5329 = vadd.f32 %v1482, %v5313
    %v5330 = vadd.f32 %v1483, %v5314
    %v5331 = vadd.f32 %v1484, %v5315
    %v5332 = vadd.f32 %v1485, %v5316
    %v5333 = vadd.f32 %v1486, %v5317
    %v5334 = vadd.f32 %v1487, %v5318
    %v5335 = vadd.f32 %v1488, %v5319
    %v5336 = vadd.f32 %v1489, %v5320
    %v5337 = vadd.f32 %v1490, %v5321
    %v5338 = vadd.f32 %v1491, %v5322
    %v5339 = vlaneseq
    %v5340 = vshrl.u32 %v5339, 7
    %v5341 = vsub.s32 4, %v5340
    %v5342 = vrot.slane %v41, %v5341
    %v5343 = vadd.f32 %v5323, %v5342
    %v5344 = vadd.f32 %v5324, %v5342
    %v5345 = vadd.f32 %v5325, %v5342
    %v5346 = vadd.f32 %v5326, %v5342
    %v5347 = vadd.f32 %v5327, %v5342
    %v5348 = vadd.f32 %v5328, %v5342
    %v5349 = vadd.f32 %v5329, %v5342
    %v5350 = vadd.f32 %v5330, %v5342
    %v5351 = vadd.f32 %v5331, %v5342
    %v5352 = vadd.f32 %v5332, %v5342
    %v5353 = vadd.f32 %v5333, %v5342
    %v5354 = vadd.f32 %v5334, %v5342
    %v5355 = vadd.f32 %v5335, %v5342
    %v5356 = vadd.f32 %v5336, %v5342
    %v5357 = vadd.f32 %v5337, %v5342
    %v5358 = vadd.f32 %v5338, %v5342
    %v5359 = vsel %vm1282, %v5343, 0.0
    %5360 = vadd.xlane.f32.xlu0 %v5359
    %v5361 = vpop.xlane.xlu0 %5360
    %v5362 = vsel %vm1282, %v5344, 0.0
    %5363 = vadd.xlane.f32.xlu0 %v5362
    %v5364 = vpop.xlane.xlu0 %5363
    %v5365 = vsel %vm1282, %v5345, 0.0
    %5366 = vadd.xlane.f32.xlu0 %v5365
    %v5367 = vpop.xlane.xlu0 %5366
    %v5368 = vsel %vm1282, %v5346, 0.0
    %5369 = vadd.xlane.f32.xlu0 %v5368
    %v5370 = vpop.xlane.xlu0 %5369
    %v5371 = vsel %vm1282, %v5347, 0.0
    %5372 = vadd.xlane.f32.xlu0 %v5371
    %v5373 = vpop.xlane.xlu0 %5372
    %v5374 = vsel %vm1282, %v5348, 0.0
    %5375 = vadd.xlane.f32.xlu0 %v5374
    %v5376 = vpop.xlane.xlu0 %5375
    %v5377 = vsel %vm1282, %v5349, 0.0
    %5378 = vadd.xlane.f32.xlu0 %v5377
    %v5379 = vpop.xlane.xlu0 %5378
    %v5380 = vsel %vm1282, %v5350, 0.0
    %5381 = vadd.xlane.f32.xlu0 %v5380
    %v5382 = vpop.xlane.xlu0 %5381
    %v5383 = vsel %vm1282, %v5351, 0.0
    %5384 = vadd.xlane.f32.xlu0 %v5383
    %v5385 = vpop.xlane.xlu0 %5384
    %v5386 = vsel %vm1282, %v5352, 0.0
    %5387 = vadd.xlane.f32.xlu0 %v5386
    %v5388 = vpop.xlane.xlu0 %5387
    %v5389 = vsel %vm1282, %v5353, 0.0
    %5390 = vadd.xlane.f32.xlu0 %v5389
    %v5391 = vpop.xlane.xlu0 %5390
    %v5392 = vsel %vm1282, %v5354, 0.0
    %5393 = vadd.xlane.f32.xlu0 %v5392
    %v5394 = vpop.xlane.xlu0 %5393
    %v5395 = vsel %vm1282, %v5355, 0.0
    %5396 = vadd.xlane.f32.xlu0 %v5395
    %v5397 = vpop.xlane.xlu0 %5396
    %v5398 = vsel %vm1282, %v5356, 0.0
    %5399 = vadd.xlane.f32.xlu0 %v5398
    %v5400 = vpop.xlane.xlu0 %5399
    %v5401 = vsel %vm1282, %v5357, 0.0
    %5402 = vadd.xlane.f32.xlu0 %v5401
    %v5403 = vpop.xlane.xlu0 %5402
    %v5404 = vsel %vm1282, %v5358, 0.0
    %5405 = vadd.xlane.f32.xlu0 %v5404
    %v5406 = vpop.xlane.xlu0 %5405
    %v5407 = vmul.f32 %v5361, %v1540
    %v5408 = vmul.f32 %v5364, %v1540
    %v5409 = vmul.f32 %v5367, %v1540
    %v5410 = vmul.f32 %v5370, %v1540
    %v5411 = vmul.f32 %v5373, %v1540
    %v5412 = vmul.f32 %v5376, %v1540
    %v5413 = vmul.f32 %v5379, %v1540
    %v5414 = vmul.f32 %v5382, %v1540
    %v5415 = vmul.f32 %v5385, %v1540
    %v5416 = vmul.f32 %v5388, %v1540
    %v5417 = vmul.f32 %v5391, %v1540
    %v5418 = vmul.f32 %v5394, %v1540
    %v5419 = vmul.f32 %v5397, %v1540
    %v5420 = vmul.f32 %v5400, %v1540
    %v5421 = vmul.f32 %v5403, %v1540
    %v5422 = vmul.f32 %v5406, %v1540
    %v5423 = vsub.f32 %v5343, %v5407
    %v5424 = vsub.f32 %v5344, %v5408
    %v5425 = vsub.f32 %v5345, %v5409
    %v5426 = vsub.f32 %v5346, %v5410
    %v5427 = vsub.f32 %v5347, %v5411
    %v5428 = vsub.f32 %v5348, %v5412
    %v5429 = vsub.f32 %v5349, %v5413
    %v5430 = vsub.f32 %v5350, %v5414
    %v5431 = vsub.f32 %v5351, %v5415
    %v5432 = vsub.f32 %v5352, %v5416
    %v5433 = vsub.f32 %v5353, %v5417
    %v5434 = vsub.f32 %v5354, %v5418
    %v5435 = vsub.f32 %v5355, %v5419
    %v5436 = vsub.f32 %v5356, %v5420
    %v5437 = vsub.f32 %v5357, %v5421
    %v5438 = vsub.f32 %v5358, %v5422
    %v5439 = vmul.f32 %v5423, %v5423
    %v5440 = vmul.f32 %v5424, %v5424
    %v5441 = vmul.f32 %v5425, %v5425
    %v5442 = vmul.f32 %v5426, %v5426
    %v5443 = vmul.f32 %v5427, %v5427
    %v5444 = vmul.f32 %v5428, %v5428
    %v5445 = vmul.f32 %v5429, %v5429
    %v5446 = vmul.f32 %v5430, %v5430
    %v5447 = vmul.f32 %v5431, %v5431
    %v5448 = vmul.f32 %v5432, %v5432
    %v5449 = vmul.f32 %v5433, %v5433
    %v5450 = vmul.f32 %v5434, %v5434
    %v5451 = vmul.f32 %v5435, %v5435
    %v5452 = vmul.f32 %v5436, %v5436
    %v5453 = vmul.f32 %v5437, %v5437
    %v5454 = vmul.f32 %v5438, %v5438
    %v5455 = vsel %vm1282, %v5439, 0.0
    %5456 = vadd.xlane.f32.xlu0 %v5455
    %v5457 = vpop.xlane.xlu0 %5456
    %v5458 = vsel %vm1282, %v5440, 0.0
    %5459 = vadd.xlane.f32.xlu0 %v5458
    %v5460 = vpop.xlane.xlu0 %5459
    %v5461 = vsel %vm1282, %v5441, 0.0
    %5462 = vadd.xlane.f32.xlu0 %v5461
    %v5463 = vpop.xlane.xlu0 %5462
    %v5464 = vsel %vm1282, %v5442, 0.0
    %5465 = vadd.xlane.f32.xlu0 %v5464
    %v5466 = vpop.xlane.xlu0 %5465
    %v5467 = vsel %vm1282, %v5443, 0.0
    %5468 = vadd.xlane.f32.xlu0 %v5467
    %v5469 = vpop.xlane.xlu0 %5468
    %v5470 = vsel %vm1282, %v5444, 0.0
    %5471 = vadd.xlane.f32.xlu0 %v5470
    %v5472 = vpop.xlane.xlu0 %5471
    %v5473 = vsel %vm1282, %v5445, 0.0
    %5474 = vadd.xlane.f32.xlu0 %v5473
    %v5475 = vpop.xlane.xlu0 %5474
    %v5476 = vsel %vm1282, %v5446, 0.0
    %5477 = vadd.xlane.f32.xlu0 %v5476
    %v5478 = vpop.xlane.xlu0 %5477
    %v5479 = vsel %vm1282, %v5447, 0.0
    %5480 = vadd.xlane.f32.xlu0 %v5479
    %v5481 = vpop.xlane.xlu0 %5480
    %v5482 = vsel %vm1282, %v5448, 0.0
    %5483 = vadd.xlane.f32.xlu0 %v5482
    %v5484 = vpop.xlane.xlu0 %5483
    %v5485 = vsel %vm1282, %v5449, 0.0
    %5486 = vadd.xlane.f32.xlu0 %v5485
    %v5487 = vpop.xlane.xlu0 %5486
    %v5488 = vsel %vm1282, %v5450, 0.0
    %5489 = vadd.xlane.f32.xlu0 %v5488
    %v5490 = vpop.xlane.xlu0 %5489
    %v5491 = vsel %vm1282, %v5451, 0.0
    %5492 = vadd.xlane.f32.xlu0 %v5491
    %v5493 = vpop.xlane.xlu0 %5492
    %v5494 = vsel %vm1282, %v5452, 0.0
    %5495 = vadd.xlane.f32.xlu0 %v5494
    %v5496 = vpop.xlane.xlu0 %5495
    %v5497 = vsel %vm1282, %v5453, 0.0
    %5498 = vadd.xlane.f32.xlu0 %v5497
    %v5499 = vpop.xlane.xlu0 %5498
    %v5500 = vsel %vm1282, %v5454, 0.0
    %5501 = vadd.xlane.f32.xlu0 %v5500
    %v5502 = vpop.xlane.xlu0 %5501
    %v5503 = vmul.f32 %v5457, %v1540
    %v5504 = vmul.f32 %v5460, %v1540
    %v5505 = vmul.f32 %v5463, %v1540
    %v5506 = vmul.f32 %v5466, %v1540
    %v5507 = vmul.f32 %v5469, %v1540
    %v5508 = vmul.f32 %v5472, %v1540
    %v5509 = vmul.f32 %v5475, %v1540
    %v5510 = vmul.f32 %v5478, %v1540
    %v5511 = vmul.f32 %v5481, %v1540
    %v5512 = vmul.f32 %v5484, %v1540
    %v5513 = vmul.f32 %v5487, %v1540
    %v5514 = vmul.f32 %v5490, %v1540
    %v5515 = vmul.f32 %v5493, %v1540
    %v5516 = vmul.f32 %v5496, %v1540
    %v5517 = vmul.f32 %v5499, %v1540
    %v5518 = vmul.f32 %v5502, %v1540
    %v5519 = vadd.f32 %v5503, 1e-05
    %v5520 = vadd.f32 %v5504, 1e-05
    %v5521 = vadd.f32 %v5505, 1e-05
    %v5522 = vadd.f32 %v5506, 1e-05
    %v5523 = vadd.f32 %v5507, 1e-05
    %v5524 = vadd.f32 %v5508, 1e-05
    %v5525 = vadd.f32 %v5509, 1e-05
    %v5526 = vadd.f32 %v5510, 1e-05
    %v5527 = vadd.f32 %v5511, 1e-05
    %v5528 = vadd.f32 %v5512, 1e-05
    %v5529 = vadd.f32 %v5513, 1e-05
    %v5530 = vadd.f32 %v5514, 1e-05
    %v5531 = vadd.f32 %v5515, 1e-05
    %v5532 = vadd.f32 %v5516, 1e-05
    %v5533 = vadd.f32 %v5517, 1e-05
    %v5534 = vadd.f32 %v5518, 1e-05
    %v5535 = vrsqrt.pop %v5519
    %v5536 = vrsqrt.pop %v5520
    %v5537 = vrsqrt.pop %v5521
    %v5538 = vrsqrt.pop %v5522
    %v5539 = vrsqrt.pop %v5523
    %v5540 = vrsqrt.pop %v5524
    %v5541 = vrsqrt.pop %v5525
    %v5542 = vrsqrt.pop %v5526
    %v5543 = vrsqrt.pop %v5527
    %v5544 = vrsqrt.pop %v5528
    %v5545 = vrsqrt.pop %v5529
    %v5546 = vrsqrt.pop %v5530
    %v5547 = vrsqrt.pop %v5531
    %v5548 = vrsqrt.pop %v5532
    %v5549 = vrsqrt.pop %v5533
    %v5550 = vrsqrt.pop %v5534
    %v5551 = vmul.f32 %v5423, %v5535
    %v5552 = vmul.f32 %v5424, %v5536
    %v5553 = vmul.f32 %v5425, %v5537
    %v5554 = vmul.f32 %v5426, %v5538
    %v5555 = vmul.f32 %v5427, %v5539
    %v5556 = vmul.f32 %v5428, %v5540
    %v5557 = vmul.f32 %v5429, %v5541
    %v5558 = vmul.f32 %v5430, %v5542
    %v5559 = vmul.f32 %v5431, %v5543
    %v5560 = vmul.f32 %v5432, %v5544
    %v5561 = vmul.f32 %v5433, %v5545
    %v5562 = vmul.f32 %v5434, %v5546
    %v5563 = vmul.f32 %v5435, %v5547
    %v5564 = vmul.f32 %v5436, %v5548
    %v5565 = vmul.f32 %v5437, %v5549
    %v5566 = vmul.f32 %v5438, %v5550
    %v5567 = vlaneseq
    %v5568 = vshrl.u32 %v5567, 7
    %v5569 = vsub.s32 5, %v5568
    %v5570 = vrot.slane %v41, %v5569
    %v5571 = vmul.f32 %v5551, %v5570
    %v5572 = vmul.f32 %v5552, %v5570
    %v5573 = vmul.f32 %v5553, %v5570
    %v5574 = vmul.f32 %v5554, %v5570
    %v5575 = vmul.f32 %v5555, %v5570
    %v5576 = vmul.f32 %v5556, %v5570
    %v5577 = vmul.f32 %v5557, %v5570
    %v5578 = vmul.f32 %v5558, %v5570
    %v5579 = vmul.f32 %v5559, %v5570
    %v5580 = vmul.f32 %v5560, %v5570
    %v5581 = vmul.f32 %v5561, %v5570
    %v5582 = vmul.f32 %v5562, %v5570
    %v5583 = vmul.f32 %v5563, %v5570
    %v5584 = vmul.f32 %v5564, %v5570
    %v5585 = vmul.f32 %v5565, %v5570
    %v5586 = vmul.f32 %v5566, %v5570
    %v5587 = vlaneseq
    %v5588 = vshrl.u32 %v5587, 7
    %v5589 = vsub.s32 6, %v5588
    %v5590 = vrot.slane %v41, %v5589
    %v5591 = vadd.f32 %v5571, %v5590
    %v5592 = vadd.f32 %v5572, %v5590
    %v5593 = vadd.f32 %v5573, %v5590
    %v5594 = vadd.f32 %v5574, %v5590
    %v5595 = vadd.f32 %v5575, %v5590
    %v5596 = vadd.f32 %v5576, %v5590
    %v5597 = vadd.f32 %v5577, %v5590
    %v5598 = vadd.f32 %v5578, %v5590
    %v5599 = vadd.f32 %v5579, %v5590
    %v5600 = vadd.f32 %v5580, %v5590
    %v5601 = vadd.f32 %v5581, %v5590
    %v5602 = vadd.f32 %v5582, %v5590
    %v5603 = vadd.f32 %v5583, %v5590
    %v5604 = vadd.f32 %v5584, %v5590
    %v5605 = vadd.f32 %v5585, %v5590
    %v5606 = vadd.f32 %v5586, %v5590
    %v5607 = vld [vmem:[#allocation2 + $0x80] sm:$0xff]
    %v5608 = vld [vmem:[#allocation2 + $0x88] sm:$0xff]
    %v5609 = vld [vmem:[#allocation2 + $0x90] sm:$0xff]
    %v5610 = vld [vmem:[#allocation2 + $0x98] sm:$0xff]
    %v5611 = vld [vmem:[#allocation2 + $0xa0] sm:$0xff]
    %v5612 = vld [vmem:[#allocation2 + $0xa8] sm:$0xff]
    %v5613 = vld [vmem:[#allocation2 + $0xb0] sm:$0xff]
    %v5614 = vld [vmem:[#allocation2 + $0xb8] sm:$0xff]
    %v5615 = vld [vmem:[#allocation2 + $0xc0] sm:$0xff]
    %v5616 = vld [vmem:[#allocation2 + $0xc8] sm:$0xff]
    %v5617 = vld [vmem:[#allocation2 + $0xd0] sm:$0xff]
    %v5618 = vld [vmem:[#allocation2 + $0xd8] sm:$0xff]
    %v5619 = vld [vmem:[#allocation2 + $0xe0] sm:$0xff]
    %v5620 = vld [vmem:[#allocation2 + $0xe8] sm:$0xff]
    %v5621 = vld [vmem:[#allocation2 + $0xf0] sm:$0xff]
    %v5622 = vld [vmem:[#allocation2 + $0xf8] sm:$0xff]
    %v5623 = vlaneseq
    %v5624 = vshrl.u32 %v5623, 7
    %v5625 = vsub.s32 7, %v5624
    %v5626 = vrot.slane %v41, %v5625
    %v5627 = vlaneseq
    %v5628 = vshrl.u32 %v5627, 7
    %v5629 = vsub.s32 7, %v5628
    %v5630 = vrot.slane %v42, %v5629
    %v5632 = vsel %vm1282, %v5591, 0
    %v5635 = vsel %vm1282, %v5592, 0
    %v5638 = vsel %vm1282, %v5593, 0
    %v5641 = vsel %vm1282, %v5594, 0
    %v5644 = vsel %vm1282, %v5595, 0
    %v5647 = vsel %vm1282, %v5596, 0
    %v5650 = vsel %vm1282, %v5597, 0
    %v5653 = vsel %vm1282, %v5598, 0
    %v5656 = vsel %vm1282, %v5599, 0
    %v5659 = vsel %vm1282, %v5600, 0
    %v5662 = vsel %vm1282, %v5601, 0
    %v5665 = vsel %vm1282, %v5602, 0
    %v5668 = vsel %vm1282, %v5603, 0
    %v5671 = vsel %vm1282, %v5604, 0
    %v5674 = vsel %vm1282, %v5605, 0
    %v5677 = vsel %vm1282, %v5606, 0
    %5679 = vmatprep.subr.mxu0 0.0
    %5680 = vmatpush1.msra.mxu0 0.0
    %5681 = vmatprep.subr.mxu0 0.0
    %5682 = vmatpush1.msra.mxu0 0.0
    %5683 = vmatprep.subr.mxu0 0.0
    %5684 = vmatpush1.msra.mxu0 0.0
    %5685 = vmatprep.subr.mxu0 0.0
    %5686 = vmatpush1.msra.mxu0 0.0
    %5687 = vmatprep.subr.mxu0 0.0
    %5688 = vmatpush1.msra.mxu0 0.0
    %5689 = vmatprep.subr.mxu0 0.0
    %5690 = vmatpush1.msra.mxu0 0.0
    %5691 = vmatprep.subr.mxu0 0.0
    %5692 = vmatpush1.msra.mxu0 0.0
    %5693 = vmatprep.subr.mxu0 0.0
    %5694 = vmatpush1.msra.mxu0 0.0
    %5695 = vmatprep.subr.mxu0 %v5622
    %5696 = vmatpush1.msra.mxu0 %v5621
    %5697 = vmatprep.subr.mxu0 %v5620
    %5698 = vmatpush1.msra.mxu0 %v5619
    %5699 = vmatprep.subr.mxu0 %v5618
    %5700 = vmatpush1.msra.mxu0 %v5617
    %5701 = vmatprep.subr.mxu0 %v5616
    %5702 = vmatpush1.msra.mxu0 %v5615
    %5703 = vmatprep.subr.mxu0 %v5614
    %5704 = vmatpush1.msra.mxu0 %v5613
    %5705 = vmatprep.subr.mxu0 %v5612
    %5706 = vmatpush1.msra.mxu0 %v5611
    %5707 = vmatprep.subr.mxu0 %v5610
    %5708 = vmatpush1.msra.mxu0 %v5609
    %5709 = vmatprep.subr.mxu0 %v5608
    %5710 = vmatpush1.msra.mxu0 %v5607
    %5711 = vmatprep.subr.mxu0 0.0
    %5712 = vmatpush2.msra.mxu0 0.0
    %5713 = vmatprep.subr.mxu0 0.0
    %5714 = vmatpush2.msra.mxu0 0.0
    %5715 = vmatprep.subr.mxu0 0.0
    %5716 = vmatpush2.msra.mxu0 0.0
    %5717 = vmatprep.subr.mxu0 0.0
    %5718 = vmatpush2.msra.mxu0 0.0
    %5719 = vmatprep.subr.mxu0 0.0
    %5720 = vmatpush2.msra.mxu0 0.0
    %5721 = vmatprep.subr.mxu0 0.0
    %5722 = vmatpush2.msra.mxu0 0.0
    %5723 = vmatprep.subr.mxu0 0.0
    %5724 = vmatpush2.msra.mxu0 0.0
    %5725 = vmatprep.subr.mxu0 0.0
    %5726 = vmatpush2.msra.mxu0 0.0
    %5727 = vmatprep.subr.mxu0 0.0
    %5728 = vmatpush2.msra.mxu0 0.0
    %5729 = vmatprep.subr.mxu0 0.0
    %5730 = vmatpush2.msra.mxu0 0.0
    %5731 = vmatprep.subr.mxu0 0.0
    %5732 = vmatpush2.msra.mxu0 0.0
    %5733 = vmatprep.subr.mxu0 0.0
    %5734 = vmatpush2.msra.mxu0 0.0
    %5735 = vmatprep.subr.mxu0 0.0
    %5736 = vmatpush2.msra.mxu0 0.0
    %5737 = vmatprep.subr.mxu0 0.0
    %5738 = vmatpush2.msra.mxu0 0.0
    %5739 = vmatprep.subr.mxu0 0.0
    %5740 = vmatpush2.msra.mxu0 0.0
    %5741 = vmatprep.subr.mxu0 0.0
    %5742 = vmatpush2.msra.mxu0 0.0
    %5743 = vmatprep.mubr.f32.mxu0 0.0
    %5744 = vmatmul.mubr.f32.gmra.mxu0 %v5632
    %v5745 = vpop.f32.mrf.mxu0
    %v5746 = vadd.f32 %v5626, %v5745
    %v5747 = vpop.f32.mrf.mxu0
    %v5748 = vadd.f32 %v5630, %v5747
    %5749 = vmatprep.mubr.f32.mxu0 0.0
    %5750 = vmatmul.mubr.f32.gmra.mxu0 %v5635
    %v5751 = vpop.f32.mrf.mxu0
    %v5752 = vadd.f32 %v5626, %v5751
    %v5753 = vpop.f32.mrf.mxu0
    %v5754 = vadd.f32 %v5630, %v5753
    %5755 = vmatprep.mubr.f32.mxu0 0.0
    %5756 = vmatmul.mubr.f32.gmra.mxu0 %v5638
    %v5757 = vpop.f32.mrf.mxu0
    %v5758 = vadd.f32 %v5626, %v5757
    %v5759 = vpop.f32.mrf.mxu0
    %v5760 = vadd.f32 %v5630, %v5759
    %5761 = vmatprep.mubr.f32.mxu0 0.0
    %5762 = vmatmul.mubr.f32.gmra.mxu0 %v5641
    %v5763 = vpop.f32.mrf.mxu0
    %v5764 = vadd.f32 %v5626, %v5763
    %v5765 = vpop.f32.mrf.mxu0
    %v5766 = vadd.f32 %v5630, %v5765
    %5767 = vmatprep.mubr.f32.mxu0 0.0
    %5768 = vmatmul.mubr.f32.gmra.mxu0 %v5644
    %v5769 = vpop.f32.mrf.mxu0
    %v5770 = vadd.f32 %v5626, %v5769
    %v5771 = vpop.f32.mrf.mxu0
    %v5772 = vadd.f32 %v5630, %v5771
    %5773 = vmatprep.mubr.f32.mxu0 0.0
    %5774 = vmatmul.mubr.f32.gmra.mxu0 %v5647
    %v5775 = vpop.f32.mrf.mxu0
    %v5776 = vadd.f32 %v5626, %v5775
    %v5777 = vpop.f32.mrf.mxu0
    %v5778 = vadd.f32 %v5630, %v5777
    %5779 = vmatprep.mubr.f32.mxu0 0.0
    %5780 = vmatmul.mubr.f32.gmra.mxu0 %v5650
    %v5781 = vpop.f32.mrf.mxu0
    %v5782 = vadd.f32 %v5626, %v5781
    %v5783 = vpop.f32.mrf.mxu0
    %v5784 = vadd.f32 %v5630, %v5783
    %5785 = vmatprep.mubr.f32.mxu0 0.0
    %5786 = vmatmul.mubr.f32.gmra.mxu0 %v5653
    %v5787 = vpop.f32.mrf.mxu0
    %v5788 = vadd.f32 %v5626, %v5787
    %v5789 = vpop.f32.mrf.mxu0
    %v5790 = vadd.f32 %v5630, %v5789
    %5791 = vmatprep.mubr.f32.mxu0 0.0
    %5792 = vmatmul.mubr.f32.gmra.mxu0 %v5656
    %v5793 = vpop.f32.mrf.mxu0
    %v5794 = vadd.f32 %v5626, %v5793
    %v5795 = vpop.f32.mrf.mxu0
    %v5796 = vadd.f32 %v5630, %v5795
    %5797 = vmatprep.mubr.f32.mxu0 0.0
    %5798 = vmatmul.mubr.f32.gmra.mxu0 %v5659
    %v5799 = vpop.f32.mrf.mxu0
    %v5800 = vadd.f32 %v5626, %v5799
    %v5801 = vpop.f32.mrf.mxu0
    %v5802 = vadd.f32 %v5630, %v5801
    %5803 = vmatprep.mubr.f32.mxu0 0.0
    %5804 = vmatmul.mubr.f32.gmra.mxu0 %v5662
    %v5805 = vpop.f32.mrf.mxu0
    %v5806 = vadd.f32 %v5626, %v5805
    %v5807 = vpop.f32.mrf.mxu0
    %v5808 = vadd.f32 %v5630, %v5807
    %5809 = vmatprep.mubr.f32.mxu0 0.0
    %5810 = vmatmul.mubr.f32.gmra.mxu0 %v5665
    %v5811 = vpop.f32.mrf.mxu0
    %v5812 = vadd.f32 %v5626, %v5811
    %v5813 = vpop.f32.mrf.mxu0
    %v5814 = vadd.f32 %v5630, %v5813
    %5815 = vmatprep.mubr.f32.mxu0 0.0
    %5816 = vmatmul.mubr.f32.gmra.mxu0 %v5668
    %v5817 = vpop.f32.mrf.mxu0
    %v5818 = vadd.f32 %v5626, %v5817
    %v5819 = vpop.f32.mrf.mxu0
    %v5820 = vadd.f32 %v5630, %v5819
    %5821 = vmatprep.mubr.f32.mxu0 0.0
    %5822 = vmatmul.mubr.f32.gmra.mxu0 %v5671
    %v5823 = vpop.f32.mrf.mxu0
    %v5824 = vadd.f32 %v5626, %v5823
    %v5825 = vpop.f32.mrf.mxu0
    %v5826 = vadd.f32 %v5630, %v5825
    %5827 = vmatprep.mubr.f32.mxu0 0.0
    %5828 = vmatmul.mubr.f32.gmra.mxu0 %v5674
    %v5829 = vpop.f32.mrf.mxu0
    %v5830 = vadd.f32 %v5626, %v5829
    %v5831 = vpop.f32.mrf.mxu0
    %v5832 = vadd.f32 %v5630, %v5831
    %5833 = vmatprep.mubr.f32.mxu0 0.0
    %5834 = vmatmul.mubr.f32.gmra.mxu0 %v5677
    %v5835 = vpop.f32.mrf.mxu0
    %v5836 = vadd.f32 %v5626, %v5835
    %v5837 = vpop.f32.mrf.mxu0
    %v5838 = vadd.f32 %v5630, %v5837
    %5839 = vdwg.mxu0
    %v5840 = vmul.f32 %v5746, 0.5
    %v5841 = vmul.f32 %v5748, 0.5
    %v5842 = vmul.f32 %v5752, 0.5
    %v5843 = vmul.f32 %v5754, 0.5
    %v5844 = vmul.f32 %v5758, 0.5
    %v5845 = vmul.f32 %v5760, 0.5
    %v5846 = vmul.f32 %v5764, 0.5
    %v5847 = vmul.f32 %v5766, 0.5
    %v5848 = vmul.f32 %v5770, 0.5
    %v5849 = vmul.f32 %v5772, 0.5
    %v5850 = vmul.f32 %v5776, 0.5
    %v5851 = vmul.f32 %v5778, 0.5
    %v5852 = vmul.f32 %v5782, 0.5
    %v5853 = vmul.f32 %v5784, 0.5
    %v5854 = vmul.f32 %v5788, 0.5
    %v5855 = vmul.f32 %v5790, 0.5
    %v5856 = vmul.f32 %v5794, 0.5
    %v5857 = vmul.f32 %v5796, 0.5
    %v5858 = vmul.f32 %v5800, 0.5
    %v5859 = vmul.f32 %v5802, 0.5
    %v5860 = vmul.f32 %v5806, 0.5
    %v5861 = vmul.f32 %v5808, 0.5
    %v5862 = vmul.f32 %v5812, 0.5
    %v5863 = vmul.f32 %v5814, 0.5
    %v5864 = vmul.f32 %v5818, 0.5
    %v5865 = vmul.f32 %v5820, 0.5
    %v5866 = vmul.f32 %v5824, 0.5
    %v5867 = vmul.f32 %v5826, 0.5
    %v5868 = vmul.f32 %v5830, 0.5
    %v5869 = vmul.f32 %v5832, 0.5
    %v5870 = vmul.f32 %v5836, 0.5
    %v5871 = vmul.f32 %v5838, 0.5
    %v5872 = vmul.f32 %v5746, 0.044715
    %v5873 = vmul.f32 %v5748, 0.044715
    %v5874 = vmul.f32 %v5752, 0.044715
    %v5875 = vmul.f32 %v5754, 0.044715
    %v5876 = vmul.f32 %v5758, 0.044715
    %v5877 = vmul.f32 %v5760, 0.044715
    %v5878 = vmul.f32 %v5764, 0.044715
    %v5879 = vmul.f32 %v5766, 0.044715
    %v5880 = vmul.f32 %v5770, 0.044715
    %v5881 = vmul.f32 %v5772, 0.044715
    %v5882 = vmul.f32 %v5776, 0.044715
    %v5883 = vmul.f32 %v5778, 0.044715
    %v5884 = vmul.f32 %v5782, 0.044715
    %v5885 = vmul.f32 %v5784, 0.044715
    %v5886 = vmul.f32 %v5788, 0.044715
    %v5887 = vmul.f32 %v5790, 0.044715
    %v5888 = vmul.f32 %v5794, 0.044715
    %v5889 = vmul.f32 %v5796, 0.044715
    %v5890 = vmul.f32 %v5800, 0.044715
    %v5891 = vmul.f32 %v5802, 0.044715
    %v5892 = vmul.f32 %v5806, 0.044715
    %v5893 = vmul.f32 %v5808, 0.044715
    %v5894 = vmul.f32 %v5812, 0.044715
    %v5895 = vmul.f32 %v5814, 0.044715
    %v5896 = vmul.f32 %v5818, 0.044715
    %v5897 = vmul.f32 %v5820, 0.044715
    %v5898 = vmul.f32 %v5824, 0.044715
    %v5899 = vmul.f32 %v5826, 0.044715
    %v5900 = vmul.f32 %v5830, 0.044715
    %v5901 = vmul.f32 %v5832, 0.044715
    %v5902 = vmul.f32 %v5836, 0.044715
    %v5903 = vmul.f32 %v5838, 0.044715
    %v5904 = vmul.f32 %v5872, %v5746
    %v5905 = vmul.f32 %v5873, %v5748
    %v5906 = vmul.f32 %v5874, %v5752
    %v5907 = vmul.f32 %v5875, %v5754
    %v5908 = vmul.f32 %v5876, %v5758
    %v5909 = vmul.f32 %v5877, %v5760
    %v5910 = vmul.f32 %v5878, %v5764
    %v5911 = vmul.f32 %v5879, %v5766
    %v5912 = vmul.f32 %v5880, %v5770
    %v5913 = vmul.f32 %v5881, %v5772
    %v5914 = vmul.f32 %v5882, %v5776
    %v5915 = vmul.f32 %v5883, %v5778
    %v5916 = vmul.f32 %v5884, %v5782
    %v5917 = vmul.f32 %v5885, %v5784
    %v5918 = vmul.f32 %v5886, %v5788
    %v5919 = vmul.f32 %v5887, %v5790
    %v5920 = vmul.f32 %v5888, %v5794
    %v5921 = vmul.f32 %v5889, %v5796
    %v5922 = vmul.f32 %v5890, %v5800
    %v5923 = vmul.f32 %v5891, %v5802
    %v5924 = vmul.f32 %v5892, %v5806
    %v5925 = vmul.f32 %v5893, %v5808
    %v5926 = vmul.f32 %v5894, %v5812
    %v5927 = vmul.f32 %v5895, %v5814
    %v5928 = vmul.f32 %v5896, %v5818
    %v5929 = vmul.f32 %v5897, %v5820
    %v5930 = vmul.f32 %v5898, %v5824
    %v5931 = vmul.f32 %v5899, %v5826
    %v5932 = vmul.f32 %v5900, %v5830
    %v5933 = vmul.f32 %v5901, %v5832
    %v5934 = vmul.f32 %v5902, %v5836
    %v5935 = vmul.f32 %v5903, %v5838
    %v5936 = vmul.f32 %v5904, %v5746
    %v5937 = vmul.f32 %v5905, %v5748
    %v5938 = vmul.f32 %v5906, %v5752
    %v5939 = vmul.f32 %v5907, %v5754
    %v5940 = vmul.f32 %v5908, %v5758
    %v5941 = vmul.f32 %v5909, %v5760
    %v5942 = vmul.f32 %v5910, %v5764
    %v5943 = vmul.f32 %v5911, %v5766
    %v5944 = vmul.f32 %v5912, %v5770
    %v5945 = vmul.f32 %v5913, %v5772
    %v5946 = vmul.f32 %v5914, %v5776
    %v5947 = vmul.f32 %v5915, %v5778
    %v5948 = vmul.f32 %v5916, %v5782
    %v5949 = vmul.f32 %v5917, %v5784
    %v5950 = vmul.f32 %v5918, %v5788
    %v5951 = vmul.f32 %v5919, %v5790
    %v5952 = vmul.f32 %v5920, %v5794
    %v5953 = vmul.f32 %v5921, %v5796
    %v5954 = vmul.f32 %v5922, %v5800
    %v5955 = vmul.f32 %v5923, %v5802
    %v5956 = vmul.f32 %v5924, %v5806
    %v5957 = vmul.f32 %v5925, %v5808
    %v5958 = vmul.f32 %v5926, %v5812
    %v5959 = vmul.f32 %v5927, %v5814
    %v5960 = vmul.f32 %v5928, %v5818
    %v5961 = vmul.f32 %v5929, %v5820
    %v5962 = vmul.f32 %v5930, %v5824
    %v5963 = vmul.f32 %v5931, %v5826
    %v5964 = vmul.f32 %v5932, %v5830
    %v5965 = vmul.f32 %v5933, %v5832
    %v5966 = vmul.f32 %v5934, %v5836
    %v5967 = vmul.f32 %v5935, %v5838
    %v5968 = vadd.f32 %v5746, %v5936
    %v5969 = vadd.f32 %v5748, %v5937
    %v5970 = vadd.f32 %v5752, %v5938
    %v5971 = vadd.f32 %v5754, %v5939
    %v5972 = vadd.f32 %v5758, %v5940
    %v5973 = vadd.f32 %v5760, %v5941
    %v5974 = vadd.f32 %v5764, %v5942
    %v5975 = vadd.f32 %v5766, %v5943
    %v5976 = vadd.f32 %v5770, %v5944
    %v5977 = vadd.f32 %v5772, %v5945
    %v5978 = vadd.f32 %v5776, %v5946
    %v5979 = vadd.f32 %v5778, %v5947
    %v5980 = vadd.f32 %v5782, %v5948
    %v5981 = vadd.f32 %v5784, %v5949
    %v5982 = vadd.f32 %v5788, %v5950
    %v5983 = vadd.f32 %v5790, %v5951
    %v5984 = vadd.f32 %v5794, %v5952
    %v5985 = vadd.f32 %v5796, %v5953
    %v5986 = vadd.f32 %v5800, %v5954
    %v5987 = vadd.f32 %v5802, %v5955
    %v5988 = vadd.f32 %v5806, %v5956
    %v5989 = vadd.f32 %v5808, %v5957
    %v5990 = vadd.f32 %v5812, %v5958
    %v5991 = vadd.f32 %v5814, %v5959
    %v5992 = vadd.f32 %v5818, %v5960
    %v5993 = vadd.f32 %v5820, %v5961
    %v5994 = vadd.f32 %v5824, %v5962
    %v5995 = vadd.f32 %v5826, %v5963
    %v5996 = vadd.f32 %v5830, %v5964
    %v5997 = vadd.f32 %v5832, %v5965
    %v5998 = vadd.f32 %v5836, %v5966
    %v5999 = vadd.f32 %v5838, %v5967
    %v6000 = vmul.f32 %v5968, 0.7978846
    %v6001 = vmul.f32 %v5969, 0.7978846
    %v6002 = vmul.f32 %v5970, 0.7978846
    %v6003 = vmul.f32 %v5971, 0.7978846
    %v6004 = vmul.f32 %v5972, 0.7978846
    %v6005 = vmul.f32 %v5973, 0.7978846
    %v6006 = vmul.f32 %v5974, 0.7978846
    %v6007 = vmul.f32 %v5975, 0.7978846
    %v6008 = vmul.f32 %v5976, 0.7978846
    %v6009 = vmul.f32 %v5977, 0.7978846
    %v6010 = vmul.f32 %v5978, 0.7978846
    %v6011 = vmul.f32 %v5979, 0.7978846
    %v6012 = vmul.f32 %v5980, 0.7978846
    %v6013 = vmul.f32 %v5981, 0.7978846
    %v6014 = vmul.f32 %v5982, 0.7978846
    %v6015 = vmul.f32 %v5983, 0.7978846
    %v6016 = vmul.f32 %v5984, 0.7978846
    %v6017 = vmul.f32 %v5985, 0.7978846
    %v6018 = vmul.f32 %v5986, 0.7978846
    %v6019 = vmul.f32 %v5987, 0.7978846
    %v6020 = vmul.f32 %v5988, 0.7978846
    %v6021 = vmul.f32 %v5989, 0.7978846
    %v6022 = vmul.f32 %v5990, 0.7978846
    %v6023 = vmul.f32 %v5991, 0.7978846
    %v6024 = vmul.f32 %v5992, 0.7978846
    %v6025 = vmul.f32 %v5993, 0.7978846
    %v6026 = vmul.f32 %v5994, 0.7978846
    %v6027 = vmul.f32 %v5995, 0.7978846
    %v6028 = vmul.f32 %v5996, 0.7978846
    %v6029 = vmul.f32 %v5997, 0.7978846
    %v6030 = vmul.f32 %v5998, 0.7978846
    %v6031 = vmul.f32 %v5999, 0.7978846
    %v6032 = vtanh.pop %v6000
    %v6033 = vtanh.pop %v6001
    %v6034 = vtanh.pop %v6002
    %v6035 = vtanh.pop %v6003
    %v6036 = vtanh.pop %v6004
    %v6037 = vtanh.pop %v6005
    %v6038 = vtanh.pop %v6006
    %v6039 = vtanh.pop %v6007
    %v6040 = vtanh.pop %v6008
    %v6041 = vtanh.pop %v6009
    %v6042 = vtanh.pop %v6010
    %v6043 = vtanh.pop %v6011
    %v6044 = vtanh.pop %v6012
    %v6045 = vtanh.pop %v6013
    %v6046 = vtanh.pop %v6014
    %v6047 = vtanh.pop %v6015
    %v6048 = vtanh.pop %v6016
    %v6049 = vtanh.pop %v6017
    %v6050 = vtanh.pop %v6018
    %v6051 = vtanh.pop %v6019
    %v6052 = vtanh.pop %v6020
    %v6053 = vtanh.pop %v6021
    %v6054 = vtanh.pop %v6022
    %v6055 = vtanh.pop %v6023
    %v6056 = vtanh.pop %v6024
    %v6057 = vtanh.pop %v6025
    %v6058 = vtanh.pop %v6026
    %v6059 = vtanh.pop %v6027
    %v6060 = vtanh.pop %v6028
    %v6061 = vtanh.pop %v6029
    %v6062 = vtanh.pop %v6030
    %v6063 = vtanh.pop %v6031
    %v6064 = vadd.f32 %v6032, 1.0
    %v6065 = vadd.f32 %v6033, 1.0
    %v6066 = vadd.f32 %v6034, 1.0
    %v6067 = vadd.f32 %v6035, 1.0
    %v6068 = vadd.f32 %v6036, 1.0
    %v6069 = vadd.f32 %v6037, 1.0
    %v6070 = vadd.f32 %v6038, 1.0
    %v6071 = vadd.f32 %v6039, 1.0
    %v6072 = vadd.f32 %v6040, 1.0
    %v6073 = vadd.f32 %v6041, 1.0
    %v6074 = vadd.f32 %v6042, 1.0
    %v6075 = vadd.f32 %v6043, 1.0
    %v6076 = vadd.f32 %v6044, 1.0
    %v6077 = vadd.f32 %v6045, 1.0
    %v6078 = vadd.f32 %v6046, 1.0
    %v6079 = vadd.f32 %v6047, 1.0
    %v6080 = vadd.f32 %v6048, 1.0
    %v6081 = vadd.f32 %v6049, 1.0
    %v6082 = vadd.f32 %v6050, 1.0
    %v6083 = vadd.f32 %v6051, 1.0
    %v6084 = vadd.f32 %v6052, 1.0
    %v6085 = vadd.f32 %v6053, 1.0
    %v6086 = vadd.f32 %v6054, 1.0
    %v6087 = vadd.f32 %v6055, 1.0
    %v6088 = vadd.f32 %v6056, 1.0
    %v6089 = vadd.f32 %v6057, 1.0
    %v6090 = vadd.f32 %v6058, 1.0
    %v6091 = vadd.f32 %v6059, 1.0
    %v6092 = vadd.f32 %v6060, 1.0
    %v6093 = vadd.f32 %v6061, 1.0
    %v6094 = vadd.f32 %v6062, 1.0
    %v6095 = vadd.f32 %v6063, 1.0
    %v6096 = vmul.f32 %v5840, %v6064
    %v6097 = vmul.f32 %v5841, %v6065
    %v6098 = vmul.f32 %v5842, %v6066
    %v6099 = vmul.f32 %v5843, %v6067
    %v6100 = vmul.f32 %v5844, %v6068
    %v6101 = vmul.f32 %v5845, %v6069
    %v6102 = vmul.f32 %v5846, %v6070
    %v6103 = vmul.f32 %v5847, %v6071
    %v6104 = vmul.f32 %v5848, %v6072
    %v6105 = vmul.f32 %v5849, %v6073
    %v6106 = vmul.f32 %v5850, %v6074
    %v6107 = vmul.f32 %v5851, %v6075
    %v6108 = vmul.f32 %v5852, %v6076
    %v6109 = vmul.f32 %v5853, %v6077
    %v6110 = vmul.f32 %v5854, %v6078
    %v6111 = vmul.f32 %v5855, %v6079
    %v6112 = vmul.f32 %v5856, %v6080
    %v6113 = vmul.f32 %v5857, %v6081
    %v6114 = vmul.f32 %v5858, %v6082
    %v6115 = vmul.f32 %v5859, %v6083
    %v6116 = vmul.f32 %v5860, %v6084
    %v6117 = vmul.f32 %v5861, %v6085
    %v6118 = vmul.f32 %v5862, %v6086
    %v6119 = vmul.f32 %v5863, %v6087
    %v6120 = vmul.f32 %v5864, %v6088
    %v6121 = vmul.f32 %v5865, %v6089
    %v6122 = vmul.f32 %v5866, %v6090
    %v6123 = vmul.f32 %v5867, %v6091
    %v6124 = vmul.f32 %v5868, %v6092
    %v6125 = vmul.f32 %v5869, %v6093
    %v6126 = vmul.f32 %v5870, %v6094
    %v6127 = vmul.f32 %v5871, %v6095
    %v6128 = vld [vmem:[%s3 + $0x340] sm:$0xff]
    %v6129 = vld [vmem:[%s3 + $0x348] sm:$0xff]
    %v6130 = vld [vmem:[%s3 + $0x350] sm:$0xff]
    %v6131 = vld [vmem:[%s3 + $0x358] sm:$0xff]
    %v6132 = vld [vmem:[%s3 + $0x360] sm:$0xff]
    %v6133 = vld [vmem:[%s3 + $0x368] sm:$0xff]
    %v6134 = vld [vmem:[%s3 + $0x370] sm:$0xff]
    %v6135 = vld [vmem:[%s3 + $0x378] sm:$0xff]
    %v6136 = vld [vmem:[%s3 + $0x380] sm:$0xff]
    %v6137 = vld [vmem:[%s3 + $0x388] sm:$0xff]
    %v6138 = vld [vmem:[%s3 + $0x390] sm:$0xff]
    %v6139 = vld [vmem:[%s3 + $0x398] sm:$0xff]
    %v6140 = vld [vmem:[%s3 + $0x3a0] sm:$0xff]
    %v6141 = vld [vmem:[%s3 + $0x3a8] sm:$0xff]
    %v6142 = vld [vmem:[%s3 + $0x3b0] sm:$0xff]
    %v6143 = vld [vmem:[%s3 + $0x3b8] sm:$0xff]
    %v6144 = vld [vmem:[%s3 + $0x3c0] sm:$0xff]
    %v6145 = vld [vmem:[%s3 + $0x3c8] sm:$0xff]
    %v6146 = vld [vmem:[%s3 + $0x3d0] sm:$0xff]
    %v6147 = vld [vmem:[%s3 + $0x3d8] sm:$0xff]
    %v6148 = vld [vmem:[%s3 + $0x3e0] sm:$0xff]
    %v6149 = vld [vmem:[%s3 + $0x3e8] sm:$0xff]
    %v6150 = vld [vmem:[%s3 + $0x3f0] sm:$0xff]
    %v6151 = vld [vmem:[%s3 + $0x3f8] sm:$0xff]
    %v6152 = vld [vmem:[%s3 + $0x400] sm:$0xff]
    %v6153 = vld [vmem:[%s3 + $0x408] sm:$0xff]
    %v6154 = vld [vmem:[%s3 + $0x410] sm:$0xff]
    %v6155 = vld [vmem:[%s3 + $0x418] sm:$0xff]
    %v6156 = vld [vmem:[%s3 + $0x420] sm:$0xff]
    %v6157 = vld [vmem:[%s3 + $0x428] sm:$0xff]
    %v6158 = vld [vmem:[%s3 + $0x430] sm:$0xff]
    %v6159 = vld [vmem:[%s3 + $0x438] sm:$0xff]
    %6160 = vmatprep.subr.mxu0 0.0
    %6161 = vmatpush1.msra.mxu0 %v6143
    %6162 = vmatprep.subr.mxu0 0.0
    %6163 = vmatpush1.msra.mxu0 %v6142
    %6164 = vmatprep.subr.mxu0 0.0
    %6165 = vmatpush1.msra.mxu0 %v6141
    %6166 = vmatprep.subr.mxu0 0.0
    %6167 = vmatpush1.msra.mxu0 %v6140
    %6168 = vmatprep.subr.mxu0 0.0
    %6169 = vmatpush1.msra.mxu0 %v6139
    %6170 = vmatprep.subr.mxu0 0.0
    %6171 = vmatpush1.msra.mxu0 %v6138
    %6172 = vmatprep.subr.mxu0 0.0
    %6173 = vmatpush1.msra.mxu0 %v6137
    %6174 = vmatprep.subr.mxu0 0.0
    %6175 = vmatpush1.msra.mxu0 %v6136
    %6176 = vmatprep.subr.mxu0 0.0
    %6177 = vmatpush1.msra.mxu0 %v6135
    %6178 = vmatprep.subr.mxu0 0.0
    %6179 = vmatpush1.msra.mxu0 %v6134
    %6180 = vmatprep.subr.mxu0 0.0
    %6181 = vmatpush1.msra.mxu0 %v6133
    %6182 = vmatprep.subr.mxu0 0.0
    %6183 = vmatpush1.msra.mxu0 %v6132
    %6184 = vmatprep.subr.mxu0 0.0
    %6185 = vmatpush1.msra.mxu0 %v6131
    %6186 = vmatprep.subr.mxu0 0.0
    %6187 = vmatpush1.msra.mxu0 %v6130
    %6188 = vmatprep.subr.mxu0 0.0
    %6189 = vmatpush1.msra.mxu0 %v6129
    %6190 = vmatprep.subr.mxu0 0.0
    %6191 = vmatpush1.msra.mxu0 %v6128
    %6192 = vmatprep.subr.mxu0 0.0
    %6193 = vmatpush2.msra.mxu0 %v6159
    %6194 = vmatprep.subr.mxu0 0.0
    %6195 = vmatpush2.msra.mxu0 %v6158
    %6196 = vmatprep.subr.mxu0 0.0
    %6197 = vmatpush2.msra.mxu0 %v6157
    %6198 = vmatprep.subr.mxu0 0.0
    %6199 = vmatpush2.msra.mxu0 %v6156
    %6200 = vmatprep.subr.mxu0 0.0
    %6201 = vmatpush2.msra.mxu0 %v6155
    %6202 = vmatprep.subr.mxu0 0.0
    %6203 = vmatpush2.msra.mxu0 %v6154
    %6204 = vmatprep.subr.mxu0 0.0
    %6205 = vmatpush2.msra.mxu0 %v6153
    %6206 = vmatprep.subr.mxu0 0.0
    %6207 = vmatpush2.msra.mxu0 %v6152
    %6208 = vmatprep.subr.mxu0 0.0
    %6209 = vmatpush2.msra.mxu0 %v6151
    %6210 = vmatprep.subr.mxu0 0.0
    %6211 = vmatpush2.msra.mxu0 %v6150
    %6212 = vmatprep.subr.mxu0 0.0
    %6213 = vmatpush2.msra.mxu0 %v6149
    %6214 = vmatprep.subr.mxu0 0.0
    %6215 = vmatpush2.msra.mxu0 %v6148
    %6216 = vmatprep.subr.mxu0 0.0
    %6217 = vmatpush2.msra.mxu0 %v6147
    %6218 = vmatprep.subr.mxu0 0.0
    %6219 = vmatpush2.msra.mxu0 %v6146
    %6220 = vmatprep.subr.mxu0 0.0
    %6221 = vmatpush2.msra.mxu0 %v6145
    %6222 = vmatprep.subr.mxu0 0.0
    %6223 = vmatpush2.msra.mxu0 %v6144
    %6224 = vmatprep.mubr.f32.mxu0 %v6097
    %6225 = vmatmul.mubr.f32.gmra.mxu0 %v6096
    %v6226 = vpop.f32.mrf.mxu0
    %v6227 = vadd.f32 0.0, %v6226
    %v6228 = vpop.f32.mrf.mxu0
    %6229 = vmatprep.mubr.f32.mxu0 %v6099
    %6230 = vmatmul.mubr.f32.gmra.mxu0 %v6098
    %v6231 = vpop.f32.mrf.mxu0
    %v6232 = vadd.f32 0.0, %v6231
    %v6233 = vpop.f32.mrf.mxu0
    %6234 = vmatprep.mubr.f32.mxu0 %v6101
    %6235 = vmatmul.mubr.f32.gmra.mxu0 %v6100
    %v6236 = vpop.f32.mrf.mxu0
    %v6237 = vadd.f32 0.0, %v6236
    %v6238 = vpop.f32.mrf.mxu0
    %6239 = vmatprep.mubr.f32.mxu0 %v6103
    %6240 = vmatmul.mubr.f32.gmra.mxu0 %v6102
    %v6241 = vpop.f32.mrf.mxu0
    %v6242 = vadd.f32 0.0, %v6241
    %v6243 = vpop.f32.mrf.mxu0
    %6244 = vmatprep.mubr.f32.mxu0 %v6105
    %6245 = vmatmul.mubr.f32.gmra.mxu0 %v6104
    %v6246 = vpop.f32.mrf.mxu0
    %v6247 = vadd.f32 0.0, %v6246
    %v6248 = vpop.f32.mrf.mxu0
    %6249 = vmatprep.mubr.f32.mxu0 %v6107
    %6250 = vmatmul.mubr.f32.gmra.mxu0 %v6106
    %v6251 = vpop.f32.mrf.mxu0
    %v6252 = vadd.f32 0.0, %v6251
    %v6253 = vpop.f32.mrf.mxu0
    %6254 = vmatprep.mubr.f32.mxu0 %v6109
    %6255 = vmatmul.mubr.f32.gmra.mxu0 %v6108
    %v6256 = vpop.f32.mrf.mxu0
    %v6257 = vadd.f32 0.0, %v6256
    %v6258 = vpop.f32.mrf.mxu0
    %6259 = vmatprep.mubr.f32.mxu0 %v6111
    %6260 = vmatmul.mubr.f32.gmra.mxu0 %v6110
    %v6261 = vpop.f32.mrf.mxu0
    %v6262 = vadd.f32 0.0, %v6261
    %v6263 = vpop.f32.mrf.mxu0
    %6264 = vmatprep.mubr.f32.mxu0 %v6113
    %6265 = vmatmul.mubr.f32.gmra.mxu0 %v6112
    %v6266 = vpop.f32.mrf.mxu0
    %v6267 = vadd.f32 0.0, %v6266
    %v6268 = vpop.f32.mrf.mxu0
    %6269 = vmatprep.mubr.f32.mxu0 %v6115
    %6270 = vmatmul.mubr.f32.gmra.mxu0 %v6114
    %v6271 = vpop.f32.mrf.mxu0
    %v6272 = vadd.f32 0.0, %v6271
    %v6273 = vpop.f32.mrf.mxu0
    %6274 = vmatprep.mubr.f32.mxu0 %v6117
    %6275 = vmatmul.mubr.f32.gmra.mxu0 %v6116
    %v6276 = vpop.f32.mrf.mxu0
    %v6277 = vadd.f32 0.0, %v6276
    %v6278 = vpop.f32.mrf.mxu0
    %6279 = vmatprep.mubr.f32.mxu0 %v6119
    %6280 = vmatmul.mubr.f32.gmra.mxu0 %v6118
    %v6281 = vpop.f32.mrf.mxu0
    %v6282 = vadd.f32 0.0, %v6281
    %v6283 = vpop.f32.mrf.mxu0
    %6284 = vmatprep.mubr.f32.mxu0 %v6121
    %6285 = vmatmul.mubr.f32.gmra.mxu0 %v6120
    %v6286 = vpop.f32.mrf.mxu0
    %v6287 = vadd.f32 0.0, %v6286
    %v6288 = vpop.f32.mrf.mxu0
    %6289 = vmatprep.mubr.f32.mxu0 %v6123
    %6290 = vmatmul.mubr.f32.gmra.mxu0 %v6122
    %v6291 = vpop.f32.mrf.mxu0
    %v6292 = vadd.f32 0.0, %v6291
    %v6293 = vpop.f32.mrf.mxu0
    %6294 = vmatprep.mubr.f32.mxu0 %v6125
    %6295 = vmatmul.mubr.f32.gmra.mxu0 %v6124
    %v6296 = vpop.f32.mrf.mxu0
    %v6297 = vadd.f32 0.0, %v6296
    %v6298 = vpop.f32.mrf.mxu0
    %6299 = vmatprep.mubr.f32.mxu0 %v6127
    %6300 = vmatmul.mubr.f32.gmra.mxu0 %v6126
    %v6301 = vpop.f32.mrf.mxu0
    %v6302 = vadd.f32 0.0, %v6301
    %v6303 = vpop.f32.mrf.mxu0
    %6304 = vdwg.mxu0
    %v6305 = vadd.f32 %v5343, %v6227
    %v6306 = vadd.f32 %v5344, %v6232
    %v6307 = vadd.f32 %v5345, %v6237
    %v6308 = vadd.f32 %v5346, %v6242
    %v6309 = vadd.f32 %v5347, %v6247
    %v6310 = vadd.f32 %v5348, %v6252
    %v6311 = vadd.f32 %v5349, %v6257
    %v6312 = vadd.f32 %v5350, %v6262
    %v6313 = vadd.f32 %v5351, %v6267
    %v6314 = vadd.f32 %v5352, %v6272
    %v6315 = vadd.f32 %v5353, %v6277
    %v6316 = vadd.f32 %v5354, %v6282
    %v6317 = vadd.f32 %v5355, %v6287
    %v6318 = vadd.f32 %v5356, %v6292
    %v6319 = vadd.f32 %v5357, %v6297
    %v6320 = vadd.f32 %v5358, %v6302
    %v6321 = vlaneseq
    %v6322 = vshrl.u32 %v6321, 7
    %v6323 = vsub.s32 0, %v6322
    %v6324 = vrot.slane %v43, %v6323
    %v6325 = vadd.f32 %v6305, %v6324
    %v6326 = vadd.f32 %v6306, %v6324
    %v6327 = vadd.f32 %v6307, %v6324
    %v6328 = vadd.f32 %v6308, %v6324
    %v6329 = vadd.f32 %v6309, %v6324
    %v6330 = vadd.f32 %v6310, %v6324
    %v6331 = vadd.f32 %v6311, %v6324
    %v6332 = vadd.f32 %v6312, %v6324
    %v6333 = vadd.f32 %v6313, %v6324
    %v6334 = vadd.f32 %v6314, %v6324
    %v6335 = vadd.f32 %v6315, %v6324
    %v6336 = vadd.f32 %v6316, %v6324
    %v6337 = vadd.f32 %v6317, %v6324
    %v6338 = vadd.f32 %v6318, %v6324
    %v6339 = vadd.f32 %v6319, %v6324
    %v6340 = vadd.f32 %v6320, %v6324
    %v6341 = vsel %vm1282, %v6325, 0.0
    %6342 = vadd.xlane.f32.xlu0 %v6341
    %v6343 = vpop.xlane.xlu0 %6342
    %v6344 = vsel %vm1282, %v6326, 0.0
    %6345 = vadd.xlane.f32.xlu0 %v6344
    %v6346 = vpop.xlane.xlu0 %6345
    %v6347 = vsel %vm1282, %v6327, 0.0
    %6348 = vadd.xlane.f32.xlu0 %v6347
    %v6349 = vpop.xlane.xlu0 %6348
    %v6350 = vsel %vm1282, %v6328, 0.0
    %6351 = vadd.xlane.f32.xlu0 %v6350
    %v6352 = vpop.xlane.xlu0 %6351
    %v6353 = vsel %vm1282, %v6329, 0.0
    %6354 = vadd.xlane.f32.xlu0 %v6353
    %v6355 = vpop.xlane.xlu0 %6354
    %v6356 = vsel %vm1282, %v6330, 0.0
    %6357 = vadd.xlane.f32.xlu0 %v6356
    %v6358 = vpop.xlane.xlu0 %6357
    %v6359 = vsel %vm1282, %v6331, 0.0
    %6360 = vadd.xlane.f32.xlu0 %v6359
    %v6361 = vpop.xlane.xlu0 %6360
    %v6362 = vsel %vm1282, %v6332, 0.0
    %6363 = vadd.xlane.f32.xlu0 %v6362
    %v6364 = vpop.xlane.xlu0 %6363
    %v6365 = vsel %vm1282, %v6333, 0.0
    %6366 = vadd.xlane.f32.xlu0 %v6365
    %v6367 = vpop.xlane.xlu0 %6366
    %v6368 = vsel %vm1282, %v6334, 0.0
    %6369 = vadd.xlane.f32.xlu0 %v6368
    %v6370 = vpop.xlane.xlu0 %6369
    %v6371 = vsel %vm1282, %v6335, 0.0
    %6372 = vadd.xlane.f32.xlu0 %v6371
    %v6373 = vpop.xlane.xlu0 %6372
    %v6374 = vsel %vm1282, %v6336, 0.0
    %6375 = vadd.xlane.f32.xlu0 %v6374
    %v6376 = vpop.xlane.xlu0 %6375
    %v6377 = vsel %vm1282, %v6337, 0.0
    %6378 = vadd.xlane.f32.xlu0 %v6377
    %v6379 = vpop.xlane.xlu0 %6378
    %v6380 = vsel %vm1282, %v6338, 0.0
    %6381 = vadd.xlane.f32.xlu0 %v6380
    %v6382 = vpop.xlane.xlu0 %6381
    %v6383 = vsel %vm1282, %v6339, 0.0
    %6384 = vadd.xlane.f32.xlu0 %v6383
    %v6385 = vpop.xlane.xlu0 %6384
    %v6386 = vsel %vm1282, %v6340, 0.0
    %6387 = vadd.xlane.f32.xlu0 %v6386
    %v6388 = vpop.xlane.xlu0 %6387
    %v6389 = vmul.f32 %v6343, %v1540
    %v6390 = vmul.f32 %v6346, %v1540
    %v6391 = vmul.f32 %v6349, %v1540
    %v6392 = vmul.f32 %v6352, %v1540
    %v6393 = vmul.f32 %v6355, %v1540
    %v6394 = vmul.f32 %v6358, %v1540
    %v6395 = vmul.f32 %v6361, %v1540
    %v6396 = vmul.f32 %v6364, %v1540
    %v6397 = vmul.f32 %v6367, %v1540
    %v6398 = vmul.f32 %v6370, %v1540
    %v6399 = vmul.f32 %v6373, %v1540
    %v6400 = vmul.f32 %v6376, %v1540
    %v6401 = vmul.f32 %v6379, %v1540
    %v6402 = vmul.f32 %v6382, %v1540
    %v6403 = vmul.f32 %v6385, %v1540
    %v6404 = vmul.f32 %v6388, %v1540
    %v6405 = vsub.f32 %v6325, %v6389
    %v6406 = vsub.f32 %v6326, %v6390
    %v6407 = vsub.f32 %v6327, %v6391
    %v6408 = vsub.f32 %v6328, %v6392
    %v6409 = vsub.f32 %v6329, %v6393
    %v6410 = vsub.f32 %v6330, %v6394
    %v6411 = vsub.f32 %v6331, %v6395
    %v6412 = vsub.f32 %v6332, %v6396
    %v6413 = vsub.f32 %v6333, %v6397
    %v6414 = vsub.f32 %v6334, %v6398
    %v6415 = vsub.f32 %v6335, %v6399
    %v6416 = vsub.f32 %v6336, %v6400
    %v6417 = vsub.f32 %v6337, %v6401
    %v6418 = vsub.f32 %v6338, %v6402
    %v6419 = vsub.f32 %v6339, %v6403
    %v6420 = vsub.f32 %v6340, %v6404
    %v6421 = vmul.f32 %v6405, %v6405
    %v6422 = vmul.f32 %v6406, %v6406
    %v6423 = vmul.f32 %v6407, %v6407
    %v6424 = vmul.f32 %v6408, %v6408
    %v6425 = vmul.f32 %v6409, %v6409
    %v6426 = vmul.f32 %v6410, %v6410
    %v6427 = vmul.f32 %v6411, %v6411
    %v6428 = vmul.f32 %v6412, %v6412
    %v6429 = vmul.f32 %v6413, %v6413
    %v6430 = vmul.f32 %v6414, %v6414
    %v6431 = vmul.f32 %v6415, %v6415
    %v6432 = vmul.f32 %v6416, %v6416
    %v6433 = vmul.f32 %v6417, %v6417
    %v6434 = vmul.f32 %v6418, %v6418
    %v6435 = vmul.f32 %v6419, %v6419
    %v6436 = vmul.f32 %v6420, %v6420
    %v6437 = vsel %vm1282, %v6421, 0.0
    %6438 = vadd.xlane.f32.xlu0 %v6437
    %v6439 = vpop.xlane.xlu0 %6438
    %v6440 = vsel %vm1282, %v6422, 0.0
    %6441 = vadd.xlane.f32.xlu0 %v6440
    %v6442 = vpop.xlane.xlu0 %6441
    %v6443 = vsel %vm1282, %v6423, 0.0
    %6444 = vadd.xlane.f32.xlu0 %v6443
    %v6445 = vpop.xlane.xlu0 %6444
    %v6446 = vsel %vm1282, %v6424, 0.0
    %6447 = vadd.xlane.f32.xlu0 %v6446
    %v6448 = vpop.xlane.xlu0 %6447
    %v6449 = vsel %vm1282, %v6425, 0.0
    %6450 = vadd.xlane.f32.xlu0 %v6449
    %v6451 = vpop.xlane.xlu0 %6450
    %v6452 = vsel %vm1282, %v6426, 0.0
    %6453 = vadd.xlane.f32.xlu0 %v6452
    %v6454 = vpop.xlane.xlu0 %6453
    %v6455 = vsel %vm1282, %v6427, 0.0
    %6456 = vadd.xlane.f32.xlu0 %v6455
    %v6457 = vpop.xlane.xlu0 %6456
    %v6458 = vsel %vm1282, %v6428, 0.0
    %6459 = vadd.xlane.f32.xlu0 %v6458
    %v6460 = vpop.xlane.xlu0 %6459
    %v6461 = vsel %vm1282, %v6429, 0.0
    %6462 = vadd.xlane.f32.xlu0 %v6461
    %v6463 = vpop.xlane.xlu0 %6462
    %v6464 = vsel %vm1282, %v6430, 0.0
    %6465 = vadd.xlane.f32.xlu0 %v6464
    %v6466 = vpop.xlane.xlu0 %6465
    %v6467 = vsel %vm1282, %v6431, 0.0
    %6468 = vadd.xlane.f32.xlu0 %v6467
    %v6469 = vpop.xlane.xlu0 %6468
    %v6470 = vsel %vm1282, %v6432, 0.0
    %6471 = vadd.xlane.f32.xlu0 %v6470
    %v6472 = vpop.xlane.xlu0 %6471
    %v6473 = vsel %vm1282, %v6433, 0.0
    %6474 = vadd.xlane.f32.xlu0 %v6473
    %v6475 = vpop.xlane.xlu0 %6474
    %v6476 = vsel %vm1282, %v6434, 0.0
    %6477 = vadd.xlane.f32.xlu0 %v6476
    %v6478 = vpop.xlane.xlu0 %6477
    %v6479 = vsel %vm1282, %v6435, 0.0
    %6480 = vadd.xlane.f32.xlu0 %v6479
    %v6481 = vpop.xlane.xlu0 %6480
    %v6482 = vsel %vm1282, %v6436, 0.0
    %6483 = vadd.xlane.f32.xlu0 %v6482
    %v6484 = vpop.xlane.xlu0 %6483
    %v6485 = vmul.f32 %v6439, %v1540
    %v6486 = vmul.f32 %v6442, %v1540
    %v6487 = vmul.f32 %v6445, %v1540
    %v6488 = vmul.f32 %v6448, %v1540
    %v6489 = vmul.f32 %v6451, %v1540
    %v6490 = vmul.f32 %v6454, %v1540
    %v6491 = vmul.f32 %v6457, %v1540
    %v6492 = vmul.f32 %v6460, %v1540
    %v6493 = vmul.f32 %v6463, %v1540
    %v6494 = vmul.f32 %v6466, %v1540
    %v6495 = vmul.f32 %v6469, %v1540
    %v6496 = vmul.f32 %v6472, %v1540
    %v6497 = vmul.f32 %v6475, %v1540
    %v6498 = vmul.f32 %v6478, %v1540
    %v6499 = vmul.f32 %v6481, %v1540
    %v6500 = vmul.f32 %v6484, %v1540
    %v6501 = vadd.f32 %v6485, 1e-05
    %v6502 = vadd.f32 %v6486, 1e-05
    %v6503 = vadd.f32 %v6487, 1e-05
    %v6504 = vadd.f32 %v6488, 1e-05
    %v6505 = vadd.f32 %v6489, 1e-05
    %v6506 = vadd.f32 %v6490, 1e-05
    %v6507 = vadd.f32 %v6491, 1e-05
    %v6508 = vadd.f32 %v6492, 1e-05
    %v6509 = vadd.f32 %v6493, 1e-05
    %v6510 = vadd.f32 %v6494, 1e-05
    %v6511 = vadd.f32 %v6495, 1e-05
    %v6512 = vadd.f32 %v6496, 1e-05
    %v6513 = vadd.f32 %v6497, 1e-05
    %v6514 = vadd.f32 %v6498, 1e-05
    %v6515 = vadd.f32 %v6499, 1e-05
    %v6516 = vadd.f32 %v6500, 1e-05
    %v6517 = vrsqrt.pop %v6501
    %v6518 = vrsqrt.pop %v6502
    %v6519 = vrsqrt.pop %v6503
    %v6520 = vrsqrt.pop %v6504
    %v6521 = vrsqrt.pop %v6505
    %v6522 = vrsqrt.pop %v6506
    %v6523 = vrsqrt.pop %v6507
    %v6524 = vrsqrt.pop %v6508
    %v6525 = vrsqrt.pop %v6509
    %v6526 = vrsqrt.pop %v6510
    %v6527 = vrsqrt.pop %v6511
    %v6528 = vrsqrt.pop %v6512
    %v6529 = vrsqrt.pop %v6513
    %v6530 = vrsqrt.pop %v6514
    %v6531 = vrsqrt.pop %v6515
    %v6532 = vrsqrt.pop %v6516
    %v6533 = vmul.f32 %v6405, %v6517
    %v6534 = vmul.f32 %v6406, %v6518
    %v6535 = vmul.f32 %v6407, %v6519
    %v6536 = vmul.f32 %v6408, %v6520
    %v6537 = vmul.f32 %v6409, %v6521
    %v6538 = vmul.f32 %v6410, %v6522
    %v6539 = vmul.f32 %v6411, %v6523
    %v6540 = vmul.f32 %v6412, %v6524
    %v6541 = vmul.f32 %v6413, %v6525
    %v6542 = vmul.f32 %v6414, %v6526
    %v6543 = vmul.f32 %v6415, %v6527
    %v6544 = vmul.f32 %v6416, %v6528
    %v6545 = vmul.f32 %v6417, %v6529
    %v6546 = vmul.f32 %v6418, %v6530
    %v6547 = vmul.f32 %v6419, %v6531
    %v6548 = vmul.f32 %v6420, %v6532
    %v6549 = vlaneseq
    %v6550 = vshrl.u32 %v6549, 7
    %v6551 = vsub.s32 1, %v6550
    %v6552 = vrot.slane %v43, %v6551
    %v6553 = vmul.f32 %v6533, %v6552
    %v6554 = vmul.f32 %v6534, %v6552
    %v6555 = vmul.f32 %v6535, %v6552
    %v6556 = vmul.f32 %v6536, %v6552
    %v6557 = vmul.f32 %v6537, %v6552
    %v6558 = vmul.f32 %v6538, %v6552
    %v6559 = vmul.f32 %v6539, %v6552
    %v6560 = vmul.f32 %v6540, %v6552
    %v6561 = vmul.f32 %v6541, %v6552
    %v6562 = vmul.f32 %v6542, %v6552
    %v6563 = vmul.f32 %v6543, %v6552
    %v6564 = vmul.f32 %v6544, %v6552
    %v6565 = vmul.f32 %v6545, %v6552
    %v6566 = vmul.f32 %v6546, %v6552
    %v6567 = vmul.f32 %v6547, %v6552
    %v6568 = vmul.f32 %v6548, %v6552
    %v6569 = vlaneseq
    %v6570 = vshrl.u32 %v6569, 7
    %v6571 = vsub.s32 2, %v6570
    %v6572 = vrot.slane %v43, %v6571
    %v6573 = vadd.f32 %v6553, %v6572
    %v6574 = vadd.f32 %v6554, %v6572
    %v6575 = vadd.f32 %v6555, %v6572
    %v6576 = vadd.f32 %v6556, %v6572
    %v6577 = vadd.f32 %v6557, %v6572
    %v6578 = vadd.f32 %v6558, %v6572
    %v6579 = vadd.f32 %v6559, %v6572
    %v6580 = vadd.f32 %v6560, %v6572
    %v6581 = vadd.f32 %v6561, %v6572
    %v6582 = vadd.f32 %v6562, %v6572
    %v6583 = vadd.f32 %v6563, %v6572
    %v6584 = vadd.f32 %v6564, %v6572
    %v6585 = vadd.f32 %v6565, %v6572
    %v6586 = vadd.f32 %v6566, %v6572
    %v6587 = vadd.f32 %v6567, %v6572
    %v6588 = vadd.f32 %v6568, %v6572
    %v6589 = vld [vmem:[%s4] sm:$0xff]
    %v6590 = vld [vmem:[%s4 + $0x8] sm:$0xff]
    %v6591 = vld [vmem:[%s4 + $0x10] sm:$0xff]
    %v6592 = vld [vmem:[%s4 + $0x18] sm:$0xff]
    %v6593 = vld [vmem:[%s4 + $0x20] sm:$0xff]
    %v6594 = vld [vmem:[%s4 + $0x28] sm:$0xff]
    %v6595 = vld [vmem:[%s4 + $0x30] sm:$0xff]
    %v6596 = vld [vmem:[%s4 + $0x38] sm:$0xff]
    %6597 = vmatprep.subr.mxu0 0.0
    %6598 = vmatpush1.msra.mxu0 %v6588
    %6599 = vmatprep.subr.mxu0 0.0
    %6600 = vmatpush1.msra.mxu0 %v6587
    %6601 = vmatprep.subr.mxu0 0.0
    %6602 = vmatpush1.msra.mxu0 %v6586
    %6603 = vmatprep.subr.mxu0 0.0
    %6604 = vmatpush1.msra.mxu0 %v6585
    %6605 = vmatprep.subr.mxu0 0.0
    %6606 = vmatpush1.msra.mxu0 %v6584
    %6607 = vmatprep.subr.mxu0 0.0
    %6608 = vmatpush1.msra.mxu0 %v6583
    %6609 = vmatprep.subr.mxu0 0.0
    %6610 = vmatpush1.msra.mxu0 %v6582
    %6611 = vmatprep.subr.mxu0 0.0
    %6612 = vmatpush1.msra.mxu0 %v6581
    %6613 = vmatprep.subr.mxu0 0.0
    %6614 = vmatpush1.msra.mxu0 %v6580
    %6615 = vmatprep.subr.mxu0 0.0
    %6616 = vmatpush1.msra.mxu0 %v6579
    %6617 = vmatprep.subr.mxu0 0.0
    %6618 = vmatpush1.msra.mxu0 %v6578
    %6619 = vmatprep.subr.mxu0 0.0
    %6620 = vmatpush1.msra.mxu0 %v6577
    %6621 = vmatprep.subr.mxu0 0.0
    %6622 = vmatpush1.msra.mxu0 %v6576
    %6623 = vmatprep.subr.mxu0 0.0
    %6624 = vmatpush1.msra.mxu0 %v6575
    %6625 = vmatprep.subr.mxu0 0.0
    %6626 = vmatpush1.msra.mxu0 %v6574
    %6627 = vmatprep.subr.mxu0 0.0
    %6628 = vmatpush1.msra.mxu0 %v6573
    %6629 = vmatprep.subr.mxu0 0.0
    %6630 = vmatpush2.msra.mxu0 0.0
    %6631 = vmatprep.subr.mxu0 0.0
    %6632 = vmatpush2.msra.mxu0 0.0
    %6633 = vmatprep.subr.mxu0 0.0
    %6634 = vmatpush2.msra.mxu0 0.0
    %6635 = vmatprep.subr.mxu0 0.0
    %6636 = vmatpush2.msra.mxu0 0.0
    %6637 = vmatprep.subr.mxu0 0.0
    %6638 = vmatpush2.msra.mxu0 0.0
    %6639 = vmatprep.subr.mxu0 0.0
    %6640 = vmatpush2.msra.mxu0 0.0
    %6641 = vmatprep.subr.mxu0 0.0
    %6642 = vmatpush2.msra.mxu0 0.0
    %6643 = vmatprep.subr.mxu0 0.0
    %6644 = vmatpush2.msra.mxu0 0.0
    %6645 = vmatprep.subr.mxu0 0.0
    %6646 = vmatpush2.msra.mxu0 0.0
    %6647 = vmatprep.subr.mxu0 0.0
    %6648 = vmatpush2.msra.mxu0 0.0
    %6649 = vmatprep.subr.mxu0 0.0
    %6650 = vmatpush2.msra.mxu0 0.0
    %6651 = vmatprep.subr.mxu0 0.0
    %6652 = vmatpush2.msra.mxu0 0.0
    %6653 = vmatprep.subr.mxu0 0.0
    %6654 = vmatpush2.msra.mxu0 0.0
    %6655 = vmatprep.subr.mxu0 0.0
    %6656 = vmatpush2.msra.mxu0 0.0
    %6657 = vmatprep.subr.mxu0 0.0
    %6658 = vmatpush2.msra.mxu0 0.0
    %6659 = vmatprep.subr.mxu0 0.0
    %6660 = vmatpush2.msra.mxu0 0.0
    %6661 = vmatprep.mubr.f32.mxu0 0.0
    %6662 = vmatmul.mubr.f32.gmra.mxu0 %v6589
    %v6663 = vpop.f32.mrf.mxu0
    %v6664 = vadd.f32 0.0, %v6663
    %v6665 = vpop.f32.mrf.mxu0
    %6666 = vmatprep.mubr.f32.mxu0 0.0
    %6667 = vmatmul.mubr.f32.gmra.mxu0 %v6590
    %v6668 = vpop.f32.mrf.mxu0
    %v6669 = vadd.f32 0.0, %v6668
    %v6670 = vpop.f32.mrf.mxu0
    %6671 = vmatprep.mubr.f32.mxu0 0.0
    %6672 = vmatmul.mubr.f32.gmra.mxu0 %v6591
    %v6673 = vpop.f32.mrf.mxu0
    %v6674 = vadd.f32 0.0, %v6673
    %v6675 = vpop.f32.mrf.mxu0
    %6676 = vmatprep.mubr.f32.mxu0 0.0
    %6677 = vmatmul.mubr.f32.gmra.mxu0 %v6592
    %v6678 = vpop.f32.mrf.mxu0
    %v6679 = vadd.f32 0.0, %v6678
    %v6680 = vpop.f32.mrf.mxu0
    %6681 = vmatprep.mubr.f32.mxu0 0.0
    %6682 = vmatmul.mubr.f32.gmra.mxu0 %v6593
    %v6683 = vpop.f32.mrf.mxu0
    %v6684 = vadd.f32 0.0, %v6683
    %v6685 = vpop.f32.mrf.mxu0
    %6686 = vmatprep.mubr.f32.mxu0 0.0
    %6687 = vmatmul.mubr.f32.gmra.mxu0 %v6594
    %v6688 = vpop.f32.mrf.mxu0
    %v6689 = vadd.f32 0.0, %v6688
    %v6690 = vpop.f32.mrf.mxu0
    %6691 = vmatprep.mubr.f32.mxu0 0.0
    %6692 = vmatmul.mubr.f32.gmra.mxu0 %v6595
    %v6693 = vpop.f32.mrf.mxu0
    %v6694 = vadd.f32 0.0, %v6693
    %v6695 = vpop.f32.mrf.mxu0
    %6696 = vmatprep.mubr.f32.mxu0 0.0
    %6697 = vmatmul.mubr.f32.gmra.mxu0 %v6596
    %v6698 = vpop.f32.mrf.mxu0
    %v6699 = vadd.f32 0.0, %v6698
    %v6700 = vpop.f32.mrf.mxu0
    %6701 = vdwg.mxu0
    %v6702 = vld [vmem:[%s4 + $0xc0] sm:$0xff]
    %v6703 = vld [vmem:[%s4 + $0xc8] sm:$0xff]
    %v6704 = vld [vmem:[%s4 + $0xd0] sm:$0xff]
    %v6705 = vld [vmem:[%s4 + $0xd8] sm:$0xff]
    %v6706 = vld [vmem:[%s4 + $0xe0] sm:$0xff]
    %v6707 = vld [vmem:[%s4 + $0xe8] sm:$0xff]
    %v6708 = vld [vmem:[%s4 + $0xf0] sm:$0xff]
    %v6709 = vld [vmem:[%s4 + $0xf8] sm:$0xff]
    %v6711 = vsel %vm1282, %v6664, 0
    %6713 = vmatprep.subr.mxu0 0.0
    %6714 = vmatpush1.msra.mxu0 0.0
    %6715 = vmatprep.subr.mxu0 0.0
    %6716 = vmatpush1.msra.mxu0 0.0
    %6717 = vmatprep.subr.mxu0 0.0
    %6718 = vmatpush1.msra.mxu0 0.0
    %6719 = vmatprep.subr.mxu0 0.0
    %6720 = vmatpush1.msra.mxu0 0.0
    %6721 = vmatprep.subr.mxu0 0.0
    %6722 = vmatpush1.msra.mxu0 0.0
    %6723 = vmatprep.subr.mxu0 0.0
    %6724 = vmatpush1.msra.mxu0 0.0
    %6725 = vmatprep.subr.mxu0 0.0
    %6726 = vmatpush1.msra.mxu0 0.0
    %6727 = vmatprep.subr.mxu0 0.0
    %6728 = vmatpush1.msra.mxu0 0.0
    %6729 = vmatprep.subr.mxu0 0.0
    %6730 = vmatpush1.msra.mxu0 %v6709
    %6731 = vmatprep.subr.mxu0 0.0
    %6732 = vmatpush1.msra.mxu0 %v6708
    %6733 = vmatprep.subr.mxu0 0.0
    %6734 = vmatpush1.msra.mxu0 %v6707
    %6735 = vmatprep.subr.mxu0 0.0
    %6736 = vmatpush1.msra.mxu0 %v6706
    %6737 = vmatprep.subr.mxu0 0.0
    %6738 = vmatpush1.msra.mxu0 %v6705
    %6739 = vmatprep.subr.mxu0 0.0
    %6740 = vmatpush1.msra.mxu0 %v6704
    %6741 = vmatprep.subr.mxu0 0.0
    %6742 = vmatpush1.msra.mxu0 %v6703
    %6743 = vmatprep.subr.mxu0 0.0
    %6744 = vmatpush1.msra.mxu0 %v6702
    %6745 = vmatprep.subr.mxu0 0.0
    %6746 = vmatpush2.msra.mxu0 0.0
    %6747 = vmatprep.subr.mxu0 0.0
    %6748 = vmatpush2.msra.mxu0 0.0
    %6749 = vmatprep.subr.mxu0 0.0
    %6750 = vmatpush2.msra.mxu0 0.0
    %6751 = vmatprep.subr.mxu0 0.0
    %6752 = vmatpush2.msra.mxu0 0.0
    %6753 = vmatprep.subr.mxu0 0.0
    %6754 = vmatpush2.msra.mxu0 0.0
    %6755 = vmatprep.subr.mxu0 0.0
    %6756 = vmatpush2.msra.mxu0 0.0
    %6757 = vmatprep.subr.mxu0 0.0
    %6758 = vmatpush2.msra.mxu0 0.0
    %6759 = vmatprep.subr.mxu0 0.0
    %6760 = vmatpush2.msra.mxu0 0.0
    %6761 = vmatprep.subr.mxu0 0.0
    %6762 = vmatpush2.msra.mxu0 0.0
    %6763 = vmatprep.subr.mxu0 0.0
    %6764 = vmatpush2.msra.mxu0 0.0
    %6765 = vmatprep.subr.mxu0 0.0
    %6766 = vmatpush2.msra.mxu0 0.0
    %6767 = vmatprep.subr.mxu0 0.0
    %6768 = vmatpush2.msra.mxu0 0.0
    %6769 = vmatprep.subr.mxu0 0.0
    %6770 = vmatpush2.msra.mxu0 0.0
    %6771 = vmatprep.subr.mxu0 0.0
    %6772 = vmatpush2.msra.mxu0 0.0
    %6773 = vmatprep.subr.mxu0 0.0
    %6774 = vmatpush2.msra.mxu0 0.0
    %6775 = vmatprep.subr.mxu0 0.0
    %6776 = vmatpush2.msra.mxu0 0.0
    %6777 = vmatprep.mubr.f32.mxu0 0.0
    %6778 = vmatmul.mubr.f32.gmra.mxu0 %v6711
    %v6779 = vpop.f32.mrf.mxu0
    %v6780 = vadd.f32 0.0, %v6779
    %v6781 = vpop.f32.mrf.mxu0
    %6782 = vdwg.mxu0
    %v6783 = vlaneseq
    %v6784 = vshrl.u32 %v6783, 7
    %v6785 = vsub.s32 3, %v6784
    %v6786 = vrot.slane %v43, %v6785
    %v6787 = vadd.f32 %v6786, %v6780
    %v6788 = vld [vmem:[%s4 + $0x100] sm:$0xff]
    %v6789 = vld [vmem:[%s4 + $0x108] sm:$0xff]
    %v6790 = vld [vmem:[%s4 + $0x110] sm:$0xff]
    %v6791 = vld [vmem:[%s4 + $0x118] sm:$0xff]
    %v6792 = vld [vmem:[%s4 + $0x120] sm:$0xff]
    %v6793 = vld [vmem:[%s4 + $0x128] sm:$0xff]
    %v6794 = vld [vmem:[%s4 + $0x130] sm:$0xff]
    %v6795 = vld [vmem:[%s4 + $0x138] sm:$0xff]
    %v6797 = vsel %vm1282, %v6669, 0
    %6799 = vmatprep.subr.mxu0 0.0
    %6800 = vmatpush1.msra.mxu0 0.0
    %6801 = vmatprep.subr.mxu0 0.0
    %6802 = vmatpush1.msra.mxu0 0.0
    %6803 = vmatprep.subr.mxu0 0.0
    %6804 = vmatpush1.msra.mxu0 0.0
    %6805 = vmatprep.subr.mxu0 0.0
    %6806 = vmatpush1.msra.mxu0 0.0
    %6807 = vmatprep.subr.mxu0 0.0
    %6808 = vmatpush1.msra.mxu0 0.0
    %6809 = vmatprep.subr.mxu0 0.0
    %6810 = vmatpush1.msra.mxu0 0.0
    %6811 = vmatprep.subr.mxu0 0.0
    %6812 = vmatpush1.msra.mxu0 0.0
    %6813 = vmatprep.subr.mxu0 0.0
    %6814 = vmatpush1.msra.mxu0 0.0
    %6815 = vmatprep.subr.mxu0 0.0
    %6816 = vmatpush1.msra.mxu0 %v6795
    %6817 = vmatprep.subr.mxu0 0.0
    %6818 = vmatpush1.msra.mxu0 %v6794
    %6819 = vmatprep.subr.mxu0 0.0
    %6820 = vmatpush1.msra.mxu0 %v6793
    %6821 = vmatprep.subr.mxu0 0.0
    %6822 = vmatpush1.msra.mxu0 %v6792
    %6823 = vmatprep.subr.mxu0 0.0
    %6824 = vmatpush1.msra.mxu0 %v6791
    %6825 = vmatprep.subr.mxu0 0.0
    %6826 = vmatpush1.msra.mxu0 %v6790
    %6827 = vmatprep.subr.mxu0 0.0
    %6828 = vmatpush1.msra.mxu0 %v6789
    %6829 = vmatprep.subr.mxu0 0.0
    %6830 = vmatpush1.msra.mxu0 %v6788
    %6831 = vmatprep.subr.mxu0 0.0
    %6832 = vmatpush2.msra.mxu0 0.0
    %6833 = vmatprep.subr.mxu0 0.0
    %6834 = vmatpush2.msra.mxu0 0.0
    %6835 = vmatprep.subr.mxu0 0.0
    %6836 = vmatpush2.msra.mxu0 0.0
    %6837 = vmatprep.subr.mxu0 0.0
    %6838 = vmatpush2.msra.mxu0 0.0
    %6839 = vmatprep.subr.mxu0 0.0
    %6840 = vmatpush2.msra.mxu0 0.0
    %6841 = vmatprep.subr.mxu0 0.0
    %6842 = vmatpush2.msra.mxu0 0.0
    %6843 = vmatprep.subr.mxu0 0.0
    %6844 = vmatpush2.msra.mxu0 0.0
    %6845 = vmatprep.subr.mxu0 0.0
    %6846 = vmatpush2.msra.mxu0 0.0
    %6847 = vmatprep.subr.mxu0 0.0
    %6848 = vmatpush2.msra.mxu0 0.0
    %6849 = vmatprep.subr.mxu0 0.0
    %6850 = vmatpush2.msra.mxu0 0.0
    %6851 = vmatprep.subr.mxu0 0.0
    %6852 = vmatpush2.msra.mxu0 0.0
    %6853 = vmatprep.subr.mxu0 0.0
    %6854 = vmatpush2.msra.mxu0 0.0
    %6855 = vmatprep.subr.mxu0 0.0
    %6856 = vmatpush2.msra.mxu0 0.0
    %6857 = vmatprep.subr.mxu0 0.0
    %6858 = vmatpush2.msra.mxu0 0.0
    %6859 = vmatprep.subr.mxu0 0.0
    %6860 = vmatpush2.msra.mxu0 0.0
    %6861 = vmatprep.subr.mxu0 0.0
    %6862 = vmatpush2.msra.mxu0 0.0
    %6863 = vmatprep.mubr.f32.mxu0 0.0
    %6864 = vmatmul.mubr.f32.gmra.mxu0 %v6797
    %v6865 = vpop.f32.mrf.mxu0
    %v6866 = vadd.f32 0.0, %v6865
    %v6867 = vpop.f32.mrf.mxu0
    %6868 = vdwg.mxu0
    %v6869 = vadd.f32 %v6787, %v6866
    %v6870 = vld [vmem:[%s4 + $0x140] sm:$0xff]
    %v6871 = vld [vmem:[%s4 + $0x148] sm:$0xff]
    %v6872 = vld [vmem:[%s4 + $0x150] sm:$0xff]
    %v6873 = vld [vmem:[%s4 + $0x158] sm:$0xff]
    %v6874 = vld [vmem:[%s4 + $0x160] sm:$0xff]
    %v6875 = vld [vmem:[%s4 + $0x168] sm:$0xff]
    %v6876 = vld [vmem:[%s4 + $0x170] sm:$0xff]
    %v6877 = vld [vmem:[%s4 + $0x178] sm:$0xff]
    %v6879 = vsel %vm1282, %v6674, 0
    %6881 = vmatprep.subr.mxu0 0.0
    %6882 = vmatpush1.msra.mxu0 0.0
    %6883 = vmatprep.subr.mxu0 0.0
    %6884 = vmatpush1.msra.mxu0 0.0
    %6885 = vmatprep.subr.mxu0 0.0
    %6886 = vmatpush1.msra.mxu0 0.0
    %6887 = vmatprep.subr.mxu0 0.0
    %6888 = vmatpush1.msra.mxu0 0.0
    %6889 = vmatprep.subr.mxu0 0.0
    %6890 = vmatpush1.msra.mxu0 0.0
    %6891 = vmatprep.subr.mxu0 0.0
    %6892 = vmatpush1.msra.mxu0 0.0
    %6893 = vmatprep.subr.mxu0 0.0
    %6894 = vmatpush1.msra.mxu0 0.0
    %6895 = vmatprep.subr.mxu0 0.0
    %6896 = vmatpush1.msra.mxu0 0.0
    %6897 = vmatprep.subr.mxu0 0.0
    %6898 = vmatpush1.msra.mxu0 %v6877
    %6899 = vmatprep.subr.mxu0 0.0
    %6900 = vmatpush1.msra.mxu0 %v6876
    %6901 = vmatprep.subr.mxu0 0.0
    %6902 = vmatpush1.msra.mxu0 %v6875
    %6903 = vmatprep.subr.mxu0 0.0
    %6904 = vmatpush1.msra.mxu0 %v6874
    %6905 = vmatprep.subr.mxu0 0.0
    %6906 = vmatpush1.msra.mxu0 %v6873
    %6907 = vmatprep.subr.mxu0 0.0
    %6908 = vmatpush1.msra.mxu0 %v6872
    %6909 = vmatprep.subr.mxu0 0.0
    %6910 = vmatpush1.msra.mxu0 %v6871
    %6911 = vmatprep.subr.mxu0 0.0
    %6912 = vmatpush1.msra.mxu0 %v6870
    %6913 = vmatprep.subr.mxu0 0.0
    %6914 = vmatpush2.msra.mxu0 0.0
    %6915 = vmatprep.subr.mxu0 0.0
    %6916 = vmatpush2.msra.mxu0 0.0
    %6917 = vmatprep.subr.mxu0 0.0
    %6918 = vmatpush2.msra.mxu0 0.0
    %6919 = vmatprep.subr.mxu0 0.0
    %6920 = vmatpush2.msra.mxu0 0.0
    %6921 = vmatprep.subr.mxu0 0.0
    %6922 = vmatpush2.msra.mxu0 0.0
    %6923 = vmatprep.subr.mxu0 0.0
    %6924 = vmatpush2.msra.mxu0 0.0
    %6925 = vmatprep.subr.mxu0 0.0
    %6926 = vmatpush2.msra.mxu0 0.0
    %6927 = vmatprep.subr.mxu0 0.0
    %6928 = vmatpush2.msra.mxu0 0.0
    %6929 = vmatprep.subr.mxu0 0.0
    %6930 = vmatpush2.msra.mxu0 0.0
    %6931 = vmatprep.subr.mxu0 0.0
    %6932 = vmatpush2.msra.mxu0 0.0
    %6933 = vmatprep.subr.mxu0 0.0
    %6934 = vmatpush2.msra.mxu0 0.0
    %6935 = vmatprep.subr.mxu0 0.0
    %6936 = vmatpush2.msra.mxu0 0.0
    %6937 = vmatprep.subr.mxu0 0.0
    %6938 = vmatpush2.msra.mxu0 0.0
    %6939 = vmatprep.subr.mxu0 0.0
    %6940 = vmatpush2.msra.mxu0 0.0
    %6941 = vmatprep.subr.mxu0 0.0
    %6942 = vmatpush2.msra.mxu0 0.0
    %6943 = vmatprep.subr.mxu0 0.0
    %6944 = vmatpush2.msra.mxu0 0.0
    %6945 = vmatprep.mubr.f32.mxu0 0.0
    %6946 = vmatmul.mubr.f32.gmra.mxu0 %v6879
    %v6947 = vpop.f32.mrf.mxu0
    %v6948 = vadd.f32 0.0, %v6947
    %v6949 = vpop.f32.mrf.mxu0
    %6950 = vdwg.mxu0
    %v6951 = vadd.f32 %v6869, %v6948
    %v6952 = vld [vmem:[%s4 + $0x180] sm:$0xff]
    %v6953 = vld [vmem:[%s4 + $0x188] sm:$0xff]
    %v6954 = vld [vmem:[%s4 + $0x190] sm:$0xff]
    %v6955 = vld [vmem:[%s4 + $0x198] sm:$0xff]
    %v6956 = vld [vmem:[%s4 + $0x1a0] sm:$0xff]
    %v6957 = vld [vmem:[%s4 + $0x1a8] sm:$0xff]
    %v6958 = vld [vmem:[%s4 + $0x1b0] sm:$0xff]
    %v6959 = vld [vmem:[%s4 + $0x1b8] sm:$0xff]
    %v6961 = vsel %vm1282, %v6679, 0
    %6963 = vmatprep.subr.mxu0 0.0
    %6964 = vmatpush1.msra.mxu0 0.0
    %6965 = vmatprep.subr.mxu0 0.0
    %6966 = vmatpush1.msra.mxu0 0.0
    %6967 = vmatprep.subr.mxu0 0.0
    %6968 = vmatpush1.msra.mxu0 0.0
    %6969 = vmatprep.subr.mxu0 0.0
    %6970 = vmatpush1.msra.mxu0 0.0
    %6971 = vmatprep.subr.mxu0 0.0
    %6972 = vmatpush1.msra.mxu0 0.0
    %6973 = vmatprep.subr.mxu0 0.0
    %6974 = vmatpush1.msra.mxu0 0.0
    %6975 = vmatprep.subr.mxu0 0.0
    %6976 = vmatpush1.msra.mxu0 0.0
    %6977 = vmatprep.subr.mxu0 0.0
    %6978 = vmatpush1.msra.mxu0 0.0
    %6979 = vmatprep.subr.mxu0 0.0
    %6980 = vmatpush1.msra.mxu0 %v6959
    %6981 = vmatprep.subr.mxu0 0.0
    %6982 = vmatpush1.msra.mxu0 %v6958
    %6983 = vmatprep.subr.mxu0 0.0
    %6984 = vmatpush1.msra.mxu0 %v6957
    %6985 = vmatprep.subr.mxu0 0.0
    %6986 = vmatpush1.msra.mxu0 %v6956
    %6987 = vmatprep.subr.mxu0 0.0
    %6988 = vmatpush1.msra.mxu0 %v6955
    %6989 = vmatprep.subr.mxu0 0.0
    %6990 = vmatpush1.msra.mxu0 %v6954
    %6991 = vmatprep.subr.mxu0 0.0
    %6992 = vmatpush1.msra.mxu0 %v6953
    %6993 = vmatprep.subr.mxu0 0.0
    %6994 = vmatpush1.msra.mxu0 %v6952
    %6995 = vmatprep.subr.mxu0 0.0
    %6996 = vmatpush2.msra.mxu0 0.0
    %6997 = vmatprep.subr.mxu0 0.0
    %6998 = vmatpush2.msra.mxu0 0.0
    %6999 = vmatprep.subr.mxu0 0.0
    %7000 = vmatpush2.msra.mxu0 0.0
    %7001 = vmatprep.subr.mxu0 0.0
    %7002 = vmatpush2.msra.mxu0 0.0
    %7003 = vmatprep.subr.mxu0 0.0
    %7004 = vmatpush2.msra.mxu0 0.0
    %7005 = vmatprep.subr.mxu0 0.0
    %7006 = vmatpush2.msra.mxu0 0.0
    %7007 = vmatprep.subr.mxu0 0.0
    %7008 = vmatpush2.msra.mxu0 0.0
    %7009 = vmatprep.subr.mxu0 0.0
    %7010 = vmatpush2.msra.mxu0 0.0
    %7011 = vmatprep.subr.mxu0 0.0
    %7012 = vmatpush2.msra.mxu0 0.0
    %7013 = vmatprep.subr.mxu0 0.0
    %7014 = vmatpush2.msra.mxu0 0.0
    %7015 = vmatprep.subr.mxu0 0.0
    %7016 = vmatpush2.msra.mxu0 0.0
    %7017 = vmatprep.subr.mxu0 0.0
    %7018 = vmatpush2.msra.mxu0 0.0
    %7019 = vmatprep.subr.mxu0 0.0
    %7020 = vmatpush2.msra.mxu0 0.0
    %7021 = vmatprep.subr.mxu0 0.0
    %7022 = vmatpush2.msra.mxu0 0.0
    %7023 = vmatprep.subr.mxu0 0.0
    %7024 = vmatpush2.msra.mxu0 0.0
    %7025 = vmatprep.subr.mxu0 0.0
    %7026 = vmatpush2.msra.mxu0 0.0
    %7027 = vmatprep.mubr.f32.mxu0 0.0
    %7028 = vmatmul.mubr.f32.gmra.mxu0 %v6961
    %v7029 = vpop.f32.mrf.mxu0
    %v7030 = vadd.f32 0.0, %v7029
    %v7031 = vpop.f32.mrf.mxu0
    %7032 = vdwg.mxu0
    %v7033 = vadd.f32 %v6951, %v7030
    %v7034 = vld [vmem:[%s4 + $0x1c0] sm:$0xff]
    %v7035 = vld [vmem:[%s4 + $0x1c8] sm:$0xff]
    %v7036 = vld [vmem:[%s4 + $0x1d0] sm:$0xff]
    %v7037 = vld [vmem:[%s4 + $0x1d8] sm:$0xff]
    %v7038 = vld [vmem:[%s4 + $0x1e0] sm:$0xff]
    %v7039 = vld [vmem:[%s4 + $0x1e8] sm:$0xff]
    %v7040 = vld [vmem:[%s4 + $0x1f0] sm:$0xff]
    %v7041 = vld [vmem:[%s4 + $0x1f8] sm:$0xff]
    %v7043 = vsel %vm1282, %v6684, 0
    %7045 = vmatprep.subr.mxu0 0.0
    %7046 = vmatpush1.msra.mxu0 0.0
    %7047 = vmatprep.subr.mxu0 0.0
    %7048 = vmatpush1.msra.mxu0 0.0
    %7049 = vmatprep.subr.mxu0 0.0
    %7050 = vmatpush1.msra.mxu0 0.0
    %7051 = vmatprep.subr.mxu0 0.0
    %7052 = vmatpush1.msra.mxu0 0.0
    %7053 = vmatprep.subr.mxu0 0.0
    %7054 = vmatpush1.msra.mxu0 0.0
    %7055 = vmatprep.subr.mxu0 0.0
    %7056 = vmatpush1.msra.mxu0 0.0
    %7057 = vmatprep.subr.mxu0 0.0
    %7058 = vmatpush1.msra.mxu0 0.0
    %7059 = vmatprep.subr.mxu0 0.0
    %7060 = vmatpush1.msra.mxu0 0.0
    %7061 = vmatprep.subr.mxu0 0.0
    %7062 = vmatpush1.msra.mxu0 %v7041
    %7063 = vmatprep.subr.mxu0 0.0
    %7064 = vmatpush1.msra.mxu0 %v7040
    %7065 = vmatprep.subr.mxu0 0.0
    %7066 = vmatpush1.msra.mxu0 %v7039
    %7067 = vmatprep.subr.mxu0 0.0
    %7068 = vmatpush1.msra.mxu0 %v7038
    %7069 = vmatprep.subr.mxu0 0.0
    %7070 = vmatpush1.msra.mxu0 %v7037
    %7071 = vmatprep.subr.mxu0 0.0
    %7072 = vmatpush1.msra.mxu0 %v7036
    %7073 = vmatprep.subr.mxu0 0.0
    %7074 = vmatpush1.msra.mxu0 %v7035
    %7075 = vmatprep.subr.mxu0 0.0
    %7076 = vmatpush1.msra.mxu0 %v7034
    %7077 = vmatprep.subr.mxu0 0.0
    %7078 = vmatpush2.msra.mxu0 0.0
    %7079 = vmatprep.subr.mxu0 0.0
    %7080 = vmatpush2.msra.mxu0 0.0
    %7081 = vmatprep.subr.mxu0 0.0
    %7082 = vmatpush2.msra.mxu0 0.0
    %7083 = vmatprep.subr.mxu0 0.0
    %7084 = vmatpush2.msra.mxu0 0.0
    %7085 = vmatprep.subr.mxu0 0.0
    %7086 = vmatpush2.msra.mxu0 0.0
    %7087 = vmatprep.subr.mxu0 0.0
    %7088 = vmatpush2.msra.mxu0 0.0
    %7089 = vmatprep.subr.mxu0 0.0
    %7090 = vmatpush2.msra.mxu0 0.0
    %7091 = vmatprep.subr.mxu0 0.0
    %7092 = vmatpush2.msra.mxu0 0.0
    %7093 = vmatprep.subr.mxu0 0.0
    %7094 = vmatpush2.msra.mxu0 0.0
    %7095 = vmatprep.subr.mxu0 0.0
    %7096 = vmatpush2.msra.mxu0 0.0
    %7097 = vmatprep.subr.mxu0 0.0
    %7098 = vmatpush2.msra.mxu0 0.0
    %7099 = vmatprep.subr.mxu0 0.0
    %7100 = vmatpush2.msra.mxu0 0.0
    %7101 = vmatprep.subr.mxu0 0.0
    %7102 = vmatpush2.msra.mxu0 0.0
    %7103 = vmatprep.subr.mxu0 0.0
    %7104 = vmatpush2.msra.mxu0 0.0
    %7105 = vmatprep.subr.mxu0 0.0
    %7106 = vmatpush2.msra.mxu0 0.0
    %7107 = vmatprep.subr.mxu0 0.0
    %7108 = vmatpush2.msra.mxu0 0.0
    %7109 = vmatprep.mubr.f32.mxu0 0.0
    %7110 = vmatmul.mubr.f32.gmra.mxu0 %v7043
    %v7111 = vpop.f32.mrf.mxu0
    %v7112 = vadd.f32 0.0, %v7111
    %v7113 = vpop.f32.mrf.mxu0
    %7114 = vdwg.mxu0
    %v7115 = vadd.f32 %v7033, %v7112
    %v7116 = vld [vmem:[%s4 + $0x200] sm:$0xff]
    %v7117 = vld [vmem:[%s4 + $0x208] sm:$0xff]
    %v7118 = vld [vmem:[%s4 + $0x210] sm:$0xff]
    %v7119 = vld [vmem:[%s4 + $0x218] sm:$0xff]
    %v7120 = vld [vmem:[%s4 + $0x220] sm:$0xff]
    %v7121 = vld [vmem:[%s4 + $0x228] sm:$0xff]
    %v7122 = vld [vmem:[%s4 + $0x230] sm:$0xff]
    %v7123 = vld [vmem:[%s4 + $0x238] sm:$0xff]
    %v7125 = vsel %vm1282, %v6689, 0
    %7127 = vmatprep.subr.mxu0 0.0
    %7128 = vmatpush1.msra.mxu0 0.0
    %7129 = vmatprep.subr.mxu0 0.0
    %7130 = vmatpush1.msra.mxu0 0.0
    %7131 = vmatprep.subr.mxu0 0.0
    %7132 = vmatpush1.msra.mxu0 0.0
    %7133 = vmatprep.subr.mxu0 0.0
    %7134 = vmatpush1.msra.mxu0 0.0
    %7135 = vmatprep.subr.mxu0 0.0
    %7136 = vmatpush1.msra.mxu0 0.0
    %7137 = vmatprep.subr.mxu0 0.0
    %7138 = vmatpush1.msra.mxu0 0.0
    %7139 = vmatprep.subr.mxu0 0.0
    %7140 = vmatpush1.msra.mxu0 0.0
    %7141 = vmatprep.subr.mxu0 0.0
    %7142 = vmatpush1.msra.mxu0 0.0
    %7143 = vmatprep.subr.mxu0 0.0
    %7144 = vmatpush1.msra.mxu0 %v7123
    %7145 = vmatprep.subr.mxu0 0.0
    %7146 = vmatpush1.msra.mxu0 %v7122
    %7147 = vmatprep.subr.mxu0 0.0
    %7148 = vmatpush1.msra.mxu0 %v7121
    %7149 = vmatprep.subr.mxu0 0.0
    %7150 = vmatpush1.msra.mxu0 %v7120
    %7151 = vmatprep.subr.mxu0 0.0
    %7152 = vmatpush1.msra.mxu0 %v7119
    %7153 = vmatprep.subr.mxu0 0.0
    %7154 = vmatpush1.msra.mxu0 %v7118
    %7155 = vmatprep.subr.mxu0 0.0
    %7156 = vmatpush1.msra.mxu0 %v7117
    %7157 = vmatprep.subr.mxu0 0.0
    %7158 = vmatpush1.msra.mxu0 %v7116
    %7159 = vmatprep.subr.mxu0 0.0
    %7160 = vmatpush2.msra.mxu0 0.0
    %7161 = vmatprep.subr.mxu0 0.0
    %7162 = vmatpush2.msra.mxu0 0.0
    %7163 = vmatprep.subr.mxu0 0.0
    %7164 = vmatpush2.msra.mxu0 0.0
    %7165 = vmatprep.subr.mxu0 0.0
    %7166 = vmatpush2.msra.mxu0 0.0
    %7167 = vmatprep.subr.mxu0 0.0
    %7168 = vmatpush2.msra.mxu0 0.0
    %7169 = vmatprep.subr.mxu0 0.0
    %7170 = vmatpush2.msra.mxu0 0.0
    %7171 = vmatprep.subr.mxu0 0.0
    %7172 = vmatpush2.msra.mxu0 0.0
    %7173 = vmatprep.subr.mxu0 0.0
    %7174 = vmatpush2.msra.mxu0 0.0
    %7175 = vmatprep.subr.mxu0 0.0
    %7176 = vmatpush2.msra.mxu0 0.0
    %7177 = vmatprep.subr.mxu0 0.0
    %7178 = vmatpush2.msra.mxu0 0.0
    %7179 = vmatprep.subr.mxu0 0.0
    %7180 = vmatpush2.msra.mxu0 0.0
    %7181 = vmatprep.subr.mxu0 0.0
    %7182 = vmatpush2.msra.mxu0 0.0
    %7183 = vmatprep.subr.mxu0 0.0
    %7184 = vmatpush2.msra.mxu0 0.0
    %7185 = vmatprep.subr.mxu0 0.0
    %7186 = vmatpush2.msra.mxu0 0.0
    %7187 = vmatprep.subr.mxu0 0.0
    %7188 = vmatpush2.msra.mxu0 0.0
    %7189 = vmatprep.subr.mxu0 0.0
    %7190 = vmatpush2.msra.mxu0 0.0
    %7191 = vmatprep.mubr.f32.mxu0 0.0
    %7192 = vmatmul.mubr.f32.gmra.mxu0 %v7125
    %v7193 = vpop.f32.mrf.mxu0
    %v7194 = vadd.f32 0.0, %v7193
    %v7195 = vpop.f32.mrf.mxu0
    %7196 = vdwg.mxu0
    %v7197 = vadd.f32 %v7115, %v7194
    %v7198 = vld [vmem:[%s4 + $0x240] sm:$0xff]
    %v7199 = vld [vmem:[%s4 + $0x248] sm:$0xff]
    %v7200 = vld [vmem:[%s4 + $0x250] sm:$0xff]
    %v7201 = vld [vmem:[%s4 + $0x258] sm:$0xff]
    %v7202 = vld [vmem:[%s4 + $0x260] sm:$0xff]
    %v7203 = vld [vmem:[%s4 + $0x268] sm:$0xff]
    %v7204 = vld [vmem:[%s4 + $0x270] sm:$0xff]
    %v7205 = vld [vmem:[%s4 + $0x278] sm:$0xff]
    %v7207 = vsel %vm1282, %v6694, 0
    %7209 = vmatprep.subr.mxu0 0.0
    %7210 = vmatpush1.msra.mxu0 0.0
    %7211 = vmatprep.subr.mxu0 0.0
    %7212 = vmatpush1.msra.mxu0 0.0
    %7213 = vmatprep.subr.mxu0 0.0
    %7214 = vmatpush1.msra.mxu0 0.0
    %7215 = vmatprep.subr.mxu0 0.0
    %7216 = vmatpush1.msra.mxu0 0.0
    %7217 = vmatprep.subr.mxu0 0.0
    %7218 = vmatpush1.msra.mxu0 0.0
    %7219 = vmatprep.subr.mxu0 0.0
    %7220 = vmatpush1.msra.mxu0 0.0
    %7221 = vmatprep.subr.mxu0 0.0
    %7222 = vmatpush1.msra.mxu0 0.0
    %7223 = vmatprep.subr.mxu0 0.0
    %7224 = vmatpush1.msra.mxu0 0.0
    %7225 = vmatprep.subr.mxu0 0.0
    %7226 = vmatpush1.msra.mxu0 %v7205
    %7227 = vmatprep.subr.mxu0 0.0
    %7228 = vmatpush1.msra.mxu0 %v7204
    %7229 = vmatprep.subr.mxu0 0.0
    %7230 = vmatpush1.msra.mxu0 %v7203
    %7231 = vmatprep.subr.mxu0 0.0
    %7232 = vmatpush1.msra.mxu0 %v7202
    %7233 = vmatprep.subr.mxu0 0.0
    %7234 = vmatpush1.msra.mxu0 %v7201
    %7235 = vmatprep.subr.mxu0 0.0
    %7236 = vmatpush1.msra.mxu0 %v7200
    %7237 = vmatprep.subr.mxu0 0.0
    %7238 = vmatpush1.msra.mxu0 %v7199
    %7239 = vmatprep.subr.mxu0 0.0
    %7240 = vmatpush1.msra.mxu0 %v7198
    %7241 = vmatprep.subr.mxu0 0.0
    %7242 = vmatpush2.msra.mxu0 0.0
    %7243 = vmatprep.subr.mxu0 0.0
    %7244 = vmatpush2.msra.mxu0 0.0
    %7245 = vmatprep.subr.mxu0 0.0
    %7246 = vmatpush2.msra.mxu0 0.0
    %7247 = vmatprep.subr.mxu0 0.0
    %7248 = vmatpush2.msra.mxu0 0.0
    %7249 = vmatprep.subr.mxu0 0.0
    %7250 = vmatpush2.msra.mxu0 0.0
    %7251 = vmatprep.subr.mxu0 0.0
    %7252 = vmatpush2.msra.mxu0 0.0
    %7253 = vmatprep.subr.mxu0 0.0
    %7254 = vmatpush2.msra.mxu0 0.0
    %7255 = vmatprep.subr.mxu0 0.0
    %7256 = vmatpush2.msra.mxu0 0.0
    %7257 = vmatprep.subr.mxu0 0.0
    %7258 = vmatpush2.msra.mxu0 0.0
    %7259 = vmatprep.subr.mxu0 0.0
    %7260 = vmatpush2.msra.mxu0 0.0
    %7261 = vmatprep.subr.mxu0 0.0
    %7262 = vmatpush2.msra.mxu0 0.0
    %7263 = vmatprep.subr.mxu0 0.0
    %7264 = vmatpush2.msra.mxu0 0.0
    %7265 = vmatprep.subr.mxu0 0.0
    %7266 = vmatpush2.msra.mxu0 0.0
    %7267 = vmatprep.subr.mxu0 0.0
    %7268 = vmatpush2.msra.mxu0 0.0
    %7269 = vmatprep.subr.mxu0 0.0
    %7270 = vmatpush2.msra.mxu0 0.0
    %7271 = vmatprep.subr.mxu0 0.0
    %7272 = vmatpush2.msra.mxu0 0.0
    %7273 = vmatprep.mubr.f32.mxu0 0.0
    %7274 = vmatmul.mubr.f32.gmra.mxu0 %v7207
    %v7275 = vpop.f32.mrf.mxu0
    %v7276 = vadd.f32 0.0, %v7275
    %v7277 = vpop.f32.mrf.mxu0
    %7278 = vdwg.mxu0
    %v7279 = vadd.f32 %v7197, %v7276
    %v7280 = vld [vmem:[%s4 + $0x280] sm:$0xff]
    %v7281 = vld [vmem:[%s4 + $0x288] sm:$0xff]
    %v7282 = vld [vmem:[%s4 + $0x290] sm:$0xff]
    %v7283 = vld [vmem:[%s4 + $0x298] sm:$0xff]
    %v7284 = vld [vmem:[%s4 + $0x2a0] sm:$0xff]
    %v7285 = vld [vmem:[%s4 + $0x2a8] sm:$0xff]
    %v7286 = vld [vmem:[%s4 + $0x2b0] sm:$0xff]
    %v7287 = vld [vmem:[%s4 + $0x2b8] sm:$0xff]
    %v7289 = vsel %vm1282, %v6699, 0
    %7291 = vmatprep.subr.mxu0 0.0
    %7292 = vmatpush1.msra.mxu0 0.0
    %7293 = vmatprep.subr.mxu0 0.0
    %7294 = vmatpush1.msra.mxu0 0.0
    %7295 = vmatprep.subr.mxu0 0.0
    %7296 = vmatpush1.msra.mxu0 0.0
    %7297 = vmatprep.subr.mxu0 0.0
    %7298 = vmatpush1.msra.mxu0 0.0
    %7299 = vmatprep.subr.mxu0 0.0
    %7300 = vmatpush1.msra.mxu0 0.0
    %7301 = vmatprep.subr.mxu0 0.0
    %7302 = vmatpush1.msra.mxu0 0.0
    %7303 = vmatprep.subr.mxu0 0.0
    %7304 = vmatpush1.msra.mxu0 0.0
    %7305 = vmatprep.subr.mxu0 0.0
    %7306 = vmatpush1.msra.mxu0 0.0
    %7307 = vmatprep.subr.mxu0 0.0
    %7308 = vmatpush1.msra.mxu0 %v7287
    %7309 = vmatprep.subr.mxu0 0.0
    %7310 = vmatpush1.msra.mxu0 %v7286
    %7311 = vmatprep.subr.mxu0 0.0
    %7312 = vmatpush1.msra.mxu0 %v7285
    %7313 = vmatprep.subr.mxu0 0.0
    %7314 = vmatpush1.msra.mxu0 %v7284
    %7315 = vmatprep.subr.mxu0 0.0
    %7316 = vmatpush1.msra.mxu0 %v7283
    %7317 = vmatprep.subr.mxu0 0.0
    %7318 = vmatpush1.msra.mxu0 %v7282
    %7319 = vmatprep.subr.mxu0 0.0
    %7320 = vmatpush1.msra.mxu0 %v7281
    %7321 = vmatprep.subr.mxu0 0.0
    %7322 = vmatpush1.msra.mxu0 %v7280
    %7323 = vmatprep.subr.mxu0 0.0
    %7324 = vmatpush2.msra.mxu0 0.0
    %7325 = vmatprep.subr.mxu0 0.0
    %7326 = vmatpush2.msra.mxu0 0.0
    %7327 = vmatprep.subr.mxu0 0.0
    %7328 = vmatpush2.msra.mxu0 0.0
    %7329 = vmatprep.subr.mxu0 0.0
    %7330 = vmatpush2.msra.mxu0 0.0
    %7331 = vmatprep.subr.mxu0 0.0
    %7332 = vmatpush2.msra.mxu0 0.0
    %7333 = vmatprep.subr.mxu0 0.0
    %7334 = vmatpush2.msra.mxu0 0.0
    %7335 = vmatprep.subr.mxu0 0.0
    %7336 = vmatpush2.msra.mxu0 0.0
    %7337 = vmatprep.subr.mxu0 0.0
    %7338 = vmatpush2.msra.mxu0 0.0
    %7339 = vmatprep.subr.mxu0 0.0
    %7340 = vmatpush2.msra.mxu0 0.0
    %7341 = vmatprep.subr.mxu0 0.0
    %7342 = vmatpush2.msra.mxu0 0.0
    %7343 = vmatprep.subr.mxu0 0.0
    %7344 = vmatpush2.msra.mxu0 0.0
    %7345 = vmatprep.subr.mxu0 0.0
    %7346 = vmatpush2.msra.mxu0 0.0
    %7347 = vmatprep.subr.mxu0 0.0
    %7348 = vmatpush2.msra.mxu0 0.0
    %7349 = vmatprep.subr.mxu0 0.0
    %7350 = vmatpush2.msra.mxu0 0.0
    %7351 = vmatprep.subr.mxu0 0.0
    %7352 = vmatpush2.msra.mxu0 0.0
    %7353 = vmatprep.subr.mxu0 0.0
    %7354 = vmatpush2.msra.mxu0 0.0
    %7355 = vmatprep.mubr.f32.mxu0 0.0
    %7356 = vmatmul.mubr.f32.gmra.mxu0 %v7289
    %v7357 = vpop.f32.mrf.mxu0
    %v7358 = vadd.f32 0.0, %v7357
    %v7359 = vpop.f32.mrf.mxu0
    %7360 = vdwg.mxu0
    %v7361 = vadd.f32 %v7279, %v7358
    %v7362 = vmul.f32 %v7361, %v64
    %v7363 = vadd.f32 %v7362, %v50
    %7364 = vst [vmem:[#allocation5] sm:$0xff] %v7363
    // Predicated region
    $region34: #{timellm_forward.1} parent=1 // pred_check
      _
    $region35: #{timellm_forward.1} parent=1 // pred_check_branch
      %7366 = sbr.rel (0) target = $region37
    $region36: #{timellm_forward.1} parent=1 // pred_region
      %s7368 = ssub.s32 128, 128
      %7369 = vsyncadd [#allocation4], %s7368
      %s7371 = sshll.u32 [#allocation5], 4
      %s7372 = int_to_ptr.vmem [resolvable:$true] %s7371
      %7374 = dma.vmem_to_hbm [thread:$0]  %s7372, 128, %s7, [#allocation4]
    $region37: #{timellm_forward.1} parent=1 // pred_fallthru
      _
    // Predicated region
    $region38: #{timellm_forward.1} parent=1 // pred_check
      _
    $region39: #{timellm_forward.1} parent=1 // pred_check_branch
      %7376 = sbr.rel (0) target = $region41
    $region40: #{timellm_forward.1} parent=1 // pred_region
      %7377 = dma.done [#allocation4], 128
    $region41: #{timellm_forward.1} parent=1 // pred_fallthru
      _
    %7378 = vsyncpa [#allocation3], 1
    %7379 = vsyncpa [#allocation4], 1

</llo_original>
